<compile_context>
chip_gen: v5e
topology: v5e:2x2
jax: 0.10.0
libtpu: 0.0.40
codegen_flags: <defaults>
</compile_context>

<pallas_src>
import functools

import jax
import jax.numpy as jnp
from jax.experimental import pallas as pl
from jax.experimental.pallas import tpu as pltpu


# ---------------------------------------------------------------------------
# Per-generation defaults (review items 6/7)
# ---------------------------------------------------------------------------

@functools.lru_cache(maxsize=None)
def _device_defaults():
    """(block_images, vmem_limit_bytes) picked from the TPU generation."""
    kind = ""
    try:
        kind = jax.devices()[0].device_kind.lower()
    except Exception:
        pass
    is_v7 = ("v7" in kind) or ("tpu7" in kind)
    if (not is_v7) and any(g in kind for g in ("v4", "v5", "v6")):
        # 128 MiB physical VMEM: bigger image blocks amortize per-layer weight
        # streaming and per-step overhead.
        return 8, 96 * 1024 * 1024
    # v7x (64 MiB per core) or unknown: conservative block size + VMEM budget.
    return 4, 52 * 1024 * 1024


def _default_block_images():
    return _device_defaults()[0]


def _vmem_limit():
    return _device_defaults()[1]


# ---------------------------------------------------------------------------
# In-kernel helpers
# ---------------------------------------------------------------------------

def _gelu(x):
    # TODO(synk): PyTorch nn.GELU() default is the exact erf form; the tanh
    # approximation is used here (guaranteed Mosaic lowering, max abs err ~3e-4).
    return jax.nn.gelu(x, approximate=True)


def _layernorm(x, gamma, beta, eps):
    # float32 statistics (x is float32 here).
    mu = jnp.mean(x, axis=-1, keepdims=True)
    var = jnp.mean(jnp.square(x - mu), axis=-1, keepdims=True)
    return (x - mu) * jax.lax.rsqrt(var + eps) * gamma + beta


_NT_DIMS = (((1,), (1,)), ((), ()))   # A @ B.T contraction (flash-attention style)


# ---------------------------------------------------------------------------
# Pallas kernels
# ---------------------------------------------------------------------------

def _token_embed_kernel(x_ref, w_ref, b_ref, pos_ref, cls_ref, o_ref, *, gelu):
    """Patch/phi projection + pos-embedding + fused CLS prepend for T images.

    x_ref: (T, N, K) bf16, w_ref: (K, D) bf16, b_ref: (1, D) f32,
    pos_ref: (N, D) f32 (rows 1..N of the pos table),
    cls_ref: (1, D) f32 (class_token + pos row 0),
    o_ref: (T, N+1, D) bf16 with row 0 = CLS.
    """
    w = w_ref[...]
    b = b_ref[...]
    pos = pos_ref[...]
    cls_row = cls_ref[...]
    for t in range(x_ref.shape[0]):
        xt = x_ref[t]                                                     # (N, K) bf16
        tok = jnp.dot(xt, w, preferred_element_type=jnp.float32) + b      # (N, D) f32
        if gelu:
            tok = _gelu(tok)
        tok = tok + pos
        o_ref[t] = jnp.concatenate([cls_row, tok], axis=0).astype(o_ref.dtype)


def _vit_encoder_kernel(x_ref,
                        ln1_ref, wqkv_ref, bqkv_ref, wo_ref, bo_ref,
                        ln2_ref, w1_ref, b1_ref, w2_ref, b2_ref,
                        lnf_g_ref, lnf_b_ref,
                        o_ref, tok_ref,
                        *, num_heads, head_dim, seq, eps):
    """One fused pre-LN transformer encoder layer, iterated over the layer grid axis.

    grid = (image_blocks, num_layers). The residual stream for the current block of
    T images is held FLATTENED as a (T*S, D) f32 VMEM scratch across the layer axis,
    so the QKV / output-projection / MLP matmuls see M = T*S (MXU-friendly).
    Matmuls are bf16 x bf16 -> f32; LN / softmax / residuals are float32.
    The 1/sqrt(head_dim) scale is already folded into the Q part of wqkv/bqkv.
    Only the CLS token (final-LayerNorm'ed) is written to HBM in the last layer.
    """
    layer = pl.program_id(1)
    T = x_ref.shape[0]
    D = tok_ref.shape[1]

    # First layer for this image block: flatten the (T, S, D) bf16 input into the
    # f32 residual scratch (per-image row stores keep blocks sublane-legal).
    @pl.when(layer == 0)
    def _():
        for t in range(T):
            tok_ref[pl.ds(t * seq, seq), :] = x_ref[t].astype(jnp.float32)

    ln1 = ln1_ref[0]          # (2, D): row 0 = gamma, row 1 = beta
    ln2 = ln2_ref[0]
    wqkv = wqkv_ref[0]        # (D, 3D) bf16
    bqkv = bqkv_ref[0]        # (1, 3D) f32
    wo = wo_ref[0]
    bo = bo_ref[0]
    w1 = w1_ref[0]
    b1 = b1_ref[0]
    w2 = w2_ref[0]
    b2 = b2_ref[0]

    # ---- attention block ----
    x = tok_ref[...]                                                      # (T*S, D) f32
    h = _layernorm(x, ln1[0:1], ln1[1:2], eps).astype(jnp.bfloat16)
    qkv = (jnp.dot(h, wqkv, preferred_element_type=jnp.float32) + bqkv
           ).astype(jnp.bfloat16)                                         # (T*S, 3D)

    attn_rows = []
    for t in range(T):
        r0 = t * seq
        q_t = qkv[r0:r0 + seq, 0:D]
        k_t = qkv[r0:r0 + seq, D:2 * D]
        v_t = qkv[r0:r0 + seq, 2 * D:3 * D]
        heads = []
        for hh in range(num_heads):
            c0 = hh * head_dim
            qh = q_t[:, c0:c0 + head_dim]
            kh = k_t[:, c0:c0 + head_dim]
            vh = v_t[:, c0:c0 + head_dim]
            s = jax.lax.dot_general(qh, kh, _NT_DIMS,
                                    preferred_element_type=jnp.float32)   # (S, S) f32
            s = s - jnp.max(s, axis=-1, keepdims=True)
            p = jnp.exp(s)
            p = p * pl.reciprocal(jnp.sum(p, axis=-1, keepdims=True), approx=True)
            heads.append(jnp.dot(p.astype(jnp.bfloat16), vh,
                                 preferred_element_type=jnp.float32))     # (S, Dh) f32
        attn_rows.append(jnp.concatenate(heads, axis=-1).astype(jnp.bfloat16))
    attn = jnp.concatenate(attn_rows, axis=0)                             # (T*S, D) bf16

    x = x + jnp.dot(attn, wo, preferred_element_type=jnp.float32) + bo    # residual 1

    # ---- MLP block ----
    h2 = _layernorm(x, ln2[0:1], ln2[1:2], eps).astype(jnp.bfloat16)
    m = _gelu(jnp.dot(h2, w1, preferred_element_type=jnp.float32) + b1)
    m = m.astype(jnp.bfloat16)
    x = x + jnp.dot(m, w2, preferred_element_type=jnp.float32) + b2       # residual 2
    tok_ref[...] = x

    # Last layer: apply the final LayerNorm to the CLS rows only and emit (T, 1, D).
    @pl.when(layer == pl.num_programs(1) - 1)
    def _():
        g = lnf_g_ref[...]
        b = lnf_b_ref[...]
        for t in range(T):
            cls = tok_ref[pl.ds(t * seq, 1), :]                           # (1, D)
            o_ref[t] = _layernorm(cls, g, b, eps)


# ---------------------------------------------------------------------------
# Pallas wrappers
# ---------------------------------------------------------------------------

def _pick_block(n, max_block):
    """Largest divisor of n that is <= max_block (images per grid step)."""
    t = max(1, min(max_block, n))
    while n % t:
        t -= 1
    return t


def pallas_token_embed(x, w, b, pos, cls_row, *, gelu, block):
    """x: (G, N, K) bf16 -> (G, N+1, D) bf16 tokens with CLS in row 0."""
    G, N, K = x.shape
    D = w.shape[1]
    S = N + 1
    kernel = functools.partial(_token_embed_kernel, gelu=gelu)
    return pl.pallas_call(
        kernel,
        out_shape=jax.ShapeDtypeStruct((G, S, D), jnp.bfloat16),
        grid=(G // block,),
        in_specs=[pl.BlockSpec((block, N, K), lambda i: (i, 0, 0)),
                  pl.BlockSpec((K, D), lambda i: (0, 0)),
                  pl.BlockSpec((1, D), lambda i: (0, 0)),
                  pl.BlockSpec((N, D), lambda i: (0, 0)),
                  pl.BlockSpec((1, D), lambda i: (0, 0))],
        out_specs=pl.BlockSpec((block, S, D), lambda i: (i, 0, 0)),
        compiler_params=pltpu.CompilerParams(
            dimension_semantics=("parallel",),
            vmem_limit_bytes=_vmem_limit()),
    )(x, w, b, pos, cls_row)


def pallas_vit_encoder(tok, p, *, num_heads, block, eps=1e-6):
    """Entire encoder stack in one pallas_call: grid = (image_blocks, num_layers).

    tok: (G, S, D) bf16 tokens (row 0 = CLS). Returns CLS features (G, 1, D) f32
    with the final LayerNorm already applied.
    """
    G, S, D = tok.shape
    L = p["wqkv"].shape[0]
    M = p["w1"].shape[-1]
    kernel = functools.partial(_vit_encoder_kernel, num_heads=num_heads,
                               head_dim=D // num_heads, seq=S, eps=eps)

    def lw(*shape):
        # Per-layer stacked parameter: block index follows the layer grid axis.
        return pl.BlockSpec((1,) + shape, lambda i, l: (l, 0, 0))

    return pl.pallas_call(
        kernel,
        out_shape=jax.ShapeDtypeStruct((G, 1, D), jnp.float32),
        grid=(G // block, L),
        in_specs=[pl.BlockSpec((block, S, D), lambda i, l: (i, 0, 0)),
                  lw(2, D),                       # ln1 (gamma; beta)
                  lw(D, 3 * D), lw(1, 3 * D),     # fused wqkv, bqkv (Q scale folded)
                  lw(D, D), lw(1, D),             # wo, bo
                  lw(2, D),                       # ln2 (gamma; beta)
                  lw(D, M), lw(1, M),             # fc1
                  lw(M, D), lw(1, D),             # fc2
                  pl.BlockSpec((1, D), lambda i, l: (0, 0)),   # final LN gamma
                  pl.BlockSpec((1, D), lambda i, l: (0, 0))],  # final LN beta
        out_specs=pl.BlockSpec((block, 1, D), lambda i, l: (i, 0, 0)),
        scratch_shapes=[pltpu.VMEM((block * S, D), jnp.float32)],
        compiler_params=pltpu.CompilerParams(
            dimension_semantics=("parallel", "arbitrary"),
            vmem_limit_bytes=_vmem_limit()),
    )(tok,
      p["ln1"], p["wqkv"], p["bqkv"], p["wo"], p["bo"],
      p["ln2"], p["w1"], p["b1"], p["w2"], p["b2"],
      p["ln_f_g"], p["ln_f_b"])


# ---------------------------------------------------------------------------
# ViT (torchvision-style, eval mode: dropout = identity)
# ---------------------------------------------------------------------------

def init_vit_params(key, *, num_layers, hidden, mlp, num_tokens, num_heads,
                    proj_in, proj_gelu, std=0.02):
    """Random-init parameters laid out for the fused kernels.

    Matmul weights are bfloat16 (MXU inputs) with wq/wk/wv fused into one (L, D, 3D)
    tensor; biases / LayerNorm params / class token / pos embeddings stay float32.
    The 1/sqrt(head_dim) attention scale is folded into the Q third of wqkv (and
    would be folded into the Q bias for a real checkpoint; biases are zero here).
    """
    head_dim = hidden // num_heads
    scale = 1.0 / float(head_dim) ** 0.5
    seq = num_tokens + 1
    k = jax.random.split(key, 9)

    def nrm(kk, shape):
        return jax.random.normal(kk, shape, jnp.float32) * std

    L = num_layers
    wq = nrm(k[3], (L, hidden, hidden)) * scale
    wk = nrm(k[4], (L, hidden, hidden))
    wv = nrm(k[5], (L, hidden, hidden))
    ln_ones = jnp.ones((L, 1, hidden), jnp.float32)
    ln_zeros = jnp.zeros((L, 1, hidden), jnp.float32)
    return {
        "num_heads": num_heads,
        "proj_gelu": proj_gelu,
        "proj_w": nrm(k[0], (proj_in, hidden)).astype(jnp.bfloat16),
        "proj_b": jnp.zeros((1, hidden), jnp.float32),
        "class_token": nrm(k[1], (1, hidden)),
        "pos_embedding": nrm(k[2], (seq, hidden)),
        "ln_f_g": jnp.ones((1, hidden), jnp.float32),
        "ln_f_b": jnp.zeros((1, hidden), jnp.float32),
        # Stacked per-layer parameters (layer axis leading -> streamed by BlockSpec).
        "ln1": jnp.concatenate([ln_ones, ln_zeros], axis=1),          # (L, 2, D)
        "wqkv": jnp.concatenate([wq, wk, wv], axis=-1).astype(jnp.bfloat16),
        "bqkv": jnp.zeros((L, 1, 3 * hidden), jnp.float32),
        "wo": nrm(k[6], (L, hidden, hidden)).astype(jnp.bfloat16),
        "bo": jnp.zeros((L, 1, hidden), jnp.float32),
        "ln2": jnp.concatenate([ln_ones, ln_zeros], axis=1),          # (L, 2, D)
        "w1": nrm(k[7], (L, hidden, mlp)).astype(jnp.bfloat16),
        "b1": jnp.zeros((L, 1, mlp), jnp.float32),
        "w2": nrm(k[8], (L, mlp, hidden)).astype(jnp.bfloat16),
        "b2": jnp.zeros((L, 1, hidden), jnp.float32),
    }


def vit_forward(tokens, p, *, block_images):
    """tokens: (G, N, proj_in) bf16 raw pre-projection tokens -> CLS features (G, D) f32."""
    G, N, _ = tokens.shape
    D = p["proj_w"].shape[1]
    T = _pick_block(G, block_images)

    # conv_proj / phi projection + positional embedding + fused CLS prepend.
    cls_row = p["class_token"] + p["pos_embedding"][:1]                   # (1, D) f32
    tok = pallas_token_embed(tokens, p["proj_w"], p["proj_b"],
                             p["pos_embedding"][1:], cls_row,
                             gelu=p["proj_gelu"], block=T)                # (G, S, D) bf16

    # Whole encoder stack (+ final LayerNorm on CLS) in one fused pallas_call.
    cls = pallas_vit_encoder(tok, p, num_heads=p["num_heads"], block=T)   # (G, 1, D) f32
    return cls.reshape(G, D)


# ---------------------------------------------------------------------------
# RegionLevelHIPTFeatureExtractor.forward
# ---------------------------------------------------------------------------

def init_region_hipt_params(key, *, grid_size, patch_img=256, patch_size=16,
                            patch_hidden=384, patch_mlp=1536, patch_layers=12, patch_heads=6,
                            region_hidden=192, region_mlp=768, region_layers=6, region_heads=6):
    # TODO(synk): pretrained HIPT checkpoint loading is not reproduced; parameters are
    # random-initialized with the same shapes/layout a converted checkpoint would use.
    k1, k2 = jax.random.split(key)
    return {
        "patch_img": patch_img,
        "patch_size": patch_size,
        # Conv2d(3, 384, 16, stride=16) as im2col + matmul (weight in (c, kh, kw) order).
        "patch_vit": init_vit_params(
            k1, num_layers=patch_layers, hidden=patch_hidden, mlp=patch_mlp,
            num_tokens=(patch_img // patch_size) ** 2, num_heads=patch_heads,
            proj_in=3 * patch_size * patch_size, proj_gelu=False),
        # phi = flatten+transpose -> Linear(384, 192) -> GELU -> transpose.
        "region_vit": init_vit_params(
            k2, num_layers=region_layers, hidden=region_hidden, mlp=region_mlp,
            num_tokens=grid_size * grid_size, num_heads=region_heads,
            proj_in=patch_hidden, proj_gelu=True),
    }


def region_level_hipt_forward(x, params, *, block_images=None):
    """x: (B, 3, H, W) NCHW (reference: H = W = 4096) -> (B, 192)."""
    if block_images is None:
        block_images = _default_block_images()
    B, C, H, W = x.shape
    P = params["patch_img"]
    pp = params["patch_size"]
    gh, gw = H // P, W // P                  # region grid (reference hard-codes 16x16)

    # Cast to bf16 before the unfold/transpose chains: halves the pure data movement
    # of the im2col pipeline; the kernels cast to bf16 for the MXU anyway.
    xb = x.astype(jnp.bfloat16)

    # x.unfold(2, P, P).unfold(3, P, P); rearrange 'b c h w p q -> (b h w) c p q'
    imgs = (xb.reshape(B, C, gh, P, gw, P)
              .transpose(0, 2, 4, 1, 3, 5)
              .reshape(B * gh * gw, C, P, P))

    # ---- patch-level ViT-S/16 ----
    n = imgs.shape[0]
    nh = nw = P // pp
    patches = (imgs.reshape(n, C, nh, pp, nw, pp)
                   .transpose(0, 2, 4, 1, 3, 5)
                   .reshape(n, nh * nw, C * pp * pp))        # im2col, (c, kh, kw) order
    patch_feat = vit_forward(patches, params["patch_vit"],
                             block_images=block_images)      # (n, 384) f32

    # rearrange '(b h w) c -> b c h w' followed by phi's flatten(2,3).transpose(1,2)
    # round-trips to a (B, gh*gw, 384) token tensor in the same row-major order,
    # so the pair of permutes collapses to a single reshape.
    Dp = patch_feat.shape[-1]
    region_in = patch_feat.reshape(B, gh * gw, Dp).astype(jnp.bfloat16)

    # ---- region-level ViT ----
    region_feat = vit_forward(region_in, params["region_vit"],
                              block_images=block_images)     # (B, 192)
    return region_feat


# ---------------------------------------------------------------------------

if __name__ == "__main__":
    # Small demo: real HIPT widths/depths, 2x2 region grid instead of 16x16
    # (reference input (B, 3, 4096, 4096) -> demo input (2, 3, 512, 512)).
    GRID = 2
    B = 2
    key = jax.random.PRNGKey(0)
    pkey, xkey = jax.random.split(key)
    params = init_region_hipt_params(pkey, grid_size=GRID)
    x = jax.random.normal(xkey, (B, 3, GRID * 256, GRID * 256), jnp.float32)

    out = region_level_hipt_forward(x, params)
    out = jax.block_until_ready(out)
    assert out.shape == (B, 192), out.shape
    assert bool(jnp.all(jnp.isfinite(out)))
    print("KERNEL_OK")
</pallas_src>

<mosaic_0001>
module attributes {stable_mosaic.version = 11 : i64} {
  func.func @_token_embed_kernel(%arg0: i32, %arg1: memref<4x256x768xbf16, #tpu.memory_space<vmem>>, %arg2: memref<768x384xbf16, #tpu.memory_space<vmem>>, %arg3: memref<1x384xf32, #tpu.memory_space<vmem>>, %arg4: memref<256x384xf32, #tpu.memory_space<vmem>>, %arg5: memref<1x384xf32, #tpu.memory_space<vmem>>, %arg6: memref<4x257x384xbf16, #tpu.memory_space<vmem>>) attributes {dimension_semantics = [#tpu.dimension_semantics<parallel>], iteration_bounds = array<i64: 2>, scalar_prefetch = 0 : i64, scratch_operands = 0 : i64, tpu.core_type = #tpu.core_type<tc>, window_params = [{transform_indices = @transform_0, window_bounds = array<i64: 4, 256, 768>}, {pipeline_mode = #tpu.pipeline_mode<synchronous>, transform_indices = @transform_1, window_bounds = array<i64: 768, 384>}, {pipeline_mode = #tpu.pipeline_mode<synchronous>, transform_indices = @transform_2, window_bounds = array<i64: 1, 384>}, {pipeline_mode = #tpu.pipeline_mode<synchronous>, transform_indices = @transform_3, window_bounds = array<i64: 256, 384>}, {pipeline_mode = #tpu.pipeline_mode<synchronous>, transform_indices = @transform_4, window_bounds = array<i64: 1, 384>}, {transform_indices = @transform_5, window_bounds = array<i64: 4, 257, 384>}]} {
    %c0 = arith.constant 0 : index
    %c0_0 = arith.constant 0 : index
    %0 = vector.load %arg2[%c0, %c0_0] : memref<768x384xbf16, #tpu.memory_space<vmem>>, vector<768x384xbf16>
    %c0_1 = arith.constant 0 : index
    %c0_2 = arith.constant 0 : index
    %1 = vector.load %arg3[%c0_1, %c0_2] : memref<1x384xf32, #tpu.memory_space<vmem>>, vector<1x384xf32>
    %c0_3 = arith.constant 0 : index
    %c0_4 = arith.constant 0 : index
    %2 = vector.load %arg4[%c0_3, %c0_4] : memref<256x384xf32, #tpu.memory_space<vmem>>, vector<256x384xf32>
    %c0_5 = arith.constant 0 : index
    %c0_6 = arith.constant 0 : index
    %3 = vector.load %arg5[%c0_5, %c0_6] : memref<1x384xf32, #tpu.memory_space<vmem>>, vector<1x384xf32>
    %c0_7 = arith.constant 0 : index
    %c0_8 = arith.constant 0 : index
    %c0_9 = arith.constant 0 : index
    %4 = vector.load %arg1[%c0_7, %c0_8, %c0_9] : memref<4x256x768xbf16, #tpu.memory_space<vmem>>, vector<1x256x768xbf16>
    %5 = vector.shape_cast %4 : vector<1x256x768xbf16> to vector<256x768xbf16>
    %cst = arith.constant dense<0.000000e+00> : vector<256x384xf32>
    %6 = tpu.matmul %5, %0, %cst {dimension_numbers = #tpu.dot_dimension_numbers<[1], [0], [0], [1], [0, 0, 1, 1], [], []>} : vector<256x768xbf16>, vector<768x384xbf16>, vector<256x384xf32> -> vector<256x384xf32>
    %7 = vector.broadcast %1 : vector<1x384xf32> to vector<256x384xf32>
    %8 = arith.addf %6, %7 : vector<256x384xf32>
    %9 = arith.addf %8, %2 : vector<256x384xf32>
    %10 = tpu.concatenate %3, %9 in 0 : vector<1x384xf32>, vector<256x384xf32> -> vector<257x384xf32>
    %11 = arith.truncf %10 : vector<257x384xf32> to vector<257x384xbf16>
    %c0_10 = arith.constant 0 : index
    %c0_11 = arith.constant 0 : index
    %c0_12 = arith.constant 0 : index
    %12 = vector.load %arg6[%c0_10, %c0_11, %c0_12] : memref<4x257x384xbf16, #tpu.memory_space<vmem>>, vector<1x257x384xbf16>
    %13 = vector.shape_cast %12 : vector<1x257x384xbf16> to vector<257x384xbf16>
    %14 = vector.shape_cast %11 : vector<257x384xbf16> to vector<1x257x384xbf16>
    tpu.vector_store %arg6[%c0_10, %c0_11, %c0_12], %14 {strides = array<i32>} : memref<4x257x384xbf16, #tpu.memory_space<vmem>>, vector<1x257x384xbf16>,
    %c1 = arith.constant 1 : index
    %c0_13 = arith.constant 0 : index
    %c0_14 = arith.constant 0 : index
    %15 = vector.load %arg1[%c1, %c0_13, %c0_14] : memref<4x256x768xbf16, #tpu.memory_space<vmem>>, vector<1x256x768xbf16>
    %16 = vector.shape_cast %15 : vector<1x256x768xbf16> to vector<256x768xbf16>
    %cst_15 = arith.constant dense<0.000000e+00> : vector<256x384xf32>
    %17 = tpu.matmul %16, %0, %cst_15 {dimension_numbers = #tpu.dot_dimension_numbers<[1], [0], [0], [1], [0, 0, 1, 1], [], []>} : vector<256x768xbf16>, vector<768x384xbf16>, vector<256x384xf32> -> vector<256x384xf32>
    %18 = vector.broadcast %1 : vector<1x384xf32> to vector<256x384xf32>
    %19 = arith.addf %17, %18 : vector<256x384xf32>
    %20 = arith.addf %19, %2 : vector<256x384xf32>
    %21 = tpu.concatenate %3, %20 in 0 : vector<1x384xf32>, vector<256x384xf32> -> vector<257x384xf32>
    %22 = arith.truncf %21 : vector<257x384xf32> to vector<257x384xbf16>
    %c1_16 = arith.constant 1 : index
    %c0_17 = arith.constant 0 : index
    %c0_18 = arith.constant 0 : index
    %23 = vector.load %arg6[%c1_16, %c0_17, %c0_18] : memref<4x257x384xbf16, #tpu.memory_space<vmem>>, vector<1x257x384xbf16>
    %24 = vector.shape_cast %23 : vector<1x257x384xbf16> to vector<257x384xbf16>
    %25 = vector.shape_cast %22 : vector<257x384xbf16> to vector<1x257x384xbf16>
    tpu.vector_store %arg6[%c1_16, %c0_17, %c0_18], %25 {strides = array<i32>} : memref<4x257x384xbf16, #tpu.memory_space<vmem>>, vector<1x257x384xbf16>,
    %c2 = arith.constant 2 : index
    %c0_19 = arith.constant 0 : index
    %c0_20 = arith.constant 0 : index
    %26 = vector.load %arg1[%c2, %c0_19, %c0_20] : memref<4x256x768xbf16, #tpu.memory_space<vmem>>, vector<1x256x768xbf16>
    %27 = vector.shape_cast %26 : vector<1x256x768xbf16> to vector<256x768xbf16>
    %cst_21 = arith.constant dense<0.000000e+00> : vector<256x384xf32>
    %28 = tpu.matmul %27, %0, %cst_21 {dimension_numbers = #tpu.dot_dimension_numbers<[1], [0], [0], [1], [0, 0, 1, 1], [], []>} : vector<256x768xbf16>, vector<768x384xbf16>, vector<256x384xf32> -> vector<256x384xf32>
    %29 = vector.broadcast %1 : vector<1x384xf32> to vector<256x384xf32>
    %30 = arith.addf %28, %29 : vector<256x384xf32>
    %31 = arith.addf %30, %2 : vector<256x384xf32>
    %32 = tpu.concatenate %3, %31 in 0 : vector<1x384xf32>, vector<256x384xf32> -> vector<257x384xf32>
    %33 = arith.truncf %32 : vector<257x384xf32> to vector<257x384xbf16>
    %c2_22 = arith.constant 2 : index
    %c0_23 = arith.constant 0 : index
    %c0_24 = arith.constant 0 : index
    %34 = vector.load %arg6[%c2_22, %c0_23, %c0_24] : memref<4x257x384xbf16, #tpu.memory_space<vmem>>, vector<1x257x384xbf16>
    %35 = vector.shape_cast %34 : vector<1x257x384xbf16> to vector<257x384xbf16>
    %36 = vector.shape_cast %33 : vector<257x384xbf16> to vector<1x257x384xbf16>
    tpu.vector_store %arg6[%c2_22, %c0_23, %c0_24], %36 {strides = array<i32>} : memref<4x257x384xbf16, #tpu.memory_space<vmem>>, vector<1x257x384xbf16>,
    %c3 = arith.constant 3 : index
    %c0_25 = arith.constant 0 : index
    %c0_26 = arith.constant 0 : index
    %37 = vector.load %arg1[%c3, %c0_25, %c0_26] : memref<4x256x768xbf16, #tpu.memory_space<vmem>>, vector<1x256x768xbf16>
    %38 = vector.shape_cast %37 : vector<1x256x768xbf16> to vector<256x768xbf16>
    %cst_27 = arith.constant dense<0.000000e+00> : vector<256x384xf32>
    %39 = tpu.matmul %38, %0, %cst_27 {dimension_numbers = #tpu.dot_dimension_numbers<[1], [0], [0], [1], [0, 0, 1, 1], [], []>} : vector<256x768xbf16>, vector<768x384xbf16>, vector<256x384xf32> -> vector<256x384xf32>
    %40 = vector.broadcast %1 : vector<1x384xf32> to vector<256x384xf32>
    %41 = arith.addf %39, %40 : vector<256x384xf32>
    %42 = arith.addf %41, %2 : vector<256x384xf32>
    %43 = tpu.concatenate %3, %42 in 0 : vector<1x384xf32>, vector<256x384xf32> -> vector<257x384xf32>
    %44 = arith.truncf %43 : vector<257x384xf32> to vector<257x384xbf16>
    %c3_28 = arith.constant 3 : index
    %c0_29 = arith.constant 0 : index
    %c0_30 = arith.constant 0 : index
    %45 = vector.load %arg6[%c3_28, %c0_29, %c0_30] : memref<4x257x384xbf16, #tpu.memory_space<vmem>>, vector<1x257x384xbf16>
    %46 = vector.shape_cast %45 : vector<1x257x384xbf16> to vector<257x384xbf16>
    %47 = vector.shape_cast %44 : vector<257x384xbf16> to vector<1x257x384xbf16>
    tpu.vector_store %arg6[%c3_28, %c0_29, %c0_30], %47 {strides = array<i32>} : memref<4x257x384xbf16, #tpu.memory_space<vmem>>, vector<1x257x384xbf16>,
    return
  }
  func.func @transform_0(%arg0: i32) -> (i32, i32, i32) {
    %c0_i32 = arith.constant 0 : i32
    %c0_i32_0 = arith.constant 0 : i32
    %c0_i32_1 = arith.constant 0 : i32
    return %arg0, %c0_i32, %c0_i32_0 : i32, i32, i32
  }
  func.func @transform_1(%arg0: i32) -> (i32, i32) {
    %c0_i32 = arith.constant 0 : i32
    %c0_i32_0 = arith.constant 0 : i32
    %c0_i32_1 = arith.constant 0 : i32
    return %c0_i32, %c0_i32_0 : i32, i32
  }
  func.func @transform_2(%arg0: i32) -> (i32, i32) {
    %c0_i32 = arith.constant 0 : i32
    %c0_i32_0 = arith.constant 0 : i32
    %c0_i32_1 = arith.constant 0 : i32
    return %c0_i32, %c0_i32_0 : i32, i32
  }
  func.func @transform_3(%arg0: i32) -> (i32, i32) {
    %c0_i32 = arith.constant 0 : i32
    %c0_i32_0 = arith.constant 0 : i32
    %c0_i32_1 = arith.constant 0 : i32
    return %c0_i32, %c0_i32_0 : i32, i32
  }
  func.func @transform_4(%arg0: i32) -> (i32, i32) {
    %c0_i32 = arith.constant 0 : i32
    %c0_i32_0 = arith.constant 0 : i32
    %c0_i32_1 = arith.constant 0 : i32
    return %c0_i32, %c0_i32_0 : i32, i32
  }
  func.func @transform_5(%arg0: i32) -> (i32, i32, i32) {
    %c0_i32 = arith.constant 0 : i32
    %c0_i32_0 = arith.constant 0 : i32
    %c0_i32_1 = arith.constant 0 : i32
    return %arg0, %c0_i32, %c0_i32_0 : i32, i32, i32
  }
}

</mosaic_0001>

<llo_original>
// kernel: tpu_custom_call.1
$region0: #{tpu_custom_call.1}
  #allocation0 [shape = 'u32[]', space=smem, size = 0x4, offset = 0x4, fixed_abs, tag = 'smem constant byte address 0x4 - core index']
  #allocation1 [shape = 'u32[72,128]{1,0:T(1,128)}', space=vmem, size = 0x9000, scoped, tag = 'internal scratch']
  %s0 = inlined_call_operand.hbm [shape: bf16[8,256,768], index: 0, kind: input, shape index: {}]
  %s1 = inlined_call_operand.hbm [shape: bf16[768,384], index: 1, kind: input, shape index: {}]
  %s2 = inlined_call_operand.hbm [shape: f32[1,384], index: 2, kind: input, shape index: {}]
  %s3 = inlined_call_operand.hbm [shape: f32[256,384], index: 3, kind: input, shape index: {}]
  %s4 = inlined_call_operand.hbm [shape: f32[1,384], index: 4, kind: input, shape index: {}]
  %s5 = inlined_call_operand.vmem [shape: bf16[8,257,384], index: 5, kind: output, shape index: {}]
  %s6 = sld [smem:[#allocation0]]
  $region73: #{tpu_custom_call.1} parent=0
    _
  %s8 = ssub.s32 1, %s6
  %s9 = scalar_select 0, %s8, %s6
  $region1: #{tpu_custom_call.1} parent=0
    #allocation2 [shape = 'u8[3145728]{0}', space=vmem, size = 0x300000, scoped, tag = 'input window, operand 0']
    #allocation3 [shape = 's32[2]{0}', space=sflag, size = 0x8, scoped, tag = 'scoped memory for tpu_custom_call.1']
    #allocation4 [shape = 'u8[589824]{0}', space=vmem, size = 0x90000, scoped, tag = 'input window, operand 1, single buffered']
    #allocation5 [shape = 's32[1]{0}', space=sflag, size = 0x4, scoped, tag = 'scoped memory for tpu_custom_call.1']
    #allocation6 [shape = 'u8[1536]{0}', space=vmem, size = 0x800, scoped, tag = 'input window, operand 2, single buffered']
    #allocation7 [shape = 'u8[393216]{0}', space=vmem, size = 0x60000, scoped, tag = 'input window, operand 3, single buffered']
    #allocation8 [shape = 's32[1]{0}', space=sflag, size = 0x4, scoped, tag = 'scoped memory for tpu_custom_call.1']
    #allocation9 [shape = 'u8[1536]{0}', space=vmem, size = 0x800, scoped, tag = 'input window, operand 4, single buffered']
    %10 = vsyncpa [#allocation3], 0
    %s11 = scalar_lea.sflag [#allocation3], 1
    %12 = vsyncpa %s11, 0
    %13 = vsyncpa [#allocation5], 0
    %14 = vsyncpa [#allocation8], 0
    loop: start=0, step=1, limit=4
    $region2: #{tpu_custom_call.1} parent=1 // loop_pre_header
      _
    $region3: #{tpu_custom_call.1} parent=1 // loop_header
      %s16 = sphi 0, %s20
      %p17 = scmp.ge.s32.totalorder %s16, 4
      %s26 = sphi 0, %s28
      %s29 = sphi 0, %s26
      %s30 = sphi 0, %s29
      %s46 = sphi 0, %s30
      %s50 = sphi 0, %s50
      %s52 = sphi 0, %s50
      %s53 = sphi 0, %s52
      %s67 = sphi 0, %s53
      %s71 = sphi 0, %s71
      %s73 = sphi 0, %s71
      %s74 = sphi 0, %s73
      %s88 = sphi 0, %s74
      %s92 = sphi 0, %s92
      %s94 = sphi 0, %s92
      %s95 = sphi 0, %s94
      %s109 = sphi 0, %s95
      %s113 = sphi 0, %s113
      %s115 = sphi 0, %s113
      %s116 = sphi 0, %s115
      %s130 = sphi 0, %s116
      %s136 = sphi 0, %s138
      %s139 = sphi 0, %s136
      %s140 = sphi 0, %s139
      %s156 = sphi 0, %s140
    $region4: #{tpu_custom_call.1} parent=1 // loop_header_branch
      %19 = sbr.rel (%p17) target = $region8
    $region5: #{tpu_custom_call.1} parent=1 // loop_body
      %s21 = ssub.s32 %s16, 1
      %s22 = ssub.s32 %s16, 2
      %s23 = sadd.s32 %s16, 1
      %s24 = ssub.s32 %s16, %s23
      %p25 = scmp.eq.s32.totalorder %s24, 0
      %s27 = sadd.s32 %s26, 1
      %s28 = scalar_select %p25, %s26, %s27
      %p31 = pneg %p25
      %p32 = scmp.eq.s32.totalorder %s16, 1
      %p33 = por %p31, %p32
      %p34 = scmp.ne.s32.totalorder %s26, %s29
      %p35 = scmp.eq.s32.totalorder %s16, 0
      %p36 = por %p34, %p35
      %p37 = scmp.ne.s32.totalorder %s26, %s29
      %p38 = scmp.eq.s32.totalorder %s21, 1
      %p39 = por %p37, %p38
      %p40 = scmp.ne.s32.totalorder %s29, %s30
      %p41 = scmp.eq.s32.totalorder %s21, 0
      %p42 = por %p40, %p41
      %p43 = scmp.ne.s32.totalorder %s29, %s30
      %p44 = scmp.eq.s32.totalorder %s22, 1
      %p45 = por %p43, %p44
      %p47 = scmp.ne.s32.totalorder %s30, %s46
      %p48 = scmp.eq.s32.totalorder %s22, 0
      %p49 = por %p47, %p48
      %s51 = sadd.s32 %s50, 1
      %p54 = scmp.eq.s32.totalorder %s16, 1
      %p55 = scmp.ne.s32.totalorder %s50, %s52
      %p56 = scmp.eq.s32.totalorder %s16, 0
      %p57 = por %p55, %p56
      %p58 = scmp.ne.s32.totalorder %s50, %s52
      %p59 = scmp.eq.s32.totalorder %s21, 1
      %p60 = por %p58, %p59
      %p61 = scmp.ne.s32.totalorder %s52, %s53
      %p62 = scmp.eq.s32.totalorder %s21, 0
      %p63 = por %p61, %p62
      %p64 = scmp.ne.s32.totalorder %s52, %s53
      %p65 = scmp.eq.s32.totalorder %s22, 1
      %p66 = por %p64, %p65
      %p68 = scmp.ne.s32.totalorder %s53, %s67
      %p69 = scmp.eq.s32.totalorder %s22, 0
      %p70 = por %p68, %p69
      %s72 = sadd.s32 %s71, 1
      %p75 = scmp.eq.s32.totalorder %s16, 1
      %p76 = scmp.ne.s32.totalorder %s71, %s73
      %p77 = scmp.eq.s32.totalorder %s16, 0
      %p78 = por %p76, %p77
      %p79 = scmp.ne.s32.totalorder %s71, %s73
      %p80 = scmp.eq.s32.totalorder %s21, 1
      %p81 = por %p79, %p80
      %p82 = scmp.ne.s32.totalorder %s73, %s74
      %p83 = scmp.eq.s32.totalorder %s21, 0
      %p84 = por %p82, %p83
      %p85 = scmp.ne.s32.totalorder %s73, %s74
      %p86 = scmp.eq.s32.totalorder %s22, 1
      %p87 = por %p85, %p86
      %p89 = scmp.ne.s32.totalorder %s74, %s88
      %p90 = scmp.eq.s32.totalorder %s22, 0
      %p91 = por %p89, %p90
      %s93 = sadd.s32 %s92, 1
      %p96 = scmp.eq.s32.totalorder %s16, 1
      %p97 = scmp.ne.s32.totalorder %s92, %s94
      %p98 = scmp.eq.s32.totalorder %s16, 0
      %p99 = por %p97, %p98
      %p100 = scmp.ne.s32.totalorder %s92, %s94
      %p101 = scmp.eq.s32.totalorder %s21, 1
      %p102 = por %p100, %p101
      %p103 = scmp.ne.s32.totalorder %s94, %s95
      %p104 = scmp.eq.s32.totalorder %s21, 0
      %p105 = por %p103, %p104
      %p106 = scmp.ne.s32.totalorder %s94, %s95
      %p107 = scmp.eq.s32.totalorder %s22, 1
      %p108 = por %p106, %p107
      %p110 = scmp.ne.s32.totalorder %s95, %s109
      %p111 = scmp.eq.s32.totalorder %s22, 0
      %p112 = por %p110, %p111
      %s114 = sadd.s32 %s113, 1
      %p117 = scmp.eq.s32.totalorder %s16, 1
      %p118 = scmp.ne.s32.totalorder %s113, %s115
      %p119 = scmp.eq.s32.totalorder %s16, 0
      %p120 = por %p118, %p119
      %p121 = scmp.ne.s32.totalorder %s113, %s115
      %p122 = scmp.eq.s32.totalorder %s21, 1
      %p123 = por %p121, %p122
      %p124 = scmp.ne.s32.totalorder %s115, %s116
      %p125 = scmp.eq.s32.totalorder %s21, 0
      %p126 = por %p124, %p125
      %p127 = scmp.ne.s32.totalorder %s115, %s116
      %p128 = scmp.eq.s32.totalorder %s22, 1
      %p129 = por %p127, %p128
      %p131 = scmp.ne.s32.totalorder %s116, %s130
      %p132 = scmp.eq.s32.totalorder %s22, 0
      %p133 = por %p131, %p132
      %s134 = ssub.s32 %s16, %s23
      %p135 = scmp.eq.s32.totalorder %s134, 0
      %s137 = sadd.s32 %s136, 1
      %s138 = scalar_select %p135, %s136, %s137
      %p141 = pneg %p135
      %p142 = scmp.eq.s32.totalorder %s16, 1
      %p143 = por %p141, %p142
      %p144 = scmp.ne.s32.totalorder %s136, %s139
      %p145 = scmp.eq.s32.totalorder %s16, 0
      %p146 = por %p144, %p145
      %p147 = scmp.ne.s32.totalorder %s136, %s139
      %p148 = scmp.eq.s32.totalorder %s21, 1
      %p149 = por %p147, %p148
      %p150 = scmp.ne.s32.totalorder %s139, %s140
      %p151 = scmp.eq.s32.totalorder %s21, 0
      %p152 = por %p150, %p151
      %p153 = scmp.ne.s32.totalorder %s139, %s140
      %p154 = scmp.eq.s32.totalorder %s22, 1
      %p155 = por %p153, %p154
      %p157 = scmp.ne.s32.totalorder %s140, %s156
      %p158 = scmp.eq.s32.totalorder %s22, 0
      %p159 = por %p157, %p158
      %p160 = scmp.le.s32.totalorder 1, %s16
      %p161 = scmp.lt.s32.totalorder %s16, 3
      %p162 = pnand %p160, %p161
      %p163 = pneg %p162
      // Predicated region
      $region9: #{tpu_custom_call.1} parent=5 // pred_check
        _
      $region10: #{tpu_custom_call.1} parent=5 // pred_check_branch
        %165 = sbr.rel (%p162) target = $region12
      $region11: #{tpu_custom_call.1} parent=5 // pred_region
        %s166 = ssub.s32 %s16, 1
        // Predicated region
        $region13: #{tpu_custom_call.1} parent=11 // pred_check
          %p167 = pneg %p63
        $region14: #{tpu_custom_call.1} parent=11 // pred_check_branch
          %169 = sbr.rel (%p167) target = $region16
        $region15: #{tpu_custom_call.1} parent=11 // pred_region
          %171 = vsyncadd [#allocation5], 0
          %s172 = sshll.u32 %s1, 4
          %s173 = int_to_ptr.hbm [resolvable:$true] %s172
          %s174 = sshll.u32 [#allocation4], 4
          %s175 = int_to_ptr.vmem [resolvable:$true] %s174
          %180 = dma.hbm_to_vmem [thread:$0]  %s173, 18432, %s175, [#allocation5], 192, 192, 12
        $region16: #{tpu_custom_call.1} parent=11 // pred_fallthru
          _
        // Predicated region
        $region17: #{tpu_custom_call.1} parent=11 // pred_check
          %p181 = pneg %p84
        $region18: #{tpu_custom_call.1} parent=11 // pred_check_branch
          %183 = sbr.rel (%p181) target = $region20
        $region19: #{tpu_custom_call.1} parent=11 // pred_region
          %185 = vsyncadd [#allocation5], 0
          %s187 = sshll.u32 %s2, 4
          %s188 = int_to_ptr.hbm [resolvable:$true] %s187
          %s189 = sshll.u32 [#allocation6], 4
          %s190 = int_to_ptr.vmem [resolvable:$true] %s189
          %192 = dma.hbm_to_vmem [thread:$0]  %s188, 48, %s190, [#allocation5]
        $region20: #{tpu_custom_call.1} parent=11 // pred_fallthru
          _
        // Predicated region
        $region21: #{tpu_custom_call.1} parent=11 // pred_check
          %p193 = pneg %p105
        $region22: #{tpu_custom_call.1} parent=11 // pred_check_branch
          %195 = sbr.rel (%p193) target = $region24
        $region23: #{tpu_custom_call.1} parent=11 // pred_region
          %197 = vsyncadd [#allocation8], 0
          %s198 = sshll.u32 %s3, 4
          %s199 = int_to_ptr.hbm [resolvable:$true] %s198
          %s200 = sshll.u32 [#allocation7], 4
          %s201 = int_to_ptr.vmem [resolvable:$true] %s200
          %206 = dma.hbm_to_vmem [thread:$0]  %s199, 12288, %s201, [#allocation8], 384, 384, 24
        $region24: #{tpu_custom_call.1} parent=11 // pred_fallthru
          _
        // Predicated region
        $region25: #{tpu_custom_call.1} parent=11 // pred_check
          %p207 = pneg %p126
        $region26: #{tpu_custom_call.1} parent=11 // pred_check_branch
          %209 = sbr.rel (%p207) target = $region28
        $region27: #{tpu_custom_call.1} parent=11 // pred_region
          %211 = vsyncadd [#allocation8], 0
          %s213 = sshll.u32 %s4, 4
          %s214 = int_to_ptr.hbm [resolvable:$true] %s213
          %s215 = sshll.u32 [#allocation9], 4
          %s216 = int_to_ptr.vmem [resolvable:$true] %s215
          %218 = dma.hbm_to_vmem [thread:$0]  %s214, 48, %s216, [#allocation8]
        $region28: #{tpu_custom_call.1} parent=11 // pred_fallthru
          _
      $region12: #{tpu_custom_call.1} parent=5 // pred_fallthru
        _
      %p219 = scmp.lt.s32.totalorder %s16, 2
      // Predicated region
      $region29: #{tpu_custom_call.1} parent=5 // pred_check
        %p220 = pneg %p219
      $region30: #{tpu_custom_call.1} parent=5 // pred_check_branch
        %222 = sbr.rel (%p220) target = $region32
      $region31: #{tpu_custom_call.1} parent=5 // pred_region
        // Predicated region
        $region33: #{tpu_custom_call.1} parent=31 // pred_check
          %p223 = pneg %p36
        $region34: #{tpu_custom_call.1} parent=31 // pred_check_branch
          %225 = sbr.rel (%p223) target = $region36
        $region35: #{tpu_custom_call.1} parent=31 // pred_region
          %s226 = sand.u32 %s26, 1
          %s227 = scalar_lea.sflag [#allocation3], %s226
          %s228 = sand.u32 %s26, 1
          %s229 = smul.addr %s228, 3072
          %s230 = scalar_lea.vmem [#allocation2], %s229
          %s231 = smul.u32 4, %s16
          %233 = vsyncadd %s227, 0
          %s234 = smul.addr %s231, 192
          %s235 = smul.addr %s234, 4
          %s236 = scalar_lea.hbm %s0, %s235
          %s237 = sshll.u32 %s236, 4
          %s238 = int_to_ptr.hbm [resolvable:$true] %s237
          %s239 = sshll.u32 %s230, 4
          %s240 = int_to_ptr.vmem [resolvable:$true] %s239
          %245 = dma.hbm_to_vmem [thread:$0]  %s238, 49152, %s240, %s227, 384, 384, 24
        $region36: #{tpu_custom_call.1} parent=31 // pred_fallthru
          _
      $region32: #{tpu_custom_call.1} parent=5 // pred_fallthru
        _
      %p246 = scmp.le.s32.totalorder 1, %s16
      %p247 = scmp.lt.s32.totalorder %s16, 3
      %p248 = pnand %p246, %p247
      %p249 = pneg %p248
      // Predicated region
      $region37: #{tpu_custom_call.1} parent=5 // pred_check
        _
      $region38: #{tpu_custom_call.1} parent=5 // pred_check_branch
        %251 = sbr.rel (%p248) target = $region40
      $region39: #{tpu_custom_call.1} parent=5 // pred_region
        %s252 = ssub.s32 %s16, 1
        %s253 = sand.u32 %s29, 1
        %s254 = scalar_lea.sflag [#allocation3], %s253
        %s255 = sand.u32 %s29, 1
        %s256 = smul.addr %s255, 3072
        %s257 = scalar_lea.vmem [#allocation2], %s256
        // Predicated region
        $region41: #{tpu_custom_call.1} parent=39 // pred_check
          %p258 = pneg %p42
        $region42: #{tpu_custom_call.1} parent=39 // pred_check_branch
          %260 = sbr.rel (%p258) target = $region44
        $region43: #{tpu_custom_call.1} parent=39 // pred_region
          %262 = dma.done %s254, 49152
        $region44: #{tpu_custom_call.1} parent=39 // pred_fallthru
          _
        // Predicated region
        $region45: #{tpu_custom_call.1} parent=39 // pred_check
          %p263 = pneg %p63
        $region46: #{tpu_custom_call.1} parent=39 // pred_check_branch
          %265 = sbr.rel (%p263) target = $region48
        $region47: #{tpu_custom_call.1} parent=39 // pred_region
          %267 = dma.done [#allocation5], 18432
        $region48: #{tpu_custom_call.1} parent=39 // pred_fallthru
          _
        // Predicated region
        $region49: #{tpu_custom_call.1} parent=39 // pred_check
          %p268 = pneg %p84
        $region50: #{tpu_custom_call.1} parent=39 // pred_check_branch
          %270 = sbr.rel (%p268) target = $region52
        $region51: #{tpu_custom_call.1} parent=39 // pred_region
          %272 = dma.done [#allocation5], 48
        $region52: #{tpu_custom_call.1} parent=39 // pred_fallthru
          _
        // Predicated region
        $region53: #{tpu_custom_call.1} parent=39 // pred_check
          %p273 = pneg %p105
        $region54: #{tpu_custom_call.1} parent=39 // pred_check_branch
          %275 = sbr.rel (%p273) target = $region56
        $region55: #{tpu_custom_call.1} parent=39 // pred_region
          %277 = dma.done [#allocation8], 12288
        $region56: #{tpu_custom_call.1} parent=39 // pred_fallthru
          _
        // Predicated region
        $region57: #{tpu_custom_call.1} parent=39 // pred_check
          %p278 = pneg %p126
        $region58: #{tpu_custom_call.1} parent=39 // pred_check_branch
          %280 = sbr.rel (%p278) target = $region60
        $region59: #{tpu_custom_call.1} parent=39 // pred_region
          %282 = dma.done [#allocation8], 48
        $region60: #{tpu_custom_call.1} parent=39 // pred_fallthru
          _
        %s283 = sand.u32 %s29, 1
        %s284 = scalar_lea.sflag [#allocation3], %s283
        %s285 = sand.u32 %s29, 1
        %s286 = smul.addr %s285, 3072
        %s287 = scalar_lea.vmem [#allocation2], %s286
        %p288 = pneg %p42
        %p289 = pneg %p39
        %p290 = pneg %p63
        %p291 = pneg %p60
        %p292 = pneg %p84
        %p293 = pneg %p81
        %p294 = pneg %p105
        %p295 = pneg %p102
        %p296 = pneg %p126
        %p297 = pneg %p123
        %p298 = pneg %p152
        %p299 = pneg %p149
        %s300 = smul.u32 4, %s21
        %p301 = scmp.lt.s32.totalorder %s300, 7
        %s302 = scalar_select %p301, %s300, 7
        %s303 = smul.addr %s302, 99
        %s304 = smul.addr %s303, 4
        %s305 = scalar_lea.vmem %s5, %s304
        %s306 = smul.u32 4, %s21
        %s307 = smul.u32 4, %s21
        %p308 = scmp.lt.s32.totalorder %s307, 7
        %s309 = scalar_select %p308, %s307, 7
        %s310 = smul.addr %s309, 99
        %s311 = smul.addr %s310, 4
        %s312 = scalar_lea.vmem %s5, %s311
        %s313 = smul.u32 4, %s21
        %v314 = vld [vmem:[#allocation4] sm:$0xff]
        %v315 = vld [vmem:[#allocation4 + $0x8] sm:$0xf]
        %v316 = vld [vmem:[#allocation4 + $0xc] sm:$0xff]
        %v317 = vld [vmem:[#allocation4 + $0x14] sm:$0xf]
        %v318 = vld [vmem:[#allocation4 + $0x18] sm:$0xff]
        %v319 = vld [vmem:[#allocation4 + $0x20] sm:$0xf]
        %v320 = vld [vmem:[#allocation4 + $0x24] sm:$0xff]
        %v321 = vld [vmem:[#allocation4 + $0x2c] sm:$0xf]
        %v322 = vld [vmem:[#allocation4 + $0x30] sm:$0xff]
        %v323 = vld [vmem:[#allocation4 + $0x38] sm:$0xf]
        %v324 = vld [vmem:[#allocation4 + $0x3c] sm:$0xff]
        %v325 = vld [vmem:[#allocation4 + $0x44] sm:$0xf]
        %v326 = vld [vmem:[#allocation4 + $0x48] sm:$0xff]
        %v327 = vld [vmem:[#allocation4 + $0x50] sm:$0xf]
        %v328 = vld [vmem:[#allocation4 + $0x54] sm:$0xff]
        %v329 = vld [vmem:[#allocation4 + $0x5c] sm:$0xf]
        %v330 = vld [vmem:[#allocation4 + $0x60] sm:$0xff]
        %v331 = vld [vmem:[#allocation4 + $0x68] sm:$0xf]
        %v332 = vld [vmem:[#allocation4 + $0x6c] sm:$0xff]
        %v333 = vld [vmem:[#allocation4 + $0x74] sm:$0xf]
        %v334 = vld [vmem:[#allocation4 + $0x78] sm:$0xff]
        %v335 = vld [vmem:[#allocation4 + $0x80] sm:$0xf]
        %v336 = vld [vmem:[#allocation4 + $0x84] sm:$0xff]
        %v337 = vld [vmem:[#allocation4 + $0x8c] sm:$0xf]
        %v338 = vld [vmem:[#allocation4 + $0x90] sm:$0xff]
        %v339 = vld [vmem:[#allocation4 + $0x98] sm:$0xf]
        %v340 = vld [vmem:[#allocation4 + $0x9c] sm:$0xff]
        %v341 = vld [vmem:[#allocation4 + $0xa4] sm:$0xf]
        %v342 = vld [vmem:[#allocation4 + $0xa8] sm:$0xff]
        %v343 = vld [vmem:[#allocation4 + $0xb0] sm:$0xf]
        %v344 = vld [vmem:[#allocation4 + $0xb4] sm:$0xff]
        %v345 = vld [vmem:[#allocation4 + $0xbc] sm:$0xf]
        %v346 = vld [vmem:[#allocation4 + $0xc0] sm:$0xff]
        %v347 = vld [vmem:[#allocation4 + $0xc8] sm:$0xf]
        %v348 = vld [vmem:[#allocation4 + $0xcc] sm:$0xff]
        %v349 = vld [vmem:[#allocation4 + $0xd4] sm:$0xf]
        %v350 = vld [vmem:[#allocation4 + $0xd8] sm:$0xff]
        %v351 = vld [vmem:[#allocation4 + $0xe0] sm:$0xf]
        %v352 = vld [vmem:[#allocation4 + $0xe4] sm:$0xff]
        %v353 = vld [vmem:[#allocation4 + $0xec] sm:$0xf]
        %v354 = vld [vmem:[#allocation4 + $0xf0] sm:$0xff]
        %v355 = vld [vmem:[#allocation4 + $0xf8] sm:$0xf]
        %v356 = vld [vmem:[#allocation4 + $0xfc] sm:$0xff]
        %v357 = vld [vmem:[#allocation4 + $0x104] sm:$0xf]
        %v358 = vld [vmem:[#allocation4 + $0x108] sm:$0xff]
        %v359 = vld [vmem:[#allocation4 + $0x110] sm:$0xf]
        %v360 = vld [vmem:[#allocation4 + $0x114] sm:$0xff]
        %v361 = vld [vmem:[#allocation4 + $0x11c] sm:$0xf]
        %v362 = vld [vmem:[#allocation4 + $0x120] sm:$0xff]
        %v363 = vld [vmem:[#allocation4 + $0x128] sm:$0xf]
        %v364 = vld [vmem:[#allocation4 + $0x12c] sm:$0xff]
        %v365 = vld [vmem:[#allocation4 + $0x134] sm:$0xf]
        %v366 = vld [vmem:[#allocation4 + $0x138] sm:$0xff]
        %v367 = vld [vmem:[#allocation4 + $0x140] sm:$0xf]
        %v368 = vld [vmem:[#allocation4 + $0x144] sm:$0xff]
        %v369 = vld [vmem:[#allocation4 + $0x14c] sm:$0xf]
        %v370 = vld [vmem:[#allocation4 + $0x150] sm:$0xff]
        %v371 = vld [vmem:[#allocation4 + $0x158] sm:$0xf]
        %v372 = vld [vmem:[#allocation4 + $0x15c] sm:$0xff]
        %v373 = vld [vmem:[#allocation4 + $0x164] sm:$0xf]
        %v374 = vld [vmem:[#allocation4 + $0x168] sm:$0xff]
        %v375 = vld [vmem:[#allocation4 + $0x170] sm:$0xf]
        %v376 = vld [vmem:[#allocation4 + $0x174] sm:$0xff]
        %v377 = vld [vmem:[#allocation4 + $0x17c] sm:$0xf]
        %v378 = vld [vmem:[#allocation4 + $0x180] sm:$0xff]
        %v379 = vld [vmem:[#allocation4 + $0x188] sm:$0xf]
        %v380 = vld [vmem:[#allocation4 + $0x18c] sm:$0xff]
        %v381 = vld [vmem:[#allocation4 + $0x194] sm:$0xf]
        %v382 = vld [vmem:[#allocation4 + $0x198] sm:$0xff]
        %v383 = vld [vmem:[#allocation4 + $0x1a0] sm:$0xf]
        %v384 = vld [vmem:[#allocation4 + $0x1a4] sm:$0xff]
        %v385 = vld [vmem:[#allocation4 + $0x1ac] sm:$0xf]
        %v386 = vld [vmem:[#allocation4 + $0x1b0] sm:$0xff]
        %v387 = vld [vmem:[#allocation4 + $0x1b8] sm:$0xf]
        %v388 = vld [vmem:[#allocation4 + $0x1bc] sm:$0xff]
        %v389 = vld [vmem:[#allocation4 + $0x1c4] sm:$0xf]
        %v390 = vld [vmem:[#allocation4 + $0x1c8] sm:$0xff]
        %v391 = vld [vmem:[#allocation4 + $0x1d0] sm:$0xf]
        %v392 = vld [vmem:[#allocation4 + $0x1d4] sm:$0xff]
        %v393 = vld [vmem:[#allocation4 + $0x1dc] sm:$0xf]
        %v394 = vld [vmem:[#allocation4 + $0x1e0] sm:$0xff]
        %v395 = vld [vmem:[#allocation4 + $0x1e8] sm:$0xf]
        %v396 = vld [vmem:[#allocation4 + $0x1ec] sm:$0xff]
        %v397 = vld [vmem:[#allocation4 + $0x1f4] sm:$0xf]
        %v398 = vld [vmem:[#allocation4 + $0x1f8] sm:$0xff]
        %v399 = vld [vmem:[#allocation4 + $0x200] sm:$0xf]
        %v400 = vld [vmem:[#allocation4 + $0x204] sm:$0xff]
        %v401 = vld [vmem:[#allocation4 + $0x20c] sm:$0xf]
        %v402 = vld [vmem:[#allocation4 + $0x210] sm:$0xff]
        %v403 = vld [vmem:[#allocation4 + $0x218] sm:$0xf]
        %v404 = vld [vmem:[#allocation4 + $0x21c] sm:$0xff]
        %v405 = vld [vmem:[#allocation4 + $0x224] sm:$0xf]
        %v406 = vld [vmem:[#allocation4 + $0x228] sm:$0xff]
        %v407 = vld [vmem:[#allocation4 + $0x230] sm:$0xf]
        %v408 = vld [vmem:[#allocation4 + $0x234] sm:$0xff]
        %v409 = vld [vmem:[#allocation4 + $0x23c] sm:$0xf]
        %v410 = vld [vmem:[#allocation4 + $0x240] sm:$0xff]
        %v411 = vld [vmem:[#allocation4 + $0x248] sm:$0xf]
        %v412 = vld [vmem:[#allocation4 + $0x24c] sm:$0xff]
        %v413 = vld [vmem:[#allocation4 + $0x254] sm:$0xf]
        %v414 = vld [vmem:[#allocation4 + $0x258] sm:$0xff]
        %v415 = vld [vmem:[#allocation4 + $0x260] sm:$0xf]
        %v416 = vld [vmem:[#allocation4 + $0x264] sm:$0xff]
        %v417 = vld [vmem:[#allocation4 + $0x26c] sm:$0xf]
        %v418 = vld [vmem:[#allocation4 + $0x270] sm:$0xff]
        %v419 = vld [vmem:[#allocation4 + $0x278] sm:$0xf]
        %v420 = vld [vmem:[#allocation4 + $0x27c] sm:$0xff]
        %v421 = vld [vmem:[#allocation4 + $0x284] sm:$0xf]
        %v422 = vld [vmem:[#allocation4 + $0x288] sm:$0xff]
        %v423 = vld [vmem:[#allocation4 + $0x290] sm:$0xf]
        %v424 = vld [vmem:[#allocation4 + $0x294] sm:$0xff]
        %v425 = vld [vmem:[#allocation4 + $0x29c] sm:$0xf]
        %v426 = vld [vmem:[#allocation4 + $0x2a0] sm:$0xff]
        %v427 = vld [vmem:[#allocation4 + $0x2a8] sm:$0xf]
        %v428 = vld [vmem:[#allocation4 + $0x2ac] sm:$0xff]
        %v429 = vld [vmem:[#allocation4 + $0x2b4] sm:$0xf]
        %v430 = vld [vmem:[#allocation4 + $0x2b8] sm:$0xff]
        %v431 = vld [vmem:[#allocation4 + $0x2c0] sm:$0xf]
        %v432 = vld [vmem:[#allocation4 + $0x2c4] sm:$0xff]
        %v433 = vld [vmem:[#allocation4 + $0x2cc] sm:$0xf]
        %v434 = vld [vmem:[#allocation4 + $0x2d0] sm:$0xff]
        %v435 = vld [vmem:[#allocation4 + $0x2d8] sm:$0xf]
        %v436 = vld [vmem:[#allocation4 + $0x2dc] sm:$0xff]
        %v437 = vld [vmem:[#allocation4 + $0x2e4] sm:$0xf]
        %v438 = vld [vmem:[#allocation4 + $0x2e8] sm:$0xff]
        %v439 = vld [vmem:[#allocation4 + $0x2f0] sm:$0xf]
        %v440 = vld [vmem:[#allocation4 + $0x2f4] sm:$0xff]
        %v441 = vld [vmem:[#allocation4 + $0x2fc] sm:$0xf]
        %v442 = vld [vmem:[#allocation4 + $0x300] sm:$0xff]
        %v443 = vld [vmem:[#allocation4 + $0x308] sm:$0xf]
        %v444 = vld [vmem:[#allocation4 + $0x30c] sm:$0xff]
        %v445 = vld [vmem:[#allocation4 + $0x314] sm:$0xf]
        %v446 = vld [vmem:[#allocation4 + $0x318] sm:$0xff]
        %v447 = vld [vmem:[#allocation4 + $0x320] sm:$0xf]
        %v448 = vld [vmem:[#allocation4 + $0x324] sm:$0xff]
        %v449 = vld [vmem:[#allocation4 + $0x32c] sm:$0xf]
        %v450 = vld [vmem:[#allocation4 + $0x330] sm:$0xff]
        %v451 = vld [vmem:[#allocation4 + $0x338] sm:$0xf]
        %v452 = vld [vmem:[#allocation4 + $0x33c] sm:$0xff]
        %v453 = vld [vmem:[#allocation4 + $0x344] sm:$0xf]
        %v454 = vld [vmem:[#allocation4 + $0x348] sm:$0xff]
        %v455 = vld [vmem:[#allocation4 + $0x350] sm:$0xf]
        %v456 = vld [vmem:[#allocation4 + $0x354] sm:$0xff]
        %v457 = vld [vmem:[#allocation4 + $0x35c] sm:$0xf]
        %v458 = vld [vmem:[#allocation4 + $0x360] sm:$0xff]
        %v459 = vld [vmem:[#allocation4 + $0x368] sm:$0xf]
        %v460 = vld [vmem:[#allocation4 + $0x36c] sm:$0xff]
        %v461 = vld [vmem:[#allocation4 + $0x374] sm:$0xf]
        %v462 = vld [vmem:[#allocation4 + $0x378] sm:$0xff]
        %v463 = vld [vmem:[#allocation4 + $0x380] sm:$0xf]
        %v464 = vld [vmem:[#allocation4 + $0x384] sm:$0xff]
        %v465 = vld [vmem:[#allocation4 + $0x38c] sm:$0xf]
        %v466 = vld [vmem:[#allocation4 + $0x390] sm:$0xff]
        %v467 = vld [vmem:[#allocation4 + $0x398] sm:$0xf]
        %v468 = vld [vmem:[#allocation4 + $0x39c] sm:$0xff]
        %v469 = vld [vmem:[#allocation4 + $0x3a4] sm:$0xf]
        %v470 = vld [vmem:[#allocation4 + $0x3a8] sm:$0xff]
        %v471 = vld [vmem:[#allocation4 + $0x3b0] sm:$0xf]
        %v472 = vld [vmem:[#allocation4 + $0x3b4] sm:$0xff]
        %v473 = vld [vmem:[#allocation4 + $0x3bc] sm:$0xf]
        %v474 = vld [vmem:[#allocation4 + $0x3c0] sm:$0xff]
        %v475 = vld [vmem:[#allocation4 + $0x3c8] sm:$0xf]
        %v476 = vld [vmem:[#allocation4 + $0x3cc] sm:$0xff]
        %v477 = vld [vmem:[#allocation4 + $0x3d4] sm:$0xf]
        %v478 = vld [vmem:[#allocation4 + $0x3d8] sm:$0xff]
        %v479 = vld [vmem:[#allocation4 + $0x3e0] sm:$0xf]
        %v480 = vld [vmem:[#allocation4 + $0x3e4] sm:$0xff]
        %v481 = vld [vmem:[#allocation4 + $0x3ec] sm:$0xf]
        %v482 = vld [vmem:[#allocation4 + $0x3f0] sm:$0xff]
        %v483 = vld [vmem:[#allocation4 + $0x3f8] sm:$0xf]
        %v484 = vld [vmem:[#allocation4 + $0x3fc] sm:$0xff]
        %v485 = vld [vmem:[#allocation4 + $0x404] sm:$0xf]
        %v486 = vld [vmem:[#allocation4 + $0x408] sm:$0xff]
        %v487 = vld [vmem:[#allocation4 + $0x410] sm:$0xf]
        %v488 = vld [vmem:[#allocation4 + $0x414] sm:$0xff]
        %v489 = vld [vmem:[#allocation4 + $0x41c] sm:$0xf]
        %v490 = vld [vmem:[#allocation4 + $0x420] sm:$0xff]
        %v491 = vld [vmem:[#allocation4 + $0x428] sm:$0xf]
        %v492 = vld [vmem:[#allocation4 + $0x42c] sm:$0xff]
        %v493 = vld [vmem:[#allocation4 + $0x434] sm:$0xf]
        %v494 = vld [vmem:[#allocation4 + $0x438] sm:$0xff]
        %v495 = vld [vmem:[#allocation4 + $0x440] sm:$0xf]
        %v496 = vld [vmem:[#allocation4 + $0x444] sm:$0xff]
        %v497 = vld [vmem:[#allocation4 + $0x44c] sm:$0xf]
        %v498 = vld [vmem:[#allocation4 + $0x450] sm:$0xff]
        %v499 = vld [vmem:[#allocation4 + $0x458] sm:$0xf]
        %v500 = vld [vmem:[#allocation4 + $0x45c] sm:$0xff]
        %v501 = vld [vmem:[#allocation4 + $0x464] sm:$0xf]
        %v502 = vld [vmem:[#allocation4 + $0x468] sm:$0xff]
        %v503 = vld [vmem:[#allocation4 + $0x470] sm:$0xf]
        %v504 = vld [vmem:[#allocation4 + $0x474] sm:$0xff]
        %v505 = vld [vmem:[#allocation4 + $0x47c] sm:$0xf]
        %v506 = vld [vmem:[#allocation6] sm:$0x7]
        %v507 = vld [vmem:[#allocation7] sm:$0xff]
        %v508 = vld [vmem:[#allocation7 + $0x8] sm:$0xff]
        %v509 = vld [vmem:[#allocation7 + $0x10] sm:$0xff]
        %v510 = vld [vmem:[#allocation7 + $0x18] sm:$0xff]
        %v511 = vld [vmem:[#allocation7 + $0x20] sm:$0xff]
        %v512 = vld [vmem:[#allocation7 + $0x28] sm:$0xff]
        %v513 = vld [vmem:[#allocation7 + $0x30] sm:$0xff]
        %v514 = vld [vmem:[#allocation7 + $0x38] sm:$0xff]
        %v515 = vld [vmem:[#allocation7 + $0x40] sm:$0xff]
        %v516 = vld [vmem:[#allocation7 + $0x48] sm:$0xff]
        %v517 = vld [vmem:[#allocation7 + $0x50] sm:$0xff]
        %v518 = vld [vmem:[#allocation7 + $0x58] sm:$0xff]
        %v519 = vld [vmem:[#allocation7 + $0x60] sm:$0xff]
        %v520 = vld [vmem:[#allocation7 + $0x68] sm:$0xff]
        %v521 = vld [vmem:[#allocation7 + $0x70] sm:$0xff]
        %v522 = vld [vmem:[#allocation7 + $0x78] sm:$0xff]
        %v523 = vld [vmem:[#allocation7 + $0x80] sm:$0xff]
        %v524 = vld [vmem:[#allocation7 + $0x88] sm:$0xff]
        %v525 = vld [vmem:[#allocation7 + $0x90] sm:$0xff]
        %v526 = vld [vmem:[#allocation7 + $0x98] sm:$0xff]
        %v527 = vld [vmem:[#allocation7 + $0xa0] sm:$0xff]
        %v528 = vld [vmem:[#allocation7 + $0xa8] sm:$0xff]
        %v529 = vld [vmem:[#allocation7 + $0xb0] sm:$0xff]
        %v530 = vld [vmem:[#allocation7 + $0xb8] sm:$0xff]
        %v531 = vld [vmem:[#allocation7 + $0xc0] sm:$0xff]
        %v532 = vld [vmem:[#allocation7 + $0xc8] sm:$0xff]
        %v533 = vld [vmem:[#allocation7 + $0xd0] sm:$0xff]
        %v534 = vld [vmem:[#allocation7 + $0xd8] sm:$0xff]
        %v535 = vld [vmem:[#allocation7 + $0xe0] sm:$0xff]
        %v536 = vld [vmem:[#allocation7 + $0xe8] sm:$0xff]
        %v537 = vld [vmem:[#allocation7 + $0xf0] sm:$0xff]
        %v538 = vld [vmem:[#allocation7 + $0xf8] sm:$0xff]
        %v539 = vld [vmem:[#allocation7 + $0x100] sm:$0xff]
        %v540 = vld [vmem:[#allocation7 + $0x108] sm:$0xff]
        %v541 = vld [vmem:[#allocation7 + $0x110] sm:$0xff]
        %v542 = vld [vmem:[#allocation7 + $0x118] sm:$0xff]
        %v543 = vld [vmem:[#allocation7 + $0x120] sm:$0xff]
        %v544 = vld [vmem:[#allocation7 + $0x128] sm:$0xff]
        %v545 = vld [vmem:[#allocation7 + $0x130] sm:$0xff]
        %v546 = vld [vmem:[#allocation7 + $0x138] sm:$0xff]
        %v547 = vld [vmem:[#allocation7 + $0x140] sm:$0xff]
        %v548 = vld [vmem:[#allocation7 + $0x148] sm:$0xff]
        %v549 = vld [vmem:[#allocation7 + $0x150] sm:$0xff]
        %v550 = vld [vmem:[#allocation7 + $0x158] sm:$0xff]
        %v551 = vld [vmem:[#allocation7 + $0x160] sm:$0xff]
        %v552 = vld [vmem:[#allocation7 + $0x168] sm:$0xff]
        %v553 = vld [vmem:[#allocation7 + $0x170] sm:$0xff]
        %v554 = vld [vmem:[#allocation7 + $0x178] sm:$0xff]
        %v555 = vld [vmem:[#allocation7 + $0x180] sm:$0xff]
        %v556 = vld [vmem:[#allocation7 + $0x188] sm:$0xff]
        %v557 = vld [vmem:[#allocation7 + $0x190] sm:$0xff]
        %v558 = vld [vmem:[#allocation7 + $0x198] sm:$0xff]
        %v559 = vld [vmem:[#allocation7 + $0x1a0] sm:$0xff]
        %v560 = vld [vmem:[#allocation7 + $0x1a8] sm:$0xff]
        %v561 = vld [vmem:[#allocation7 + $0x1b0] sm:$0xff]
        %v562 = vld [vmem:[#allocation7 + $0x1b8] sm:$0xff]
        %v563 = vld [vmem:[#allocation7 + $0x1c0] sm:$0xff]
        %v564 = vld [vmem:[#allocation7 + $0x1c8] sm:$0xff]
        %v565 = vld [vmem:[#allocation7 + $0x1d0] sm:$0xff]
        %v566 = vld [vmem:[#allocation7 + $0x1d8] sm:$0xff]
        %v567 = vld [vmem:[#allocation7 + $0x1e0] sm:$0xff]
        %v568 = vld [vmem:[#allocation7 + $0x1e8] sm:$0xff]
        %v569 = vld [vmem:[#allocation7 + $0x1f0] sm:$0xff]
        %v570 = vld [vmem:[#allocation7 + $0x1f8] sm:$0xff]
        %v571 = vld [vmem:[#allocation7 + $0x200] sm:$0xff]
        %v572 = vld [vmem:[#allocation7 + $0x208] sm:$0xff]
        %v573 = vld [vmem:[#allocation7 + $0x210] sm:$0xff]
        %v574 = vld [vmem:[#allocation7 + $0x218] sm:$0xff]
        %v575 = vld [vmem:[#allocation7 + $0x220] sm:$0xff]
        %v576 = vld [vmem:[#allocation7 + $0x228] sm:$0xff]
        %v577 = vld [vmem:[#allocation7 + $0x230] sm:$0xff]
        %v578 = vld [vmem:[#allocation7 + $0x238] sm:$0xff]
        %v579 = vld [vmem:[#allocation7 + $0x240] sm:$0xff]
        %v580 = vld [vmem:[#allocation7 + $0x248] sm:$0xff]
        %v581 = vld [vmem:[#allocation7 + $0x250] sm:$0xff]
        %v582 = vld [vmem:[#allocation7 + $0x258] sm:$0xff]
        %v583 = vld [vmem:[#allocation7 + $0x260] sm:$0xff]
        %v584 = vld [vmem:[#allocation7 + $0x268] sm:$0xff]
        %v585 = vld [vmem:[#allocation7 + $0x270] sm:$0xff]
        %v586 = vld [vmem:[#allocation7 + $0x278] sm:$0xff]
        %v587 = vld [vmem:[#allocation7 + $0x280] sm:$0xff]
        %v588 = vld [vmem:[#allocation7 + $0x288] sm:$0xff]
        %v589 = vld [vmem:[#allocation7 + $0x290] sm:$0xff]
        %v590 = vld [vmem:[#allocation7 + $0x298] sm:$0xff]
        %v591 = vld [vmem:[#allocation7 + $0x2a0] sm:$0xff]
        %v592 = vld [vmem:[#allocation7 + $0x2a8] sm:$0xff]
        %v593 = vld [vmem:[#allocation7 + $0x2b0] sm:$0xff]
        %v594 = vld [vmem:[#allocation7 + $0x2b8] sm:$0xff]
        %v595 = vld [vmem:[#allocation7 + $0x2c0] sm:$0xff]
        %v596 = vld [vmem:[#allocation7 + $0x2c8] sm:$0xff]
        %v597 = vld [vmem:[#allocation7 + $0x2d0] sm:$0xff]
        %v598 = vld [vmem:[#allocation7 + $0x2d8] sm:$0xff]
        %v599 = vld [vmem:[#allocation7 + $0x2e0] sm:$0xff]
        %v600 = vld [vmem:[#allocation7 + $0x2e8] sm:$0xff]
        %v601 = vld [vmem:[#allocation7 + $0x2f0] sm:$0xff]
        %v602 = vld [vmem:[#allocation7 + $0x2f8] sm:$0xff]
        %v603 = vld [vmem:[#allocation9] sm:$0x7]
        %v604 = vld [vmem:[%s257] sm:$0xff]
        %v605 = vld [vmem:[%s257 + $0x8] sm:$0xff]
        %v606 = vld [vmem:[%s257 + $0x10] sm:$0xff]
        %v607 = vld [vmem:[%s257 + $0x18] sm:$0xff]
        %v608 = vld [vmem:[%s257 + $0x20] sm:$0xff]
        %v609 = vld [vmem:[%s257 + $0x28] sm:$0xff]
        %v610 = vld [vmem:[%s257 + $0x30] sm:$0xff]
        %v611 = vld [vmem:[%s257 + $0x38] sm:$0xff]
        %v612 = vld [vmem:[%s257 + $0x40] sm:$0xff]
        %v613 = vld [vmem:[%s257 + $0x48] sm:$0xff]
        %v614 = vld [vmem:[%s257 + $0x50] sm:$0xff]
        %v615 = vld [vmem:[%s257 + $0x58] sm:$0xff]
        %v616 = vld [vmem:[%s257 + $0x60] sm:$0xff]
        %v617 = vld [vmem:[%s257 + $0x68] sm:$0xff]
        %v618 = vld [vmem:[%s257 + $0x70] sm:$0xff]
        %v619 = vld [vmem:[%s257 + $0x78] sm:$0xff]
        %v620 = vld [vmem:[%s257 + $0x80] sm:$0xff]
        %v621 = vld [vmem:[%s257 + $0x88] sm:$0xff]
        %v622 = vld [vmem:[%s257 + $0x90] sm:$0xff]
        %v623 = vld [vmem:[%s257 + $0x98] sm:$0xff]
        %v624 = vld [vmem:[%s257 + $0xa0] sm:$0xff]
        %v625 = vld [vmem:[%s257 + $0xa8] sm:$0xff]
        %v626 = vld [vmem:[%s257 + $0xb0] sm:$0xff]
        %v627 = vld [vmem:[%s257 + $0xb8] sm:$0xff]
        %v628 = vld [vmem:[%s257 + $0xc0] sm:$0xff]
        %v629 = vld [vmem:[%s257 + $0xc8] sm:$0xff]
        %v630 = vld [vmem:[%s257 + $0xd0] sm:$0xff]
        %v631 = vld [vmem:[%s257 + $0xd8] sm:$0xff]
        %v632 = vld [vmem:[%s257 + $0xe0] sm:$0xff]
        %v633 = vld [vmem:[%s257 + $0xe8] sm:$0xff]
        %v634 = vld [vmem:[%s257 + $0xf0] sm:$0xff]
        %v635 = vld [vmem:[%s257 + $0xf8] sm:$0xff]
        %v636 = vld [vmem:[%s257 + $0x100] sm:$0xff]
        %v637 = vld [vmem:[%s257 + $0x108] sm:$0xff]
        %v638 = vld [vmem:[%s257 + $0x110] sm:$0xff]
        %v639 = vld [vmem:[%s257 + $0x118] sm:$0xff]
        %v640 = vld [vmem:[%s257 + $0x120] sm:$0xff]
        %v641 = vld [vmem:[%s257 + $0x128] sm:$0xff]
        %v642 = vld [vmem:[%s257 + $0x130] sm:$0xff]
        %v643 = vld [vmem:[%s257 + $0x138] sm:$0xff]
        %v644 = vld [vmem:[%s257 + $0x140] sm:$0xff]
        %v645 = vld [vmem:[%s257 + $0x148] sm:$0xff]
        %v646 = vld [vmem:[%s257 + $0x150] sm:$0xff]
        %v647 = vld [vmem:[%s257 + $0x158] sm:$0xff]
        %v648 = vld [vmem:[%s257 + $0x160] sm:$0xff]
        %v649 = vld [vmem:[%s257 + $0x168] sm:$0xff]
        %v650 = vld [vmem:[%s257 + $0x170] sm:$0xff]
        %v651 = vld [vmem:[%s257 + $0x178] sm:$0xff]
        %v652 = vld [vmem:[%s257 + $0x180] sm:$0xff]
        %v653 = vld [vmem:[%s257 + $0x188] sm:$0xff]
        %v654 = vld [vmem:[%s257 + $0x190] sm:$0xff]
        %v655 = vld [vmem:[%s257 + $0x198] sm:$0xff]
        %v656 = vld [vmem:[%s257 + $0x1a0] sm:$0xff]
        %v657 = vld [vmem:[%s257 + $0x1a8] sm:$0xff]
        %v658 = vld [vmem:[%s257 + $0x1b0] sm:$0xff]
        %v659 = vld [vmem:[%s257 + $0x1b8] sm:$0xff]
        %v660 = vld [vmem:[%s257 + $0x1c0] sm:$0xff]
        %v661 = vld [vmem:[%s257 + $0x1c8] sm:$0xff]
        %v662 = vld [vmem:[%s257 + $0x1d0] sm:$0xff]
        %v663 = vld [vmem:[%s257 + $0x1d8] sm:$0xff]
        %v664 = vld [vmem:[%s257 + $0x1e0] sm:$0xff]
        %v665 = vld [vmem:[%s257 + $0x1e8] sm:$0xff]
        %v666 = vld [vmem:[%s257 + $0x1f0] sm:$0xff]
        %v667 = vld [vmem:[%s257 + $0x1f8] sm:$0xff]
        %v668 = vld [vmem:[%s257 + $0x200] sm:$0xff]
        %v669 = vld [vmem:[%s257 + $0x208] sm:$0xff]
        %v670 = vld [vmem:[%s257 + $0x210] sm:$0xff]
        %v671 = vld [vmem:[%s257 + $0x218] sm:$0xff]
        %v672 = vld [vmem:[%s257 + $0x220] sm:$0xff]
        %v673 = vld [vmem:[%s257 + $0x228] sm:$0xff]
        %v674 = vld [vmem:[%s257 + $0x230] sm:$0xff]
        %v675 = vld [vmem:[%s257 + $0x238] sm:$0xff]
        %v676 = vld [vmem:[%s257 + $0x240] sm:$0xff]
        %v677 = vld [vmem:[%s257 + $0x248] sm:$0xff]
        %v678 = vld [vmem:[%s257 + $0x250] sm:$0xff]
        %v679 = vld [vmem:[%s257 + $0x258] sm:$0xff]
        %v680 = vld [vmem:[%s257 + $0x260] sm:$0xff]
        %v681 = vld [vmem:[%s257 + $0x268] sm:$0xff]
        %v682 = vld [vmem:[%s257 + $0x270] sm:$0xff]
        %v683 = vld [vmem:[%s257 + $0x278] sm:$0xff]
        %v684 = vld [vmem:[%s257 + $0x280] sm:$0xff]
        %v685 = vld [vmem:[%s257 + $0x288] sm:$0xff]
        %v686 = vld [vmem:[%s257 + $0x290] sm:$0xff]
        %v687 = vld [vmem:[%s257 + $0x298] sm:$0xff]
        %v688 = vld [vmem:[%s257 + $0x2a0] sm:$0xff]
        %v689 = vld [vmem:[%s257 + $0x2a8] sm:$0xff]
        %v690 = vld [vmem:[%s257 + $0x2b0] sm:$0xff]
        %v691 = vld [vmem:[%s257 + $0x2b8] sm:$0xff]
        %v692 = vld [vmem:[%s257 + $0x2c0] sm:$0xff]
        %v693 = vld [vmem:[%s257 + $0x2c8] sm:$0xff]
        %v694 = vld [vmem:[%s257 + $0x2d0] sm:$0xff]
        %v695 = vld [vmem:[%s257 + $0x2d8] sm:$0xff]
        %v696 = vld [vmem:[%s257 + $0x2e0] sm:$0xff]
        %v697 = vld [vmem:[%s257 + $0x2e8] sm:$0xff]
        %v698 = vld [vmem:[%s257 + $0x2f0] sm:$0xff]
        %v699 = vld [vmem:[%s257 + $0x2f8] sm:$0xff]
        %v701 = vperm.slane %v506, 0
        %v702 = vperm.slane %v506, 1
        %v703 = vperm.slane %v506, 2
        %v803 = vunpack.c.l.b16 %v604
        %v804 = vunpack.c.h.b16 %v604
        %v805 = vunpack.c.l.b16 %v605
        %v806 = vunpack.c.h.b16 %v605
        %v807 = vunpack.c.l.b16 %v606
        %v808 = vunpack.c.h.b16 %v606
        %v809 = vunpack.c.l.b16 %v607
        %v810 = vunpack.c.h.b16 %v607
        %v811 = vunpack.c.l.b16 %v608
        %v812 = vunpack.c.h.b16 %v608
        %v813 = vunpack.c.l.b16 %v609
        %v814 = vunpack.c.h.b16 %v609
        %v815 = vunpack.c.l.b16 %v610
        %v816 = vunpack.c.h.b16 %v610
        %v817 = vunpack.c.l.b16 %v611
        %v818 = vunpack.c.h.b16 %v611
        %v819 = vunpack.c.l.b16 %v612
        %v820 = vunpack.c.h.b16 %v612
        %v821 = vunpack.c.l.b16 %v613
        %v822 = vunpack.c.h.b16 %v613
        %v823 = vunpack.c.l.b16 %v614
        %v824 = vunpack.c.h.b16 %v614
        %v825 = vunpack.c.l.b16 %v615
        %v826 = vunpack.c.h.b16 %v615
        %v827 = vunpack.c.l.b16 %v616
        %v828 = vunpack.c.h.b16 %v616
        %v829 = vunpack.c.l.b16 %v617
        %v830 = vunpack.c.h.b16 %v617
        %v831 = vunpack.c.l.b16 %v618
        %v832 = vunpack.c.h.b16 %v618
        %v833 = vunpack.c.l.b16 %v619
        %v834 = vunpack.c.h.b16 %v619
        %v835 = vunpack.c.l.b16 %v620
        %v836 = vunpack.c.h.b16 %v620
        %v837 = vunpack.c.l.b16 %v621
        %v838 = vunpack.c.h.b16 %v621
        %v839 = vunpack.c.l.b16 %v622
        %v840 = vunpack.c.h.b16 %v622
        %v841 = vunpack.c.l.b16 %v623
        %v842 = vunpack.c.h.b16 %v623
        %v843 = vunpack.c.l.b16 %v624
        %v844 = vunpack.c.h.b16 %v624
        %v845 = vunpack.c.l.b16 %v625
        %v846 = vunpack.c.h.b16 %v625
        %v847 = vunpack.c.l.b16 %v626
        %v848 = vunpack.c.h.b16 %v626
        %v849 = vunpack.c.l.b16 %v627
        %v850 = vunpack.c.h.b16 %v627
        %v851 = vunpack.c.l.b16 %v628
        %v852 = vunpack.c.h.b16 %v628
        %v853 = vunpack.c.l.b16 %v629
        %v854 = vunpack.c.h.b16 %v629
        %v855 = vunpack.c.l.b16 %v630
        %v856 = vunpack.c.h.b16 %v630
        %v857 = vunpack.c.l.b16 %v631
        %v858 = vunpack.c.h.b16 %v631
        %v859 = vunpack.c.l.b16 %v632
        %v860 = vunpack.c.h.b16 %v632
        %v861 = vunpack.c.l.b16 %v633
        %v862 = vunpack.c.h.b16 %v633
        %v863 = vunpack.c.l.b16 %v634
        %v864 = vunpack.c.h.b16 %v634
        %v865 = vunpack.c.l.b16 %v635
        %v866 = vunpack.c.h.b16 %v635
        %v867 = vunpack.c.l.b16 %v636
        %v868 = vunpack.c.h.b16 %v636
        %v869 = vunpack.c.l.b16 %v637
        %v870 = vunpack.c.h.b16 %v637
        %v871 = vunpack.c.l.b16 %v638
        %v872 = vunpack.c.h.b16 %v638
        %v873 = vunpack.c.l.b16 %v639
        %v874 = vunpack.c.h.b16 %v639
        %v875 = vunpack.c.l.b16 %v640
        %v876 = vunpack.c.h.b16 %v640
        %v877 = vunpack.c.l.b16 %v641
        %v878 = vunpack.c.h.b16 %v641
        %v879 = vunpack.c.l.b16 %v642
        %v880 = vunpack.c.h.b16 %v642
        %v881 = vunpack.c.l.b16 %v643
        %v882 = vunpack.c.h.b16 %v643
        %v883 = vunpack.c.l.b16 %v644
        %v884 = vunpack.c.h.b16 %v644
        %v885 = vunpack.c.l.b16 %v645
        %v886 = vunpack.c.h.b16 %v645
        %v887 = vunpack.c.l.b16 %v646
        %v888 = vunpack.c.h.b16 %v646
        %v889 = vunpack.c.l.b16 %v647
        %v890 = vunpack.c.h.b16 %v647
        %v891 = vunpack.c.l.b16 %v648
        %v892 = vunpack.c.h.b16 %v648
        %v893 = vunpack.c.l.b16 %v649
        %v894 = vunpack.c.h.b16 %v649
        %v895 = vunpack.c.l.b16 %v650
        %v896 = vunpack.c.h.b16 %v650
        %v897 = vunpack.c.l.b16 %v651
        %v898 = vunpack.c.h.b16 %v651
        %v899 = vunpack.c.l.b16 %v652
        %v900 = vunpack.c.h.b16 %v652
        %v901 = vunpack.c.l.b16 %v653
        %v902 = vunpack.c.h.b16 %v653
        %v903 = vunpack.c.l.b16 %v654
        %v904 = vunpack.c.h.b16 %v654
        %v905 = vunpack.c.l.b16 %v655
        %v906 = vunpack.c.h.b16 %v655
        %v907 = vunpack.c.l.b16 %v656
        %v908 = vunpack.c.h.b16 %v656
        %v909 = vunpack.c.l.b16 %v657
        %v910 = vunpack.c.h.b16 %v657
        %v911 = vunpack.c.l.b16 %v658
        %v912 = vunpack.c.h.b16 %v658
        %v913 = vunpack.c.l.b16 %v659
        %v914 = vunpack.c.h.b16 %v659
        %v915 = vunpack.c.l.b16 %v660
        %v916 = vunpack.c.h.b16 %v660
        %v917 = vunpack.c.l.b16 %v661
        %v918 = vunpack.c.h.b16 %v661
        %v919 = vunpack.c.l.b16 %v662
        %v920 = vunpack.c.h.b16 %v662
        %v921 = vunpack.c.l.b16 %v663
        %v922 = vunpack.c.h.b16 %v663
        %v923 = vunpack.c.l.b16 %v664
        %v924 = vunpack.c.h.b16 %v664
        %v925 = vunpack.c.l.b16 %v665
        %v926 = vunpack.c.h.b16 %v665
        %v927 = vunpack.c.l.b16 %v666
        %v928 = vunpack.c.h.b16 %v666
        %v929 = vunpack.c.l.b16 %v667
        %v930 = vunpack.c.h.b16 %v667
        %v931 = vunpack.c.l.b16 %v668
        %v932 = vunpack.c.h.b16 %v668
        %v933 = vunpack.c.l.b16 %v669
        %v934 = vunpack.c.h.b16 %v669
        %v935 = vunpack.c.l.b16 %v670
        %v936 = vunpack.c.h.b16 %v670
        %v937 = vunpack.c.l.b16 %v671
        %v938 = vunpack.c.h.b16 %v671
        %v939 = vunpack.c.l.b16 %v672
        %v940 = vunpack.c.h.b16 %v672
        %v941 = vunpack.c.l.b16 %v673
        %v942 = vunpack.c.h.b16 %v673
        %v943 = vunpack.c.l.b16 %v674
        %v944 = vunpack.c.h.b16 %v674
        %v945 = vunpack.c.l.b16 %v675
        %v946 = vunpack.c.h.b16 %v675
        %v947 = vunpack.c.l.b16 %v676
        %v948 = vunpack.c.h.b16 %v676
        %v949 = vunpack.c.l.b16 %v677
        %v950 = vunpack.c.h.b16 %v677
        %v951 = vunpack.c.l.b16 %v678
        %v952 = vunpack.c.h.b16 %v678
        %v953 = vunpack.c.l.b16 %v679
        %v954 = vunpack.c.h.b16 %v679
        %v955 = vunpack.c.l.b16 %v680
        %v956 = vunpack.c.h.b16 %v680
        %v957 = vunpack.c.l.b16 %v681
        %v958 = vunpack.c.h.b16 %v681
        %v959 = vunpack.c.l.b16 %v682
        %v960 = vunpack.c.h.b16 %v682
        %v961 = vunpack.c.l.b16 %v683
        %v962 = vunpack.c.h.b16 %v683
        %v963 = vunpack.c.l.b16 %v684
        %v964 = vunpack.c.h.b16 %v684
        %v965 = vunpack.c.l.b16 %v685
        %v966 = vunpack.c.h.b16 %v685
        %v967 = vunpack.c.l.b16 %v686
        %v968 = vunpack.c.h.b16 %v686
        %v969 = vunpack.c.l.b16 %v687
        %v970 = vunpack.c.h.b16 %v687
        %v971 = vunpack.c.l.b16 %v688
        %v972 = vunpack.c.h.b16 %v688
        %v973 = vunpack.c.l.b16 %v689
        %v974 = vunpack.c.h.b16 %v689
        %v975 = vunpack.c.l.b16 %v690
        %v976 = vunpack.c.h.b16 %v690
        %v977 = vunpack.c.l.b16 %v691
        %v978 = vunpack.c.h.b16 %v691
        %v979 = vunpack.c.l.b16 %v692
        %v980 = vunpack.c.h.b16 %v692
        %v981 = vunpack.c.l.b16 %v693
        %v982 = vunpack.c.h.b16 %v693
        %v983 = vunpack.c.l.b16 %v694
        %v984 = vunpack.c.h.b16 %v694
        %v985 = vunpack.c.l.b16 %v695
        %v986 = vunpack.c.h.b16 %v695
        %v987 = vunpack.c.l.b16 %v696
        %v988 = vunpack.c.h.b16 %v696
        %v989 = vunpack.c.l.b16 %v697
        %v990 = vunpack.c.h.b16 %v697
        %v991 = vunpack.c.l.b16 %v698
        %v992 = vunpack.c.h.b16 %v698
        %v993 = vunpack.c.l.b16 %v699
        %v994 = vunpack.c.h.b16 %v699
        %v995 = vpack.c.b16 %v809, %v803
        %v996 = vpack.c.b16 %v810, %v804
        %v997 = vpack.c.b16 %v811, %v805
        %v998 = vpack.c.b16 %v812, %v806
        %v999 = vpack.c.b16 %v813, %v807
        %v1000 = vpack.c.b16 %v814, %v808
        %v1001 = vpack.c.b16 %v821, %v815
        %v1002 = vpack.c.b16 %v822, %v816
        %v1003 = vpack.c.b16 %v823, %v817
        %v1004 = vpack.c.b16 %v824, %v818
        %v1005 = vpack.c.b16 %v825, %v819
        %v1006 = vpack.c.b16 %v826, %v820
        %v1007 = vpack.c.b16 %v833, %v827
        %v1008 = vpack.c.b16 %v834, %v828
        %v1009 = vpack.c.b16 %v835, %v829
        %v1010 = vpack.c.b16 %v836, %v830
        %v1011 = vpack.c.b16 %v837, %v831
        %v1012 = vpack.c.b16 %v838, %v832
        %v1013 = vpack.c.b16 %v845, %v839
        %v1014 = vpack.c.b16 %v846, %v840
        %v1015 = vpack.c.b16 %v847, %v841
        %v1016 = vpack.c.b16 %v848, %v842
        %v1017 = vpack.c.b16 %v849, %v843
        %v1018 = vpack.c.b16 %v850, %v844
        %v1019 = vpack.c.b16 %v857, %v851
        %v1020 = vpack.c.b16 %v858, %v852
        %v1021 = vpack.c.b16 %v859, %v853
        %v1022 = vpack.c.b16 %v860, %v854
        %v1023 = vpack.c.b16 %v861, %v855
        %v1024 = vpack.c.b16 %v862, %v856
        %v1025 = vpack.c.b16 %v869, %v863
        %v1026 = vpack.c.b16 %v870, %v864
        %v1027 = vpack.c.b16 %v871, %v865
        %v1028 = vpack.c.b16 %v872, %v866
        %v1029 = vpack.c.b16 %v873, %v867
        %v1030 = vpack.c.b16 %v874, %v868
        %v1031 = vpack.c.b16 %v881, %v875
        %v1032 = vpack.c.b16 %v882, %v876
        %v1033 = vpack.c.b16 %v883, %v877
        %v1034 = vpack.c.b16 %v884, %v878
        %v1035 = vpack.c.b16 %v885, %v879
        %v1036 = vpack.c.b16 %v886, %v880
        %v1037 = vpack.c.b16 %v893, %v887
        %v1038 = vpack.c.b16 %v894, %v888
        %v1039 = vpack.c.b16 %v895, %v889
        %v1040 = vpack.c.b16 %v896, %v890
        %v1041 = vpack.c.b16 %v897, %v891
        %v1042 = vpack.c.b16 %v898, %v892
        %v1043 = vpack.c.b16 %v905, %v899
        %v1044 = vpack.c.b16 %v906, %v900
        %v1045 = vpack.c.b16 %v907, %v901
        %v1046 = vpack.c.b16 %v908, %v902
        %v1047 = vpack.c.b16 %v909, %v903
        %v1048 = vpack.c.b16 %v910, %v904
        %v1049 = vpack.c.b16 %v917, %v911
        %v1050 = vpack.c.b16 %v918, %v912
        %v1051 = vpack.c.b16 %v919, %v913
        %v1052 = vpack.c.b16 %v920, %v914
        %v1053 = vpack.c.b16 %v921, %v915
        %v1054 = vpack.c.b16 %v922, %v916
        %v1055 = vpack.c.b16 %v929, %v923
        %v1056 = vpack.c.b16 %v930, %v924
        %v1057 = vpack.c.b16 %v931, %v925
        %v1058 = vpack.c.b16 %v932, %v926
        %v1059 = vpack.c.b16 %v933, %v927
        %v1060 = vpack.c.b16 %v934, %v928
        %v1061 = vpack.c.b16 %v941, %v935
        %v1062 = vpack.c.b16 %v942, %v936
        %v1063 = vpack.c.b16 %v943, %v937
        %v1064 = vpack.c.b16 %v944, %v938
        %v1065 = vpack.c.b16 %v945, %v939
        %v1066 = vpack.c.b16 %v946, %v940
        %v1067 = vpack.c.b16 %v953, %v947
        %v1068 = vpack.c.b16 %v954, %v948
        %v1069 = vpack.c.b16 %v955, %v949
        %v1070 = vpack.c.b16 %v956, %v950
        %v1071 = vpack.c.b16 %v957, %v951
        %v1072 = vpack.c.b16 %v958, %v952
        %v1073 = vpack.c.b16 %v965, %v959
        %v1074 = vpack.c.b16 %v966, %v960
        %v1075 = vpack.c.b16 %v967, %v961
        %v1076 = vpack.c.b16 %v968, %v962
        %v1077 = vpack.c.b16 %v969, %v963
        %v1078 = vpack.c.b16 %v970, %v964
        %v1079 = vpack.c.b16 %v977, %v971
        %v1080 = vpack.c.b16 %v978, %v972
        %v1081 = vpack.c.b16 %v979, %v973
        %v1082 = vpack.c.b16 %v980, %v974
        %v1083 = vpack.c.b16 %v981, %v975
        %v1084 = vpack.c.b16 %v982, %v976
        %v1085 = vpack.c.b16 %v989, %v983
        %v1086 = vpack.c.b16 %v990, %v984
        %v1087 = vpack.c.b16 %v991, %v985
        %v1088 = vpack.c.b16 %v992, %v986
        %v1089 = vpack.c.b16 %v993, %v987
        %v1090 = vpack.c.b16 %v994, %v988
        %v1379 = vunpack.c.l.b16 %v314
        %v1380 = vunpack.c.h.b16 %v314
        %v1381 = vunpack.c.l.b16 %v315
        %v1382 = vunpack.c.l.b16 %v316
        %v1383 = vunpack.c.h.b16 %v316
        %v1384 = vunpack.c.l.b16 %v317
        %v1385 = vunpack.c.l.b16 %v318
        %v1386 = vunpack.c.h.b16 %v318
        %v1387 = vunpack.c.l.b16 %v319
        %v1388 = vunpack.c.l.b16 %v320
        %v1389 = vunpack.c.h.b16 %v320
        %v1390 = vunpack.c.l.b16 %v321
        %v1391 = vunpack.c.l.b16 %v322
        %v1392 = vunpack.c.h.b16 %v322
        %v1393 = vunpack.c.l.b16 %v323
        %v1394 = vunpack.c.l.b16 %v324
        %v1395 = vunpack.c.h.b16 %v324
        %v1396 = vunpack.c.l.b16 %v325
        %v1397 = vunpack.c.l.b16 %v326
        %v1398 = vunpack.c.h.b16 %v326
        %v1399 = vunpack.c.l.b16 %v327
        %v1400 = vunpack.c.l.b16 %v328
        %v1401 = vunpack.c.h.b16 %v328
        %v1402 = vunpack.c.l.b16 %v329
        %v1403 = vunpack.c.l.b16 %v330
        %v1404 = vunpack.c.h.b16 %v330
        %v1405 = vunpack.c.l.b16 %v331
        %v1406 = vunpack.c.l.b16 %v332
        %v1407 = vunpack.c.h.b16 %v332
        %v1408 = vunpack.c.l.b16 %v333
        %v1409 = vunpack.c.l.b16 %v334
        %v1410 = vunpack.c.h.b16 %v334
        %v1411 = vunpack.c.l.b16 %v335
        %v1412 = vunpack.c.l.b16 %v336
        %v1413 = vunpack.c.h.b16 %v336
        %v1414 = vunpack.c.l.b16 %v337
        %v1415 = vunpack.c.l.b16 %v338
        %v1416 = vunpack.c.h.b16 %v338
        %v1417 = vunpack.c.l.b16 %v339
        %v1418 = vunpack.c.l.b16 %v340
        %v1419 = vunpack.c.h.b16 %v340
        %v1420 = vunpack.c.l.b16 %v341
        %v1421 = vunpack.c.l.b16 %v342
        %v1422 = vunpack.c.h.b16 %v342
        %v1423 = vunpack.c.l.b16 %v343
        %v1424 = vunpack.c.l.b16 %v344
        %v1425 = vunpack.c.h.b16 %v344
        %v1426 = vunpack.c.l.b16 %v345
        %v1427 = vunpack.c.l.b16 %v346
        %v1428 = vunpack.c.h.b16 %v346
        %v1429 = vunpack.c.l.b16 %v347
        %v1430 = vunpack.c.l.b16 %v348
        %v1431 = vunpack.c.h.b16 %v348
        %v1432 = vunpack.c.l.b16 %v349
        %v1433 = vunpack.c.l.b16 %v350
        %v1434 = vunpack.c.h.b16 %v350
        %v1435 = vunpack.c.l.b16 %v351
        %v1436 = vunpack.c.l.b16 %v352
        %v1437 = vunpack.c.h.b16 %v352
        %v1438 = vunpack.c.l.b16 %v353
        %v1439 = vunpack.c.l.b16 %v354
        %v1440 = vunpack.c.h.b16 %v354
        %v1441 = vunpack.c.l.b16 %v355
        %v1442 = vunpack.c.l.b16 %v356
        %v1443 = vunpack.c.h.b16 %v356
        %v1444 = vunpack.c.l.b16 %v357
        %v1445 = vunpack.c.l.b16 %v358
        %v1446 = vunpack.c.h.b16 %v358
        %v1447 = vunpack.c.l.b16 %v359
        %v1448 = vunpack.c.l.b16 %v360
        %v1449 = vunpack.c.h.b16 %v360
        %v1450 = vunpack.c.l.b16 %v361
        %v1451 = vunpack.c.l.b16 %v362
        %v1452 = vunpack.c.h.b16 %v362
        %v1453 = vunpack.c.l.b16 %v363
        %v1454 = vunpack.c.l.b16 %v364
        %v1455 = vunpack.c.h.b16 %v364
        %v1456 = vunpack.c.l.b16 %v365
        %v1457 = vunpack.c.l.b16 %v366
        %v1458 = vunpack.c.h.b16 %v366
        %v1459 = vunpack.c.l.b16 %v367
        %v1460 = vunpack.c.l.b16 %v368
        %v1461 = vunpack.c.h.b16 %v368
        %v1462 = vunpack.c.l.b16 %v369
        %v1463 = vunpack.c.l.b16 %v370
        %v1464 = vunpack.c.h.b16 %v370
        %v1465 = vunpack.c.l.b16 %v371
        %v1466 = vunpack.c.l.b16 %v372
        %v1467 = vunpack.c.h.b16 %v372
        %v1468 = vunpack.c.l.b16 %v373
        %v1469 = vunpack.c.l.b16 %v374
        %v1470 = vunpack.c.h.b16 %v374
        %v1471 = vunpack.c.l.b16 %v375
        %v1472 = vunpack.c.l.b16 %v376
        %v1473 = vunpack.c.h.b16 %v376
        %v1474 = vunpack.c.l.b16 %v377
        %v1475 = vunpack.c.l.b16 %v378
        %v1476 = vunpack.c.h.b16 %v378
        %v1477 = vunpack.c.l.b16 %v379
        %v1478 = vunpack.c.l.b16 %v380
        %v1479 = vunpack.c.h.b16 %v380
        %v1480 = vunpack.c.l.b16 %v381
        %v1481 = vunpack.c.l.b16 %v382
        %v1482 = vunpack.c.h.b16 %v382
        %v1483 = vunpack.c.l.b16 %v383
        %v1484 = vunpack.c.l.b16 %v384
        %v1485 = vunpack.c.h.b16 %v384
        %v1486 = vunpack.c.l.b16 %v385
        %v1487 = vunpack.c.l.b16 %v386
        %v1488 = vunpack.c.h.b16 %v386
        %v1489 = vunpack.c.l.b16 %v387
        %v1490 = vunpack.c.l.b16 %v388
        %v1491 = vunpack.c.h.b16 %v388
        %v1492 = vunpack.c.l.b16 %v389
        %v1493 = vunpack.c.l.b16 %v390
        %v1494 = vunpack.c.h.b16 %v390
        %v1495 = vunpack.c.l.b16 %v391
        %v1496 = vunpack.c.l.b16 %v392
        %v1497 = vunpack.c.h.b16 %v392
        %v1498 = vunpack.c.l.b16 %v393
        %v1499 = vunpack.c.l.b16 %v394
        %v1500 = vunpack.c.h.b16 %v394
        %v1501 = vunpack.c.l.b16 %v395
        %v1502 = vunpack.c.l.b16 %v396
        %v1503 = vunpack.c.h.b16 %v396
        %v1504 = vunpack.c.l.b16 %v397
        %v1505 = vunpack.c.l.b16 %v398
        %v1506 = vunpack.c.h.b16 %v398
        %v1507 = vunpack.c.l.b16 %v399
        %v1508 = vunpack.c.l.b16 %v400
        %v1509 = vunpack.c.h.b16 %v400
        %v1510 = vunpack.c.l.b16 %v401
        %v1511 = vunpack.c.l.b16 %v402
        %v1512 = vunpack.c.h.b16 %v402
        %v1513 = vunpack.c.l.b16 %v403
        %v1514 = vunpack.c.l.b16 %v404
        %v1515 = vunpack.c.h.b16 %v404
        %v1516 = vunpack.c.l.b16 %v405
        %v1517 = vunpack.c.l.b16 %v406
        %v1518 = vunpack.c.h.b16 %v406
        %v1519 = vunpack.c.l.b16 %v407
        %v1520 = vunpack.c.l.b16 %v408
        %v1521 = vunpack.c.h.b16 %v408
        %v1522 = vunpack.c.l.b16 %v409
        %v1523 = vunpack.c.l.b16 %v410
        %v1524 = vunpack.c.h.b16 %v410
        %v1525 = vunpack.c.l.b16 %v411
        %v1526 = vunpack.c.l.b16 %v412
        %v1527 = vunpack.c.h.b16 %v412
        %v1528 = vunpack.c.l.b16 %v413
        %v1529 = vunpack.c.l.b16 %v414
        %v1530 = vunpack.c.h.b16 %v414
        %v1531 = vunpack.c.l.b16 %v415
        %v1532 = vunpack.c.l.b16 %v416
        %v1533 = vunpack.c.h.b16 %v416
        %v1534 = vunpack.c.l.b16 %v417
        %v1535 = vunpack.c.l.b16 %v418
        %v1536 = vunpack.c.h.b16 %v418
        %v1537 = vunpack.c.l.b16 %v419
        %v1538 = vunpack.c.l.b16 %v420
        %v1539 = vunpack.c.h.b16 %v420
        %v1540 = vunpack.c.l.b16 %v421
        %v1541 = vunpack.c.l.b16 %v422
        %v1542 = vunpack.c.h.b16 %v422
        %v1543 = vunpack.c.l.b16 %v423
        %v1544 = vunpack.c.l.b16 %v424
        %v1545 = vunpack.c.h.b16 %v424
        %v1546 = vunpack.c.l.b16 %v425
        %v1547 = vunpack.c.l.b16 %v426
        %v1548 = vunpack.c.h.b16 %v426
        %v1549 = vunpack.c.l.b16 %v427
        %v1550 = vunpack.c.l.b16 %v428
        %v1551 = vunpack.c.h.b16 %v428
        %v1552 = vunpack.c.l.b16 %v429
        %v1553 = vunpack.c.l.b16 %v430
        %v1554 = vunpack.c.h.b16 %v430
        %v1555 = vunpack.c.l.b16 %v431
        %v1556 = vunpack.c.l.b16 %v432
        %v1557 = vunpack.c.h.b16 %v432
        %v1558 = vunpack.c.l.b16 %v433
        %v1559 = vunpack.c.l.b16 %v434
        %v1560 = vunpack.c.h.b16 %v434
        %v1561 = vunpack.c.l.b16 %v435
        %v1562 = vunpack.c.l.b16 %v436
        %v1563 = vunpack.c.h.b16 %v436
        %v1564 = vunpack.c.l.b16 %v437
        %v1565 = vunpack.c.l.b16 %v438
        %v1566 = vunpack.c.h.b16 %v438
        %v1567 = vunpack.c.l.b16 %v439
        %v1568 = vunpack.c.l.b16 %v440
        %v1569 = vunpack.c.h.b16 %v440
        %v1570 = vunpack.c.l.b16 %v441
        %v1571 = vunpack.c.l.b16 %v442
        %v1572 = vunpack.c.h.b16 %v442
        %v1573 = vunpack.c.l.b16 %v443
        %v1574 = vunpack.c.l.b16 %v444
        %v1575 = vunpack.c.h.b16 %v444
        %v1576 = vunpack.c.l.b16 %v445
        %v1577 = vunpack.c.l.b16 %v446
        %v1578 = vunpack.c.h.b16 %v446
        %v1579 = vunpack.c.l.b16 %v447
        %v1580 = vunpack.c.l.b16 %v448
        %v1581 = vunpack.c.h.b16 %v448
        %v1582 = vunpack.c.l.b16 %v449
        %v1583 = vunpack.c.l.b16 %v450
        %v1584 = vunpack.c.h.b16 %v450
        %v1585 = vunpack.c.l.b16 %v451
        %v1586 = vunpack.c.l.b16 %v452
        %v1587 = vunpack.c.h.b16 %v452
        %v1588 = vunpack.c.l.b16 %v453
        %v1589 = vunpack.c.l.b16 %v454
        %v1590 = vunpack.c.h.b16 %v454
        %v1591 = vunpack.c.l.b16 %v455
        %v1592 = vunpack.c.l.b16 %v456
        %v1593 = vunpack.c.h.b16 %v456
        %v1594 = vunpack.c.l.b16 %v457
        %v1595 = vunpack.c.l.b16 %v458
        %v1596 = vunpack.c.h.b16 %v458
        %v1597 = vunpack.c.l.b16 %v459
        %v1598 = vunpack.c.l.b16 %v460
        %v1599 = vunpack.c.h.b16 %v460
        %v1600 = vunpack.c.l.b16 %v461
        %v1601 = vunpack.c.l.b16 %v462
        %v1602 = vunpack.c.h.b16 %v462
        %v1603 = vunpack.c.l.b16 %v463
        %v1604 = vunpack.c.l.b16 %v464
        %v1605 = vunpack.c.h.b16 %v464
        %v1606 = vunpack.c.l.b16 %v465
        %v1607 = vunpack.c.l.b16 %v466
        %v1608 = vunpack.c.h.b16 %v466
        %v1609 = vunpack.c.l.b16 %v467
        %v1610 = vunpack.c.l.b16 %v468
        %v1611 = vunpack.c.h.b16 %v468
        %v1612 = vunpack.c.l.b16 %v469
        %v1613 = vunpack.c.l.b16 %v470
        %v1614 = vunpack.c.h.b16 %v470
        %v1615 = vunpack.c.l.b16 %v471
        %v1616 = vunpack.c.l.b16 %v472
        %v1617 = vunpack.c.h.b16 %v472
        %v1618 = vunpack.c.l.b16 %v473
        %v1619 = vunpack.c.l.b16 %v474
        %v1620 = vunpack.c.h.b16 %v474
        %v1621 = vunpack.c.l.b16 %v475
        %v1622 = vunpack.c.l.b16 %v476
        %v1623 = vunpack.c.h.b16 %v476
        %v1624 = vunpack.c.l.b16 %v477
        %v1625 = vunpack.c.l.b16 %v478
        %v1626 = vunpack.c.h.b16 %v478
        %v1627 = vunpack.c.l.b16 %v479
        %v1628 = vunpack.c.l.b16 %v480
        %v1629 = vunpack.c.h.b16 %v480
        %v1630 = vunpack.c.l.b16 %v481
        %v1631 = vunpack.c.l.b16 %v482
        %v1632 = vunpack.c.h.b16 %v482
        %v1633 = vunpack.c.l.b16 %v483
        %v1634 = vunpack.c.l.b16 %v484
        %v1635 = vunpack.c.h.b16 %v484
        %v1636 = vunpack.c.l.b16 %v485
        %v1637 = vunpack.c.l.b16 %v486
        %v1638 = vunpack.c.h.b16 %v486
        %v1639 = vunpack.c.l.b16 %v487
        %v1640 = vunpack.c.l.b16 %v488
        %v1641 = vunpack.c.h.b16 %v488
        %v1642 = vunpack.c.l.b16 %v489
        %v1643 = vunpack.c.l.b16 %v490
        %v1644 = vunpack.c.h.b16 %v490
        %v1645 = vunpack.c.l.b16 %v491
        %v1646 = vunpack.c.l.b16 %v492
        %v1647 = vunpack.c.h.b16 %v492
        %v1648 = vunpack.c.l.b16 %v493
        %v1649 = vunpack.c.l.b16 %v494
        %v1650 = vunpack.c.h.b16 %v494
        %v1651 = vunpack.c.l.b16 %v495
        %v1652 = vunpack.c.l.b16 %v496
        %v1653 = vunpack.c.h.b16 %v496
        %v1654 = vunpack.c.l.b16 %v497
        %v1655 = vunpack.c.l.b16 %v498
        %v1656 = vunpack.c.h.b16 %v498
        %v1657 = vunpack.c.l.b16 %v499
        %v1658 = vunpack.c.l.b16 %v500
        %v1659 = vunpack.c.h.b16 %v500
        %v1660 = vunpack.c.l.b16 %v501
        %v1661 = vunpack.c.l.b16 %v502
        %v1662 = vunpack.c.h.b16 %v502
        %v1663 = vunpack.c.l.b16 %v503
        %v1664 = vunpack.c.l.b16 %v504
        %v1665 = vunpack.c.h.b16 %v504
        %v1666 = vunpack.c.l.b16 %v505
        %v1667 = vpack.c.b16 %v1382, %v1379
        %v1668 = vpack.c.b16 %v1383, %v1380
        %v1669 = vpack.c.b16 %v1384, %v1381
        %v1670 = vpack.c.b16 %v1388, %v1385
        %v1671 = vpack.c.b16 %v1389, %v1386
        %v1672 = vpack.c.b16 %v1390, %v1387
        %v1673 = vpack.c.b16 %v1394, %v1391
        %v1674 = vpack.c.b16 %v1395, %v1392
        %v1675 = vpack.c.b16 %v1396, %v1393
        %v1676 = vpack.c.b16 %v1400, %v1397
        %v1677 = vpack.c.b16 %v1401, %v1398
        %v1678 = vpack.c.b16 %v1402, %v1399
        %v1679 = vpack.c.b16 %v1406, %v1403
        %v1680 = vpack.c.b16 %v1407, %v1404
        %v1681 = vpack.c.b16 %v1408, %v1405
        %v1682 = vpack.c.b16 %v1412, %v1409
        %v1683 = vpack.c.b16 %v1413, %v1410
        %v1684 = vpack.c.b16 %v1414, %v1411
        %v1685 = vpack.c.b16 %v1418, %v1415
        %v1686 = vpack.c.b16 %v1419, %v1416
        %v1687 = vpack.c.b16 %v1420, %v1417
        %v1688 = vpack.c.b16 %v1424, %v1421
        %v1689 = vpack.c.b16 %v1425, %v1422
        %v1690 = vpack.c.b16 %v1426, %v1423
        %v1691 = vpack.c.b16 %v1430, %v1427
        %v1692 = vpack.c.b16 %v1431, %v1428
        %v1693 = vpack.c.b16 %v1432, %v1429
        %v1694 = vpack.c.b16 %v1436, %v1433
        %v1695 = vpack.c.b16 %v1437, %v1434
        %v1696 = vpack.c.b16 %v1438, %v1435
        %v1697 = vpack.c.b16 %v1442, %v1439
        %v1698 = vpack.c.b16 %v1443, %v1440
        %v1699 = vpack.c.b16 %v1444, %v1441
        %v1700 = vpack.c.b16 %v1448, %v1445
        %v1701 = vpack.c.b16 %v1449, %v1446
        %v1702 = vpack.c.b16 %v1450, %v1447
        %v1703 = vpack.c.b16 %v1454, %v1451
        %v1704 = vpack.c.b16 %v1455, %v1452
        %v1705 = vpack.c.b16 %v1456, %v1453
        %v1706 = vpack.c.b16 %v1460, %v1457
        %v1707 = vpack.c.b16 %v1461, %v1458
        %v1708 = vpack.c.b16 %v1462, %v1459
        %v1709 = vpack.c.b16 %v1466, %v1463
        %v1710 = vpack.c.b16 %v1467, %v1464
        %v1711 = vpack.c.b16 %v1468, %v1465
        %v1712 = vpack.c.b16 %v1472, %v1469
        %v1713 = vpack.c.b16 %v1473, %v1470
        %v1714 = vpack.c.b16 %v1474, %v1471
        %v1715 = vpack.c.b16 %v1478, %v1475
        %v1716 = vpack.c.b16 %v1479, %v1476
        %v1717 = vpack.c.b16 %v1480, %v1477
        %v1718 = vpack.c.b16 %v1484, %v1481
        %v1719 = vpack.c.b16 %v1485, %v1482
        %v1720 = vpack.c.b16 %v1486, %v1483
        %v1721 = vpack.c.b16 %v1490, %v1487
        %v1722 = vpack.c.b16 %v1491, %v1488
        %v1723 = vpack.c.b16 %v1492, %v1489
        %v1724 = vpack.c.b16 %v1496, %v1493
        %v1725 = vpack.c.b16 %v1497, %v1494
        %v1726 = vpack.c.b16 %v1498, %v1495
        %v1727 = vpack.c.b16 %v1502, %v1499
        %v1728 = vpack.c.b16 %v1503, %v1500
        %v1729 = vpack.c.b16 %v1504, %v1501
        %v1730 = vpack.c.b16 %v1508, %v1505
        %v1731 = vpack.c.b16 %v1509, %v1506
        %v1732 = vpack.c.b16 %v1510, %v1507
        %v1733 = vpack.c.b16 %v1514, %v1511
        %v1734 = vpack.c.b16 %v1515, %v1512
        %v1735 = vpack.c.b16 %v1516, %v1513
        %v1736 = vpack.c.b16 %v1520, %v1517
        %v1737 = vpack.c.b16 %v1521, %v1518
        %v1738 = vpack.c.b16 %v1522, %v1519
        %v1739 = vpack.c.b16 %v1526, %v1523
        %v1740 = vpack.c.b16 %v1527, %v1524
        %v1741 = vpack.c.b16 %v1528, %v1525
        %v1742 = vpack.c.b16 %v1532, %v1529
        %v1743 = vpack.c.b16 %v1533, %v1530
        %v1744 = vpack.c.b16 %v1534, %v1531
        %v1745 = vpack.c.b16 %v1538, %v1535
        %v1746 = vpack.c.b16 %v1539, %v1536
        %v1747 = vpack.c.b16 %v1540, %v1537
        %v1748 = vpack.c.b16 %v1544, %v1541
        %v1749 = vpack.c.b16 %v1545, %v1542
        %v1750 = vpack.c.b16 %v1546, %v1543
        %v1751 = vpack.c.b16 %v1550, %v1547
        %v1752 = vpack.c.b16 %v1551, %v1548
        %v1753 = vpack.c.b16 %v1552, %v1549
        %v1754 = vpack.c.b16 %v1556, %v1553
        %v1755 = vpack.c.b16 %v1557, %v1554
        %v1756 = vpack.c.b16 %v1558, %v1555
        %v1757 = vpack.c.b16 %v1562, %v1559
        %v1758 = vpack.c.b16 %v1563, %v1560
        %v1759 = vpack.c.b16 %v1564, %v1561
        %v1760 = vpack.c.b16 %v1568, %v1565
        %v1761 = vpack.c.b16 %v1569, %v1566
        %v1762 = vpack.c.b16 %v1570, %v1567
        %v1763 = vpack.c.b16 %v1574, %v1571
        %v1764 = vpack.c.b16 %v1575, %v1572
        %v1765 = vpack.c.b16 %v1576, %v1573
        %v1766 = vpack.c.b16 %v1580, %v1577
        %v1767 = vpack.c.b16 %v1581, %v1578
        %v1768 = vpack.c.b16 %v1582, %v1579
        %v1769 = vpack.c.b16 %v1586, %v1583
        %v1770 = vpack.c.b16 %v1587, %v1584
        %v1771 = vpack.c.b16 %v1588, %v1585
        %v1772 = vpack.c.b16 %v1592, %v1589
        %v1773 = vpack.c.b16 %v1593, %v1590
        %v1774 = vpack.c.b16 %v1594, %v1591
        %v1775 = vpack.c.b16 %v1598, %v1595
        %v1776 = vpack.c.b16 %v1599, %v1596
        %v1777 = vpack.c.b16 %v1600, %v1597
        %v1778 = vpack.c.b16 %v1604, %v1601
        %v1779 = vpack.c.b16 %v1605, %v1602
        %v1780 = vpack.c.b16 %v1606, %v1603
        %v1781 = vpack.c.b16 %v1610, %v1607
        %v1782 = vpack.c.b16 %v1611, %v1608
        %v1783 = vpack.c.b16 %v1612, %v1609
        %v1784 = vpack.c.b16 %v1616, %v1613
        %v1785 = vpack.c.b16 %v1617, %v1614
        %v1786 = vpack.c.b16 %v1618, %v1615
        %v1787 = vpack.c.b16 %v1622, %v1619
        %v1788 = vpack.c.b16 %v1623, %v1620
        %v1789 = vpack.c.b16 %v1624, %v1621
        %v1790 = vpack.c.b16 %v1628, %v1625
        %v1791 = vpack.c.b16 %v1629, %v1626
        %v1792 = vpack.c.b16 %v1630, %v1627
        %v1793 = vpack.c.b16 %v1634, %v1631
        %v1794 = vpack.c.b16 %v1635, %v1632
        %v1795 = vpack.c.b16 %v1636, %v1633
        %v1796 = vpack.c.b16 %v1640, %v1637
        %v1797 = vpack.c.b16 %v1641, %v1638
        %v1798 = vpack.c.b16 %v1642, %v1639
        %v1799 = vpack.c.b16 %v1646, %v1643
        %v1800 = vpack.c.b16 %v1647, %v1644
        %v1801 = vpack.c.b16 %v1648, %v1645
        %v1802 = vpack.c.b16 %v1652, %v1649
        %v1803 = vpack.c.b16 %v1653, %v1650
        %v1804 = vpack.c.b16 %v1654, %v1651
        %v1805 = vpack.c.b16 %v1658, %v1655
        %v1806 = vpack.c.b16 %v1659, %v1656
        %v1807 = vpack.c.b16 %v1660, %v1657
        %v1808 = vpack.c.b16 %v1664, %v1661
        %v1809 = vpack.c.b16 %v1665, %v1662
        %v1810 = vpack.c.b16 %v1666, %v1663
        %1955 = vmatpush.bf16.msra.mxu0 %v1688
        %1956 = vmatpush.bf16.msra.mxu0 %v1685
        %1957 = vmatpush.bf16.msra.mxu0 %v1682
        %1958 = vmatpush.bf16.msra.mxu0 %v1679
        %1959 = vmatpush.bf16.msra.mxu0 %v1676
        %1960 = vmatpush.bf16.msra.mxu0 %v1673
        %1961 = vmatpush.bf16.msra.mxu0 %v1670
        %1962 = vmatpush.bf16.msra.mxu0 %v1667
        %1963 = vmatmul.bf16.gmra.mxu0 %v995
        %v1964 = vpop.f32.mrf.mxu0
        %v1965 = vadd.f32 %v701, %v1964
        %v1966 = vpop.f32.mrf.mxu0
        %v1967 = vadd.f32 %v701, %v1966
        %1968 = vmatmul.bf16.gmra.mxu0 %v1001
        %v1969 = vpop.f32.mrf.mxu0
        %v1970 = vadd.f32 %v701, %v1969
        %v1971 = vpop.f32.mrf.mxu0
        %v1972 = vadd.f32 %v701, %v1971
        %1973 = vmatmul.bf16.gmra.mxu0 %v1007
        %v1974 = vpop.f32.mrf.mxu0
        %v1975 = vadd.f32 %v701, %v1974
        %v1976 = vpop.f32.mrf.mxu0
        %v1977 = vadd.f32 %v701, %v1976
        %1978 = vmatmul.bf16.gmra.mxu0 %v1013
        %v1979 = vpop.f32.mrf.mxu0
        %v1980 = vadd.f32 %v701, %v1979
        %v1981 = vpop.f32.mrf.mxu0
        %v1982 = vadd.f32 %v701, %v1981
        %1983 = vmatmul.bf16.gmra.mxu0 %v1019
        %v1984 = vpop.f32.mrf.mxu0
        %v1985 = vadd.f32 %v701, %v1984
        %v1986 = vpop.f32.mrf.mxu0
        %v1987 = vadd.f32 %v701, %v1986
        %1988 = vmatmul.bf16.gmra.mxu0 %v1025
        %v1989 = vpop.f32.mrf.mxu0
        %v1990 = vadd.f32 %v701, %v1989
        %v1991 = vpop.f32.mrf.mxu0
        %v1992 = vadd.f32 %v701, %v1991
        %1993 = vmatmul.bf16.gmra.mxu0 %v1031
        %v1994 = vpop.f32.mrf.mxu0
        %v1995 = vadd.f32 %v701, %v1994
        %v1996 = vpop.f32.mrf.mxu0
        %v1997 = vadd.f32 %v701, %v1996
        %1998 = vmatmul.bf16.gmra.mxu0 %v1037
        %v1999 = vpop.f32.mrf.mxu0
        %v2000 = vadd.f32 %v701, %v1999
        %v2001 = vpop.f32.mrf.mxu0
        %v2002 = vadd.f32 %v701, %v2001
        %2003 = vmatmul.bf16.gmra.mxu0 %v1043
        %v2004 = vpop.f32.mrf.mxu0
        %v2005 = vadd.f32 %v701, %v2004
        %v2006 = vpop.f32.mrf.mxu0
        %v2007 = vadd.f32 %v701, %v2006
        %2008 = vmatmul.bf16.gmra.mxu0 %v1049
        %v2009 = vpop.f32.mrf.mxu0
        %v2010 = vadd.f32 %v701, %v2009
        %v2011 = vpop.f32.mrf.mxu0
        %v2012 = vadd.f32 %v701, %v2011
        %2013 = vmatmul.bf16.gmra.mxu0 %v1055
        %v2014 = vpop.f32.mrf.mxu0
        %v2015 = vadd.f32 %v701, %v2014
        %v2016 = vpop.f32.mrf.mxu0
        %v2017 = vadd.f32 %v701, %v2016
        %2018 = vmatmul.bf16.gmra.mxu0 %v1061
        %v2019 = vpop.f32.mrf.mxu0
        %v2020 = vadd.f32 %v701, %v2019
        %v2021 = vpop.f32.mrf.mxu0
        %v2022 = vadd.f32 %v701, %v2021
        %2023 = vmatmul.bf16.gmra.mxu0 %v1067
        %v2024 = vpop.f32.mrf.mxu0
        %v2025 = vadd.f32 %v701, %v2024
        %v2026 = vpop.f32.mrf.mxu0
        %v2027 = vadd.f32 %v701, %v2026
        %2028 = vmatmul.bf16.gmra.mxu0 %v1073
        %v2029 = vpop.f32.mrf.mxu0
        %v2030 = vadd.f32 %v701, %v2029
        %v2031 = vpop.f32.mrf.mxu0
        %v2032 = vadd.f32 %v701, %v2031
        %2033 = vmatmul.bf16.gmra.mxu0 %v1079
        %v2034 = vpop.f32.mrf.mxu0
        %v2035 = vadd.f32 %v701, %v2034
        %v2036 = vpop.f32.mrf.mxu0
        %v2037 = vadd.f32 %v701, %v2036
        %2038 = vmatmul.bf16.gmra.mxu0 %v1085
        %v2039 = vpop.f32.mrf.mxu0
        %v2040 = vadd.f32 %v701, %v2039
        %v2041 = vpop.f32.mrf.mxu0
        %v2042 = vadd.f32 %v701, %v2041
        %2043 = vdwg.mxu0
        %2044 = vmatpush.bf16.msra.mxu0 %v1712
        %2045 = vmatpush.bf16.msra.mxu0 %v1709
        %2046 = vmatpush.bf16.msra.mxu0 %v1706
        %2047 = vmatpush.bf16.msra.mxu0 %v1703
        %2048 = vmatpush.bf16.msra.mxu0 %v1700
        %2049 = vmatpush.bf16.msra.mxu0 %v1697
        %2050 = vmatpush.bf16.msra.mxu0 %v1694
        %2051 = vmatpush.bf16.msra.mxu0 %v1691
        %2052 = vmatmul.bf16.gmra.mxu0 %v996
        %v2053 = vpop.f32.mrf.mxu0
        %v2054 = vadd.f32 %v1965, %v2053
        %v2055 = vpop.f32.mrf.mxu0
        %v2056 = vadd.f32 %v1967, %v2055
        %2057 = vmatmul.bf16.gmra.mxu0 %v1002
        %v2058 = vpop.f32.mrf.mxu0
        %v2059 = vadd.f32 %v1970, %v2058
        %v2060 = vpop.f32.mrf.mxu0
        %v2061 = vadd.f32 %v1972, %v2060
        %2062 = vmatmul.bf16.gmra.mxu0 %v1008
        %v2063 = vpop.f32.mrf.mxu0
        %v2064 = vadd.f32 %v1975, %v2063
        %v2065 = vpop.f32.mrf.mxu0
        %v2066 = vadd.f32 %v1977, %v2065
        %2067 = vmatmul.bf16.gmra.mxu0 %v1014
        %v2068 = vpop.f32.mrf.mxu0
        %v2069 = vadd.f32 %v1980, %v2068
        %v2070 = vpop.f32.mrf.mxu0
        %v2071 = vadd.f32 %v1982, %v2070
        %2072 = vmatmul.bf16.gmra.mxu0 %v1020
        %v2073 = vpop.f32.mrf.mxu0
        %v2074 = vadd.f32 %v1985, %v2073
        %v2075 = vpop.f32.mrf.mxu0
        %v2076 = vadd.f32 %v1987, %v2075
        %2077 = vmatmul.bf16.gmra.mxu0 %v1026
        %v2078 = vpop.f32.mrf.mxu0
        %v2079 = vadd.f32 %v1990, %v2078
        %v2080 = vpop.f32.mrf.mxu0
        %v2081 = vadd.f32 %v1992, %v2080
        %2082 = vmatmul.bf16.gmra.mxu0 %v1032
        %v2083 = vpop.f32.mrf.mxu0
        %v2084 = vadd.f32 %v1995, %v2083
        %v2085 = vpop.f32.mrf.mxu0
        %v2086 = vadd.f32 %v1997, %v2085
        %2087 = vmatmul.bf16.gmra.mxu0 %v1038
        %v2088 = vpop.f32.mrf.mxu0
        %v2089 = vadd.f32 %v2000, %v2088
        %v2090 = vpop.f32.mrf.mxu0
        %v2091 = vadd.f32 %v2002, %v2090
        %2092 = vmatmul.bf16.gmra.mxu0 %v1044
        %v2093 = vpop.f32.mrf.mxu0
        %v2094 = vadd.f32 %v2005, %v2093
        %v2095 = vpop.f32.mrf.mxu0
        %v2096 = vadd.f32 %v2007, %v2095
        %2097 = vmatmul.bf16.gmra.mxu0 %v1050
        %v2098 = vpop.f32.mrf.mxu0
        %v2099 = vadd.f32 %v2010, %v2098
        %v2100 = vpop.f32.mrf.mxu0
        %v2101 = vadd.f32 %v2012, %v2100
        %2102 = vmatmul.bf16.gmra.mxu0 %v1056
        %v2103 = vpop.f32.mrf.mxu0
        %v2104 = vadd.f32 %v2015, %v2103
        %v2105 = vpop.f32.mrf.mxu0
        %v2106 = vadd.f32 %v2017, %v2105
        %2107 = vmatmul.bf16.gmra.mxu0 %v1062
        %v2108 = vpop.f32.mrf.mxu0
        %v2109 = vadd.f32 %v2020, %v2108
        %v2110 = vpop.f32.mrf.mxu0
        %v2111 = vadd.f32 %v2022, %v2110
        %2112 = vmatmul.bf16.gmra.mxu0 %v1068
        %v2113 = vpop.f32.mrf.mxu0
        %v2114 = vadd.f32 %v2025, %v2113
        %v2115 = vpop.f32.mrf.mxu0
        %v2116 = vadd.f32 %v2027, %v2115
        %2117 = vmatmul.bf16.gmra.mxu0 %v1074
        %v2118 = vpop.f32.mrf.mxu0
        %v2119 = vadd.f32 %v2030, %v2118
        %v2120 = vpop.f32.mrf.mxu0
        %v2121 = vadd.f32 %v2032, %v2120
        %2122 = vmatmul.bf16.gmra.mxu0 %v1080
        %v2123 = vpop.f32.mrf.mxu0
        %v2124 = vadd.f32 %v2035, %v2123
        %v2125 = vpop.f32.mrf.mxu0
        %v2126 = vadd.f32 %v2037, %v2125
        %2127 = vmatmul.bf16.gmra.mxu0 %v1086
        %v2128 = vpop.f32.mrf.mxu0
        %v2129 = vadd.f32 %v2040, %v2128
        %v2130 = vpop.f32.mrf.mxu0
        %v2131 = vadd.f32 %v2042, %v2130
        %2132 = vdwg.mxu0
        %2133 = vmatpush.bf16.msra.mxu0 %v1736
        %2134 = vmatpush.bf16.msra.mxu0 %v1733
        %2135 = vmatpush.bf16.msra.mxu0 %v1730
        %2136 = vmatpush.bf16.msra.mxu0 %v1727
        %2137 = vmatpush.bf16.msra.mxu0 %v1724
        %2138 = vmatpush.bf16.msra.mxu0 %v1721
        %2139 = vmatpush.bf16.msra.mxu0 %v1718
        %2140 = vmatpush.bf16.msra.mxu0 %v1715
        %2141 = vmatmul.bf16.gmra.mxu0 %v997
        %v2142 = vpop.f32.mrf.mxu0
        %v2143 = vadd.f32 %v2054, %v2142
        %v2144 = vpop.f32.mrf.mxu0
        %v2145 = vadd.f32 %v2056, %v2144
        %2146 = vmatmul.bf16.gmra.mxu0 %v1003
        %v2147 = vpop.f32.mrf.mxu0
        %v2148 = vadd.f32 %v2059, %v2147
        %v2149 = vpop.f32.mrf.mxu0
        %v2150 = vadd.f32 %v2061, %v2149
        %2151 = vmatmul.bf16.gmra.mxu0 %v1009
        %v2152 = vpop.f32.mrf.mxu0
        %v2153 = vadd.f32 %v2064, %v2152
        %v2154 = vpop.f32.mrf.mxu0
        %v2155 = vadd.f32 %v2066, %v2154
        %2156 = vmatmul.bf16.gmra.mxu0 %v1015
        %v2157 = vpop.f32.mrf.mxu0
        %v2158 = vadd.f32 %v2069, %v2157
        %v2159 = vpop.f32.mrf.mxu0
        %v2160 = vadd.f32 %v2071, %v2159
        %2161 = vmatmul.bf16.gmra.mxu0 %v1021
        %v2162 = vpop.f32.mrf.mxu0
        %v2163 = vadd.f32 %v2074, %v2162
        %v2164 = vpop.f32.mrf.mxu0
        %v2165 = vadd.f32 %v2076, %v2164
        %2166 = vmatmul.bf16.gmra.mxu0 %v1027
        %v2167 = vpop.f32.mrf.mxu0
        %v2168 = vadd.f32 %v2079, %v2167
        %v2169 = vpop.f32.mrf.mxu0
        %v2170 = vadd.f32 %v2081, %v2169
        %2171 = vmatmul.bf16.gmra.mxu0 %v1033
        %v2172 = vpop.f32.mrf.mxu0
        %v2173 = vadd.f32 %v2084, %v2172
        %v2174 = vpop.f32.mrf.mxu0
        %v2175 = vadd.f32 %v2086, %v2174
        %2176 = vmatmul.bf16.gmra.mxu0 %v1039
        %v2177 = vpop.f32.mrf.mxu0
        %v2178 = vadd.f32 %v2089, %v2177
        %v2179 = vpop.f32.mrf.mxu0
        %v2180 = vadd.f32 %v2091, %v2179
        %2181 = vmatmul.bf16.gmra.mxu0 %v1045
        %v2182 = vpop.f32.mrf.mxu0
        %v2183 = vadd.f32 %v2094, %v2182
        %v2184 = vpop.f32.mrf.mxu0
        %v2185 = vadd.f32 %v2096, %v2184
        %2186 = vmatmul.bf16.gmra.mxu0 %v1051
        %v2187 = vpop.f32.mrf.mxu0
        %v2188 = vadd.f32 %v2099, %v2187
        %v2189 = vpop.f32.mrf.mxu0
        %v2190 = vadd.f32 %v2101, %v2189
        %2191 = vmatmul.bf16.gmra.mxu0 %v1057
        %v2192 = vpop.f32.mrf.mxu0
        %v2193 = vadd.f32 %v2104, %v2192
        %v2194 = vpop.f32.mrf.mxu0
        %v2195 = vadd.f32 %v2106, %v2194
        %2196 = vmatmul.bf16.gmra.mxu0 %v1063
        %v2197 = vpop.f32.mrf.mxu0
        %v2198 = vadd.f32 %v2109, %v2197
        %v2199 = vpop.f32.mrf.mxu0
        %v2200 = vadd.f32 %v2111, %v2199
        %2201 = vmatmul.bf16.gmra.mxu0 %v1069
        %v2202 = vpop.f32.mrf.mxu0
        %v2203 = vadd.f32 %v2114, %v2202
        %v2204 = vpop.f32.mrf.mxu0
        %v2205 = vadd.f32 %v2116, %v2204
        %2206 = vmatmul.bf16.gmra.mxu0 %v1075
        %v2207 = vpop.f32.mrf.mxu0
        %v2208 = vadd.f32 %v2119, %v2207
        %v2209 = vpop.f32.mrf.mxu0
        %v2210 = vadd.f32 %v2121, %v2209
        %2211 = vmatmul.bf16.gmra.mxu0 %v1081
        %v2212 = vpop.f32.mrf.mxu0
        %v2213 = vadd.f32 %v2124, %v2212
        %v2214 = vpop.f32.mrf.mxu0
        %v2215 = vadd.f32 %v2126, %v2214
        %2216 = vmatmul.bf16.gmra.mxu0 %v1087
        %v2217 = vpop.f32.mrf.mxu0
        %v2218 = vadd.f32 %v2129, %v2217
        %v2219 = vpop.f32.mrf.mxu0
        %v2220 = vadd.f32 %v2131, %v2219
        %2221 = vdwg.mxu0
        %2222 = vmatpush.bf16.msra.mxu0 %v1760
        %2223 = vmatpush.bf16.msra.mxu0 %v1757
        %2224 = vmatpush.bf16.msra.mxu0 %v1754
        %2225 = vmatpush.bf16.msra.mxu0 %v1751
        %2226 = vmatpush.bf16.msra.mxu0 %v1748
        %2227 = vmatpush.bf16.msra.mxu0 %v1745
        %2228 = vmatpush.bf16.msra.mxu0 %v1742
        %2229 = vmatpush.bf16.msra.mxu0 %v1739
        %2230 = vmatmul.bf16.gmra.mxu0 %v998
        %v2231 = vpop.f32.mrf.mxu0
        %v2232 = vadd.f32 %v2143, %v2231
        %v2233 = vpop.f32.mrf.mxu0
        %v2234 = vadd.f32 %v2145, %v2233
        %2235 = vmatmul.bf16.gmra.mxu0 %v1004
        %v2236 = vpop.f32.mrf.mxu0
        %v2237 = vadd.f32 %v2148, %v2236
        %v2238 = vpop.f32.mrf.mxu0
        %v2239 = vadd.f32 %v2150, %v2238
        %2240 = vmatmul.bf16.gmra.mxu0 %v1010
        %v2241 = vpop.f32.mrf.mxu0
        %v2242 = vadd.f32 %v2153, %v2241
        %v2243 = vpop.f32.mrf.mxu0
        %v2244 = vadd.f32 %v2155, %v2243
        %2245 = vmatmul.bf16.gmra.mxu0 %v1016
        %v2246 = vpop.f32.mrf.mxu0
        %v2247 = vadd.f32 %v2158, %v2246
        %v2248 = vpop.f32.mrf.mxu0
        %v2249 = vadd.f32 %v2160, %v2248
        %2250 = vmatmul.bf16.gmra.mxu0 %v1022
        %v2251 = vpop.f32.mrf.mxu0
        %v2252 = vadd.f32 %v2163, %v2251
        %v2253 = vpop.f32.mrf.mxu0
        %v2254 = vadd.f32 %v2165, %v2253
        %2255 = vmatmul.bf16.gmra.mxu0 %v1028
        %v2256 = vpop.f32.mrf.mxu0
        %v2257 = vadd.f32 %v2168, %v2256
        %v2258 = vpop.f32.mrf.mxu0
        %v2259 = vadd.f32 %v2170, %v2258
        %2260 = vmatmul.bf16.gmra.mxu0 %v1034
        %v2261 = vpop.f32.mrf.mxu0
        %v2262 = vadd.f32 %v2173, %v2261
        %v2263 = vpop.f32.mrf.mxu0
        %v2264 = vadd.f32 %v2175, %v2263
        %2265 = vmatmul.bf16.gmra.mxu0 %v1040
        %v2266 = vpop.f32.mrf.mxu0
        %v2267 = vadd.f32 %v2178, %v2266
        %v2268 = vpop.f32.mrf.mxu0
        %v2269 = vadd.f32 %v2180, %v2268
        %2270 = vmatmul.bf16.gmra.mxu0 %v1046
        %v2271 = vpop.f32.mrf.mxu0
        %v2272 = vadd.f32 %v2183, %v2271
        %v2273 = vpop.f32.mrf.mxu0
        %v2274 = vadd.f32 %v2185, %v2273
        %2275 = vmatmul.bf16.gmra.mxu0 %v1052
        %v2276 = vpop.f32.mrf.mxu0
        %v2277 = vadd.f32 %v2188, %v2276
        %v2278 = vpop.f32.mrf.mxu0
        %v2279 = vadd.f32 %v2190, %v2278
        %2280 = vmatmul.bf16.gmra.mxu0 %v1058
        %v2281 = vpop.f32.mrf.mxu0
        %v2282 = vadd.f32 %v2193, %v2281
        %v2283 = vpop.f32.mrf.mxu0
        %v2284 = vadd.f32 %v2195, %v2283
        %2285 = vmatmul.bf16.gmra.mxu0 %v1064
        %v2286 = vpop.f32.mrf.mxu0
        %v2287 = vadd.f32 %v2198, %v2286
        %v2288 = vpop.f32.mrf.mxu0
        %v2289 = vadd.f32 %v2200, %v2288
        %2290 = vmatmul.bf16.gmra.mxu0 %v1070
        %v2291 = vpop.f32.mrf.mxu0
        %v2292 = vadd.f32 %v2203, %v2291
        %v2293 = vpop.f32.mrf.mxu0
        %v2294 = vadd.f32 %v2205, %v2293
        %2295 = vmatmul.bf16.gmra.mxu0 %v1076
        %v2296 = vpop.f32.mrf.mxu0
        %v2297 = vadd.f32 %v2208, %v2296
        %v2298 = vpop.f32.mrf.mxu0
        %v2299 = vadd.f32 %v2210, %v2298
        %2300 = vmatmul.bf16.gmra.mxu0 %v1082
        %v2301 = vpop.f32.mrf.mxu0
        %v2302 = vadd.f32 %v2213, %v2301
        %v2303 = vpop.f32.mrf.mxu0
        %v2304 = vadd.f32 %v2215, %v2303
        %2305 = vmatmul.bf16.gmra.mxu0 %v1088
        %v2306 = vpop.f32.mrf.mxu0
        %v2307 = vadd.f32 %v2218, %v2306
        %v2308 = vpop.f32.mrf.mxu0
        %v2309 = vadd.f32 %v2220, %v2308
        %2310 = vdwg.mxu0
        %2311 = vmatpush.bf16.msra.mxu0 %v1784
        %2312 = vmatpush.bf16.msra.mxu0 %v1781
        %2313 = vmatpush.bf16.msra.mxu0 %v1778
        %2314 = vmatpush.bf16.msra.mxu0 %v1775
        %2315 = vmatpush.bf16.msra.mxu0 %v1772
        %2316 = vmatpush.bf16.msra.mxu0 %v1769
        %2317 = vmatpush.bf16.msra.mxu0 %v1766
        %2318 = vmatpush.bf16.msra.mxu0 %v1763
        %2319 = vmatmul.bf16.gmra.mxu0 %v999
        %v2320 = vpop.f32.mrf.mxu0
        %v2321 = vadd.f32 %v2232, %v2320
        %v2322 = vpop.f32.mrf.mxu0
        %v2323 = vadd.f32 %v2234, %v2322
        %2324 = vmatmul.bf16.gmra.mxu0 %v1005
        %v2325 = vpop.f32.mrf.mxu0
        %v2326 = vadd.f32 %v2237, %v2325
        %v2327 = vpop.f32.mrf.mxu0
        %v2328 = vadd.f32 %v2239, %v2327
        %2329 = vmatmul.bf16.gmra.mxu0 %v1011
        %v2330 = vpop.f32.mrf.mxu0
        %v2331 = vadd.f32 %v2242, %v2330
        %v2332 = vpop.f32.mrf.mxu0
        %v2333 = vadd.f32 %v2244, %v2332
        %2334 = vmatmul.bf16.gmra.mxu0 %v1017
        %v2335 = vpop.f32.mrf.mxu0
        %v2336 = vadd.f32 %v2247, %v2335
        %v2337 = vpop.f32.mrf.mxu0
        %v2338 = vadd.f32 %v2249, %v2337
        %2339 = vmatmul.bf16.gmra.mxu0 %v1023
        %v2340 = vpop.f32.mrf.mxu0
        %v2341 = vadd.f32 %v2252, %v2340
        %v2342 = vpop.f32.mrf.mxu0
        %v2343 = vadd.f32 %v2254, %v2342
        %2344 = vmatmul.bf16.gmra.mxu0 %v1029
        %v2345 = vpop.f32.mrf.mxu0
        %v2346 = vadd.f32 %v2257, %v2345
        %v2347 = vpop.f32.mrf.mxu0
        %v2348 = vadd.f32 %v2259, %v2347
        %2349 = vmatmul.bf16.gmra.mxu0 %v1035
        %v2350 = vpop.f32.mrf.mxu0
        %v2351 = vadd.f32 %v2262, %v2350
        %v2352 = vpop.f32.mrf.mxu0
        %v2353 = vadd.f32 %v2264, %v2352
        %2354 = vmatmul.bf16.gmra.mxu0 %v1041
        %v2355 = vpop.f32.mrf.mxu0
        %v2356 = vadd.f32 %v2267, %v2355
        %v2357 = vpop.f32.mrf.mxu0
        %v2358 = vadd.f32 %v2269, %v2357
        %2359 = vmatmul.bf16.gmra.mxu0 %v1047
        %v2360 = vpop.f32.mrf.mxu0
        %v2361 = vadd.f32 %v2272, %v2360
        %v2362 = vpop.f32.mrf.mxu0
        %v2363 = vadd.f32 %v2274, %v2362
        %2364 = vmatmul.bf16.gmra.mxu0 %v1053
        %v2365 = vpop.f32.mrf.mxu0
        %v2366 = vadd.f32 %v2277, %v2365
        %v2367 = vpop.f32.mrf.mxu0
        %v2368 = vadd.f32 %v2279, %v2367
        %2369 = vmatmul.bf16.gmra.mxu0 %v1059
        %v2370 = vpop.f32.mrf.mxu0
        %v2371 = vadd.f32 %v2282, %v2370
        %v2372 = vpop.f32.mrf.mxu0
        %v2373 = vadd.f32 %v2284, %v2372
        %2374 = vmatmul.bf16.gmra.mxu0 %v1065
        %v2375 = vpop.f32.mrf.mxu0
        %v2376 = vadd.f32 %v2287, %v2375
        %v2377 = vpop.f32.mrf.mxu0
        %v2378 = vadd.f32 %v2289, %v2377
        %2379 = vmatmul.bf16.gmra.mxu0 %v1071
        %v2380 = vpop.f32.mrf.mxu0
        %v2381 = vadd.f32 %v2292, %v2380
        %v2382 = vpop.f32.mrf.mxu0
        %v2383 = vadd.f32 %v2294, %v2382
        %2384 = vmatmul.bf16.gmra.mxu0 %v1077
        %v2385 = vpop.f32.mrf.mxu0
        %v2386 = vadd.f32 %v2297, %v2385
        %v2387 = vpop.f32.mrf.mxu0
        %v2388 = vadd.f32 %v2299, %v2387
        %2389 = vmatmul.bf16.gmra.mxu0 %v1083
        %v2390 = vpop.f32.mrf.mxu0
        %v2391 = vadd.f32 %v2302, %v2390
        %v2392 = vpop.f32.mrf.mxu0
        %v2393 = vadd.f32 %v2304, %v2392
        %2394 = vmatmul.bf16.gmra.mxu0 %v1089
        %v2395 = vpop.f32.mrf.mxu0
        %v2396 = vadd.f32 %v2307, %v2395
        %v2397 = vpop.f32.mrf.mxu0
        %v2398 = vadd.f32 %v2309, %v2397
        %2399 = vdwg.mxu0
        %2400 = vmatpush.bf16.msra.mxu0 %v1808
        %2401 = vmatpush.bf16.msra.mxu0 %v1805
        %2402 = vmatpush.bf16.msra.mxu0 %v1802
        %2403 = vmatpush.bf16.msra.mxu0 %v1799
        %2404 = vmatpush.bf16.msra.mxu0 %v1796
        %2405 = vmatpush.bf16.msra.mxu0 %v1793
        %2406 = vmatpush.bf16.msra.mxu0 %v1790
        %2407 = vmatpush.bf16.msra.mxu0 %v1787
        %2408 = vmatmul.bf16.gmra.mxu0 %v1000
        %v2409 = vpop.f32.mrf.mxu0
        %v2410 = vadd.f32 %v2321, %v2409
        %v2411 = vpop.f32.mrf.mxu0
        %v2412 = vadd.f32 %v2323, %v2411
        %2413 = vmatmul.bf16.gmra.mxu0 %v1006
        %v2414 = vpop.f32.mrf.mxu0
        %v2415 = vadd.f32 %v2326, %v2414
        %v2416 = vpop.f32.mrf.mxu0
        %v2417 = vadd.f32 %v2328, %v2416
        %2418 = vmatmul.bf16.gmra.mxu0 %v1012
        %v2419 = vpop.f32.mrf.mxu0
        %v2420 = vadd.f32 %v2331, %v2419
        %v2421 = vpop.f32.mrf.mxu0
        %v2422 = vadd.f32 %v2333, %v2421
        %2423 = vmatmul.bf16.gmra.mxu0 %v1018
        %v2424 = vpop.f32.mrf.mxu0
        %v2425 = vadd.f32 %v2336, %v2424
        %v2426 = vpop.f32.mrf.mxu0
        %v2427 = vadd.f32 %v2338, %v2426
        %2428 = vmatmul.bf16.gmra.mxu0 %v1024
        %v2429 = vpop.f32.mrf.mxu0
        %v2430 = vadd.f32 %v2341, %v2429
        %v2431 = vpop.f32.mrf.mxu0
        %v2432 = vadd.f32 %v2343, %v2431
        %2433 = vmatmul.bf16.gmra.mxu0 %v1030
        %v2434 = vpop.f32.mrf.mxu0
        %v2435 = vadd.f32 %v2346, %v2434
        %v2436 = vpop.f32.mrf.mxu0
        %v2437 = vadd.f32 %v2348, %v2436
        %2438 = vmatmul.bf16.gmra.mxu0 %v1036
        %v2439 = vpop.f32.mrf.mxu0
        %v2440 = vadd.f32 %v2351, %v2439
        %v2441 = vpop.f32.mrf.mxu0
        %v2442 = vadd.f32 %v2353, %v2441
        %2443 = vmatmul.bf16.gmra.mxu0 %v1042
        %v2444 = vpop.f32.mrf.mxu0
        %v2445 = vadd.f32 %v2356, %v2444
        %v2446 = vpop.f32.mrf.mxu0
        %v2447 = vadd.f32 %v2358, %v2446
        %2448 = vmatmul.bf16.gmra.mxu0 %v1048
        %v2449 = vpop.f32.mrf.mxu0
        %v2450 = vadd.f32 %v2361, %v2449
        %v2451 = vpop.f32.mrf.mxu0
        %v2452 = vadd.f32 %v2363, %v2451
        %2453 = vmatmul.bf16.gmra.mxu0 %v1054
        %v2454 = vpop.f32.mrf.mxu0
        %v2455 = vadd.f32 %v2366, %v2454
        %v2456 = vpop.f32.mrf.mxu0
        %v2457 = vadd.f32 %v2368, %v2456
        %2458 = vmatmul.bf16.gmra.mxu0 %v1060
        %v2459 = vpop.f32.mrf.mxu0
        %v2460 = vadd.f32 %v2371, %v2459
        %v2461 = vpop.f32.mrf.mxu0
        %v2462 = vadd.f32 %v2373, %v2461
        %2463 = vmatmul.bf16.gmra.mxu0 %v1066
        %v2464 = vpop.f32.mrf.mxu0
        %v2465 = vadd.f32 %v2376, %v2464
        %v2466 = vpop.f32.mrf.mxu0
        %v2467 = vadd.f32 %v2378, %v2466
        %2468 = vmatmul.bf16.gmra.mxu0 %v1072
        %v2469 = vpop.f32.mrf.mxu0
        %v2470 = vadd.f32 %v2381, %v2469
        %v2471 = vpop.f32.mrf.mxu0
        %v2472 = vadd.f32 %v2383, %v2471
        %2473 = vmatmul.bf16.gmra.mxu0 %v1078
        %v2474 = vpop.f32.mrf.mxu0
        %v2475 = vadd.f32 %v2386, %v2474
        %v2476 = vpop.f32.mrf.mxu0
        %v2477 = vadd.f32 %v2388, %v2476
        %2478 = vmatmul.bf16.gmra.mxu0 %v1084
        %v2479 = vpop.f32.mrf.mxu0
        %v2480 = vadd.f32 %v2391, %v2479
        %v2481 = vpop.f32.mrf.mxu0
        %v2482 = vadd.f32 %v2393, %v2481
        %2483 = vmatmul.bf16.gmra.mxu0 %v1090
        %v2484 = vpop.f32.mrf.mxu0
        %v2485 = vadd.f32 %v2396, %v2484
        %v2486 = vpop.f32.mrf.mxu0
        %v2487 = vadd.f32 %v2398, %v2486
        %2488 = vdwg.mxu0
        %2489 = vmatpush.bf16.msra.mxu0 %v1689
        %2490 = vmatpush.bf16.msra.mxu0 %v1686
        %2491 = vmatpush.bf16.msra.mxu0 %v1683
        %2492 = vmatpush.bf16.msra.mxu0 %v1680
        %2493 = vmatpush.bf16.msra.mxu0 %v1677
        %2494 = vmatpush.bf16.msra.mxu0 %v1674
        %2495 = vmatpush.bf16.msra.mxu0 %v1671
        %2496 = vmatpush.bf16.msra.mxu0 %v1668
        %2497 = vmatmul.bf16.gmra.mxu0 %v995
        %v2498 = vpop.f32.mrf.mxu0
        %v2499 = vadd.f32 %v702, %v2498
        %v2500 = vpop.f32.mrf.mxu0
        %v2501 = vadd.f32 %v702, %v2500
        %2502 = vmatmul.bf16.gmra.mxu0 %v1001
        %v2503 = vpop.f32.mrf.mxu0
        %v2504 = vadd.f32 %v702, %v2503
        %v2505 = vpop.f32.mrf.mxu0
        %v2506 = vadd.f32 %v702, %v2505
        %2507 = vmatmul.bf16.gmra.mxu0 %v1007
        %v2508 = vpop.f32.mrf.mxu0
        %v2509 = vadd.f32 %v702, %v2508
        %v2510 = vpop.f32.mrf.mxu0
        %v2511 = vadd.f32 %v702, %v2510
        %2512 = vmatmul.bf16.gmra.mxu0 %v1013
        %v2513 = vpop.f32.mrf.mxu0
        %v2514 = vadd.f32 %v702, %v2513
        %v2515 = vpop.f32.mrf.mxu0
        %v2516 = vadd.f32 %v702, %v2515
        %2517 = vmatmul.bf16.gmra.mxu0 %v1019
        %v2518 = vpop.f32.mrf.mxu0
        %v2519 = vadd.f32 %v702, %v2518
        %v2520 = vpop.f32.mrf.mxu0
        %v2521 = vadd.f32 %v702, %v2520
        %2522 = vmatmul.bf16.gmra.mxu0 %v1025
        %v2523 = vpop.f32.mrf.mxu0
        %v2524 = vadd.f32 %v702, %v2523
        %v2525 = vpop.f32.mrf.mxu0
        %v2526 = vadd.f32 %v702, %v2525
        %2527 = vmatmul.bf16.gmra.mxu0 %v1031
        %v2528 = vpop.f32.mrf.mxu0
        %v2529 = vadd.f32 %v702, %v2528
        %v2530 = vpop.f32.mrf.mxu0
        %v2531 = vadd.f32 %v702, %v2530
        %2532 = vmatmul.bf16.gmra.mxu0 %v1037
        %v2533 = vpop.f32.mrf.mxu0
        %v2534 = vadd.f32 %v702, %v2533
        %v2535 = vpop.f32.mrf.mxu0
        %v2536 = vadd.f32 %v702, %v2535
        %2537 = vmatmul.bf16.gmra.mxu0 %v1043
        %v2538 = vpop.f32.mrf.mxu0
        %v2539 = vadd.f32 %v702, %v2538
        %v2540 = vpop.f32.mrf.mxu0
        %v2541 = vadd.f32 %v702, %v2540
        %2542 = vmatmul.bf16.gmra.mxu0 %v1049
        %v2543 = vpop.f32.mrf.mxu0
        %v2544 = vadd.f32 %v702, %v2543
        %v2545 = vpop.f32.mrf.mxu0
        %v2546 = vadd.f32 %v702, %v2545
        %2547 = vmatmul.bf16.gmra.mxu0 %v1055
        %v2548 = vpop.f32.mrf.mxu0
        %v2549 = vadd.f32 %v702, %v2548
        %v2550 = vpop.f32.mrf.mxu0
        %v2551 = vadd.f32 %v702, %v2550
        %2552 = vmatmul.bf16.gmra.mxu0 %v1061
        %v2553 = vpop.f32.mrf.mxu0
        %v2554 = vadd.f32 %v702, %v2553
        %v2555 = vpop.f32.mrf.mxu0
        %v2556 = vadd.f32 %v702, %v2555
        %2557 = vmatmul.bf16.gmra.mxu0 %v1067
        %v2558 = vpop.f32.mrf.mxu0
        %v2559 = vadd.f32 %v702, %v2558
        %v2560 = vpop.f32.mrf.mxu0
        %v2561 = vadd.f32 %v702, %v2560
        %2562 = vmatmul.bf16.gmra.mxu0 %v1073
        %v2563 = vpop.f32.mrf.mxu0
        %v2564 = vadd.f32 %v702, %v2563
        %v2565 = vpop.f32.mrf.mxu0
        %v2566 = vadd.f32 %v702, %v2565
        %2567 = vmatmul.bf16.gmra.mxu0 %v1079
        %v2568 = vpop.f32.mrf.mxu0
        %v2569 = vadd.f32 %v702, %v2568
        %v2570 = vpop.f32.mrf.mxu0
        %v2571 = vadd.f32 %v702, %v2570
        %2572 = vmatmul.bf16.gmra.mxu0 %v1085
        %v2573 = vpop.f32.mrf.mxu0
        %v2574 = vadd.f32 %v702, %v2573
        %v2575 = vpop.f32.mrf.mxu0
        %v2576 = vadd.f32 %v702, %v2575
        %2577 = vdwg.mxu0
        %2578 = vmatpush.bf16.msra.mxu0 %v1713
        %2579 = vmatpush.bf16.msra.mxu0 %v1710
        %2580 = vmatpush.bf16.msra.mxu0 %v1707
        %2581 = vmatpush.bf16.msra.mxu0 %v1704
        %2582 = vmatpush.bf16.msra.mxu0 %v1701
        %2583 = vmatpush.bf16.msra.mxu0 %v1698
        %2584 = vmatpush.bf16.msra.mxu0 %v1695
        %2585 = vmatpush.bf16.msra.mxu0 %v1692
        %2586 = vmatmul.bf16.gmra.mxu0 %v996
        %v2587 = vpop.f32.mrf.mxu0
        %v2588 = vadd.f32 %v2499, %v2587
        %v2589 = vpop.f32.mrf.mxu0
        %v2590 = vadd.f32 %v2501, %v2589
        %2591 = vmatmul.bf16.gmra.mxu0 %v1002
        %v2592 = vpop.f32.mrf.mxu0
        %v2593 = vadd.f32 %v2504, %v2592
        %v2594 = vpop.f32.mrf.mxu0
        %v2595 = vadd.f32 %v2506, %v2594
        %2596 = vmatmul.bf16.gmra.mxu0 %v1008
        %v2597 = vpop.f32.mrf.mxu0
        %v2598 = vadd.f32 %v2509, %v2597
        %v2599 = vpop.f32.mrf.mxu0
        %v2600 = vadd.f32 %v2511, %v2599
        %2601 = vmatmul.bf16.gmra.mxu0 %v1014
        %v2602 = vpop.f32.mrf.mxu0
        %v2603 = vadd.f32 %v2514, %v2602
        %v2604 = vpop.f32.mrf.mxu0
        %v2605 = vadd.f32 %v2516, %v2604
        %2606 = vmatmul.bf16.gmra.mxu0 %v1020
        %v2607 = vpop.f32.mrf.mxu0
        %v2608 = vadd.f32 %v2519, %v2607
        %v2609 = vpop.f32.mrf.mxu0
        %v2610 = vadd.f32 %v2521, %v2609
        %2611 = vmatmul.bf16.gmra.mxu0 %v1026
        %v2612 = vpop.f32.mrf.mxu0
        %v2613 = vadd.f32 %v2524, %v2612
        %v2614 = vpop.f32.mrf.mxu0
        %v2615 = vadd.f32 %v2526, %v2614
        %2616 = vmatmul.bf16.gmra.mxu0 %v1032
        %v2617 = vpop.f32.mrf.mxu0
        %v2618 = vadd.f32 %v2529, %v2617
        %v2619 = vpop.f32.mrf.mxu0
        %v2620 = vadd.f32 %v2531, %v2619
        %2621 = vmatmul.bf16.gmra.mxu0 %v1038
        %v2622 = vpop.f32.mrf.mxu0
        %v2623 = vadd.f32 %v2534, %v2622
        %v2624 = vpop.f32.mrf.mxu0
        %v2625 = vadd.f32 %v2536, %v2624
        %2626 = vmatmul.bf16.gmra.mxu0 %v1044
        %v2627 = vpop.f32.mrf.mxu0
        %v2628 = vadd.f32 %v2539, %v2627
        %v2629 = vpop.f32.mrf.mxu0
        %v2630 = vadd.f32 %v2541, %v2629
        %2631 = vmatmul.bf16.gmra.mxu0 %v1050
        %v2632 = vpop.f32.mrf.mxu0
        %v2633 = vadd.f32 %v2544, %v2632
        %v2634 = vpop.f32.mrf.mxu0
        %v2635 = vadd.f32 %v2546, %v2634
        %2636 = vmatmul.bf16.gmra.mxu0 %v1056
        %v2637 = vpop.f32.mrf.mxu0
        %v2638 = vadd.f32 %v2549, %v2637
        %v2639 = vpop.f32.mrf.mxu0
        %v2640 = vadd.f32 %v2551, %v2639
        %2641 = vmatmul.bf16.gmra.mxu0 %v1062
        %v2642 = vpop.f32.mrf.mxu0
        %v2643 = vadd.f32 %v2554, %v2642
        %v2644 = vpop.f32.mrf.mxu0
        %v2645 = vadd.f32 %v2556, %v2644
        %2646 = vmatmul.bf16.gmra.mxu0 %v1068
        %v2647 = vpop.f32.mrf.mxu0
        %v2648 = vadd.f32 %v2559, %v2647
        %v2649 = vpop.f32.mrf.mxu0
        %v2650 = vadd.f32 %v2561, %v2649
        %2651 = vmatmul.bf16.gmra.mxu0 %v1074
        %v2652 = vpop.f32.mrf.mxu0
        %v2653 = vadd.f32 %v2564, %v2652
        %v2654 = vpop.f32.mrf.mxu0
        %v2655 = vadd.f32 %v2566, %v2654
        %2656 = vmatmul.bf16.gmra.mxu0 %v1080
        %v2657 = vpop.f32.mrf.mxu0
        %v2658 = vadd.f32 %v2569, %v2657
        %v2659 = vpop.f32.mrf.mxu0
        %v2660 = vadd.f32 %v2571, %v2659
        %2661 = vmatmul.bf16.gmra.mxu0 %v1086
        %v2662 = vpop.f32.mrf.mxu0
        %v2663 = vadd.f32 %v2574, %v2662
        %v2664 = vpop.f32.mrf.mxu0
        %v2665 = vadd.f32 %v2576, %v2664
        %2666 = vdwg.mxu0
        %2667 = vmatpush.bf16.msra.mxu0 %v1737
        %2668 = vmatpush.bf16.msra.mxu0 %v1734
        %2669 = vmatpush.bf16.msra.mxu0 %v1731
        %2670 = vmatpush.bf16.msra.mxu0 %v1728
        %2671 = vmatpush.bf16.msra.mxu0 %v1725
        %2672 = vmatpush.bf16.msra.mxu0 %v1722
        %2673 = vmatpush.bf16.msra.mxu0 %v1719
        %2674 = vmatpush.bf16.msra.mxu0 %v1716
        %2675 = vmatmul.bf16.gmra.mxu0 %v997
        %v2676 = vpop.f32.mrf.mxu0
        %v2677 = vadd.f32 %v2588, %v2676
        %v2678 = vpop.f32.mrf.mxu0
        %v2679 = vadd.f32 %v2590, %v2678
        %2680 = vmatmul.bf16.gmra.mxu0 %v1003
        %v2681 = vpop.f32.mrf.mxu0
        %v2682 = vadd.f32 %v2593, %v2681
        %v2683 = vpop.f32.mrf.mxu0
        %v2684 = vadd.f32 %v2595, %v2683
        %2685 = vmatmul.bf16.gmra.mxu0 %v1009
        %v2686 = vpop.f32.mrf.mxu0
        %v2687 = vadd.f32 %v2598, %v2686
        %v2688 = vpop.f32.mrf.mxu0
        %v2689 = vadd.f32 %v2600, %v2688
        %2690 = vmatmul.bf16.gmra.mxu0 %v1015
        %v2691 = vpop.f32.mrf.mxu0
        %v2692 = vadd.f32 %v2603, %v2691
        %v2693 = vpop.f32.mrf.mxu0
        %v2694 = vadd.f32 %v2605, %v2693
        %2695 = vmatmul.bf16.gmra.mxu0 %v1021
        %v2696 = vpop.f32.mrf.mxu0
        %v2697 = vadd.f32 %v2608, %v2696
        %v2698 = vpop.f32.mrf.mxu0
        %v2699 = vadd.f32 %v2610, %v2698
        %2700 = vmatmul.bf16.gmra.mxu0 %v1027
        %v2701 = vpop.f32.mrf.mxu0
        %v2702 = vadd.f32 %v2613, %v2701
        %v2703 = vpop.f32.mrf.mxu0
        %v2704 = vadd.f32 %v2615, %v2703
        %2705 = vmatmul.bf16.gmra.mxu0 %v1033
        %v2706 = vpop.f32.mrf.mxu0
        %v2707 = vadd.f32 %v2618, %v2706
        %v2708 = vpop.f32.mrf.mxu0
        %v2709 = vadd.f32 %v2620, %v2708
        %2710 = vmatmul.bf16.gmra.mxu0 %v1039
        %v2711 = vpop.f32.mrf.mxu0
        %v2712 = vadd.f32 %v2623, %v2711
        %v2713 = vpop.f32.mrf.mxu0
        %v2714 = vadd.f32 %v2625, %v2713
        %2715 = vmatmul.bf16.gmra.mxu0 %v1045
        %v2716 = vpop.f32.mrf.mxu0
        %v2717 = vadd.f32 %v2628, %v2716
        %v2718 = vpop.f32.mrf.mxu0
        %v2719 = vadd.f32 %v2630, %v2718
        %2720 = vmatmul.bf16.gmra.mxu0 %v1051
        %v2721 = vpop.f32.mrf.mxu0
        %v2722 = vadd.f32 %v2633, %v2721
        %v2723 = vpop.f32.mrf.mxu0
        %v2724 = vadd.f32 %v2635, %v2723
        %2725 = vmatmul.bf16.gmra.mxu0 %v1057
        %v2726 = vpop.f32.mrf.mxu0
        %v2727 = vadd.f32 %v2638, %v2726
        %v2728 = vpop.f32.mrf.mxu0
        %v2729 = vadd.f32 %v2640, %v2728
        %2730 = vmatmul.bf16.gmra.mxu0 %v1063
        %v2731 = vpop.f32.mrf.mxu0
        %v2732 = vadd.f32 %v2643, %v2731
        %v2733 = vpop.f32.mrf.mxu0
        %v2734 = vadd.f32 %v2645, %v2733
        %2735 = vmatmul.bf16.gmra.mxu0 %v1069
        %v2736 = vpop.f32.mrf.mxu0
        %v2737 = vadd.f32 %v2648, %v2736
        %v2738 = vpop.f32.mrf.mxu0
        %v2739 = vadd.f32 %v2650, %v2738
        %2740 = vmatmul.bf16.gmra.mxu0 %v1075
        %v2741 = vpop.f32.mrf.mxu0
        %v2742 = vadd.f32 %v2653, %v2741
        %v2743 = vpop.f32.mrf.mxu0
        %v2744 = vadd.f32 %v2655, %v2743
        %2745 = vmatmul.bf16.gmra.mxu0 %v1081
        %v2746 = vpop.f32.mrf.mxu0
        %v2747 = vadd.f32 %v2658, %v2746
        %v2748 = vpop.f32.mrf.mxu0
        %v2749 = vadd.f32 %v2660, %v2748
        %2750 = vmatmul.bf16.gmra.mxu0 %v1087
        %v2751 = vpop.f32.mrf.mxu0
        %v2752 = vadd.f32 %v2663, %v2751
        %v2753 = vpop.f32.mrf.mxu0
        %v2754 = vadd.f32 %v2665, %v2753
        %2755 = vdwg.mxu0
        %2756 = vmatpush.bf16.msra.mxu0 %v1761
        %2757 = vmatpush.bf16.msra.mxu0 %v1758
        %2758 = vmatpush.bf16.msra.mxu0 %v1755
        %2759 = vmatpush.bf16.msra.mxu0 %v1752
        %2760 = vmatpush.bf16.msra.mxu0 %v1749
        %2761 = vmatpush.bf16.msra.mxu0 %v1746
        %2762 = vmatpush.bf16.msra.mxu0 %v1743
        %2763 = vmatpush.bf16.msra.mxu0 %v1740
        %2764 = vmatmul.bf16.gmra.mxu0 %v998
        %v2765 = vpop.f32.mrf.mxu0
        %v2766 = vadd.f32 %v2677, %v2765
        %v2767 = vpop.f32.mrf.mxu0
        %v2768 = vadd.f32 %v2679, %v2767
        %2769 = vmatmul.bf16.gmra.mxu0 %v1004
        %v2770 = vpop.f32.mrf.mxu0
        %v2771 = vadd.f32 %v2682, %v2770
        %v2772 = vpop.f32.mrf.mxu0
        %v2773 = vadd.f32 %v2684, %v2772
        %2774 = vmatmul.bf16.gmra.mxu0 %v1010
        %v2775 = vpop.f32.mrf.mxu0
        %v2776 = vadd.f32 %v2687, %v2775
        %v2777 = vpop.f32.mrf.mxu0
        %v2778 = vadd.f32 %v2689, %v2777
        %2779 = vmatmul.bf16.gmra.mxu0 %v1016
        %v2780 = vpop.f32.mrf.mxu0
        %v2781 = vadd.f32 %v2692, %v2780
        %v2782 = vpop.f32.mrf.mxu0
        %v2783 = vadd.f32 %v2694, %v2782
        %2784 = vmatmul.bf16.gmra.mxu0 %v1022
        %v2785 = vpop.f32.mrf.mxu0
        %v2786 = vadd.f32 %v2697, %v2785
        %v2787 = vpop.f32.mrf.mxu0
        %v2788 = vadd.f32 %v2699, %v2787
        %2789 = vmatmul.bf16.gmra.mxu0 %v1028
        %v2790 = vpop.f32.mrf.mxu0
        %v2791 = vadd.f32 %v2702, %v2790
        %v2792 = vpop.f32.mrf.mxu0
        %v2793 = vadd.f32 %v2704, %v2792
        %2794 = vmatmul.bf16.gmra.mxu0 %v1034
        %v2795 = vpop.f32.mrf.mxu0
        %v2796 = vadd.f32 %v2707, %v2795
        %v2797 = vpop.f32.mrf.mxu0
        %v2798 = vadd.f32 %v2709, %v2797
        %2799 = vmatmul.bf16.gmra.mxu0 %v1040
        %v2800 = vpop.f32.mrf.mxu0
        %v2801 = vadd.f32 %v2712, %v2800
        %v2802 = vpop.f32.mrf.mxu0
        %v2803 = vadd.f32 %v2714, %v2802
        %2804 = vmatmul.bf16.gmra.mxu0 %v1046
        %v2805 = vpop.f32.mrf.mxu0
        %v2806 = vadd.f32 %v2717, %v2805
        %v2807 = vpop.f32.mrf.mxu0
        %v2808 = vadd.f32 %v2719, %v2807
        %2809 = vmatmul.bf16.gmra.mxu0 %v1052
        %v2810 = vpop.f32.mrf.mxu0
        %v2811 = vadd.f32 %v2722, %v2810
        %v2812 = vpop.f32.mrf.mxu0
        %v2813 = vadd.f32 %v2724, %v2812
        %2814 = vmatmul.bf16.gmra.mxu0 %v1058
        %v2815 = vpop.f32.mrf.mxu0
        %v2816 = vadd.f32 %v2727, %v2815
        %v2817 = vpop.f32.mrf.mxu0
        %v2818 = vadd.f32 %v2729, %v2817
        %2819 = vmatmul.bf16.gmra.mxu0 %v1064
        %v2820 = vpop.f32.mrf.mxu0
        %v2821 = vadd.f32 %v2732, %v2820
        %v2822 = vpop.f32.mrf.mxu0
        %v2823 = vadd.f32 %v2734, %v2822
        %2824 = vmatmul.bf16.gmra.mxu0 %v1070
        %v2825 = vpop.f32.mrf.mxu0
        %v2826 = vadd.f32 %v2737, %v2825
        %v2827 = vpop.f32.mrf.mxu0
        %v2828 = vadd.f32 %v2739, %v2827
        %2829 = vmatmul.bf16.gmra.mxu0 %v1076
        %v2830 = vpop.f32.mrf.mxu0
        %v2831 = vadd.f32 %v2742, %v2830
        %v2832 = vpop.f32.mrf.mxu0
        %v2833 = vadd.f32 %v2744, %v2832
        %2834 = vmatmul.bf16.gmra.mxu0 %v1082
        %v2835 = vpop.f32.mrf.mxu0
        %v2836 = vadd.f32 %v2747, %v2835
        %v2837 = vpop.f32.mrf.mxu0
        %v2838 = vadd.f32 %v2749, %v2837
        %2839 = vmatmul.bf16.gmra.mxu0 %v1088
        %v2840 = vpop.f32.mrf.mxu0
        %v2841 = vadd.f32 %v2752, %v2840
        %v2842 = vpop.f32.mrf.mxu0
        %v2843 = vadd.f32 %v2754, %v2842
        %2844 = vdwg.mxu0
        %2845 = vmatpush.bf16.msra.mxu0 %v1785
        %2846 = vmatpush.bf16.msra.mxu0 %v1782
        %2847 = vmatpush.bf16.msra.mxu0 %v1779
        %2848 = vmatpush.bf16.msra.mxu0 %v1776
        %2849 = vmatpush.bf16.msra.mxu0 %v1773
        %2850 = vmatpush.bf16.msra.mxu0 %v1770
        %2851 = vmatpush.bf16.msra.mxu0 %v1767
        %2852 = vmatpush.bf16.msra.mxu0 %v1764
        %2853 = vmatmul.bf16.gmra.mxu0 %v999
        %v2854 = vpop.f32.mrf.mxu0
        %v2855 = vadd.f32 %v2766, %v2854
        %v2856 = vpop.f32.mrf.mxu0
        %v2857 = vadd.f32 %v2768, %v2856
        %2858 = vmatmul.bf16.gmra.mxu0 %v1005
        %v2859 = vpop.f32.mrf.mxu0
        %v2860 = vadd.f32 %v2771, %v2859
        %v2861 = vpop.f32.mrf.mxu0
        %v2862 = vadd.f32 %v2773, %v2861
        %2863 = vmatmul.bf16.gmra.mxu0 %v1011
        %v2864 = vpop.f32.mrf.mxu0
        %v2865 = vadd.f32 %v2776, %v2864
        %v2866 = vpop.f32.mrf.mxu0
        %v2867 = vadd.f32 %v2778, %v2866
        %2868 = vmatmul.bf16.gmra.mxu0 %v1017
        %v2869 = vpop.f32.mrf.mxu0
        %v2870 = vadd.f32 %v2781, %v2869
        %v2871 = vpop.f32.mrf.mxu0
        %v2872 = vadd.f32 %v2783, %v2871
        %2873 = vmatmul.bf16.gmra.mxu0 %v1023
        %v2874 = vpop.f32.mrf.mxu0
        %v2875 = vadd.f32 %v2786, %v2874
        %v2876 = vpop.f32.mrf.mxu0
        %v2877 = vadd.f32 %v2788, %v2876
        %2878 = vmatmul.bf16.gmra.mxu0 %v1029
        %v2879 = vpop.f32.mrf.mxu0
        %v2880 = vadd.f32 %v2791, %v2879
        %v2881 = vpop.f32.mrf.mxu0
        %v2882 = vadd.f32 %v2793, %v2881
        %2883 = vmatmul.bf16.gmra.mxu0 %v1035
        %v2884 = vpop.f32.mrf.mxu0
        %v2885 = vadd.f32 %v2796, %v2884
        %v2886 = vpop.f32.mrf.mxu0
        %v2887 = vadd.f32 %v2798, %v2886
        %2888 = vmatmul.bf16.gmra.mxu0 %v1041
        %v2889 = vpop.f32.mrf.mxu0
        %v2890 = vadd.f32 %v2801, %v2889
        %v2891 = vpop.f32.mrf.mxu0
        %v2892 = vadd.f32 %v2803, %v2891
        %2893 = vmatmul.bf16.gmra.mxu0 %v1047
        %v2894 = vpop.f32.mrf.mxu0
        %v2895 = vadd.f32 %v2806, %v2894
        %v2896 = vpop.f32.mrf.mxu0
        %v2897 = vadd.f32 %v2808, %v2896
        %2898 = vmatmul.bf16.gmra.mxu0 %v1053
        %v2899 = vpop.f32.mrf.mxu0
        %v2900 = vadd.f32 %v2811, %v2899
        %v2901 = vpop.f32.mrf.mxu0
        %v2902 = vadd.f32 %v2813, %v2901
        %2903 = vmatmul.bf16.gmra.mxu0 %v1059
        %v2904 = vpop.f32.mrf.mxu0
        %v2905 = vadd.f32 %v2816, %v2904
        %v2906 = vpop.f32.mrf.mxu0
        %v2907 = vadd.f32 %v2818, %v2906
        %2908 = vmatmul.bf16.gmra.mxu0 %v1065
        %v2909 = vpop.f32.mrf.mxu0
        %v2910 = vadd.f32 %v2821, %v2909
        %v2911 = vpop.f32.mrf.mxu0
        %v2912 = vadd.f32 %v2823, %v2911
        %2913 = vmatmul.bf16.gmra.mxu0 %v1071
        %v2914 = vpop.f32.mrf.mxu0
        %v2915 = vadd.f32 %v2826, %v2914
        %v2916 = vpop.f32.mrf.mxu0
        %v2917 = vadd.f32 %v2828, %v2916
        %2918 = vmatmul.bf16.gmra.mxu0 %v1077
        %v2919 = vpop.f32.mrf.mxu0
        %v2920 = vadd.f32 %v2831, %v2919
        %v2921 = vpop.f32.mrf.mxu0
        %v2922 = vadd.f32 %v2833, %v2921
        %2923 = vmatmul.bf16.gmra.mxu0 %v1083
        %v2924 = vpop.f32.mrf.mxu0
        %v2925 = vadd.f32 %v2836, %v2924
        %v2926 = vpop.f32.mrf.mxu0
        %v2927 = vadd.f32 %v2838, %v2926
        %2928 = vmatmul.bf16.gmra.mxu0 %v1089
        %v2929 = vpop.f32.mrf.mxu0
        %v2930 = vadd.f32 %v2841, %v2929
        %v2931 = vpop.f32.mrf.mxu0
        %v2932 = vadd.f32 %v2843, %v2931
        %2933 = vdwg.mxu0
        %2934 = vmatpush.bf16.msra.mxu0 %v1809
        %2935 = vmatpush.bf16.msra.mxu0 %v1806
        %2936 = vmatpush.bf16.msra.mxu0 %v1803
        %2937 = vmatpush.bf16.msra.mxu0 %v1800
        %2938 = vmatpush.bf16.msra.mxu0 %v1797
        %2939 = vmatpush.bf16.msra.mxu0 %v1794
        %2940 = vmatpush.bf16.msra.mxu0 %v1791
        %2941 = vmatpush.bf16.msra.mxu0 %v1788
        %2942 = vmatmul.bf16.gmra.mxu0 %v1000
        %v2943 = vpop.f32.mrf.mxu0
        %v2944 = vadd.f32 %v2855, %v2943
        %v2945 = vpop.f32.mrf.mxu0
        %v2946 = vadd.f32 %v2857, %v2945
        %2947 = vmatmul.bf16.gmra.mxu0 %v1006
        %v2948 = vpop.f32.mrf.mxu0
        %v2949 = vadd.f32 %v2860, %v2948
        %v2950 = vpop.f32.mrf.mxu0
        %v2951 = vadd.f32 %v2862, %v2950
        %2952 = vmatmul.bf16.gmra.mxu0 %v1012
        %v2953 = vpop.f32.mrf.mxu0
        %v2954 = vadd.f32 %v2865, %v2953
        %v2955 = vpop.f32.mrf.mxu0
        %v2956 = vadd.f32 %v2867, %v2955
        %2957 = vmatmul.bf16.gmra.mxu0 %v1018
        %v2958 = vpop.f32.mrf.mxu0
        %v2959 = vadd.f32 %v2870, %v2958
        %v2960 = vpop.f32.mrf.mxu0
        %v2961 = vadd.f32 %v2872, %v2960
        %2962 = vmatmul.bf16.gmra.mxu0 %v1024
        %v2963 = vpop.f32.mrf.mxu0
        %v2964 = vadd.f32 %v2875, %v2963
        %v2965 = vpop.f32.mrf.mxu0
        %v2966 = vadd.f32 %v2877, %v2965
        %2967 = vmatmul.bf16.gmra.mxu0 %v1030
        %v2968 = vpop.f32.mrf.mxu0
        %v2969 = vadd.f32 %v2880, %v2968
        %v2970 = vpop.f32.mrf.mxu0
        %v2971 = vadd.f32 %v2882, %v2970
        %2972 = vmatmul.bf16.gmra.mxu0 %v1036
        %v2973 = vpop.f32.mrf.mxu0
        %v2974 = vadd.f32 %v2885, %v2973
        %v2975 = vpop.f32.mrf.mxu0
        %v2976 = vadd.f32 %v2887, %v2975
        %2977 = vmatmul.bf16.gmra.mxu0 %v1042
        %v2978 = vpop.f32.mrf.mxu0
        %v2979 = vadd.f32 %v2890, %v2978
        %v2980 = vpop.f32.mrf.mxu0
        %v2981 = vadd.f32 %v2892, %v2980
        %2982 = vmatmul.bf16.gmra.mxu0 %v1048
        %v2983 = vpop.f32.mrf.mxu0
        %v2984 = vadd.f32 %v2895, %v2983
        %v2985 = vpop.f32.mrf.mxu0
        %v2986 = vadd.f32 %v2897, %v2985
        %2987 = vmatmul.bf16.gmra.mxu0 %v1054
        %v2988 = vpop.f32.mrf.mxu0
        %v2989 = vadd.f32 %v2900, %v2988
        %v2990 = vpop.f32.mrf.mxu0
        %v2991 = vadd.f32 %v2902, %v2990
        %2992 = vmatmul.bf16.gmra.mxu0 %v1060
        %v2993 = vpop.f32.mrf.mxu0
        %v2994 = vadd.f32 %v2905, %v2993
        %v2995 = vpop.f32.mrf.mxu0
        %v2996 = vadd.f32 %v2907, %v2995
        %2997 = vmatmul.bf16.gmra.mxu0 %v1066
        %v2998 = vpop.f32.mrf.mxu0
        %v2999 = vadd.f32 %v2910, %v2998
        %v3000 = vpop.f32.mrf.mxu0
        %v3001 = vadd.f32 %v2912, %v3000
        %3002 = vmatmul.bf16.gmra.mxu0 %v1072
        %v3003 = vpop.f32.mrf.mxu0
        %v3004 = vadd.f32 %v2915, %v3003
        %v3005 = vpop.f32.mrf.mxu0
        %v3006 = vadd.f32 %v2917, %v3005
        %3007 = vmatmul.bf16.gmra.mxu0 %v1078
        %v3008 = vpop.f32.mrf.mxu0
        %v3009 = vadd.f32 %v2920, %v3008
        %v3010 = vpop.f32.mrf.mxu0
        %v3011 = vadd.f32 %v2922, %v3010
        %3012 = vmatmul.bf16.gmra.mxu0 %v1084
        %v3013 = vpop.f32.mrf.mxu0
        %v3014 = vadd.f32 %v2925, %v3013
        %v3015 = vpop.f32.mrf.mxu0
        %v3016 = vadd.f32 %v2927, %v3015
        %3017 = vmatmul.bf16.gmra.mxu0 %v1090
        %v3018 = vpop.f32.mrf.mxu0
        %v3019 = vadd.f32 %v2930, %v3018
        %v3020 = vpop.f32.mrf.mxu0
        %v3021 = vadd.f32 %v2932, %v3020
        %3022 = vdwg.mxu0
        %3023 = vmatpush.bf16.msra.mxu0 %v1690
        %3024 = vmatpush.bf16.msra.mxu0 %v1687
        %3025 = vmatpush.bf16.msra.mxu0 %v1684
        %3026 = vmatpush.bf16.msra.mxu0 %v1681
        %3027 = vmatpush.bf16.msra.mxu0 %v1678
        %3028 = vmatpush.bf16.msra.mxu0 %v1675
        %3029 = vmatpush.bf16.msra.mxu0 %v1672
        %3030 = vmatpush.bf16.msra.mxu0 %v1669
        %3031 = vmatmul.bf16.gmra.mxu0 %v995
        %v3032 = vpop.f32.mrf.mxu0
        %v3033 = vadd.f32 %v703, %v3032
        %v3034 = vpop.f32.mrf.mxu0
        %v3035 = vadd.f32 %v703, %v3034
        %3036 = vmatmul.bf16.gmra.mxu0 %v1001
        %v3037 = vpop.f32.mrf.mxu0
        %v3038 = vadd.f32 %v703, %v3037
        %v3039 = vpop.f32.mrf.mxu0
        %v3040 = vadd.f32 %v703, %v3039
        %3041 = vmatmul.bf16.gmra.mxu0 %v1007
        %v3042 = vpop.f32.mrf.mxu0
        %v3043 = vadd.f32 %v703, %v3042
        %v3044 = vpop.f32.mrf.mxu0
        %v3045 = vadd.f32 %v703, %v3044
        %3046 = vmatmul.bf16.gmra.mxu0 %v1013
        %v3047 = vpop.f32.mrf.mxu0
        %v3048 = vadd.f32 %v703, %v3047
        %v3049 = vpop.f32.mrf.mxu0
        %v3050 = vadd.f32 %v703, %v3049
        %3051 = vmatmul.bf16.gmra.mxu0 %v1019
        %v3052 = vpop.f32.mrf.mxu0
        %v3053 = vadd.f32 %v703, %v3052
        %v3054 = vpop.f32.mrf.mxu0
        %v3055 = vadd.f32 %v703, %v3054
        %3056 = vmatmul.bf16.gmra.mxu0 %v1025
        %v3057 = vpop.f32.mrf.mxu0
        %v3058 = vadd.f32 %v703, %v3057
        %v3059 = vpop.f32.mrf.mxu0
        %v3060 = vadd.f32 %v703, %v3059
        %3061 = vmatmul.bf16.gmra.mxu0 %v1031
        %v3062 = vpop.f32.mrf.mxu0
        %v3063 = vadd.f32 %v703, %v3062
        %v3064 = vpop.f32.mrf.mxu0
        %v3065 = vadd.f32 %v703, %v3064
        %3066 = vmatmul.bf16.gmra.mxu0 %v1037
        %v3067 = vpop.f32.mrf.mxu0
        %v3068 = vadd.f32 %v703, %v3067
        %v3069 = vpop.f32.mrf.mxu0
        %v3070 = vadd.f32 %v703, %v3069
        %3071 = vmatmul.bf16.gmra.mxu0 %v1043
        %v3072 = vpop.f32.mrf.mxu0
        %v3073 = vadd.f32 %v703, %v3072
        %v3074 = vpop.f32.mrf.mxu0
        %v3075 = vadd.f32 %v703, %v3074
        %3076 = vmatmul.bf16.gmra.mxu0 %v1049
        %v3077 = vpop.f32.mrf.mxu0
        %v3078 = vadd.f32 %v703, %v3077
        %v3079 = vpop.f32.mrf.mxu0
        %v3080 = vadd.f32 %v703, %v3079
        %3081 = vmatmul.bf16.gmra.mxu0 %v1055
        %v3082 = vpop.f32.mrf.mxu0
        %v3083 = vadd.f32 %v703, %v3082
        %v3084 = vpop.f32.mrf.mxu0
        %v3085 = vadd.f32 %v703, %v3084
        %3086 = vmatmul.bf16.gmra.mxu0 %v1061
        %v3087 = vpop.f32.mrf.mxu0
        %v3088 = vadd.f32 %v703, %v3087
        %v3089 = vpop.f32.mrf.mxu0
        %v3090 = vadd.f32 %v703, %v3089
        %3091 = vmatmul.bf16.gmra.mxu0 %v1067
        %v3092 = vpop.f32.mrf.mxu0
        %v3093 = vadd.f32 %v703, %v3092
        %v3094 = vpop.f32.mrf.mxu0
        %v3095 = vadd.f32 %v703, %v3094
        %3096 = vmatmul.bf16.gmra.mxu0 %v1073
        %v3097 = vpop.f32.mrf.mxu0
        %v3098 = vadd.f32 %v703, %v3097
        %v3099 = vpop.f32.mrf.mxu0
        %v3100 = vadd.f32 %v703, %v3099
        %3101 = vmatmul.bf16.gmra.mxu0 %v1079
        %v3102 = vpop.f32.mrf.mxu0
        %v3103 = vadd.f32 %v703, %v3102
        %v3104 = vpop.f32.mrf.mxu0
        %v3105 = vadd.f32 %v703, %v3104
        %3106 = vmatmul.bf16.gmra.mxu0 %v1085
        %v3107 = vpop.f32.mrf.mxu0
        %v3108 = vadd.f32 %v703, %v3107
        %v3109 = vpop.f32.mrf.mxu0
        %v3110 = vadd.f32 %v703, %v3109
        %3111 = vdwg.mxu0
        %3112 = vmatpush.bf16.msra.mxu0 %v1714
        %3113 = vmatpush.bf16.msra.mxu0 %v1711
        %3114 = vmatpush.bf16.msra.mxu0 %v1708
        %3115 = vmatpush.bf16.msra.mxu0 %v1705
        %3116 = vmatpush.bf16.msra.mxu0 %v1702
        %3117 = vmatpush.bf16.msra.mxu0 %v1699
        %3118 = vmatpush.bf16.msra.mxu0 %v1696
        %3119 = vmatpush.bf16.msra.mxu0 %v1693
        %3120 = vmatmul.bf16.gmra.mxu0 %v996
        %v3121 = vpop.f32.mrf.mxu0
        %v3122 = vadd.f32 %v3033, %v3121
        %v3123 = vpop.f32.mrf.mxu0
        %v3124 = vadd.f32 %v3035, %v3123
        %3125 = vmatmul.bf16.gmra.mxu0 %v1002
        %v3126 = vpop.f32.mrf.mxu0
        %v3127 = vadd.f32 %v3038, %v3126
        %v3128 = vpop.f32.mrf.mxu0
        %v3129 = vadd.f32 %v3040, %v3128
        %3130 = vmatmul.bf16.gmra.mxu0 %v1008
        %v3131 = vpop.f32.mrf.mxu0
        %v3132 = vadd.f32 %v3043, %v3131
        %v3133 = vpop.f32.mrf.mxu0
        %v3134 = vadd.f32 %v3045, %v3133
        %3135 = vmatmul.bf16.gmra.mxu0 %v1014
        %v3136 = vpop.f32.mrf.mxu0
        %v3137 = vadd.f32 %v3048, %v3136
        %v3138 = vpop.f32.mrf.mxu0
        %v3139 = vadd.f32 %v3050, %v3138
        %3140 = vmatmul.bf16.gmra.mxu0 %v1020
        %v3141 = vpop.f32.mrf.mxu0
        %v3142 = vadd.f32 %v3053, %v3141
        %v3143 = vpop.f32.mrf.mxu0
        %v3144 = vadd.f32 %v3055, %v3143
        %3145 = vmatmul.bf16.gmra.mxu0 %v1026
        %v3146 = vpop.f32.mrf.mxu0
        %v3147 = vadd.f32 %v3058, %v3146
        %v3148 = vpop.f32.mrf.mxu0
        %v3149 = vadd.f32 %v3060, %v3148
        %3150 = vmatmul.bf16.gmra.mxu0 %v1032
        %v3151 = vpop.f32.mrf.mxu0
        %v3152 = vadd.f32 %v3063, %v3151
        %v3153 = vpop.f32.mrf.mxu0
        %v3154 = vadd.f32 %v3065, %v3153
        %3155 = vmatmul.bf16.gmra.mxu0 %v1038
        %v3156 = vpop.f32.mrf.mxu0
        %v3157 = vadd.f32 %v3068, %v3156
        %v3158 = vpop.f32.mrf.mxu0
        %v3159 = vadd.f32 %v3070, %v3158
        %3160 = vmatmul.bf16.gmra.mxu0 %v1044
        %v3161 = vpop.f32.mrf.mxu0
        %v3162 = vadd.f32 %v3073, %v3161
        %v3163 = vpop.f32.mrf.mxu0
        %v3164 = vadd.f32 %v3075, %v3163
        %3165 = vmatmul.bf16.gmra.mxu0 %v1050
        %v3166 = vpop.f32.mrf.mxu0
        %v3167 = vadd.f32 %v3078, %v3166
        %v3168 = vpop.f32.mrf.mxu0
        %v3169 = vadd.f32 %v3080, %v3168
        %3170 = vmatmul.bf16.gmra.mxu0 %v1056
        %v3171 = vpop.f32.mrf.mxu0
        %v3172 = vadd.f32 %v3083, %v3171
        %v3173 = vpop.f32.mrf.mxu0
        %v3174 = vadd.f32 %v3085, %v3173
        %3175 = vmatmul.bf16.gmra.mxu0 %v1062
        %v3176 = vpop.f32.mrf.mxu0
        %v3177 = vadd.f32 %v3088, %v3176
        %v3178 = vpop.f32.mrf.mxu0
        %v3179 = vadd.f32 %v3090, %v3178
        %3180 = vmatmul.bf16.gmra.mxu0 %v1068
        %v3181 = vpop.f32.mrf.mxu0
        %v3182 = vadd.f32 %v3093, %v3181
        %v3183 = vpop.f32.mrf.mxu0
        %v3184 = vadd.f32 %v3095, %v3183
        %3185 = vmatmul.bf16.gmra.mxu0 %v1074
        %v3186 = vpop.f32.mrf.mxu0
        %v3187 = vadd.f32 %v3098, %v3186
        %v3188 = vpop.f32.mrf.mxu0
        %v3189 = vadd.f32 %v3100, %v3188
        %3190 = vmatmul.bf16.gmra.mxu0 %v1080
        %v3191 = vpop.f32.mrf.mxu0
        %v3192 = vadd.f32 %v3103, %v3191
        %v3193 = vpop.f32.mrf.mxu0
        %v3194 = vadd.f32 %v3105, %v3193
        %3195 = vmatmul.bf16.gmra.mxu0 %v1086
        %v3196 = vpop.f32.mrf.mxu0
        %v3197 = vadd.f32 %v3108, %v3196
        %v3198 = vpop.f32.mrf.mxu0
        %v3199 = vadd.f32 %v3110, %v3198
        %3200 = vdwg.mxu0
        %3201 = vmatpush.bf16.msra.mxu0 %v1738
        %3202 = vmatpush.bf16.msra.mxu0 %v1735
        %3203 = vmatpush.bf16.msra.mxu0 %v1732
        %3204 = vmatpush.bf16.msra.mxu0 %v1729
        %3205 = vmatpush.bf16.msra.mxu0 %v1726
        %3206 = vmatpush.bf16.msra.mxu0 %v1723
        %3207 = vmatpush.bf16.msra.mxu0 %v1720
        %3208 = vmatpush.bf16.msra.mxu0 %v1717
        %3209 = vmatmul.bf16.gmra.mxu0 %v997
        %v3210 = vpop.f32.mrf.mxu0
        %v3211 = vadd.f32 %v3122, %v3210
        %v3212 = vpop.f32.mrf.mxu0
        %v3213 = vadd.f32 %v3124, %v3212
        %3214 = vmatmul.bf16.gmra.mxu0 %v1003
        %v3215 = vpop.f32.mrf.mxu0
        %v3216 = vadd.f32 %v3127, %v3215
        %v3217 = vpop.f32.mrf.mxu0
        %v3218 = vadd.f32 %v3129, %v3217
        %3219 = vmatmul.bf16.gmra.mxu0 %v1009
        %v3220 = vpop.f32.mrf.mxu0
        %v3221 = vadd.f32 %v3132, %v3220
        %v3222 = vpop.f32.mrf.mxu0
        %v3223 = vadd.f32 %v3134, %v3222
        %3224 = vmatmul.bf16.gmra.mxu0 %v1015
        %v3225 = vpop.f32.mrf.mxu0
        %v3226 = vadd.f32 %v3137, %v3225
        %v3227 = vpop.f32.mrf.mxu0
        %v3228 = vadd.f32 %v3139, %v3227
        %3229 = vmatmul.bf16.gmra.mxu0 %v1021
        %v3230 = vpop.f32.mrf.mxu0
        %v3231 = vadd.f32 %v3142, %v3230
        %v3232 = vpop.f32.mrf.mxu0
        %v3233 = vadd.f32 %v3144, %v3232
        %3234 = vmatmul.bf16.gmra.mxu0 %v1027
        %v3235 = vpop.f32.mrf.mxu0
        %v3236 = vadd.f32 %v3147, %v3235
        %v3237 = vpop.f32.mrf.mxu0
        %v3238 = vadd.f32 %v3149, %v3237
        %3239 = vmatmul.bf16.gmra.mxu0 %v1033
        %v3240 = vpop.f32.mrf.mxu0
        %v3241 = vadd.f32 %v3152, %v3240
        %v3242 = vpop.f32.mrf.mxu0
        %v3243 = vadd.f32 %v3154, %v3242
        %3244 = vmatmul.bf16.gmra.mxu0 %v1039
        %v3245 = vpop.f32.mrf.mxu0
        %v3246 = vadd.f32 %v3157, %v3245
        %v3247 = vpop.f32.mrf.mxu0
        %v3248 = vadd.f32 %v3159, %v3247
        %3249 = vmatmul.bf16.gmra.mxu0 %v1045
        %v3250 = vpop.f32.mrf.mxu0
        %v3251 = vadd.f32 %v3162, %v3250
        %v3252 = vpop.f32.mrf.mxu0
        %v3253 = vadd.f32 %v3164, %v3252
        %3254 = vmatmul.bf16.gmra.mxu0 %v1051
        %v3255 = vpop.f32.mrf.mxu0
        %v3256 = vadd.f32 %v3167, %v3255
        %v3257 = vpop.f32.mrf.mxu0
        %v3258 = vadd.f32 %v3169, %v3257
        %3259 = vmatmul.bf16.gmra.mxu0 %v1057
        %v3260 = vpop.f32.mrf.mxu0
        %v3261 = vadd.f32 %v3172, %v3260
        %v3262 = vpop.f32.mrf.mxu0
        %v3263 = vadd.f32 %v3174, %v3262
        %3264 = vmatmul.bf16.gmra.mxu0 %v1063
        %v3265 = vpop.f32.mrf.mxu0
        %v3266 = vadd.f32 %v3177, %v3265
        %v3267 = vpop.f32.mrf.mxu0
        %v3268 = vadd.f32 %v3179, %v3267
        %3269 = vmatmul.bf16.gmra.mxu0 %v1069
        %v3270 = vpop.f32.mrf.mxu0
        %v3271 = vadd.f32 %v3182, %v3270
        %v3272 = vpop.f32.mrf.mxu0
        %v3273 = vadd.f32 %v3184, %v3272
        %3274 = vmatmul.bf16.gmra.mxu0 %v1075
        %v3275 = vpop.f32.mrf.mxu0
        %v3276 = vadd.f32 %v3187, %v3275
        %v3277 = vpop.f32.mrf.mxu0
        %v3278 = vadd.f32 %v3189, %v3277
        %3279 = vmatmul.bf16.gmra.mxu0 %v1081
        %v3280 = vpop.f32.mrf.mxu0
        %v3281 = vadd.f32 %v3192, %v3280
        %v3282 = vpop.f32.mrf.mxu0
        %v3283 = vadd.f32 %v3194, %v3282
        %3284 = vmatmul.bf16.gmra.mxu0 %v1087
        %v3285 = vpop.f32.mrf.mxu0
        %v3286 = vadd.f32 %v3197, %v3285
        %v3287 = vpop.f32.mrf.mxu0
        %v3288 = vadd.f32 %v3199, %v3287
        %3289 = vdwg.mxu0
        %3290 = vmatpush.bf16.msra.mxu0 %v1762
        %3291 = vmatpush.bf16.msra.mxu0 %v1759
        %3292 = vmatpush.bf16.msra.mxu0 %v1756
        %3293 = vmatpush.bf16.msra.mxu0 %v1753
        %3294 = vmatpush.bf16.msra.mxu0 %v1750
        %3295 = vmatpush.bf16.msra.mxu0 %v1747
        %3296 = vmatpush.bf16.msra.mxu0 %v1744
        %3297 = vmatpush.bf16.msra.mxu0 %v1741
        %3298 = vmatmul.bf16.gmra.mxu0 %v998
        %v3299 = vpop.f32.mrf.mxu0
        %v3300 = vadd.f32 %v3211, %v3299
        %v3301 = vpop.f32.mrf.mxu0
        %v3302 = vadd.f32 %v3213, %v3301
        %3303 = vmatmul.bf16.gmra.mxu0 %v1004
        %v3304 = vpop.f32.mrf.mxu0
        %v3305 = vadd.f32 %v3216, %v3304
        %v3306 = vpop.f32.mrf.mxu0
        %v3307 = vadd.f32 %v3218, %v3306
        %3308 = vmatmul.bf16.gmra.mxu0 %v1010
        %v3309 = vpop.f32.mrf.mxu0
        %v3310 = vadd.f32 %v3221, %v3309
        %v3311 = vpop.f32.mrf.mxu0
        %v3312 = vadd.f32 %v3223, %v3311
        %3313 = vmatmul.bf16.gmra.mxu0 %v1016
        %v3314 = vpop.f32.mrf.mxu0
        %v3315 = vadd.f32 %v3226, %v3314
        %v3316 = vpop.f32.mrf.mxu0
        %v3317 = vadd.f32 %v3228, %v3316
        %3318 = vmatmul.bf16.gmra.mxu0 %v1022
        %v3319 = vpop.f32.mrf.mxu0
        %v3320 = vadd.f32 %v3231, %v3319
        %v3321 = vpop.f32.mrf.mxu0
        %v3322 = vadd.f32 %v3233, %v3321
        %3323 = vmatmul.bf16.gmra.mxu0 %v1028
        %v3324 = vpop.f32.mrf.mxu0
        %v3325 = vadd.f32 %v3236, %v3324
        %v3326 = vpop.f32.mrf.mxu0
        %v3327 = vadd.f32 %v3238, %v3326
        %3328 = vmatmul.bf16.gmra.mxu0 %v1034
        %v3329 = vpop.f32.mrf.mxu0
        %v3330 = vadd.f32 %v3241, %v3329
        %v3331 = vpop.f32.mrf.mxu0
        %v3332 = vadd.f32 %v3243, %v3331
        %3333 = vmatmul.bf16.gmra.mxu0 %v1040
        %v3334 = vpop.f32.mrf.mxu0
        %v3335 = vadd.f32 %v3246, %v3334
        %v3336 = vpop.f32.mrf.mxu0
        %v3337 = vadd.f32 %v3248, %v3336
        %3338 = vmatmul.bf16.gmra.mxu0 %v1046
        %v3339 = vpop.f32.mrf.mxu0
        %v3340 = vadd.f32 %v3251, %v3339
        %v3341 = vpop.f32.mrf.mxu0
        %v3342 = vadd.f32 %v3253, %v3341
        %3343 = vmatmul.bf16.gmra.mxu0 %v1052
        %v3344 = vpop.f32.mrf.mxu0
        %v3345 = vadd.f32 %v3256, %v3344
        %v3346 = vpop.f32.mrf.mxu0
        %v3347 = vadd.f32 %v3258, %v3346
        %3348 = vmatmul.bf16.gmra.mxu0 %v1058
        %v3349 = vpop.f32.mrf.mxu0
        %v3350 = vadd.f32 %v3261, %v3349
        %v3351 = vpop.f32.mrf.mxu0
        %v3352 = vadd.f32 %v3263, %v3351
        %3353 = vmatmul.bf16.gmra.mxu0 %v1064
        %v3354 = vpop.f32.mrf.mxu0
        %v3355 = vadd.f32 %v3266, %v3354
        %v3356 = vpop.f32.mrf.mxu0
        %v3357 = vadd.f32 %v3268, %v3356
        %3358 = vmatmul.bf16.gmra.mxu0 %v1070
        %v3359 = vpop.f32.mrf.mxu0
        %v3360 = vadd.f32 %v3271, %v3359
        %v3361 = vpop.f32.mrf.mxu0
        %v3362 = vadd.f32 %v3273, %v3361
        %3363 = vmatmul.bf16.gmra.mxu0 %v1076
        %v3364 = vpop.f32.mrf.mxu0
        %v3365 = vadd.f32 %v3276, %v3364
        %v3366 = vpop.f32.mrf.mxu0
        %v3367 = vadd.f32 %v3278, %v3366
        %3368 = vmatmul.bf16.gmra.mxu0 %v1082
        %v3369 = vpop.f32.mrf.mxu0
        %v3370 = vadd.f32 %v3281, %v3369
        %v3371 = vpop.f32.mrf.mxu0
        %v3372 = vadd.f32 %v3283, %v3371
        %3373 = vmatmul.bf16.gmra.mxu0 %v1088
        %v3374 = vpop.f32.mrf.mxu0
        %v3375 = vadd.f32 %v3286, %v3374
        %v3376 = vpop.f32.mrf.mxu0
        %v3377 = vadd.f32 %v3288, %v3376
        %3378 = vdwg.mxu0
        %3379 = vmatpush.bf16.msra.mxu0 %v1786
        %3380 = vmatpush.bf16.msra.mxu0 %v1783
        %3381 = vmatpush.bf16.msra.mxu0 %v1780
        %3382 = vmatpush.bf16.msra.mxu0 %v1777
        %3383 = vmatpush.bf16.msra.mxu0 %v1774
        %3384 = vmatpush.bf16.msra.mxu0 %v1771
        %3385 = vmatpush.bf16.msra.mxu0 %v1768
        %3386 = vmatpush.bf16.msra.mxu0 %v1765
        %3387 = vmatmul.bf16.gmra.mxu0 %v999
        %v3388 = vpop.f32.mrf.mxu0
        %v3389 = vadd.f32 %v3300, %v3388
        %v3390 = vpop.f32.mrf.mxu0
        %v3391 = vadd.f32 %v3302, %v3390
        %3392 = vmatmul.bf16.gmra.mxu0 %v1005
        %v3393 = vpop.f32.mrf.mxu0
        %v3394 = vadd.f32 %v3305, %v3393
        %v3395 = vpop.f32.mrf.mxu0
        %v3396 = vadd.f32 %v3307, %v3395
        %3397 = vmatmul.bf16.gmra.mxu0 %v1011
        %v3398 = vpop.f32.mrf.mxu0
        %v3399 = vadd.f32 %v3310, %v3398
        %v3400 = vpop.f32.mrf.mxu0
        %v3401 = vadd.f32 %v3312, %v3400
        %3402 = vmatmul.bf16.gmra.mxu0 %v1017
        %v3403 = vpop.f32.mrf.mxu0
        %v3404 = vadd.f32 %v3315, %v3403
        %v3405 = vpop.f32.mrf.mxu0
        %v3406 = vadd.f32 %v3317, %v3405
        %3407 = vmatmul.bf16.gmra.mxu0 %v1023
        %v3408 = vpop.f32.mrf.mxu0
        %v3409 = vadd.f32 %v3320, %v3408
        %v3410 = vpop.f32.mrf.mxu0
        %v3411 = vadd.f32 %v3322, %v3410
        %3412 = vmatmul.bf16.gmra.mxu0 %v1029
        %v3413 = vpop.f32.mrf.mxu0
        %v3414 = vadd.f32 %v3325, %v3413
        %v3415 = vpop.f32.mrf.mxu0
        %v3416 = vadd.f32 %v3327, %v3415
        %3417 = vmatmul.bf16.gmra.mxu0 %v1035
        %v3418 = vpop.f32.mrf.mxu0
        %v3419 = vadd.f32 %v3330, %v3418
        %v3420 = vpop.f32.mrf.mxu0
        %v3421 = vadd.f32 %v3332, %v3420
        %3422 = vmatmul.bf16.gmra.mxu0 %v1041
        %v3423 = vpop.f32.mrf.mxu0
        %v3424 = vadd.f32 %v3335, %v3423
        %v3425 = vpop.f32.mrf.mxu0
        %v3426 = vadd.f32 %v3337, %v3425
        %3427 = vmatmul.bf16.gmra.mxu0 %v1047
        %v3428 = vpop.f32.mrf.mxu0
        %v3429 = vadd.f32 %v3340, %v3428
        %v3430 = vpop.f32.mrf.mxu0
        %v3431 = vadd.f32 %v3342, %v3430
        %3432 = vmatmul.bf16.gmra.mxu0 %v1053
        %v3433 = vpop.f32.mrf.mxu0
        %v3434 = vadd.f32 %v3345, %v3433
        %v3435 = vpop.f32.mrf.mxu0
        %v3436 = vadd.f32 %v3347, %v3435
        %3437 = vmatmul.bf16.gmra.mxu0 %v1059
        %v3438 = vpop.f32.mrf.mxu0
        %v3439 = vadd.f32 %v3350, %v3438
        %v3440 = vpop.f32.mrf.mxu0
        %v3441 = vadd.f32 %v3352, %v3440
        %3442 = vmatmul.bf16.gmra.mxu0 %v1065
        %v3443 = vpop.f32.mrf.mxu0
        %v3444 = vadd.f32 %v3355, %v3443
        %v3445 = vpop.f32.mrf.mxu0
        %v3446 = vadd.f32 %v3357, %v3445
        %3447 = vmatmul.bf16.gmra.mxu0 %v1071
        %v3448 = vpop.f32.mrf.mxu0
        %v3449 = vadd.f32 %v3360, %v3448
        %v3450 = vpop.f32.mrf.mxu0
        %v3451 = vadd.f32 %v3362, %v3450
        %3452 = vmatmul.bf16.gmra.mxu0 %v1077
        %v3453 = vpop.f32.mrf.mxu0
        %v3454 = vadd.f32 %v3365, %v3453
        %v3455 = vpop.f32.mrf.mxu0
        %v3456 = vadd.f32 %v3367, %v3455
        %3457 = vmatmul.bf16.gmra.mxu0 %v1083
        %v3458 = vpop.f32.mrf.mxu0
        %v3459 = vadd.f32 %v3370, %v3458
        %v3460 = vpop.f32.mrf.mxu0
        %v3461 = vadd.f32 %v3372, %v3460
        %3462 = vmatmul.bf16.gmra.mxu0 %v1089
        %v3463 = vpop.f32.mrf.mxu0
        %v3464 = vadd.f32 %v3375, %v3463
        %v3465 = vpop.f32.mrf.mxu0
        %v3466 = vadd.f32 %v3377, %v3465
        %3467 = vdwg.mxu0
        %3468 = vmatpush.bf16.msra.mxu0 %v1810
        %3469 = vmatpush.bf16.msra.mxu0 %v1807
        %3470 = vmatpush.bf16.msra.mxu0 %v1804
        %3471 = vmatpush.bf16.msra.mxu0 %v1801
        %3472 = vmatpush.bf16.msra.mxu0 %v1798
        %3473 = vmatpush.bf16.msra.mxu0 %v1795
        %3474 = vmatpush.bf16.msra.mxu0 %v1792
        %3475 = vmatpush.bf16.msra.mxu0 %v1789
        %3476 = vmatmul.bf16.gmra.mxu0 %v1000
        %v3477 = vpop.f32.mrf.mxu0
        %v3478 = vadd.f32 %v3389, %v3477
        %v3479 = vpop.f32.mrf.mxu0
        %v3480 = vadd.f32 %v3391, %v3479
        %3481 = vmatmul.bf16.gmra.mxu0 %v1006
        %v3482 = vpop.f32.mrf.mxu0
        %v3483 = vadd.f32 %v3394, %v3482
        %v3484 = vpop.f32.mrf.mxu0
        %v3485 = vadd.f32 %v3396, %v3484
        %3486 = vmatmul.bf16.gmra.mxu0 %v1012
        %v3487 = vpop.f32.mrf.mxu0
        %v3488 = vadd.f32 %v3399, %v3487
        %v3489 = vpop.f32.mrf.mxu0
        %v3490 = vadd.f32 %v3401, %v3489
        %3491 = vmatmul.bf16.gmra.mxu0 %v1018
        %v3492 = vpop.f32.mrf.mxu0
        %v3493 = vadd.f32 %v3404, %v3492
        %v3494 = vpop.f32.mrf.mxu0
        %v3495 = vadd.f32 %v3406, %v3494
        %3496 = vmatmul.bf16.gmra.mxu0 %v1024
        %v3497 = vpop.f32.mrf.mxu0
        %v3498 = vadd.f32 %v3409, %v3497
        %v3499 = vpop.f32.mrf.mxu0
        %v3500 = vadd.f32 %v3411, %v3499
        %3501 = vmatmul.bf16.gmra.mxu0 %v1030
        %v3502 = vpop.f32.mrf.mxu0
        %v3503 = vadd.f32 %v3414, %v3502
        %v3504 = vpop.f32.mrf.mxu0
        %v3505 = vadd.f32 %v3416, %v3504
        %3506 = vmatmul.bf16.gmra.mxu0 %v1036
        %v3507 = vpop.f32.mrf.mxu0
        %v3508 = vadd.f32 %v3419, %v3507
        %v3509 = vpop.f32.mrf.mxu0
        %v3510 = vadd.f32 %v3421, %v3509
        %3511 = vmatmul.bf16.gmra.mxu0 %v1042
        %v3512 = vpop.f32.mrf.mxu0
        %v3513 = vadd.f32 %v3424, %v3512
        %v3514 = vpop.f32.mrf.mxu0
        %v3515 = vadd.f32 %v3426, %v3514
        %3516 = vmatmul.bf16.gmra.mxu0 %v1048
        %v3517 = vpop.f32.mrf.mxu0
        %v3518 = vadd.f32 %v3429, %v3517
        %v3519 = vpop.f32.mrf.mxu0
        %v3520 = vadd.f32 %v3431, %v3519
        %3521 = vmatmul.bf16.gmra.mxu0 %v1054
        %v3522 = vpop.f32.mrf.mxu0
        %v3523 = vadd.f32 %v3434, %v3522
        %v3524 = vpop.f32.mrf.mxu0
        %v3525 = vadd.f32 %v3436, %v3524
        %3526 = vmatmul.bf16.gmra.mxu0 %v1060
        %v3527 = vpop.f32.mrf.mxu0
        %v3528 = vadd.f32 %v3439, %v3527
        %v3529 = vpop.f32.mrf.mxu0
        %v3530 = vadd.f32 %v3441, %v3529
        %3531 = vmatmul.bf16.gmra.mxu0 %v1066
        %v3532 = vpop.f32.mrf.mxu0
        %v3533 = vadd.f32 %v3444, %v3532
        %v3534 = vpop.f32.mrf.mxu0
        %v3535 = vadd.f32 %v3446, %v3534
        %3536 = vmatmul.bf16.gmra.mxu0 %v1072
        %v3537 = vpop.f32.mrf.mxu0
        %v3538 = vadd.f32 %v3449, %v3537
        %v3539 = vpop.f32.mrf.mxu0
        %v3540 = vadd.f32 %v3451, %v3539
        %3541 = vmatmul.bf16.gmra.mxu0 %v1078
        %v3542 = vpop.f32.mrf.mxu0
        %v3543 = vadd.f32 %v3454, %v3542
        %v3544 = vpop.f32.mrf.mxu0
        %v3545 = vadd.f32 %v3456, %v3544
        %3546 = vmatmul.bf16.gmra.mxu0 %v1084
        %v3547 = vpop.f32.mrf.mxu0
        %v3548 = vadd.f32 %v3459, %v3547
        %v3549 = vpop.f32.mrf.mxu0
        %v3550 = vadd.f32 %v3461, %v3549
        %3551 = vmatmul.bf16.gmra.mxu0 %v1090
        %v3552 = vpop.f32.mrf.mxu0
        %v3553 = vadd.f32 %v3464, %v3552
        %v3554 = vpop.f32.mrf.mxu0
        %v3555 = vadd.f32 %v3466, %v3554
        %3556 = vdwg.mxu0
        %v3557 = vadd.f32 %v2410, %v507
        %v3558 = vadd.f32 %v2944, %v508
        %v3559 = vadd.f32 %v3478, %v509
        %v3560 = vadd.f32 %v2412, %v510
        %v3561 = vadd.f32 %v2946, %v511
        %v3562 = vadd.f32 %v3480, %v512
        %v3563 = vadd.f32 %v2415, %v513
        %v3564 = vadd.f32 %v2949, %v514
        %v3565 = vadd.f32 %v3483, %v515
        %v3566 = vadd.f32 %v2417, %v516
        %v3567 = vadd.f32 %v2951, %v517
        %v3568 = vadd.f32 %v3485, %v518
        %v3569 = vadd.f32 %v2420, %v519
        %v3570 = vadd.f32 %v2954, %v520
        %v3571 = vadd.f32 %v3488, %v521
        %v3572 = vadd.f32 %v2422, %v522
        %v3573 = vadd.f32 %v2956, %v523
        %v3574 = vadd.f32 %v3490, %v524
        %v3575 = vadd.f32 %v2425, %v525
        %v3576 = vadd.f32 %v2959, %v526
        %v3577 = vadd.f32 %v3493, %v527
        %v3578 = vadd.f32 %v2427, %v528
        %v3579 = vadd.f32 %v2961, %v529
        %v3580 = vadd.f32 %v3495, %v530
        %v3581 = vadd.f32 %v2430, %v531
        %v3582 = vadd.f32 %v2964, %v532
        %v3583 = vadd.f32 %v3498, %v533
        %v3584 = vadd.f32 %v2432, %v534
        %v3585 = vadd.f32 %v2966, %v535
        %v3586 = vadd.f32 %v3500, %v536
        %v3587 = vadd.f32 %v2435, %v537
        %v3588 = vadd.f32 %v2969, %v538
        %v3589 = vadd.f32 %v3503, %v539
        %v3590 = vadd.f32 %v2437, %v540
        %v3591 = vadd.f32 %v2971, %v541
        %v3592 = vadd.f32 %v3505, %v542
        %v3593 = vadd.f32 %v2440, %v543
        %v3594 = vadd.f32 %v2974, %v544
        %v3595 = vadd.f32 %v3508, %v545
        %v3596 = vadd.f32 %v2442, %v546
        %v3597 = vadd.f32 %v2976, %v547
        %v3598 = vadd.f32 %v3510, %v548
        %v3599 = vadd.f32 %v2445, %v549
        %v3600 = vadd.f32 %v2979, %v550
        %v3601 = vadd.f32 %v3513, %v551
        %v3602 = vadd.f32 %v2447, %v552
        %v3603 = vadd.f32 %v2981, %v553
        %v3604 = vadd.f32 %v3515, %v554
        %v3605 = vadd.f32 %v2450, %v555
        %v3606 = vadd.f32 %v2984, %v556
        %v3607 = vadd.f32 %v3518, %v557
        %v3608 = vadd.f32 %v2452, %v558
        %v3609 = vadd.f32 %v2986, %v559
        %v3610 = vadd.f32 %v3520, %v560
        %v3611 = vadd.f32 %v2455, %v561
        %v3612 = vadd.f32 %v2989, %v562
        %v3613 = vadd.f32 %v3523, %v563
        %v3614 = vadd.f32 %v2457, %v564
        %v3615 = vadd.f32 %v2991, %v565
        %v3616 = vadd.f32 %v3525, %v566
        %v3617 = vadd.f32 %v2460, %v567
        %v3618 = vadd.f32 %v2994, %v568
        %v3619 = vadd.f32 %v3528, %v569
        %v3620 = vadd.f32 %v2462, %v570
        %v3621 = vadd.f32 %v2996, %v571
        %v3622 = vadd.f32 %v3530, %v572
        %v3623 = vadd.f32 %v2465, %v573
        %v3624 = vadd.f32 %v2999, %v574
        %v3625 = vadd.f32 %v3533, %v575
        %v3626 = vadd.f32 %v2467, %v576
        %v3627 = vadd.f32 %v3001, %v577
        %v3628 = vadd.f32 %v3535, %v578
        %v3629 = vadd.f32 %v2470, %v579
        %v3630 = vadd.f32 %v3004, %v580
        %v3631 = vadd.f32 %v3538, %v581
        %v3632 = vadd.f32 %v2472, %v582
        %v3633 = vadd.f32 %v3006, %v583
        %v3634 = vadd.f32 %v3540, %v584
        %v3635 = vadd.f32 %v2475, %v585
        %v3636 = vadd.f32 %v3009, %v586
        %v3637 = vadd.f32 %v3543, %v587
        %v3638 = vadd.f32 %v2477, %v588
        %v3639 = vadd.f32 %v3011, %v589
        %v3640 = vadd.f32 %v3545, %v590
        %v3641 = vadd.f32 %v2480, %v591
        %v3642 = vadd.f32 %v3014, %v592
        %v3643 = vadd.f32 %v3548, %v593
        %v3644 = vadd.f32 %v2482, %v594
        %v3645 = vadd.f32 %v3016, %v595
        %v3646 = vadd.f32 %v3550, %v596
        %v3647 = vadd.f32 %v2485, %v597
        %v3648 = vadd.f32 %v3019, %v598
        %v3649 = vadd.f32 %v3553, %v599
        %v3650 = vadd.f32 %v2487, %v600
        %v3651 = vadd.f32 %v3021, %v601
        %v3652 = vadd.f32 %v3555, %v602
        %v3654 = vperm.slane %v603, 0
        %v3655 = vperm.slane %v603, 1
        %v3656 = vperm.slane %v603, 2
        %vm3756 = vcmask 1040384
        %v3757 = vrot.slane %v3557, 7
        %v3758 = vrot.slane %v3558, 7
        %v3759 = vrot.slane %v3559, 7
        %v3760 = vrot.slane %v3560, 7
        %v3761 = vsel %vm3756, %v3757, %v3760
        %v3762 = vrot.slane %v3561, 7
        %v3763 = vsel %vm3756, %v3758, %v3762
        %v3764 = vrot.slane %v3562, 7
        %v3765 = vsel %vm3756, %v3759, %v3764
        %v3766 = vrot.slane %v3563, 7
        %v3767 = vsel %vm3756, %v3760, %v3766
        %v3768 = vrot.slane %v3564, 7
        %v3769 = vsel %vm3756, %v3762, %v3768
        %v3770 = vrot.slane %v3565, 7
        %v3771 = vsel %vm3756, %v3764, %v3770
        %v3772 = vrot.slane %v3566, 7
        %v3773 = vsel %vm3756, %v3766, %v3772
        %v3774 = vrot.slane %v3567, 7
        %v3775 = vsel %vm3756, %v3768, %v3774
        %v3776 = vrot.slane %v3568, 7
        %v3777 = vsel %vm3756, %v3770, %v3776
        %v3778 = vrot.slane %v3569, 7
        %v3779 = vsel %vm3756, %v3772, %v3778
        %v3780 = vrot.slane %v3570, 7
        %v3781 = vsel %vm3756, %v3774, %v3780
        %v3782 = vrot.slane %v3571, 7
        %v3783 = vsel %vm3756, %v3776, %v3782
        %v3784 = vrot.slane %v3572, 7
        %v3785 = vsel %vm3756, %v3778, %v3784
        %v3786 = vrot.slane %v3573, 7
        %v3787 = vsel %vm3756, %v3780, %v3786
        %v3788 = vrot.slane %v3574, 7
        %v3789 = vsel %vm3756, %v3782, %v3788
        %v3790 = vrot.slane %v3575, 7
        %v3791 = vsel %vm3756, %v3784, %v3790
        %v3792 = vrot.slane %v3576, 7
        %v3793 = vsel %vm3756, %v3786, %v3792
        %v3794 = vrot.slane %v3577, 7
        %v3795 = vsel %vm3756, %v3788, %v3794
        %v3796 = vrot.slane %v3578, 7
        %v3797 = vsel %vm3756, %v3790, %v3796
        %v3798 = vrot.slane %v3579, 7
        %v3799 = vsel %vm3756, %v3792, %v3798
        %v3800 = vrot.slane %v3580, 7
        %v3801 = vsel %vm3756, %v3794, %v3800
        %v3802 = vrot.slane %v3581, 7
        %v3803 = vsel %vm3756, %v3796, %v3802
        %v3804 = vrot.slane %v3582, 7
        %v3805 = vsel %vm3756, %v3798, %v3804
        %v3806 = vrot.slane %v3583, 7
        %v3807 = vsel %vm3756, %v3800, %v3806
        %v3808 = vrot.slane %v3584, 7
        %v3809 = vsel %vm3756, %v3802, %v3808
        %v3810 = vrot.slane %v3585, 7
        %v3811 = vsel %vm3756, %v3804, %v3810
        %v3812 = vrot.slane %v3586, 7
        %v3813 = vsel %vm3756, %v3806, %v3812
        %v3814 = vrot.slane %v3587, 7
        %v3815 = vsel %vm3756, %v3808, %v3814
        %v3816 = vrot.slane %v3588, 7
        %v3817 = vsel %vm3756, %v3810, %v3816
        %v3818 = vrot.slane %v3589, 7
        %v3819 = vsel %vm3756, %v3812, %v3818
        %v3820 = vrot.slane %v3590, 7
        %v3821 = vsel %vm3756, %v3814, %v3820
        %v3822 = vrot.slane %v3591, 7
        %v3823 = vsel %vm3756, %v3816, %v3822
        %v3824 = vrot.slane %v3592, 7
        %v3825 = vsel %vm3756, %v3818, %v3824
        %v3826 = vrot.slane %v3593, 7
        %v3827 = vsel %vm3756, %v3820, %v3826
        %v3828 = vrot.slane %v3594, 7
        %v3829 = vsel %vm3756, %v3822, %v3828
        %v3830 = vrot.slane %v3595, 7
        %v3831 = vsel %vm3756, %v3824, %v3830
        %v3832 = vrot.slane %v3596, 7
        %v3833 = vsel %vm3756, %v3826, %v3832
        %v3834 = vrot.slane %v3597, 7
        %v3835 = vsel %vm3756, %v3828, %v3834
        %v3836 = vrot.slane %v3598, 7
        %v3837 = vsel %vm3756, %v3830, %v3836
        %v3838 = vrot.slane %v3599, 7
        %v3839 = vsel %vm3756, %v3832, %v3838
        %v3840 = vrot.slane %v3600, 7
        %v3841 = vsel %vm3756, %v3834, %v3840
        %v3842 = vrot.slane %v3601, 7
        %v3843 = vsel %vm3756, %v3836, %v3842
        %v3844 = vrot.slane %v3602, 7
        %v3845 = vsel %vm3756, %v3838, %v3844
        %v3846 = vrot.slane %v3603, 7
        %v3847 = vsel %vm3756, %v3840, %v3846
        %v3848 = vrot.slane %v3604, 7
        %v3849 = vsel %vm3756, %v3842, %v3848
        %v3850 = vrot.slane %v3605, 7
        %v3851 = vsel %vm3756, %v3844, %v3850
        %v3852 = vrot.slane %v3606, 7
        %v3853 = vsel %vm3756, %v3846, %v3852
        %v3854 = vrot.slane %v3607, 7
        %v3855 = vsel %vm3756, %v3848, %v3854
        %v3856 = vrot.slane %v3608, 7
        %v3857 = vsel %vm3756, %v3850, %v3856
        %v3858 = vrot.slane %v3609, 7
        %v3859 = vsel %vm3756, %v3852, %v3858
        %v3860 = vrot.slane %v3610, 7
        %v3861 = vsel %vm3756, %v3854, %v3860
        %v3862 = vrot.slane %v3611, 7
        %v3863 = vsel %vm3756, %v3856, %v3862
        %v3864 = vrot.slane %v3612, 7
        %v3865 = vsel %vm3756, %v3858, %v3864
        %v3866 = vrot.slane %v3613, 7
        %v3867 = vsel %vm3756, %v3860, %v3866
        %v3868 = vrot.slane %v3614, 7
        %v3869 = vsel %vm3756, %v3862, %v3868
        %v3870 = vrot.slane %v3615, 7
        %v3871 = vsel %vm3756, %v3864, %v3870
        %v3872 = vrot.slane %v3616, 7
        %v3873 = vsel %vm3756, %v3866, %v3872
        %v3874 = vrot.slane %v3617, 7
        %v3875 = vsel %vm3756, %v3868, %v3874
        %v3876 = vrot.slane %v3618, 7
        %v3877 = vsel %vm3756, %v3870, %v3876
        %v3878 = vrot.slane %v3619, 7
        %v3879 = vsel %vm3756, %v3872, %v3878
        %v3880 = vrot.slane %v3620, 7
        %v3881 = vsel %vm3756, %v3874, %v3880
        %v3882 = vrot.slane %v3621, 7
        %v3883 = vsel %vm3756, %v3876, %v3882
        %v3884 = vrot.slane %v3622, 7
        %v3885 = vsel %vm3756, %v3878, %v3884
        %v3886 = vrot.slane %v3623, 7
        %v3887 = vsel %vm3756, %v3880, %v3886
        %v3888 = vrot.slane %v3624, 7
        %v3889 = vsel %vm3756, %v3882, %v3888
        %v3890 = vrot.slane %v3625, 7
        %v3891 = vsel %vm3756, %v3884, %v3890
        %v3892 = vrot.slane %v3626, 7
        %v3893 = vsel %vm3756, %v3886, %v3892
        %v3894 = vrot.slane %v3627, 7
        %v3895 = vsel %vm3756, %v3888, %v3894
        %v3896 = vrot.slane %v3628, 7
        %v3897 = vsel %vm3756, %v3890, %v3896
        %v3898 = vrot.slane %v3629, 7
        %v3899 = vsel %vm3756, %v3892, %v3898
        %v3900 = vrot.slane %v3630, 7
        %v3901 = vsel %vm3756, %v3894, %v3900
        %v3902 = vrot.slane %v3631, 7
        %v3903 = vsel %vm3756, %v3896, %v3902
        %v3904 = vrot.slane %v3632, 7
        %v3905 = vsel %vm3756, %v3898, %v3904
        %v3906 = vrot.slane %v3633, 7
        %v3907 = vsel %vm3756, %v3900, %v3906
        %v3908 = vrot.slane %v3634, 7
        %v3909 = vsel %vm3756, %v3902, %v3908
        %v3910 = vrot.slane %v3635, 7
        %v3911 = vsel %vm3756, %v3904, %v3910
        %v3912 = vrot.slane %v3636, 7
        %v3913 = vsel %vm3756, %v3906, %v3912
        %v3914 = vrot.slane %v3637, 7
        %v3915 = vsel %vm3756, %v3908, %v3914
        %v3916 = vrot.slane %v3638, 7
        %v3917 = vsel %vm3756, %v3910, %v3916
        %v3918 = vrot.slane %v3639, 7
        %v3919 = vsel %vm3756, %v3912, %v3918
        %v3920 = vrot.slane %v3640, 7
        %v3921 = vsel %vm3756, %v3914, %v3920
        %v3922 = vrot.slane %v3641, 7
        %v3923 = vsel %vm3756, %v3916, %v3922
        %v3924 = vrot.slane %v3642, 7
        %v3925 = vsel %vm3756, %v3918, %v3924
        %v3926 = vrot.slane %v3643, 7
        %v3927 = vsel %vm3756, %v3920, %v3926
        %v3928 = vrot.slane %v3644, 7
        %v3929 = vsel %vm3756, %v3922, %v3928
        %v3930 = vrot.slane %v3645, 7
        %v3931 = vsel %vm3756, %v3924, %v3930
        %v3932 = vrot.slane %v3646, 7
        %v3933 = vsel %vm3756, %v3926, %v3932
        %v3934 = vrot.slane %v3647, 7
        %v3935 = vsel %vm3756, %v3928, %v3934
        %v3936 = vrot.slane %v3648, 7
        %v3937 = vsel %vm3756, %v3930, %v3936
        %v3938 = vrot.slane %v3649, 7
        %v3939 = vsel %vm3756, %v3932, %v3938
        %v3940 = vrot.slane %v3650, 7
        %v3941 = vsel %vm3756, %v3934, %v3940
        %v3942 = vrot.slane %v3651, 7
        %v3943 = vsel %vm3756, %v3936, %v3942
        %v3944 = vrot.slane %v3652, 7
        %v3945 = vsel %vm3756, %v3938, %v3944
        %v4045 = vsel %vm3756, %v3654, %v3757
        %v4046 = vsel %vm3756, %v3655, %v3758
        %v4047 = vsel %vm3756, %v3656, %v3759
        %v4048 = vpack.c.bf16 %v4046, %v4045
        %v4049 = vpack.c.bf16 %v4047, %v4047
        %v4050 = vpack.c.bf16 %v3763, %v3761
        %v4051 = vpack.c.bf16 %v3765, %v3765
        %v4052 = vpack.c.bf16 %v3769, %v3767
        %v4053 = vpack.c.bf16 %v3771, %v3771
        %v4054 = vpack.c.bf16 %v3775, %v3773
        %v4055 = vpack.c.bf16 %v3777, %v3777
        %v4056 = vpack.c.bf16 %v3781, %v3779
        %v4057 = vpack.c.bf16 %v3783, %v3783
        %v4058 = vpack.c.bf16 %v3787, %v3785
        %v4059 = vpack.c.bf16 %v3789, %v3789
        %v4060 = vpack.c.bf16 %v3793, %v3791
        %v4061 = vpack.c.bf16 %v3795, %v3795
        %v4062 = vpack.c.bf16 %v3799, %v3797
        %v4063 = vpack.c.bf16 %v3801, %v3801
        %v4064 = vpack.c.bf16 %v3805, %v3803
        %v4065 = vpack.c.bf16 %v3807, %v3807
        %v4066 = vpack.c.bf16 %v3811, %v3809
        %v4067 = vpack.c.bf16 %v3813, %v3813
        %v4068 = vpack.c.bf16 %v3817, %v3815
        %v4069 = vpack.c.bf16 %v3819, %v3819
        %v4070 = vpack.c.bf16 %v3823, %v3821
        %v4071 = vpack.c.bf16 %v3825, %v3825
        %v4072 = vpack.c.bf16 %v3829, %v3827
        %v4073 = vpack.c.bf16 %v3831, %v3831
        %v4074 = vpack.c.bf16 %v3835, %v3833
        %v4075 = vpack.c.bf16 %v3837, %v3837
        %v4076 = vpack.c.bf16 %v3841, %v3839
        %v4077 = vpack.c.bf16 %v3843, %v3843
        %v4078 = vpack.c.bf16 %v3847, %v3845
        %v4079 = vpack.c.bf16 %v3849, %v3849
        %v4080 = vpack.c.bf16 %v3853, %v3851
        %v4081 = vpack.c.bf16 %v3855, %v3855
        %v4082 = vpack.c.bf16 %v3859, %v3857
        %v4083 = vpack.c.bf16 %v3861, %v3861
        %v4084 = vpack.c.bf16 %v3865, %v3863
        %v4085 = vpack.c.bf16 %v3867, %v3867
        %v4086 = vpack.c.bf16 %v3871, %v3869
        %v4087 = vpack.c.bf16 %v3873, %v3873
        %v4088 = vpack.c.bf16 %v3877, %v3875
        %v4089 = vpack.c.bf16 %v3879, %v3879
        %v4090 = vpack.c.bf16 %v3883, %v3881
        %v4091 = vpack.c.bf16 %v3885, %v3885
        %v4092 = vpack.c.bf16 %v3889, %v3887
        %v4093 = vpack.c.bf16 %v3891, %v3891
        %v4094 = vpack.c.bf16 %v3895, %v3893
        %v4095 = vpack.c.bf16 %v3897, %v3897
        %v4096 = vpack.c.bf16 %v3901, %v3899
        %v4097 = vpack.c.bf16 %v3903, %v3903
        %v4098 = vpack.c.bf16 %v3907, %v3905
        %v4099 = vpack.c.bf16 %v3909, %v3909
        %v4100 = vpack.c.bf16 %v3913, %v3911
        %v4101 = vpack.c.bf16 %v3915, %v3915
        %v4102 = vpack.c.bf16 %v3919, %v3917
        %v4103 = vpack.c.bf16 %v3921, %v3921
        %v4104 = vpack.c.bf16 %v3925, %v3923
        %v4105 = vpack.c.bf16 %v3927, %v3927
        %v4106 = vpack.c.bf16 %v3931, %v3929
        %v4107 = vpack.c.bf16 %v3933, %v3933
        %v4108 = vpack.c.bf16 %v3937, %v3935
        %v4109 = vpack.c.bf16 %v3939, %v3939
        %v4110 = vpack.c.bf16 %v3943, %v3941
        %v4111 = vpack.c.bf16 %v3945, %v3945
        %v4112 = vpack.c.bf16 %v3942, %v3940
        %v4113 = vpack.c.bf16 %v3944, %v3944
        %4114 = vst [vmem:[%s312] sm:$0xff] %v4048
        %4115 = vst [vmem:[%s312 + $0x8] sm:$0xf] %v4049
        %4116 = vst [vmem:[%s312 + $0xc] sm:$0xff] %v4050
        %4117 = vst [vmem:[%s312 + $0x14] sm:$0xf] %v4051
        %4118 = vst [vmem:[%s312 + $0x18] sm:$0xff] %v4052
        %4119 = vst [vmem:[%s312 + $0x20] sm:$0xf] %v4053
        %4120 = vst [vmem:[%s312 + $0x24] sm:$0xff] %v4054
        %4121 = vst [vmem:[%s312 + $0x2c] sm:$0xf] %v4055
        %4122 = vst [vmem:[%s312 + $0x30] sm:$0xff] %v4056
        %4123 = vst [vmem:[%s312 + $0x38] sm:$0xf] %v4057
        %4124 = vst [vmem:[%s312 + $0x3c] sm:$0xff] %v4058
        %4125 = vst [vmem:[%s312 + $0x44] sm:$0xf] %v4059
        %4126 = vst [vmem:[%s312 + $0x48] sm:$0xff] %v4060
        %4127 = vst [vmem:[%s312 + $0x50] sm:$0xf] %v4061
        %4128 = vst [vmem:[%s312 + $0x54] sm:$0xff] %v4062
        %4129 = vst [vmem:[%s312 + $0x5c] sm:$0xf] %v4063
        %4130 = vst [vmem:[%s312 + $0x60] sm:$0xff] %v4064
        %4131 = vst [vmem:[%s312 + $0x68] sm:$0xf] %v4065
        %4132 = vst [vmem:[%s312 + $0x6c] sm:$0xff] %v4066
        %4133 = vst [vmem:[%s312 + $0x74] sm:$0xf] %v4067
        %4134 = vst [vmem:[%s312 + $0x78] sm:$0xff] %v4068
        %4135 = vst [vmem:[%s312 + $0x80] sm:$0xf] %v4069
        %4136 = vst [vmem:[%s312 + $0x84] sm:$0xff] %v4070
        %4137 = vst [vmem:[%s312 + $0x8c] sm:$0xf] %v4071
        %4138 = vst [vmem:[%s312 + $0x90] sm:$0xff] %v4072
        %4139 = vst [vmem:[%s312 + $0x98] sm:$0xf] %v4073
        %4140 = vst [vmem:[%s312 + $0x9c] sm:$0xff] %v4074
        %4141 = vst [vmem:[%s312 + $0xa4] sm:$0xf] %v4075
        %4142 = vst [vmem:[%s312 + $0xa8] sm:$0xff] %v4076
        %4143 = vst [vmem:[%s312 + $0xb0] sm:$0xf] %v4077
        %4144 = vst [vmem:[%s312 + $0xb4] sm:$0xff] %v4078
        %4145 = vst [vmem:[%s312 + $0xbc] sm:$0xf] %v4079
        %4146 = vst [vmem:[%s312 + $0xc0] sm:$0xff] %v4080
        %4147 = vst [vmem:[%s312 + $0xc8] sm:$0xf] %v4081
        %4148 = vst [vmem:[%s312 + $0xcc] sm:$0xff] %v4082
        %4149 = vst [vmem:[%s312 + $0xd4] sm:$0xf] %v4083
        %4150 = vst [vmem:[%s312 + $0xd8] sm:$0xff] %v4084
        %4151 = vst [vmem:[%s312 + $0xe0] sm:$0xf] %v4085
        %4152 = vst [vmem:[%s312 + $0xe4] sm:$0xff] %v4086
        %4153 = vst [vmem:[%s312 + $0xec] sm:$0xf] %v4087
        %4154 = vst [vmem:[%s312 + $0xf0] sm:$0xff] %v4088
        %4155 = vst [vmem:[%s312 + $0xf8] sm:$0xf] %v4089
        %4156 = vst [vmem:[%s312 + $0xfc] sm:$0xff] %v4090
        %4157 = vst [vmem:[%s312 + $0x104] sm:$0xf] %v4091
        %4158 = vst [vmem:[%s312 + $0x108] sm:$0xff] %v4092
        %4159 = vst [vmem:[%s312 + $0x110] sm:$0xf] %v4093
        %4160 = vst [vmem:[%s312 + $0x114] sm:$0xff] %v4094
        %4161 = vst [vmem:[%s312 + $0x11c] sm:$0xf] %v4095
        %4162 = vst [vmem:[%s312 + $0x120] sm:$0xff] %v4096
        %4163 = vst [vmem:[%s312 + $0x128] sm:$0xf] %v4097
        %4164 = vst [vmem:[%s312 + $0x12c] sm:$0xff] %v4098
        %4165 = vst [vmem:[%s312 + $0x134] sm:$0xf] %v4099
        %4166 = vst [vmem:[%s312 + $0x138] sm:$0xff] %v4100
        %4167 = vst [vmem:[%s312 + $0x140] sm:$0xf] %v4101
        %4168 = vst [vmem:[%s312 + $0x144] sm:$0xff] %v4102
        %4169 = vst [vmem:[%s312 + $0x14c] sm:$0xf] %v4103
        %4170 = vst [vmem:[%s312 + $0x150] sm:$0xff] %v4104
        %4171 = vst [vmem:[%s312 + $0x158] sm:$0xf] %v4105
        %4172 = vst [vmem:[%s312 + $0x15c] sm:$0xff] %v4106
        %4173 = vst [vmem:[%s312 + $0x164] sm:$0xf] %v4107
        %4174 = vst [vmem:[%s312 + $0x168] sm:$0xff] %v4108
        %4175 = vst [vmem:[%s312 + $0x170] sm:$0xf] %v4109
        %4176 = vst [vmem:[%s312 + $0x174] sm:$0xff] %v4110
        %4177 = vst [vmem:[%s312 + $0x17c] sm:$0xf] %v4111
        %vm4178 = vcmask 1040384
        %vm4179 = vsmask.f32 256
        %vm4180 = vmand %vm4178, %vm4179
        %vm4181 = vcmask 1044484
        %vm4182 = vsmask.f32 4352
        %vm4183 = vmand %vm4181, %vm4182
        %vm4184 = vmor %vm4183, %vm4180
        %v4185 = vld [vmem:[%s312 + $0x180] sm:$0x11]
        %v4186 = vsel %vm4184, %v4112, %v4185
        %4187 = vst [vmem:[%s312 + $0x180] sm:$0x11] %v4186
        %v4188 = vld [vmem:[%s312 + $0x188] sm:$0x1]
        %v4189 = vsel %vm4180, %v4113, %v4188
        %4190 = vst [vmem:[%s312 + $0x188] sm:$0x1] %v4189
        %s4191 = scalar_lea.vmem %s257, 768 [#allocation2]
        %v4192 = vld [vmem:[%s4191] sm:$0xff]
        %v4193 = vld [vmem:[%s4191 + $0x8] sm:$0xff]
        %v4194 = vld [vmem:[%s4191 + $0x10] sm:$0xff]
        %v4195 = vld [vmem:[%s4191 + $0x18] sm:$0xff]
        %v4196 = vld [vmem:[%s4191 + $0x20] sm:$0xff]
        %v4197 = vld [vmem:[%s4191 + $0x28] sm:$0xff]
        %v4198 = vld [vmem:[%s4191 + $0x30] sm:$0xff]
        %v4199 = vld [vmem:[%s4191 + $0x38] sm:$0xff]
        %v4200 = vld [vmem:[%s4191 + $0x40] sm:$0xff]
        %v4201 = vld [vmem:[%s4191 + $0x48] sm:$0xff]
        %v4202 = vld [vmem:[%s4191 + $0x50] sm:$0xff]
        %v4203 = vld [vmem:[%s4191 + $0x58] sm:$0xff]
        %v4204 = vld [vmem:[%s4191 + $0x60] sm:$0xff]
        %v4205 = vld [vmem:[%s4191 + $0x68] sm:$0xff]
        %v4206 = vld [vmem:[%s4191 + $0x70] sm:$0xff]
        %v4207 = vld [vmem:[%s4191 + $0x78] sm:$0xff]
        %v4208 = vld [vmem:[%s4191 + $0x80] sm:$0xff]
        %v4209 = vld [vmem:[%s4191 + $0x88] sm:$0xff]
        %v4210 = vld [vmem:[%s4191 + $0x90] sm:$0xff]
        %v4211 = vld [vmem:[%s4191 + $0x98] sm:$0xff]
        %v4212 = vld [vmem:[%s4191 + $0xa0] sm:$0xff]
        %v4213 = vld [vmem:[%s4191 + $0xa8] sm:$0xff]
        %v4214 = vld [vmem:[%s4191 + $0xb0] sm:$0xff]
        %v4215 = vld [vmem:[%s4191 + $0xb8] sm:$0xff]
        %v4216 = vld [vmem:[%s4191 + $0xc0] sm:$0xff]
        %v4217 = vld [vmem:[%s4191 + $0xc8] sm:$0xff]
        %v4218 = vld [vmem:[%s4191 + $0xd0] sm:$0xff]
        %v4219 = vld [vmem:[%s4191 + $0xd8] sm:$0xff]
        %v4220 = vld [vmem:[%s4191 + $0xe0] sm:$0xff]
        %v4221 = vld [vmem:[%s4191 + $0xe8] sm:$0xff]
        %v4222 = vld [vmem:[%s4191 + $0xf0] sm:$0xff]
        %v4223 = vld [vmem:[%s4191 + $0xf8] sm:$0xff]
        %v4224 = vld [vmem:[%s4191 + $0x100] sm:$0xff]
        %v4225 = vld [vmem:[%s4191 + $0x108] sm:$0xff]
        %v4226 = vld [vmem:[%s4191 + $0x110] sm:$0xff]
        %v4227 = vld [vmem:[%s4191 + $0x118] sm:$0xff]
        %v4228 = vld [vmem:[%s4191 + $0x120] sm:$0xff]
        %v4229 = vld [vmem:[%s4191 + $0x128] sm:$0xff]
        %v4230 = vld [vmem:[%s4191 + $0x130] sm:$0xff]
        %v4231 = vld [vmem:[%s4191 + $0x138] sm:$0xff]
        %v4232 = vld [vmem:[%s4191 + $0x140] sm:$0xff]
        %v4233 = vld [vmem:[%s4191 + $0x148] sm:$0xff]
        %v4234 = vld [vmem:[%s4191 + $0x150] sm:$0xff]
        %v4235 = vld [vmem:[%s4191 + $0x158] sm:$0xff]
        %v4236 = vld [vmem:[%s4191 + $0x160] sm:$0xff]
        %v4237 = vld [vmem:[%s4191 + $0x168] sm:$0xff]
        %v4238 = vld [vmem:[%s4191 + $0x170] sm:$0xff]
        %v4239 = vld [vmem:[%s4191 + $0x178] sm:$0xff]
        %v4240 = vld [vmem:[%s4191 + $0x180] sm:$0xff]
        %v4241 = vld [vmem:[%s4191 + $0x188] sm:$0xff]
        %v4242 = vld [vmem:[%s4191 + $0x190] sm:$0xff]
        %v4243 = vld [vmem:[%s4191 + $0x198] sm:$0xff]
        %v4244 = vld [vmem:[%s4191 + $0x1a0] sm:$0xff]
        %v4245 = vld [vmem:[%s4191 + $0x1a8] sm:$0xff]
        %v4246 = vld [vmem:[%s4191 + $0x1b0] sm:$0xff]
        %v4247 = vld [vmem:[%s4191 + $0x1b8] sm:$0xff]
        %v4248 = vld [vmem:[%s4191 + $0x1c0] sm:$0xff]
        %v4249 = vld [vmem:[%s4191 + $0x1c8] sm:$0xff]
        %v4250 = vld [vmem:[%s4191 + $0x1d0] sm:$0xff]
        %v4251 = vld [vmem:[%s4191 + $0x1d8] sm:$0xff]
        %v4252 = vld [vmem:[%s4191 + $0x1e0] sm:$0xff]
        %v4253 = vld [vmem:[%s4191 + $0x1e8] sm:$0xff]
        %v4254 = vld [vmem:[%s4191 + $0x1f0] sm:$0xff]
        %v4255 = vld [vmem:[%s4191 + $0x1f8] sm:$0xff]
        %v4256 = vld [vmem:[%s4191 + $0x200] sm:$0xff]
        %v4257 = vld [vmem:[%s4191 + $0x208] sm:$0xff]
        %v4258 = vld [vmem:[%s4191 + $0x210] sm:$0xff]
        %v4259 = vld [vmem:[%s4191 + $0x218] sm:$0xff]
        %v4260 = vld [vmem:[%s4191 + $0x220] sm:$0xff]
        %v4261 = vld [vmem:[%s4191 + $0x228] sm:$0xff]
        %v4262 = vld [vmem:[%s4191 + $0x230] sm:$0xff]
        %v4263 = vld [vmem:[%s4191 + $0x238] sm:$0xff]
        %v4264 = vld [vmem:[%s4191 + $0x240] sm:$0xff]
        %v4265 = vld [vmem:[%s4191 + $0x248] sm:$0xff]
        %v4266 = vld [vmem:[%s4191 + $0x250] sm:$0xff]
        %v4267 = vld [vmem:[%s4191 + $0x258] sm:$0xff]
        %v4268 = vld [vmem:[%s4191 + $0x260] sm:$0xff]
        %v4269 = vld [vmem:[%s4191 + $0x268] sm:$0xff]
        %v4270 = vld [vmem:[%s4191 + $0x270] sm:$0xff]
        %v4271 = vld [vmem:[%s4191 + $0x278] sm:$0xff]
        %v4272 = vld [vmem:[%s4191 + $0x280] sm:$0xff]
        %v4273 = vld [vmem:[%s4191 + $0x288] sm:$0xff]
        %v4274 = vld [vmem:[%s4191 + $0x290] sm:$0xff]
        %v4275 = vld [vmem:[%s4191 + $0x298] sm:$0xff]
        %v4276 = vld [vmem:[%s4191 + $0x2a0] sm:$0xff]
        %v4277 = vld [vmem:[%s4191 + $0x2a8] sm:$0xff]
        %v4278 = vld [vmem:[%s4191 + $0x2b0] sm:$0xff]
        %v4279 = vld [vmem:[%s4191 + $0x2b8] sm:$0xff]
        %v4280 = vld [vmem:[%s4191 + $0x2c0] sm:$0xff]
        %v4281 = vld [vmem:[%s4191 + $0x2c8] sm:$0xff]
        %v4282 = vld [vmem:[%s4191 + $0x2d0] sm:$0xff]
        %v4283 = vld [vmem:[%s4191 + $0x2d8] sm:$0xff]
        %v4284 = vld [vmem:[%s4191 + $0x2e0] sm:$0xff]
        %v4285 = vld [vmem:[%s4191 + $0x2e8] sm:$0xff]
        %v4286 = vld [vmem:[%s4191 + $0x2f0] sm:$0xff]
        %v4287 = vld [vmem:[%s4191 + $0x2f8] sm:$0xff]
        %v4384 = vunpack.c.l.b16 %v4192
        %v4385 = vunpack.c.h.b16 %v4192
        %v4386 = vunpack.c.l.b16 %v4193
        %v4387 = vunpack.c.h.b16 %v4193
        %v4388 = vunpack.c.l.b16 %v4194
        %v4389 = vunpack.c.h.b16 %v4194
        %v4390 = vunpack.c.l.b16 %v4195
        %v4391 = vunpack.c.h.b16 %v4195
        %v4392 = vunpack.c.l.b16 %v4196
        %v4393 = vunpack.c.h.b16 %v4196
        %v4394 = vunpack.c.l.b16 %v4197
        %v4395 = vunpack.c.h.b16 %v4197
        %v4396 = vunpack.c.l.b16 %v4198
        %v4397 = vunpack.c.h.b16 %v4198
        %v4398 = vunpack.c.l.b16 %v4199
        %v4399 = vunpack.c.h.b16 %v4199
        %v4400 = vunpack.c.l.b16 %v4200
        %v4401 = vunpack.c.h.b16 %v4200
        %v4402 = vunpack.c.l.b16 %v4201
        %v4403 = vunpack.c.h.b16 %v4201
        %v4404 = vunpack.c.l.b16 %v4202
        %v4405 = vunpack.c.h.b16 %v4202
        %v4406 = vunpack.c.l.b16 %v4203
        %v4407 = vunpack.c.h.b16 %v4203
        %v4408 = vunpack.c.l.b16 %v4204
        %v4409 = vunpack.c.h.b16 %v4204
        %v4410 = vunpack.c.l.b16 %v4205
        %v4411 = vunpack.c.h.b16 %v4205
        %v4412 = vunpack.c.l.b16 %v4206
        %v4413 = vunpack.c.h.b16 %v4206
        %v4414 = vunpack.c.l.b16 %v4207
        %v4415 = vunpack.c.h.b16 %v4207
        %v4416 = vunpack.c.l.b16 %v4208
        %v4417 = vunpack.c.h.b16 %v4208
        %v4418 = vunpack.c.l.b16 %v4209
        %v4419 = vunpack.c.h.b16 %v4209
        %v4420 = vunpack.c.l.b16 %v4210
        %v4421 = vunpack.c.h.b16 %v4210
        %v4422 = vunpack.c.l.b16 %v4211
        %v4423 = vunpack.c.h.b16 %v4211
        %v4424 = vunpack.c.l.b16 %v4212
        %v4425 = vunpack.c.h.b16 %v4212
        %v4426 = vunpack.c.l.b16 %v4213
        %v4427 = vunpack.c.h.b16 %v4213
        %v4428 = vunpack.c.l.b16 %v4214
        %v4429 = vunpack.c.h.b16 %v4214
        %v4430 = vunpack.c.l.b16 %v4215
        %v4431 = vunpack.c.h.b16 %v4215
        %v4432 = vunpack.c.l.b16 %v4216
        %v4433 = vunpack.c.h.b16 %v4216
        %v4434 = vunpack.c.l.b16 %v4217
        %v4435 = vunpack.c.h.b16 %v4217
        %v4436 = vunpack.c.l.b16 %v4218
        %v4437 = vunpack.c.h.b16 %v4218
        %v4438 = vunpack.c.l.b16 %v4219
        %v4439 = vunpack.c.h.b16 %v4219
        %v4440 = vunpack.c.l.b16 %v4220
        %v4441 = vunpack.c.h.b16 %v4220
        %v4442 = vunpack.c.l.b16 %v4221
        %v4443 = vunpack.c.h.b16 %v4221
        %v4444 = vunpack.c.l.b16 %v4222
        %v4445 = vunpack.c.h.b16 %v4222
        %v4446 = vunpack.c.l.b16 %v4223
        %v4447 = vunpack.c.h.b16 %v4223
        %v4448 = vunpack.c.l.b16 %v4224
        %v4449 = vunpack.c.h.b16 %v4224
        %v4450 = vunpack.c.l.b16 %v4225
        %v4451 = vunpack.c.h.b16 %v4225
        %v4452 = vunpack.c.l.b16 %v4226
        %v4453 = vunpack.c.h.b16 %v4226
        %v4454 = vunpack.c.l.b16 %v4227
        %v4455 = vunpack.c.h.b16 %v4227
        %v4456 = vunpack.c.l.b16 %v4228
        %v4457 = vunpack.c.h.b16 %v4228
        %v4458 = vunpack.c.l.b16 %v4229
        %v4459 = vunpack.c.h.b16 %v4229
        %v4460 = vunpack.c.l.b16 %v4230
        %v4461 = vunpack.c.h.b16 %v4230
        %v4462 = vunpack.c.l.b16 %v4231
        %v4463 = vunpack.c.h.b16 %v4231
        %v4464 = vunpack.c.l.b16 %v4232
        %v4465 = vunpack.c.h.b16 %v4232
        %v4466 = vunpack.c.l.b16 %v4233
        %v4467 = vunpack.c.h.b16 %v4233
        %v4468 = vunpack.c.l.b16 %v4234
        %v4469 = vunpack.c.h.b16 %v4234
        %v4470 = vunpack.c.l.b16 %v4235
        %v4471 = vunpack.c.h.b16 %v4235
        %v4472 = vunpack.c.l.b16 %v4236
        %v4473 = vunpack.c.h.b16 %v4236
        %v4474 = vunpack.c.l.b16 %v4237
        %v4475 = vunpack.c.h.b16 %v4237
        %v4476 = vunpack.c.l.b16 %v4238
        %v4477 = vunpack.c.h.b16 %v4238
        %v4478 = vunpack.c.l.b16 %v4239
        %v4479 = vunpack.c.h.b16 %v4239
        %v4480 = vunpack.c.l.b16 %v4240
        %v4481 = vunpack.c.h.b16 %v4240
        %v4482 = vunpack.c.l.b16 %v4241
        %v4483 = vunpack.c.h.b16 %v4241
        %v4484 = vunpack.c.l.b16 %v4242
        %v4485 = vunpack.c.h.b16 %v4242
        %v4486 = vunpack.c.l.b16 %v4243
        %v4487 = vunpack.c.h.b16 %v4243
        %v4488 = vunpack.c.l.b16 %v4244
        %v4489 = vunpack.c.h.b16 %v4244
        %v4490 = vunpack.c.l.b16 %v4245
        %v4491 = vunpack.c.h.b16 %v4245
        %v4492 = vunpack.c.l.b16 %v4246
        %v4493 = vunpack.c.h.b16 %v4246
        %v4494 = vunpack.c.l.b16 %v4247
        %v4495 = vunpack.c.h.b16 %v4247
        %v4496 = vunpack.c.l.b16 %v4248
        %v4497 = vunpack.c.h.b16 %v4248
        %v4498 = vunpack.c.l.b16 %v4249
        %v4499 = vunpack.c.h.b16 %v4249
        %v4500 = vunpack.c.l.b16 %v4250
        %v4501 = vunpack.c.h.b16 %v4250
        %v4502 = vunpack.c.l.b16 %v4251
        %v4503 = vunpack.c.h.b16 %v4251
        %v4504 = vunpack.c.l.b16 %v4252
        %v4505 = vunpack.c.h.b16 %v4252
        %v4506 = vunpack.c.l.b16 %v4253
        %v4507 = vunpack.c.h.b16 %v4253
        %v4508 = vunpack.c.l.b16 %v4254
        %v4509 = vunpack.c.h.b16 %v4254
        %v4510 = vunpack.c.l.b16 %v4255
        %v4511 = vunpack.c.h.b16 %v4255
        %v4512 = vunpack.c.l.b16 %v4256
        %v4513 = vunpack.c.h.b16 %v4256
        %v4514 = vunpack.c.l.b16 %v4257
        %v4515 = vunpack.c.h.b16 %v4257
        %v4516 = vunpack.c.l.b16 %v4258
        %v4517 = vunpack.c.h.b16 %v4258
        %v4518 = vunpack.c.l.b16 %v4259
        %v4519 = vunpack.c.h.b16 %v4259
        %v4520 = vunpack.c.l.b16 %v4260
        %v4521 = vunpack.c.h.b16 %v4260
        %v4522 = vunpack.c.l.b16 %v4261
        %v4523 = vunpack.c.h.b16 %v4261
        %v4524 = vunpack.c.l.b16 %v4262
        %v4525 = vunpack.c.h.b16 %v4262
        %v4526 = vunpack.c.l.b16 %v4263
        %v4527 = vunpack.c.h.b16 %v4263
        %v4528 = vunpack.c.l.b16 %v4264
        %v4529 = vunpack.c.h.b16 %v4264
        %v4530 = vunpack.c.l.b16 %v4265
        %v4531 = vunpack.c.h.b16 %v4265
        %v4532 = vunpack.c.l.b16 %v4266
        %v4533 = vunpack.c.h.b16 %v4266
        %v4534 = vunpack.c.l.b16 %v4267
        %v4535 = vunpack.c.h.b16 %v4267
        %v4536 = vunpack.c.l.b16 %v4268
        %v4537 = vunpack.c.h.b16 %v4268
        %v4538 = vunpack.c.l.b16 %v4269
        %v4539 = vunpack.c.h.b16 %v4269
        %v4540 = vunpack.c.l.b16 %v4270
        %v4541 = vunpack.c.h.b16 %v4270
        %v4542 = vunpack.c.l.b16 %v4271
        %v4543 = vunpack.c.h.b16 %v4271
        %v4544 = vunpack.c.l.b16 %v4272
        %v4545 = vunpack.c.h.b16 %v4272
        %v4546 = vunpack.c.l.b16 %v4273
        %v4547 = vunpack.c.h.b16 %v4273
        %v4548 = vunpack.c.l.b16 %v4274
        %v4549 = vunpack.c.h.b16 %v4274
        %v4550 = vunpack.c.l.b16 %v4275
        %v4551 = vunpack.c.h.b16 %v4275
        %v4552 = vunpack.c.l.b16 %v4276
        %v4553 = vunpack.c.h.b16 %v4276
        %v4554 = vunpack.c.l.b16 %v4277
        %v4555 = vunpack.c.h.b16 %v4277
        %v4556 = vunpack.c.l.b16 %v4278
        %v4557 = vunpack.c.h.b16 %v4278
        %v4558 = vunpack.c.l.b16 %v4279
        %v4559 = vunpack.c.h.b16 %v4279
        %v4560 = vunpack.c.l.b16 %v4280
        %v4561 = vunpack.c.h.b16 %v4280
        %v4562 = vunpack.c.l.b16 %v4281
        %v4563 = vunpack.c.h.b16 %v4281
        %v4564 = vunpack.c.l.b16 %v4282
        %v4565 = vunpack.c.h.b16 %v4282
        %v4566 = vunpack.c.l.b16 %v4283
        %v4567 = vunpack.c.h.b16 %v4283
        %v4568 = vunpack.c.l.b16 %v4284
        %v4569 = vunpack.c.h.b16 %v4284
        %v4570 = vunpack.c.l.b16 %v4285
        %v4571 = vunpack.c.h.b16 %v4285
        %v4572 = vunpack.c.l.b16 %v4286
        %v4573 = vunpack.c.h.b16 %v4286
        %v4574 = vunpack.c.l.b16 %v4287
        %v4575 = vunpack.c.h.b16 %v4287
        %v4576 = vpack.c.b16 %v4390, %v4384
        %v4577 = vpack.c.b16 %v4391, %v4385
        %v4578 = vpack.c.b16 %v4392, %v4386
        %v4579 = vpack.c.b16 %v4393, %v4387
        %v4580 = vpack.c.b16 %v4394, %v4388
        %v4581 = vpack.c.b16 %v4395, %v4389
        %v4582 = vpack.c.b16 %v4402, %v4396
        %v4583 = vpack.c.b16 %v4403, %v4397
        %v4584 = vpack.c.b16 %v4404, %v4398
        %v4585 = vpack.c.b16 %v4405, %v4399
        %v4586 = vpack.c.b16 %v4406, %v4400
        %v4587 = vpack.c.b16 %v4407, %v4401
        %v4588 = vpack.c.b16 %v4414, %v4408
        %v4589 = vpack.c.b16 %v4415, %v4409
        %v4590 = vpack.c.b16 %v4416, %v4410
        %v4591 = vpack.c.b16 %v4417, %v4411
        %v4592 = vpack.c.b16 %v4418, %v4412
        %v4593 = vpack.c.b16 %v4419, %v4413
        %v4594 = vpack.c.b16 %v4426, %v4420
        %v4595 = vpack.c.b16 %v4427, %v4421
        %v4596 = vpack.c.b16 %v4428, %v4422
        %v4597 = vpack.c.b16 %v4429, %v4423
        %v4598 = vpack.c.b16 %v4430, %v4424
        %v4599 = vpack.c.b16 %v4431, %v4425
        %v4600 = vpack.c.b16 %v4438, %v4432
        %v4601 = vpack.c.b16 %v4439, %v4433
        %v4602 = vpack.c.b16 %v4440, %v4434
        %v4603 = vpack.c.b16 %v4441, %v4435
        %v4604 = vpack.c.b16 %v4442, %v4436
        %v4605 = vpack.c.b16 %v4443, %v4437
        %v4606 = vpack.c.b16 %v4450, %v4444
        %v4607 = vpack.c.b16 %v4451, %v4445
        %v4608 = vpack.c.b16 %v4452, %v4446
        %v4609 = vpack.c.b16 %v4453, %v4447
        %v4610 = vpack.c.b16 %v4454, %v4448
        %v4611 = vpack.c.b16 %v4455, %v4449
        %v4612 = vpack.c.b16 %v4462, %v4456
        %v4613 = vpack.c.b16 %v4463, %v4457
        %v4614 = vpack.c.b16 %v4464, %v4458
        %v4615 = vpack.c.b16 %v4465, %v4459
        %v4616 = vpack.c.b16 %v4466, %v4460
        %v4617 = vpack.c.b16 %v4467, %v4461
        %v4618 = vpack.c.b16 %v4474, %v4468
        %v4619 = vpack.c.b16 %v4475, %v4469
        %v4620 = vpack.c.b16 %v4476, %v4470
        %v4621 = vpack.c.b16 %v4477, %v4471
        %v4622 = vpack.c.b16 %v4478, %v4472
        %v4623 = vpack.c.b16 %v4479, %v4473
        %v4624 = vpack.c.b16 %v4486, %v4480
        %v4625 = vpack.c.b16 %v4487, %v4481
        %v4626 = vpack.c.b16 %v4488, %v4482
        %v4627 = vpack.c.b16 %v4489, %v4483
        %v4628 = vpack.c.b16 %v4490, %v4484
        %v4629 = vpack.c.b16 %v4491, %v4485
        %v4630 = vpack.c.b16 %v4498, %v4492
        %v4631 = vpack.c.b16 %v4499, %v4493
        %v4632 = vpack.c.b16 %v4500, %v4494
        %v4633 = vpack.c.b16 %v4501, %v4495
        %v4634 = vpack.c.b16 %v4502, %v4496
        %v4635 = vpack.c.b16 %v4503, %v4497
        %v4636 = vpack.c.b16 %v4510, %v4504
        %v4637 = vpack.c.b16 %v4511, %v4505
        %v4638 = vpack.c.b16 %v4512, %v4506
        %v4639 = vpack.c.b16 %v4513, %v4507
        %v4640 = vpack.c.b16 %v4514, %v4508
        %v4641 = vpack.c.b16 %v4515, %v4509
        %v4642 = vpack.c.b16 %v4522, %v4516
        %v4643 = vpack.c.b16 %v4523, %v4517
        %v4644 = vpack.c.b16 %v4524, %v4518
        %v4645 = vpack.c.b16 %v4525, %v4519
        %v4646 = vpack.c.b16 %v4526, %v4520
        %v4647 = vpack.c.b16 %v4527, %v4521
        %v4648 = vpack.c.b16 %v4534, %v4528
        %v4649 = vpack.c.b16 %v4535, %v4529
        %v4650 = vpack.c.b16 %v4536, %v4530
        %v4651 = vpack.c.b16 %v4537, %v4531
        %v4652 = vpack.c.b16 %v4538, %v4532
        %v4653 = vpack.c.b16 %v4539, %v4533
        %v4654 = vpack.c.b16 %v4546, %v4540
        %v4655 = vpack.c.b16 %v4547, %v4541
        %v4656 = vpack.c.b16 %v4548, %v4542
        %v4657 = vpack.c.b16 %v4549, %v4543
        %v4658 = vpack.c.b16 %v4550, %v4544
        %v4659 = vpack.c.b16 %v4551, %v4545
        %v4660 = vpack.c.b16 %v4558, %v4552
        %v4661 = vpack.c.b16 %v4559, %v4553
        %v4662 = vpack.c.b16 %v4560, %v4554
        %v4663 = vpack.c.b16 %v4561, %v4555
        %v4664 = vpack.c.b16 %v4562, %v4556
        %v4665 = vpack.c.b16 %v4563, %v4557
        %v4666 = vpack.c.b16 %v4570, %v4564
        %v4667 = vpack.c.b16 %v4571, %v4565
        %v4668 = vpack.c.b16 %v4572, %v4566
        %v4669 = vpack.c.b16 %v4573, %v4567
        %v4670 = vpack.c.b16 %v4574, %v4568
        %v4671 = vpack.c.b16 %v4575, %v4569
        %4768 = vmatpush.bf16.msra.mxu0 %v1688
        %4769 = vmatpush.bf16.msra.mxu0 %v1685
        %4770 = vmatpush.bf16.msra.mxu0 %v1682
        %4771 = vmatpush.bf16.msra.mxu0 %v1679
        %4772 = vmatpush.bf16.msra.mxu0 %v1676
        %4773 = vmatpush.bf16.msra.mxu0 %v1673
        %4774 = vmatpush.bf16.msra.mxu0 %v1670
        %4775 = vmatpush.bf16.msra.mxu0 %v1667
        %4776 = vmatmul.bf16.gmra.mxu0 %v4576
        %v4777 = vpop.f32.mrf.mxu0
        %v4778 = vadd.f32 %v701, %v4777
        %v4779 = vpop.f32.mrf.mxu0
        %v4780 = vadd.f32 %v701, %v4779
        %4781 = vmatmul.bf16.gmra.mxu0 %v4582
        %v4782 = vpop.f32.mrf.mxu0
        %v4783 = vadd.f32 %v701, %v4782
        %v4784 = vpop.f32.mrf.mxu0
        %v4785 = vadd.f32 %v701, %v4784
        %4786 = vmatmul.bf16.gmra.mxu0 %v4588
        %v4787 = vpop.f32.mrf.mxu0
        %v4788 = vadd.f32 %v701, %v4787
        %v4789 = vpop.f32.mrf.mxu0
        %v4790 = vadd.f32 %v701, %v4789
        %4791 = vmatmul.bf16.gmra.mxu0 %v4594
        %v4792 = vpop.f32.mrf.mxu0
        %v4793 = vadd.f32 %v701, %v4792
        %v4794 = vpop.f32.mrf.mxu0
        %v4795 = vadd.f32 %v701, %v4794
        %4796 = vmatmul.bf16.gmra.mxu0 %v4600
        %v4797 = vpop.f32.mrf.mxu0
        %v4798 = vadd.f32 %v701, %v4797
        %v4799 = vpop.f32.mrf.mxu0
        %v4800 = vadd.f32 %v701, %v4799
        %4801 = vmatmul.bf16.gmra.mxu0 %v4606
        %v4802 = vpop.f32.mrf.mxu0
        %v4803 = vadd.f32 %v701, %v4802
        %v4804 = vpop.f32.mrf.mxu0
        %v4805 = vadd.f32 %v701, %v4804
        %4806 = vmatmul.bf16.gmra.mxu0 %v4612
        %v4807 = vpop.f32.mrf.mxu0
        %v4808 = vadd.f32 %v701, %v4807
        %v4809 = vpop.f32.mrf.mxu0
        %v4810 = vadd.f32 %v701, %v4809
        %4811 = vmatmul.bf16.gmra.mxu0 %v4618
        %v4812 = vpop.f32.mrf.mxu0
        %v4813 = vadd.f32 %v701, %v4812
        %v4814 = vpop.f32.mrf.mxu0
        %v4815 = vadd.f32 %v701, %v4814
        %4816 = vmatmul.bf16.gmra.mxu0 %v4624
        %v4817 = vpop.f32.mrf.mxu0
        %v4818 = vadd.f32 %v701, %v4817
        %v4819 = vpop.f32.mrf.mxu0
        %v4820 = vadd.f32 %v701, %v4819
        %4821 = vmatmul.bf16.gmra.mxu0 %v4630
        %v4822 = vpop.f32.mrf.mxu0
        %v4823 = vadd.f32 %v701, %v4822
        %v4824 = vpop.f32.mrf.mxu0
        %v4825 = vadd.f32 %v701, %v4824
        %4826 = vmatmul.bf16.gmra.mxu0 %v4636
        %v4827 = vpop.f32.mrf.mxu0
        %v4828 = vadd.f32 %v701, %v4827
        %v4829 = vpop.f32.mrf.mxu0
        %v4830 = vadd.f32 %v701, %v4829
        %4831 = vmatmul.bf16.gmra.mxu0 %v4642
        %v4832 = vpop.f32.mrf.mxu0
        %v4833 = vadd.f32 %v701, %v4832
        %v4834 = vpop.f32.mrf.mxu0
        %v4835 = vadd.f32 %v701, %v4834
        %4836 = vmatmul.bf16.gmra.mxu0 %v4648
        %v4837 = vpop.f32.mrf.mxu0
        %v4838 = vadd.f32 %v701, %v4837
        %v4839 = vpop.f32.mrf.mxu0
        %v4840 = vadd.f32 %v701, %v4839
        %4841 = vmatmul.bf16.gmra.mxu0 %v4654
        %v4842 = vpop.f32.mrf.mxu0
        %v4843 = vadd.f32 %v701, %v4842
        %v4844 = vpop.f32.mrf.mxu0
        %v4845 = vadd.f32 %v701, %v4844
        %4846 = vmatmul.bf16.gmra.mxu0 %v4660
        %v4847 = vpop.f32.mrf.mxu0
        %v4848 = vadd.f32 %v701, %v4847
        %v4849 = vpop.f32.mrf.mxu0
        %v4850 = vadd.f32 %v701, %v4849
        %4851 = vmatmul.bf16.gmra.mxu0 %v4666
        %v4852 = vpop.f32.mrf.mxu0
        %v4853 = vadd.f32 %v701, %v4852
        %v4854 = vpop.f32.mrf.mxu0
        %v4855 = vadd.f32 %v701, %v4854
        %4856 = vdwg.mxu0
        %4857 = vmatpush.bf16.msra.mxu0 %v1712
        %4858 = vmatpush.bf16.msra.mxu0 %v1709
        %4859 = vmatpush.bf16.msra.mxu0 %v1706
        %4860 = vmatpush.bf16.msra.mxu0 %v1703
        %4861 = vmatpush.bf16.msra.mxu0 %v1700
        %4862 = vmatpush.bf16.msra.mxu0 %v1697
        %4863 = vmatpush.bf16.msra.mxu0 %v1694
        %4864 = vmatpush.bf16.msra.mxu0 %v1691
        %4865 = vmatmul.bf16.gmra.mxu0 %v4577
        %v4866 = vpop.f32.mrf.mxu0
        %v4867 = vadd.f32 %v4778, %v4866
        %v4868 = vpop.f32.mrf.mxu0
        %v4869 = vadd.f32 %v4780, %v4868
        %4870 = vmatmul.bf16.gmra.mxu0 %v4583
        %v4871 = vpop.f32.mrf.mxu0
        %v4872 = vadd.f32 %v4783, %v4871
        %v4873 = vpop.f32.mrf.mxu0
        %v4874 = vadd.f32 %v4785, %v4873
        %4875 = vmatmul.bf16.gmra.mxu0 %v4589
        %v4876 = vpop.f32.mrf.mxu0
        %v4877 = vadd.f32 %v4788, %v4876
        %v4878 = vpop.f32.mrf.mxu0
        %v4879 = vadd.f32 %v4790, %v4878
        %4880 = vmatmul.bf16.gmra.mxu0 %v4595
        %v4881 = vpop.f32.mrf.mxu0
        %v4882 = vadd.f32 %v4793, %v4881
        %v4883 = vpop.f32.mrf.mxu0
        %v4884 = vadd.f32 %v4795, %v4883
        %4885 = vmatmul.bf16.gmra.mxu0 %v4601
        %v4886 = vpop.f32.mrf.mxu0
        %v4887 = vadd.f32 %v4798, %v4886
        %v4888 = vpop.f32.mrf.mxu0
        %v4889 = vadd.f32 %v4800, %v4888
        %4890 = vmatmul.bf16.gmra.mxu0 %v4607
        %v4891 = vpop.f32.mrf.mxu0
        %v4892 = vadd.f32 %v4803, %v4891
        %v4893 = vpop.f32.mrf.mxu0
        %v4894 = vadd.f32 %v4805, %v4893
        %4895 = vmatmul.bf16.gmra.mxu0 %v4613
        %v4896 = vpop.f32.mrf.mxu0
        %v4897 = vadd.f32 %v4808, %v4896
        %v4898 = vpop.f32.mrf.mxu0
        %v4899 = vadd.f32 %v4810, %v4898
        %4900 = vmatmul.bf16.gmra.mxu0 %v4619
        %v4901 = vpop.f32.mrf.mxu0
        %v4902 = vadd.f32 %v4813, %v4901
        %v4903 = vpop.f32.mrf.mxu0
        %v4904 = vadd.f32 %v4815, %v4903
        %4905 = vmatmul.bf16.gmra.mxu0 %v4625
        %v4906 = vpop.f32.mrf.mxu0
        %v4907 = vadd.f32 %v4818, %v4906
        %v4908 = vpop.f32.mrf.mxu0
        %v4909 = vadd.f32 %v4820, %v4908
        %4910 = vmatmul.bf16.gmra.mxu0 %v4631
        %v4911 = vpop.f32.mrf.mxu0
        %v4912 = vadd.f32 %v4823, %v4911
        %v4913 = vpop.f32.mrf.mxu0
        %v4914 = vadd.f32 %v4825, %v4913
        %4915 = vmatmul.bf16.gmra.mxu0 %v4637
        %v4916 = vpop.f32.mrf.mxu0
        %v4917 = vadd.f32 %v4828, %v4916
        %v4918 = vpop.f32.mrf.mxu0
        %v4919 = vadd.f32 %v4830, %v4918
        %4920 = vmatmul.bf16.gmra.mxu0 %v4643
        %v4921 = vpop.f32.mrf.mxu0
        %v4922 = vadd.f32 %v4833, %v4921
        %v4923 = vpop.f32.mrf.mxu0
        %v4924 = vadd.f32 %v4835, %v4923
        %4925 = vmatmul.bf16.gmra.mxu0 %v4649
        %v4926 = vpop.f32.mrf.mxu0
        %v4927 = vadd.f32 %v4838, %v4926
        %v4928 = vpop.f32.mrf.mxu0
        %v4929 = vadd.f32 %v4840, %v4928
        %4930 = vmatmul.bf16.gmra.mxu0 %v4655
        %v4931 = vpop.f32.mrf.mxu0
        %v4932 = vadd.f32 %v4843, %v4931
        %v4933 = vpop.f32.mrf.mxu0
        %v4934 = vadd.f32 %v4845, %v4933
        %4935 = vmatmul.bf16.gmra.mxu0 %v4661
        %v4936 = vpop.f32.mrf.mxu0
        %v4937 = vadd.f32 %v4848, %v4936
        %v4938 = vpop.f32.mrf.mxu0
        %v4939 = vadd.f32 %v4850, %v4938
        %4940 = vmatmul.bf16.gmra.mxu0 %v4667
        %v4941 = vpop.f32.mrf.mxu0
        %v4942 = vadd.f32 %v4853, %v4941
        %v4943 = vpop.f32.mrf.mxu0
        %v4944 = vadd.f32 %v4855, %v4943
        %4945 = vdwg.mxu0
        %4946 = vmatpush.bf16.msra.mxu0 %v1736
        %4947 = vmatpush.bf16.msra.mxu0 %v1733
        %4948 = vmatpush.bf16.msra.mxu0 %v1730
        %4949 = vmatpush.bf16.msra.mxu0 %v1727
        %4950 = vmatpush.bf16.msra.mxu0 %v1724
        %4951 = vmatpush.bf16.msra.mxu0 %v1721
        %4952 = vmatpush.bf16.msra.mxu0 %v1718
        %4953 = vmatpush.bf16.msra.mxu0 %v1715
        %4954 = vmatmul.bf16.gmra.mxu0 %v4578
        %v4955 = vpop.f32.mrf.mxu0
        %v4956 = vadd.f32 %v4867, %v4955
        %v4957 = vpop.f32.mrf.mxu0
        %v4958 = vadd.f32 %v4869, %v4957
        %4959 = vmatmul.bf16.gmra.mxu0 %v4584
        %v4960 = vpop.f32.mrf.mxu0
        %v4961 = vadd.f32 %v4872, %v4960
        %v4962 = vpop.f32.mrf.mxu0
        %v4963 = vadd.f32 %v4874, %v4962
        %4964 = vmatmul.bf16.gmra.mxu0 %v4590
        %v4965 = vpop.f32.mrf.mxu0
        %v4966 = vadd.f32 %v4877, %v4965
        %v4967 = vpop.f32.mrf.mxu0
        %v4968 = vadd.f32 %v4879, %v4967
        %4969 = vmatmul.bf16.gmra.mxu0 %v4596
        %v4970 = vpop.f32.mrf.mxu0
        %v4971 = vadd.f32 %v4882, %v4970
        %v4972 = vpop.f32.mrf.mxu0
        %v4973 = vadd.f32 %v4884, %v4972
        %4974 = vmatmul.bf16.gmra.mxu0 %v4602
        %v4975 = vpop.f32.mrf.mxu0
        %v4976 = vadd.f32 %v4887, %v4975
        %v4977 = vpop.f32.mrf.mxu0
        %v4978 = vadd.f32 %v4889, %v4977
        %4979 = vmatmul.bf16.gmra.mxu0 %v4608
        %v4980 = vpop.f32.mrf.mxu0
        %v4981 = vadd.f32 %v4892, %v4980
        %v4982 = vpop.f32.mrf.mxu0
        %v4983 = vadd.f32 %v4894, %v4982
        %4984 = vmatmul.bf16.gmra.mxu0 %v4614
        %v4985 = vpop.f32.mrf.mxu0
        %v4986 = vadd.f32 %v4897, %v4985
        %v4987 = vpop.f32.mrf.mxu0
        %v4988 = vadd.f32 %v4899, %v4987
        %4989 = vmatmul.bf16.gmra.mxu0 %v4620
        %v4990 = vpop.f32.mrf.mxu0
        %v4991 = vadd.f32 %v4902, %v4990
        %v4992 = vpop.f32.mrf.mxu0
        %v4993 = vadd.f32 %v4904, %v4992
        %4994 = vmatmul.bf16.gmra.mxu0 %v4626
        %v4995 = vpop.f32.mrf.mxu0
        %v4996 = vadd.f32 %v4907, %v4995
        %v4997 = vpop.f32.mrf.mxu0
        %v4998 = vadd.f32 %v4909, %v4997
        %4999 = vmatmul.bf16.gmra.mxu0 %v4632
        %v5000 = vpop.f32.mrf.mxu0
        %v5001 = vadd.f32 %v4912, %v5000
        %v5002 = vpop.f32.mrf.mxu0
        %v5003 = vadd.f32 %v4914, %v5002
        %5004 = vmatmul.bf16.gmra.mxu0 %v4638
        %v5005 = vpop.f32.mrf.mxu0
        %v5006 = vadd.f32 %v4917, %v5005
        %v5007 = vpop.f32.mrf.mxu0
        %v5008 = vadd.f32 %v4919, %v5007
        %5009 = vmatmul.bf16.gmra.mxu0 %v4644
        %v5010 = vpop.f32.mrf.mxu0
        %v5011 = vadd.f32 %v4922, %v5010
        %v5012 = vpop.f32.mrf.mxu0
        %v5013 = vadd.f32 %v4924, %v5012
        %5014 = vmatmul.bf16.gmra.mxu0 %v4650
        %v5015 = vpop.f32.mrf.mxu0
        %v5016 = vadd.f32 %v4927, %v5015
        %v5017 = vpop.f32.mrf.mxu0
        %v5018 = vadd.f32 %v4929, %v5017
        %5019 = vmatmul.bf16.gmra.mxu0 %v4656
        %v5020 = vpop.f32.mrf.mxu0
        %v5021 = vadd.f32 %v4932, %v5020
        %v5022 = vpop.f32.mrf.mxu0
        %v5023 = vadd.f32 %v4934, %v5022
        %5024 = vmatmul.bf16.gmra.mxu0 %v4662
        %v5025 = vpop.f32.mrf.mxu0
        %v5026 = vadd.f32 %v4937, %v5025
        %v5027 = vpop.f32.mrf.mxu0
        %v5028 = vadd.f32 %v4939, %v5027
        %5029 = vmatmul.bf16.gmra.mxu0 %v4668
        %v5030 = vpop.f32.mrf.mxu0
        %v5031 = vadd.f32 %v4942, %v5030
        %v5032 = vpop.f32.mrf.mxu0
        %v5033 = vadd.f32 %v4944, %v5032
        %5034 = vdwg.mxu0
        %5035 = vmatpush.bf16.msra.mxu0 %v1760
        %5036 = vmatpush.bf16.msra.mxu0 %v1757
        %5037 = vmatpush.bf16.msra.mxu0 %v1754
        %5038 = vmatpush.bf16.msra.mxu0 %v1751
        %5039 = vmatpush.bf16.msra.mxu0 %v1748
        %5040 = vmatpush.bf16.msra.mxu0 %v1745
        %5041 = vmatpush.bf16.msra.mxu0 %v1742
        %5042 = vmatpush.bf16.msra.mxu0 %v1739
        %5043 = vmatmul.bf16.gmra.mxu0 %v4579
        %v5044 = vpop.f32.mrf.mxu0
        %v5045 = vadd.f32 %v4956, %v5044
        %v5046 = vpop.f32.mrf.mxu0
        %v5047 = vadd.f32 %v4958, %v5046
        %5048 = vmatmul.bf16.gmra.mxu0 %v4585
        %v5049 = vpop.f32.mrf.mxu0
        %v5050 = vadd.f32 %v4961, %v5049
        %v5051 = vpop.f32.mrf.mxu0
        %v5052 = vadd.f32 %v4963, %v5051
        %5053 = vmatmul.bf16.gmra.mxu0 %v4591
        %v5054 = vpop.f32.mrf.mxu0
        %v5055 = vadd.f32 %v4966, %v5054
        %v5056 = vpop.f32.mrf.mxu0
        %v5057 = vadd.f32 %v4968, %v5056
        %5058 = vmatmul.bf16.gmra.mxu0 %v4597
        %v5059 = vpop.f32.mrf.mxu0
        %v5060 = vadd.f32 %v4971, %v5059
        %v5061 = vpop.f32.mrf.mxu0
        %v5062 = vadd.f32 %v4973, %v5061
        %5063 = vmatmul.bf16.gmra.mxu0 %v4603
        %v5064 = vpop.f32.mrf.mxu0
        %v5065 = vadd.f32 %v4976, %v5064
        %v5066 = vpop.f32.mrf.mxu0
        %v5067 = vadd.f32 %v4978, %v5066
        %5068 = vmatmul.bf16.gmra.mxu0 %v4609
        %v5069 = vpop.f32.mrf.mxu0
        %v5070 = vadd.f32 %v4981, %v5069
        %v5071 = vpop.f32.mrf.mxu0
        %v5072 = vadd.f32 %v4983, %v5071
        %5073 = vmatmul.bf16.gmra.mxu0 %v4615
        %v5074 = vpop.f32.mrf.mxu0
        %v5075 = vadd.f32 %v4986, %v5074
        %v5076 = vpop.f32.mrf.mxu0
        %v5077 = vadd.f32 %v4988, %v5076
        %5078 = vmatmul.bf16.gmra.mxu0 %v4621
        %v5079 = vpop.f32.mrf.mxu0
        %v5080 = vadd.f32 %v4991, %v5079
        %v5081 = vpop.f32.mrf.mxu0
        %v5082 = vadd.f32 %v4993, %v5081
        %5083 = vmatmul.bf16.gmra.mxu0 %v4627
        %v5084 = vpop.f32.mrf.mxu0
        %v5085 = vadd.f32 %v4996, %v5084
        %v5086 = vpop.f32.mrf.mxu0
        %v5087 = vadd.f32 %v4998, %v5086
        %5088 = vmatmul.bf16.gmra.mxu0 %v4633
        %v5089 = vpop.f32.mrf.mxu0
        %v5090 = vadd.f32 %v5001, %v5089
        %v5091 = vpop.f32.mrf.mxu0
        %v5092 = vadd.f32 %v5003, %v5091
        %5093 = vmatmul.bf16.gmra.mxu0 %v4639
        %v5094 = vpop.f32.mrf.mxu0
        %v5095 = vadd.f32 %v5006, %v5094
        %v5096 = vpop.f32.mrf.mxu0
        %v5097 = vadd.f32 %v5008, %v5096
        %5098 = vmatmul.bf16.gmra.mxu0 %v4645
        %v5099 = vpop.f32.mrf.mxu0
        %v5100 = vadd.f32 %v5011, %v5099
        %v5101 = vpop.f32.mrf.mxu0
        %v5102 = vadd.f32 %v5013, %v5101
        %5103 = vmatmul.bf16.gmra.mxu0 %v4651
        %v5104 = vpop.f32.mrf.mxu0
        %v5105 = vadd.f32 %v5016, %v5104
        %v5106 = vpop.f32.mrf.mxu0
        %v5107 = vadd.f32 %v5018, %v5106
        %5108 = vmatmul.bf16.gmra.mxu0 %v4657
        %v5109 = vpop.f32.mrf.mxu0
        %v5110 = vadd.f32 %v5021, %v5109
        %v5111 = vpop.f32.mrf.mxu0
        %v5112 = vadd.f32 %v5023, %v5111
        %5113 = vmatmul.bf16.gmra.mxu0 %v4663
        %v5114 = vpop.f32.mrf.mxu0
        %v5115 = vadd.f32 %v5026, %v5114
        %v5116 = vpop.f32.mrf.mxu0
        %v5117 = vadd.f32 %v5028, %v5116
        %5118 = vmatmul.bf16.gmra.mxu0 %v4669
        %v5119 = vpop.f32.mrf.mxu0
        %v5120 = vadd.f32 %v5031, %v5119
        %v5121 = vpop.f32.mrf.mxu0
        %v5122 = vadd.f32 %v5033, %v5121
        %5123 = vdwg.mxu0
        %5124 = vmatpush.bf16.msra.mxu0 %v1784
        %5125 = vmatpush.bf16.msra.mxu0 %v1781
        %5126 = vmatpush.bf16.msra.mxu0 %v1778
        %5127 = vmatpush.bf16.msra.mxu0 %v1775
        %5128 = vmatpush.bf16.msra.mxu0 %v1772
        %5129 = vmatpush.bf16.msra.mxu0 %v1769
        %5130 = vmatpush.bf16.msra.mxu0 %v1766
        %5131 = vmatpush.bf16.msra.mxu0 %v1763
        %5132 = vmatmul.bf16.gmra.mxu0 %v4580
        %v5133 = vpop.f32.mrf.mxu0
        %v5134 = vadd.f32 %v5045, %v5133
        %v5135 = vpop.f32.mrf.mxu0
        %v5136 = vadd.f32 %v5047, %v5135
        %5137 = vmatmul.bf16.gmra.mxu0 %v4586
        %v5138 = vpop.f32.mrf.mxu0
        %v5139 = vadd.f32 %v5050, %v5138
        %v5140 = vpop.f32.mrf.mxu0
        %v5141 = vadd.f32 %v5052, %v5140
        %5142 = vmatmul.bf16.gmra.mxu0 %v4592
        %v5143 = vpop.f32.mrf.mxu0
        %v5144 = vadd.f32 %v5055, %v5143
        %v5145 = vpop.f32.mrf.mxu0
        %v5146 = vadd.f32 %v5057, %v5145
        %5147 = vmatmul.bf16.gmra.mxu0 %v4598
        %v5148 = vpop.f32.mrf.mxu0
        %v5149 = vadd.f32 %v5060, %v5148
        %v5150 = vpop.f32.mrf.mxu0
        %v5151 = vadd.f32 %v5062, %v5150
        %5152 = vmatmul.bf16.gmra.mxu0 %v4604
        %v5153 = vpop.f32.mrf.mxu0
        %v5154 = vadd.f32 %v5065, %v5153
        %v5155 = vpop.f32.mrf.mxu0
        %v5156 = vadd.f32 %v5067, %v5155
        %5157 = vmatmul.bf16.gmra.mxu0 %v4610
        %v5158 = vpop.f32.mrf.mxu0
        %v5159 = vadd.f32 %v5070, %v5158
        %v5160 = vpop.f32.mrf.mxu0
        %v5161 = vadd.f32 %v5072, %v5160
        %5162 = vmatmul.bf16.gmra.mxu0 %v4616
        %v5163 = vpop.f32.mrf.mxu0
        %v5164 = vadd.f32 %v5075, %v5163
        %v5165 = vpop.f32.mrf.mxu0
        %v5166 = vadd.f32 %v5077, %v5165
        %5167 = vmatmul.bf16.gmra.mxu0 %v4622
        %v5168 = vpop.f32.mrf.mxu0
        %v5169 = vadd.f32 %v5080, %v5168
        %v5170 = vpop.f32.mrf.mxu0
        %v5171 = vadd.f32 %v5082, %v5170
        %5172 = vmatmul.bf16.gmra.mxu0 %v4628
        %v5173 = vpop.f32.mrf.mxu0
        %v5174 = vadd.f32 %v5085, %v5173
        %v5175 = vpop.f32.mrf.mxu0
        %v5176 = vadd.f32 %v5087, %v5175
        %5177 = vmatmul.bf16.gmra.mxu0 %v4634
        %v5178 = vpop.f32.mrf.mxu0
        %v5179 = vadd.f32 %v5090, %v5178
        %v5180 = vpop.f32.mrf.mxu0
        %v5181 = vadd.f32 %v5092, %v5180
        %5182 = vmatmul.bf16.gmra.mxu0 %v4640
        %v5183 = vpop.f32.mrf.mxu0
        %v5184 = vadd.f32 %v5095, %v5183
        %v5185 = vpop.f32.mrf.mxu0
        %v5186 = vadd.f32 %v5097, %v5185
        %5187 = vmatmul.bf16.gmra.mxu0 %v4646
        %v5188 = vpop.f32.mrf.mxu0
        %v5189 = vadd.f32 %v5100, %v5188
        %v5190 = vpop.f32.mrf.mxu0
        %v5191 = vadd.f32 %v5102, %v5190
        %5192 = vmatmul.bf16.gmra.mxu0 %v4652
        %v5193 = vpop.f32.mrf.mxu0
        %v5194 = vadd.f32 %v5105, %v5193
        %v5195 = vpop.f32.mrf.mxu0
        %v5196 = vadd.f32 %v5107, %v5195
        %5197 = vmatmul.bf16.gmra.mxu0 %v4658
        %v5198 = vpop.f32.mrf.mxu0
        %v5199 = vadd.f32 %v5110, %v5198
        %v5200 = vpop.f32.mrf.mxu0
        %v5201 = vadd.f32 %v5112, %v5200
        %5202 = vmatmul.bf16.gmra.mxu0 %v4664
        %v5203 = vpop.f32.mrf.mxu0
        %v5204 = vadd.f32 %v5115, %v5203
        %v5205 = vpop.f32.mrf.mxu0
        %v5206 = vadd.f32 %v5117, %v5205
        %5207 = vmatmul.bf16.gmra.mxu0 %v4670
        %v5208 = vpop.f32.mrf.mxu0
        %v5209 = vadd.f32 %v5120, %v5208
        %v5210 = vpop.f32.mrf.mxu0
        %v5211 = vadd.f32 %v5122, %v5210
        %5212 = vdwg.mxu0
        %5213 = vmatpush.bf16.msra.mxu0 %v1808
        %5214 = vmatpush.bf16.msra.mxu0 %v1805
        %5215 = vmatpush.bf16.msra.mxu0 %v1802
        %5216 = vmatpush.bf16.msra.mxu0 %v1799
        %5217 = vmatpush.bf16.msra.mxu0 %v1796
        %5218 = vmatpush.bf16.msra.mxu0 %v1793
        %5219 = vmatpush.bf16.msra.mxu0 %v1790
        %5220 = vmatpush.bf16.msra.mxu0 %v1787
        %5221 = vmatmul.bf16.gmra.mxu0 %v4581
        %v5222 = vpop.f32.mrf.mxu0
        %v5223 = vadd.f32 %v5134, %v5222
        %v5224 = vpop.f32.mrf.mxu0
        %v5225 = vadd.f32 %v5136, %v5224
        %5226 = vmatmul.bf16.gmra.mxu0 %v4587
        %v5227 = vpop.f32.mrf.mxu0
        %v5228 = vadd.f32 %v5139, %v5227
        %v5229 = vpop.f32.mrf.mxu0
        %v5230 = vadd.f32 %v5141, %v5229
        %5231 = vmatmul.bf16.gmra.mxu0 %v4593
        %v5232 = vpop.f32.mrf.mxu0
        %v5233 = vadd.f32 %v5144, %v5232
        %v5234 = vpop.f32.mrf.mxu0
        %v5235 = vadd.f32 %v5146, %v5234
        %5236 = vmatmul.bf16.gmra.mxu0 %v4599
        %v5237 = vpop.f32.mrf.mxu0
        %v5238 = vadd.f32 %v5149, %v5237
        %v5239 = vpop.f32.mrf.mxu0
        %v5240 = vadd.f32 %v5151, %v5239
        %5241 = vmatmul.bf16.gmra.mxu0 %v4605
        %v5242 = vpop.f32.mrf.mxu0
        %v5243 = vadd.f32 %v5154, %v5242
        %v5244 = vpop.f32.mrf.mxu0
        %v5245 = vadd.f32 %v5156, %v5244
        %5246 = vmatmul.bf16.gmra.mxu0 %v4611
        %v5247 = vpop.f32.mrf.mxu0
        %v5248 = vadd.f32 %v5159, %v5247
        %v5249 = vpop.f32.mrf.mxu0
        %v5250 = vadd.f32 %v5161, %v5249
        %5251 = vmatmul.bf16.gmra.mxu0 %v4617
        %v5252 = vpop.f32.mrf.mxu0
        %v5253 = vadd.f32 %v5164, %v5252
        %v5254 = vpop.f32.mrf.mxu0
        %v5255 = vadd.f32 %v5166, %v5254
        %5256 = vmatmul.bf16.gmra.mxu0 %v4623
        %v5257 = vpop.f32.mrf.mxu0
        %v5258 = vadd.f32 %v5169, %v5257
        %v5259 = vpop.f32.mrf.mxu0
        %v5260 = vadd.f32 %v5171, %v5259
        %5261 = vmatmul.bf16.gmra.mxu0 %v4629
        %v5262 = vpop.f32.mrf.mxu0
        %v5263 = vadd.f32 %v5174, %v5262
        %v5264 = vpop.f32.mrf.mxu0
        %v5265 = vadd.f32 %v5176, %v5264
        %5266 = vmatmul.bf16.gmra.mxu0 %v4635
        %v5267 = vpop.f32.mrf.mxu0
        %v5268 = vadd.f32 %v5179, %v5267
        %v5269 = vpop.f32.mrf.mxu0
        %v5270 = vadd.f32 %v5181, %v5269
        %5271 = vmatmul.bf16.gmra.mxu0 %v4641
        %v5272 = vpop.f32.mrf.mxu0
        %v5273 = vadd.f32 %v5184, %v5272
        %v5274 = vpop.f32.mrf.mxu0
        %v5275 = vadd.f32 %v5186, %v5274
        %5276 = vmatmul.bf16.gmra.mxu0 %v4647
        %v5277 = vpop.f32.mrf.mxu0
        %v5278 = vadd.f32 %v5189, %v5277
        %v5279 = vpop.f32.mrf.mxu0
        %v5280 = vadd.f32 %v5191, %v5279
        %5281 = vmatmul.bf16.gmra.mxu0 %v4653
        %v5282 = vpop.f32.mrf.mxu0
        %v5283 = vadd.f32 %v5194, %v5282
        %v5284 = vpop.f32.mrf.mxu0
        %v5285 = vadd.f32 %v5196, %v5284
        %5286 = vmatmul.bf16.gmra.mxu0 %v4659
        %v5287 = vpop.f32.mrf.mxu0
        %v5288 = vadd.f32 %v5199, %v5287
        %v5289 = vpop.f32.mrf.mxu0
        %v5290 = vadd.f32 %v5201, %v5289
        %5291 = vmatmul.bf16.gmra.mxu0 %v4665
        %v5292 = vpop.f32.mrf.mxu0
        %v5293 = vadd.f32 %v5204, %v5292
        %v5294 = vpop.f32.mrf.mxu0
        %v5295 = vadd.f32 %v5206, %v5294
        %5296 = vmatmul.bf16.gmra.mxu0 %v4671
        %v5297 = vpop.f32.mrf.mxu0
        %v5298 = vadd.f32 %v5209, %v5297
        %v5299 = vpop.f32.mrf.mxu0
        %v5300 = vadd.f32 %v5211, %v5299
        %5301 = vdwg.mxu0
        %5302 = vmatpush.bf16.msra.mxu0 %v1689
        %5303 = vmatpush.bf16.msra.mxu0 %v1686
        %5304 = vmatpush.bf16.msra.mxu0 %v1683
        %5305 = vmatpush.bf16.msra.mxu0 %v1680
        %5306 = vmatpush.bf16.msra.mxu0 %v1677
        %5307 = vmatpush.bf16.msra.mxu0 %v1674
        %5308 = vmatpush.bf16.msra.mxu0 %v1671
        %5309 = vmatpush.bf16.msra.mxu0 %v1668
        %5310 = vmatmul.bf16.gmra.mxu0 %v4576
        %v5311 = vpop.f32.mrf.mxu0
        %v5312 = vadd.f32 %v702, %v5311
        %v5313 = vpop.f32.mrf.mxu0
        %v5314 = vadd.f32 %v702, %v5313
        %5315 = vmatmul.bf16.gmra.mxu0 %v4582
        %v5316 = vpop.f32.mrf.mxu0
        %v5317 = vadd.f32 %v702, %v5316
        %v5318 = vpop.f32.mrf.mxu0
        %v5319 = vadd.f32 %v702, %v5318
        %5320 = vmatmul.bf16.gmra.mxu0 %v4588
        %v5321 = vpop.f32.mrf.mxu0
        %v5322 = vadd.f32 %v702, %v5321
        %v5323 = vpop.f32.mrf.mxu0
        %v5324 = vadd.f32 %v702, %v5323
        %5325 = vmatmul.bf16.gmra.mxu0 %v4594
        %v5326 = vpop.f32.mrf.mxu0
        %v5327 = vadd.f32 %v702, %v5326
        %v5328 = vpop.f32.mrf.mxu0
        %v5329 = vadd.f32 %v702, %v5328
        %5330 = vmatmul.bf16.gmra.mxu0 %v4600
        %v5331 = vpop.f32.mrf.mxu0
        %v5332 = vadd.f32 %v702, %v5331
        %v5333 = vpop.f32.mrf.mxu0
        %v5334 = vadd.f32 %v702, %v5333
        %5335 = vmatmul.bf16.gmra.mxu0 %v4606
        %v5336 = vpop.f32.mrf.mxu0
        %v5337 = vadd.f32 %v702, %v5336
        %v5338 = vpop.f32.mrf.mxu0
        %v5339 = vadd.f32 %v702, %v5338
        %5340 = vmatmul.bf16.gmra.mxu0 %v4612
        %v5341 = vpop.f32.mrf.mxu0
        %v5342 = vadd.f32 %v702, %v5341
        %v5343 = vpop.f32.mrf.mxu0
        %v5344 = vadd.f32 %v702, %v5343
        %5345 = vmatmul.bf16.gmra.mxu0 %v4618
        %v5346 = vpop.f32.mrf.mxu0
        %v5347 = vadd.f32 %v702, %v5346
        %v5348 = vpop.f32.mrf.mxu0
        %v5349 = vadd.f32 %v702, %v5348
        %5350 = vmatmul.bf16.gmra.mxu0 %v4624
        %v5351 = vpop.f32.mrf.mxu0
        %v5352 = vadd.f32 %v702, %v5351
        %v5353 = vpop.f32.mrf.mxu0
        %v5354 = vadd.f32 %v702, %v5353
        %5355 = vmatmul.bf16.gmra.mxu0 %v4630
        %v5356 = vpop.f32.mrf.mxu0
        %v5357 = vadd.f32 %v702, %v5356
        %v5358 = vpop.f32.mrf.mxu0
        %v5359 = vadd.f32 %v702, %v5358
        %5360 = vmatmul.bf16.gmra.mxu0 %v4636
        %v5361 = vpop.f32.mrf.mxu0
        %v5362 = vadd.f32 %v702, %v5361
        %v5363 = vpop.f32.mrf.mxu0
        %v5364 = vadd.f32 %v702, %v5363
        %5365 = vmatmul.bf16.gmra.mxu0 %v4642
        %v5366 = vpop.f32.mrf.mxu0
        %v5367 = vadd.f32 %v702, %v5366
        %v5368 = vpop.f32.mrf.mxu0
        %v5369 = vadd.f32 %v702, %v5368
        %5370 = vmatmul.bf16.gmra.mxu0 %v4648
        %v5371 = vpop.f32.mrf.mxu0
        %v5372 = vadd.f32 %v702, %v5371
        %v5373 = vpop.f32.mrf.mxu0
        %v5374 = vadd.f32 %v702, %v5373
        %5375 = vmatmul.bf16.gmra.mxu0 %v4654
        %v5376 = vpop.f32.mrf.mxu0
        %v5377 = vadd.f32 %v702, %v5376
        %v5378 = vpop.f32.mrf.mxu0
        %v5379 = vadd.f32 %v702, %v5378
        %5380 = vmatmul.bf16.gmra.mxu0 %v4660
        %v5381 = vpop.f32.mrf.mxu0
        %v5382 = vadd.f32 %v702, %v5381
        %v5383 = vpop.f32.mrf.mxu0
        %v5384 = vadd.f32 %v702, %v5383
        %5385 = vmatmul.bf16.gmra.mxu0 %v4666
        %v5386 = vpop.f32.mrf.mxu0
        %v5387 = vadd.f32 %v702, %v5386
        %v5388 = vpop.f32.mrf.mxu0
        %v5389 = vadd.f32 %v702, %v5388
        %5390 = vdwg.mxu0
        %5391 = vmatpush.bf16.msra.mxu0 %v1713
        %5392 = vmatpush.bf16.msra.mxu0 %v1710
        %5393 = vmatpush.bf16.msra.mxu0 %v1707
        %5394 = vmatpush.bf16.msra.mxu0 %v1704
        %5395 = vmatpush.bf16.msra.mxu0 %v1701
        %5396 = vmatpush.bf16.msra.mxu0 %v1698
        %5397 = vmatpush.bf16.msra.mxu0 %v1695
        %5398 = vmatpush.bf16.msra.mxu0 %v1692
        %5399 = vmatmul.bf16.gmra.mxu0 %v4577
        %v5400 = vpop.f32.mrf.mxu0
        %v5401 = vadd.f32 %v5312, %v5400
        %v5402 = vpop.f32.mrf.mxu0
        %v5403 = vadd.f32 %v5314, %v5402
        %5404 = vmatmul.bf16.gmra.mxu0 %v4583
        %v5405 = vpop.f32.mrf.mxu0
        %v5406 = vadd.f32 %v5317, %v5405
        %v5407 = vpop.f32.mrf.mxu0
        %v5408 = vadd.f32 %v5319, %v5407
        %5409 = vmatmul.bf16.gmra.mxu0 %v4589
        %v5410 = vpop.f32.mrf.mxu0
        %v5411 = vadd.f32 %v5322, %v5410
        %v5412 = vpop.f32.mrf.mxu0
        %v5413 = vadd.f32 %v5324, %v5412
        %5414 = vmatmul.bf16.gmra.mxu0 %v4595
        %v5415 = vpop.f32.mrf.mxu0
        %v5416 = vadd.f32 %v5327, %v5415
        %v5417 = vpop.f32.mrf.mxu0
        %v5418 = vadd.f32 %v5329, %v5417
        %5419 = vmatmul.bf16.gmra.mxu0 %v4601
        %v5420 = vpop.f32.mrf.mxu0
        %v5421 = vadd.f32 %v5332, %v5420
        %v5422 = vpop.f32.mrf.mxu0
        %v5423 = vadd.f32 %v5334, %v5422
        %5424 = vmatmul.bf16.gmra.mxu0 %v4607
        %v5425 = vpop.f32.mrf.mxu0
        %v5426 = vadd.f32 %v5337, %v5425
        %v5427 = vpop.f32.mrf.mxu0
        %v5428 = vadd.f32 %v5339, %v5427
        %5429 = vmatmul.bf16.gmra.mxu0 %v4613
        %v5430 = vpop.f32.mrf.mxu0
        %v5431 = vadd.f32 %v5342, %v5430
        %v5432 = vpop.f32.mrf.mxu0
        %v5433 = vadd.f32 %v5344, %v5432
        %5434 = vmatmul.bf16.gmra.mxu0 %v4619
        %v5435 = vpop.f32.mrf.mxu0
        %v5436 = vadd.f32 %v5347, %v5435
        %v5437 = vpop.f32.mrf.mxu0
        %v5438 = vadd.f32 %v5349, %v5437
        %5439 = vmatmul.bf16.gmra.mxu0 %v4625
        %v5440 = vpop.f32.mrf.mxu0
        %v5441 = vadd.f32 %v5352, %v5440
        %v5442 = vpop.f32.mrf.mxu0
        %v5443 = vadd.f32 %v5354, %v5442
        %5444 = vmatmul.bf16.gmra.mxu0 %v4631
        %v5445 = vpop.f32.mrf.mxu0
        %v5446 = vadd.f32 %v5357, %v5445
        %v5447 = vpop.f32.mrf.mxu0
        %v5448 = vadd.f32 %v5359, %v5447
        %5449 = vmatmul.bf16.gmra.mxu0 %v4637
        %v5450 = vpop.f32.mrf.mxu0
        %v5451 = vadd.f32 %v5362, %v5450
        %v5452 = vpop.f32.mrf.mxu0
        %v5453 = vadd.f32 %v5364, %v5452
        %5454 = vmatmul.bf16.gmra.mxu0 %v4643
        %v5455 = vpop.f32.mrf.mxu0
        %v5456 = vadd.f32 %v5367, %v5455
        %v5457 = vpop.f32.mrf.mxu0
        %v5458 = vadd.f32 %v5369, %v5457
        %5459 = vmatmul.bf16.gmra.mxu0 %v4649
        %v5460 = vpop.f32.mrf.mxu0
        %v5461 = vadd.f32 %v5372, %v5460
        %v5462 = vpop.f32.mrf.mxu0
        %v5463 = vadd.f32 %v5374, %v5462
        %5464 = vmatmul.bf16.gmra.mxu0 %v4655
        %v5465 = vpop.f32.mrf.mxu0
        %v5466 = vadd.f32 %v5377, %v5465
        %v5467 = vpop.f32.mrf.mxu0
        %v5468 = vadd.f32 %v5379, %v5467
        %5469 = vmatmul.bf16.gmra.mxu0 %v4661
        %v5470 = vpop.f32.mrf.mxu0
        %v5471 = vadd.f32 %v5382, %v5470
        %v5472 = vpop.f32.mrf.mxu0
        %v5473 = vadd.f32 %v5384, %v5472
        %5474 = vmatmul.bf16.gmra.mxu0 %v4667
        %v5475 = vpop.f32.mrf.mxu0
        %v5476 = vadd.f32 %v5387, %v5475
        %v5477 = vpop.f32.mrf.mxu0
        %v5478 = vadd.f32 %v5389, %v5477
        %5479 = vdwg.mxu0
        %5480 = vmatpush.bf16.msra.mxu0 %v1737
        %5481 = vmatpush.bf16.msra.mxu0 %v1734
        %5482 = vmatpush.bf16.msra.mxu0 %v1731
        %5483 = vmatpush.bf16.msra.mxu0 %v1728
        %5484 = vmatpush.bf16.msra.mxu0 %v1725
        %5485 = vmatpush.bf16.msra.mxu0 %v1722
        %5486 = vmatpush.bf16.msra.mxu0 %v1719
        %5487 = vmatpush.bf16.msra.mxu0 %v1716
        %5488 = vmatmul.bf16.gmra.mxu0 %v4578
        %v5489 = vpop.f32.mrf.mxu0
        %v5490 = vadd.f32 %v5401, %v5489
        %v5491 = vpop.f32.mrf.mxu0
        %v5492 = vadd.f32 %v5403, %v5491
        %5493 = vmatmul.bf16.gmra.mxu0 %v4584
        %v5494 = vpop.f32.mrf.mxu0
        %v5495 = vadd.f32 %v5406, %v5494
        %v5496 = vpop.f32.mrf.mxu0
        %v5497 = vadd.f32 %v5408, %v5496
        %5498 = vmatmul.bf16.gmra.mxu0 %v4590
        %v5499 = vpop.f32.mrf.mxu0
        %v5500 = vadd.f32 %v5411, %v5499
        %v5501 = vpop.f32.mrf.mxu0
        %v5502 = vadd.f32 %v5413, %v5501
        %5503 = vmatmul.bf16.gmra.mxu0 %v4596
        %v5504 = vpop.f32.mrf.mxu0
        %v5505 = vadd.f32 %v5416, %v5504
        %v5506 = vpop.f32.mrf.mxu0
        %v5507 = vadd.f32 %v5418, %v5506
        %5508 = vmatmul.bf16.gmra.mxu0 %v4602
        %v5509 = vpop.f32.mrf.mxu0
        %v5510 = vadd.f32 %v5421, %v5509
        %v5511 = vpop.f32.mrf.mxu0
        %v5512 = vadd.f32 %v5423, %v5511
        %5513 = vmatmul.bf16.gmra.mxu0 %v4608
        %v5514 = vpop.f32.mrf.mxu0
        %v5515 = vadd.f32 %v5426, %v5514
        %v5516 = vpop.f32.mrf.mxu0
        %v5517 = vadd.f32 %v5428, %v5516
        %5518 = vmatmul.bf16.gmra.mxu0 %v4614
        %v5519 = vpop.f32.mrf.mxu0
        %v5520 = vadd.f32 %v5431, %v5519
        %v5521 = vpop.f32.mrf.mxu0
        %v5522 = vadd.f32 %v5433, %v5521
        %5523 = vmatmul.bf16.gmra.mxu0 %v4620
        %v5524 = vpop.f32.mrf.mxu0
        %v5525 = vadd.f32 %v5436, %v5524
        %v5526 = vpop.f32.mrf.mxu0
        %v5527 = vadd.f32 %v5438, %v5526
        %5528 = vmatmul.bf16.gmra.mxu0 %v4626
        %v5529 = vpop.f32.mrf.mxu0
        %v5530 = vadd.f32 %v5441, %v5529
        %v5531 = vpop.f32.mrf.mxu0
        %v5532 = vadd.f32 %v5443, %v5531
        %5533 = vmatmul.bf16.gmra.mxu0 %v4632
        %v5534 = vpop.f32.mrf.mxu0
        %v5535 = vadd.f32 %v5446, %v5534
        %v5536 = vpop.f32.mrf.mxu0
        %v5537 = vadd.f32 %v5448, %v5536
        %5538 = vmatmul.bf16.gmra.mxu0 %v4638
        %v5539 = vpop.f32.mrf.mxu0
        %v5540 = vadd.f32 %v5451, %v5539
        %v5541 = vpop.f32.mrf.mxu0
        %v5542 = vadd.f32 %v5453, %v5541
        %5543 = vmatmul.bf16.gmra.mxu0 %v4644
        %v5544 = vpop.f32.mrf.mxu0
        %v5545 = vadd.f32 %v5456, %v5544
        %v5546 = vpop.f32.mrf.mxu0
        %v5547 = vadd.f32 %v5458, %v5546
        %5548 = vmatmul.bf16.gmra.mxu0 %v4650
        %v5549 = vpop.f32.mrf.mxu0
        %v5550 = vadd.f32 %v5461, %v5549
        %v5551 = vpop.f32.mrf.mxu0
        %v5552 = vadd.f32 %v5463, %v5551
        %5553 = vmatmul.bf16.gmra.mxu0 %v4656
        %v5554 = vpop.f32.mrf.mxu0
        %v5555 = vadd.f32 %v5466, %v5554
        %v5556 = vpop.f32.mrf.mxu0
        %v5557 = vadd.f32 %v5468, %v5556
        %5558 = vmatmul.bf16.gmra.mxu0 %v4662
        %v5559 = vpop.f32.mrf.mxu0
        %v5560 = vadd.f32 %v5471, %v5559
        %v5561 = vpop.f32.mrf.mxu0
        %v5562 = vadd.f32 %v5473, %v5561
        %5563 = vmatmul.bf16.gmra.mxu0 %v4668
        %v5564 = vpop.f32.mrf.mxu0
        %v5565 = vadd.f32 %v5476, %v5564
        %v5566 = vpop.f32.mrf.mxu0
        %v5567 = vadd.f32 %v5478, %v5566
        %5568 = vdwg.mxu0
        %5569 = vmatpush.bf16.msra.mxu0 %v1761
        %5570 = vmatpush.bf16.msra.mxu0 %v1758
        %5571 = vmatpush.bf16.msra.mxu0 %v1755
        %5572 = vmatpush.bf16.msra.mxu0 %v1752
        %5573 = vmatpush.bf16.msra.mxu0 %v1749
        %5574 = vmatpush.bf16.msra.mxu0 %v1746
        %5575 = vmatpush.bf16.msra.mxu0 %v1743
        %5576 = vmatpush.bf16.msra.mxu0 %v1740
        %5577 = vmatmul.bf16.gmra.mxu0 %v4579
        %v5578 = vpop.f32.mrf.mxu0
        %v5579 = vadd.f32 %v5490, %v5578
        %v5580 = vpop.f32.mrf.mxu0
        %v5581 = vadd.f32 %v5492, %v5580
        %5582 = vmatmul.bf16.gmra.mxu0 %v4585
        %v5583 = vpop.f32.mrf.mxu0
        %v5584 = vadd.f32 %v5495, %v5583
        %v5585 = vpop.f32.mrf.mxu0
        %v5586 = vadd.f32 %v5497, %v5585
        %5587 = vmatmul.bf16.gmra.mxu0 %v4591
        %v5588 = vpop.f32.mrf.mxu0
        %v5589 = vadd.f32 %v5500, %v5588
        %v5590 = vpop.f32.mrf.mxu0
        %v5591 = vadd.f32 %v5502, %v5590
        %5592 = vmatmul.bf16.gmra.mxu0 %v4597
        %v5593 = vpop.f32.mrf.mxu0
        %v5594 = vadd.f32 %v5505, %v5593
        %v5595 = vpop.f32.mrf.mxu0
        %v5596 = vadd.f32 %v5507, %v5595
        %5597 = vmatmul.bf16.gmra.mxu0 %v4603
        %v5598 = vpop.f32.mrf.mxu0
        %v5599 = vadd.f32 %v5510, %v5598
        %v5600 = vpop.f32.mrf.mxu0
        %v5601 = vadd.f32 %v5512, %v5600
        %5602 = vmatmul.bf16.gmra.mxu0 %v4609
        %v5603 = vpop.f32.mrf.mxu0
        %v5604 = vadd.f32 %v5515, %v5603
        %v5605 = vpop.f32.mrf.mxu0
        %v5606 = vadd.f32 %v5517, %v5605
        %5607 = vmatmul.bf16.gmra.mxu0 %v4615
        %v5608 = vpop.f32.mrf.mxu0
        %v5609 = vadd.f32 %v5520, %v5608
        %v5610 = vpop.f32.mrf.mxu0
        %v5611 = vadd.f32 %v5522, %v5610
        %5612 = vmatmul.bf16.gmra.mxu0 %v4621
        %v5613 = vpop.f32.mrf.mxu0
        %v5614 = vadd.f32 %v5525, %v5613
        %v5615 = vpop.f32.mrf.mxu0
        %v5616 = vadd.f32 %v5527, %v5615
        %5617 = vmatmul.bf16.gmra.mxu0 %v4627
        %v5618 = vpop.f32.mrf.mxu0
        %v5619 = vadd.f32 %v5530, %v5618
        %v5620 = vpop.f32.mrf.mxu0
        %v5621 = vadd.f32 %v5532, %v5620
        %5622 = vmatmul.bf16.gmra.mxu0 %v4633
        %v5623 = vpop.f32.mrf.mxu0
        %v5624 = vadd.f32 %v5535, %v5623
        %v5625 = vpop.f32.mrf.mxu0
        %v5626 = vadd.f32 %v5537, %v5625
        %5627 = vmatmul.bf16.gmra.mxu0 %v4639
        %v5628 = vpop.f32.mrf.mxu0
        %v5629 = vadd.f32 %v5540, %v5628
        %v5630 = vpop.f32.mrf.mxu0
        %v5631 = vadd.f32 %v5542, %v5630
        %5632 = vmatmul.bf16.gmra.mxu0 %v4645
        %v5633 = vpop.f32.mrf.mxu0
        %v5634 = vadd.f32 %v5545, %v5633
        %v5635 = vpop.f32.mrf.mxu0
        %v5636 = vadd.f32 %v5547, %v5635
        %5637 = vmatmul.bf16.gmra.mxu0 %v4651
        %v5638 = vpop.f32.mrf.mxu0
        %v5639 = vadd.f32 %v5550, %v5638
        %v5640 = vpop.f32.mrf.mxu0
        %v5641 = vadd.f32 %v5552, %v5640
        %5642 = vmatmul.bf16.gmra.mxu0 %v4657
        %v5643 = vpop.f32.mrf.mxu0
        %v5644 = vadd.f32 %v5555, %v5643
        %v5645 = vpop.f32.mrf.mxu0
        %v5646 = vadd.f32 %v5557, %v5645
        %5647 = vmatmul.bf16.gmra.mxu0 %v4663
        %v5648 = vpop.f32.mrf.mxu0
        %v5649 = vadd.f32 %v5560, %v5648
        %v5650 = vpop.f32.mrf.mxu0
        %v5651 = vadd.f32 %v5562, %v5650
        %5652 = vmatmul.bf16.gmra.mxu0 %v4669
        %v5653 = vpop.f32.mrf.mxu0
        %v5654 = vadd.f32 %v5565, %v5653
        %v5655 = vpop.f32.mrf.mxu0
        %v5656 = vadd.f32 %v5567, %v5655
        %5657 = vdwg.mxu0
        %5658 = vmatpush.bf16.msra.mxu0 %v1785
        %5659 = vmatpush.bf16.msra.mxu0 %v1782
        %5660 = vmatpush.bf16.msra.mxu0 %v1779
        %5661 = vmatpush.bf16.msra.mxu0 %v1776
        %5662 = vmatpush.bf16.msra.mxu0 %v1773
        %5663 = vmatpush.bf16.msra.mxu0 %v1770
        %5664 = vmatpush.bf16.msra.mxu0 %v1767
        %5665 = vmatpush.bf16.msra.mxu0 %v1764
        %5666 = vmatmul.bf16.gmra.mxu0 %v4580
        %v5667 = vpop.f32.mrf.mxu0
        %v5668 = vadd.f32 %v5579, %v5667
        %v5669 = vpop.f32.mrf.mxu0
        %v5670 = vadd.f32 %v5581, %v5669
        %5671 = vmatmul.bf16.gmra.mxu0 %v4586
        %v5672 = vpop.f32.mrf.mxu0
        %v5673 = vadd.f32 %v5584, %v5672
        %v5674 = vpop.f32.mrf.mxu0
        %v5675 = vadd.f32 %v5586, %v5674
        %5676 = vmatmul.bf16.gmra.mxu0 %v4592
        %v5677 = vpop.f32.mrf.mxu0
        %v5678 = vadd.f32 %v5589, %v5677
        %v5679 = vpop.f32.mrf.mxu0
        %v5680 = vadd.f32 %v5591, %v5679
        %5681 = vmatmul.bf16.gmra.mxu0 %v4598
        %v5682 = vpop.f32.mrf.mxu0
        %v5683 = vadd.f32 %v5594, %v5682
        %v5684 = vpop.f32.mrf.mxu0
        %v5685 = vadd.f32 %v5596, %v5684
        %5686 = vmatmul.bf16.gmra.mxu0 %v4604
        %v5687 = vpop.f32.mrf.mxu0
        %v5688 = vadd.f32 %v5599, %v5687
        %v5689 = vpop.f32.mrf.mxu0
        %v5690 = vadd.f32 %v5601, %v5689
        %5691 = vmatmul.bf16.gmra.mxu0 %v4610
        %v5692 = vpop.f32.mrf.mxu0
        %v5693 = vadd.f32 %v5604, %v5692
        %v5694 = vpop.f32.mrf.mxu0
        %v5695 = vadd.f32 %v5606, %v5694
        %5696 = vmatmul.bf16.gmra.mxu0 %v4616
        %v5697 = vpop.f32.mrf.mxu0
        %v5698 = vadd.f32 %v5609, %v5697
        %v5699 = vpop.f32.mrf.mxu0
        %v5700 = vadd.f32 %v5611, %v5699
        %5701 = vmatmul.bf16.gmra.mxu0 %v4622
        %v5702 = vpop.f32.mrf.mxu0
        %v5703 = vadd.f32 %v5614, %v5702
        %v5704 = vpop.f32.mrf.mxu0
        %v5705 = vadd.f32 %v5616, %v5704
        %5706 = vmatmul.bf16.gmra.mxu0 %v4628
        %v5707 = vpop.f32.mrf.mxu0
        %v5708 = vadd.f32 %v5619, %v5707
        %v5709 = vpop.f32.mrf.mxu0
        %v5710 = vadd.f32 %v5621, %v5709
        %5711 = vmatmul.bf16.gmra.mxu0 %v4634
        %v5712 = vpop.f32.mrf.mxu0
        %v5713 = vadd.f32 %v5624, %v5712
        %v5714 = vpop.f32.mrf.mxu0
        %v5715 = vadd.f32 %v5626, %v5714
        %5716 = vmatmul.bf16.gmra.mxu0 %v4640
        %v5717 = vpop.f32.mrf.mxu0
        %v5718 = vadd.f32 %v5629, %v5717
        %v5719 = vpop.f32.mrf.mxu0
        %v5720 = vadd.f32 %v5631, %v5719
        %5721 = vmatmul.bf16.gmra.mxu0 %v4646
        %v5722 = vpop.f32.mrf.mxu0
        %v5723 = vadd.f32 %v5634, %v5722
        %v5724 = vpop.f32.mrf.mxu0
        %v5725 = vadd.f32 %v5636, %v5724
        %5726 = vmatmul.bf16.gmra.mxu0 %v4652
        %v5727 = vpop.f32.mrf.mxu0
        %v5728 = vadd.f32 %v5639, %v5727
        %v5729 = vpop.f32.mrf.mxu0
        %v5730 = vadd.f32 %v5641, %v5729
        %5731 = vmatmul.bf16.gmra.mxu0 %v4658
        %v5732 = vpop.f32.mrf.mxu0
        %v5733 = vadd.f32 %v5644, %v5732
        %v5734 = vpop.f32.mrf.mxu0
        %v5735 = vadd.f32 %v5646, %v5734
        %5736 = vmatmul.bf16.gmra.mxu0 %v4664
        %v5737 = vpop.f32.mrf.mxu0
        %v5738 = vadd.f32 %v5649, %v5737
        %v5739 = vpop.f32.mrf.mxu0
        %v5740 = vadd.f32 %v5651, %v5739
        %5741 = vmatmul.bf16.gmra.mxu0 %v4670
        %v5742 = vpop.f32.mrf.mxu0
        %v5743 = vadd.f32 %v5654, %v5742
        %v5744 = vpop.f32.mrf.mxu0
        %v5745 = vadd.f32 %v5656, %v5744
        %5746 = vdwg.mxu0
        %5747 = vmatpush.bf16.msra.mxu0 %v1809
        %5748 = vmatpush.bf16.msra.mxu0 %v1806
        %5749 = vmatpush.bf16.msra.mxu0 %v1803
        %5750 = vmatpush.bf16.msra.mxu0 %v1800
        %5751 = vmatpush.bf16.msra.mxu0 %v1797
        %5752 = vmatpush.bf16.msra.mxu0 %v1794
        %5753 = vmatpush.bf16.msra.mxu0 %v1791
        %5754 = vmatpush.bf16.msra.mxu0 %v1788
        %5755 = vmatmul.bf16.gmra.mxu0 %v4581
        %v5756 = vpop.f32.mrf.mxu0
        %v5757 = vadd.f32 %v5668, %v5756
        %v5758 = vpop.f32.mrf.mxu0
        %v5759 = vadd.f32 %v5670, %v5758
        %5760 = vmatmul.bf16.gmra.mxu0 %v4587
        %v5761 = vpop.f32.mrf.mxu0
        %v5762 = vadd.f32 %v5673, %v5761
        %v5763 = vpop.f32.mrf.mxu0
        %v5764 = vadd.f32 %v5675, %v5763
        %5765 = vmatmul.bf16.gmra.mxu0 %v4593
        %v5766 = vpop.f32.mrf.mxu0
        %v5767 = vadd.f32 %v5678, %v5766
        %v5768 = vpop.f32.mrf.mxu0
        %v5769 = vadd.f32 %v5680, %v5768
        %5770 = vmatmul.bf16.gmra.mxu0 %v4599
        %v5771 = vpop.f32.mrf.mxu0
        %v5772 = vadd.f32 %v5683, %v5771
        %v5773 = vpop.f32.mrf.mxu0
        %v5774 = vadd.f32 %v5685, %v5773
        %5775 = vmatmul.bf16.gmra.mxu0 %v4605
        %v5776 = vpop.f32.mrf.mxu0
        %v5777 = vadd.f32 %v5688, %v5776
        %v5778 = vpop.f32.mrf.mxu0
        %v5779 = vadd.f32 %v5690, %v5778
        %5780 = vmatmul.bf16.gmra.mxu0 %v4611
        %v5781 = vpop.f32.mrf.mxu0
        %v5782 = vadd.f32 %v5693, %v5781
        %v5783 = vpop.f32.mrf.mxu0
        %v5784 = vadd.f32 %v5695, %v5783
        %5785 = vmatmul.bf16.gmra.mxu0 %v4617
        %v5786 = vpop.f32.mrf.mxu0
        %v5787 = vadd.f32 %v5698, %v5786
        %v5788 = vpop.f32.mrf.mxu0
        %v5789 = vadd.f32 %v5700, %v5788
        %5790 = vmatmul.bf16.gmra.mxu0 %v4623
        %v5791 = vpop.f32.mrf.mxu0
        %v5792 = vadd.f32 %v5703, %v5791
        %v5793 = vpop.f32.mrf.mxu0
        %v5794 = vadd.f32 %v5705, %v5793
        %5795 = vmatmul.bf16.gmra.mxu0 %v4629
        %v5796 = vpop.f32.mrf.mxu0
        %v5797 = vadd.f32 %v5708, %v5796
        %v5798 = vpop.f32.mrf.mxu0
        %v5799 = vadd.f32 %v5710, %v5798
        %5800 = vmatmul.bf16.gmra.mxu0 %v4635
        %v5801 = vpop.f32.mrf.mxu0
        %v5802 = vadd.f32 %v5713, %v5801
        %v5803 = vpop.f32.mrf.mxu0
        %v5804 = vadd.f32 %v5715, %v5803
        %5805 = vmatmul.bf16.gmra.mxu0 %v4641
        %v5806 = vpop.f32.mrf.mxu0
        %v5807 = vadd.f32 %v5718, %v5806
        %v5808 = vpop.f32.mrf.mxu0
        %v5809 = vadd.f32 %v5720, %v5808
        %5810 = vmatmul.bf16.gmra.mxu0 %v4647
        %v5811 = vpop.f32.mrf.mxu0
        %v5812 = vadd.f32 %v5723, %v5811
        %v5813 = vpop.f32.mrf.mxu0
        %v5814 = vadd.f32 %v5725, %v5813
        %5815 = vmatmul.bf16.gmra.mxu0 %v4653
        %v5816 = vpop.f32.mrf.mxu0
        %v5817 = vadd.f32 %v5728, %v5816
        %v5818 = vpop.f32.mrf.mxu0
        %v5819 = vadd.f32 %v5730, %v5818
        %5820 = vmatmul.bf16.gmra.mxu0 %v4659
        %v5821 = vpop.f32.mrf.mxu0
        %v5822 = vadd.f32 %v5733, %v5821
        %v5823 = vpop.f32.mrf.mxu0
        %v5824 = vadd.f32 %v5735, %v5823
        %5825 = vmatmul.bf16.gmra.mxu0 %v4665
        %v5826 = vpop.f32.mrf.mxu0
        %v5827 = vadd.f32 %v5738, %v5826
        %v5828 = vpop.f32.mrf.mxu0
        %v5829 = vadd.f32 %v5740, %v5828
        %5830 = vmatmul.bf16.gmra.mxu0 %v4671
        %v5831 = vpop.f32.mrf.mxu0
        %v5832 = vadd.f32 %v5743, %v5831
        %v5833 = vpop.f32.mrf.mxu0
        %v5834 = vadd.f32 %v5745, %v5833
        %5835 = vdwg.mxu0
        %5836 = vmatpush.bf16.msra.mxu0 %v1690
        %5837 = vmatpush.bf16.msra.mxu0 %v1687
        %5838 = vmatpush.bf16.msra.mxu0 %v1684
        %5839 = vmatpush.bf16.msra.mxu0 %v1681
        %5840 = vmatpush.bf16.msra.mxu0 %v1678
        %5841 = vmatpush.bf16.msra.mxu0 %v1675
        %5842 = vmatpush.bf16.msra.mxu0 %v1672
        %5843 = vmatpush.bf16.msra.mxu0 %v1669
        %5844 = vmatmul.bf16.gmra.mxu0 %v4576
        %v5845 = vpop.f32.mrf.mxu0
        %v5846 = vadd.f32 %v703, %v5845
        %v5847 = vpop.f32.mrf.mxu0
        %v5848 = vadd.f32 %v703, %v5847
        %5849 = vmatmul.bf16.gmra.mxu0 %v4582
        %v5850 = vpop.f32.mrf.mxu0
        %v5851 = vadd.f32 %v703, %v5850
        %v5852 = vpop.f32.mrf.mxu0
        %v5853 = vadd.f32 %v703, %v5852
        %5854 = vmatmul.bf16.gmra.mxu0 %v4588
        %v5855 = vpop.f32.mrf.mxu0
        %v5856 = vadd.f32 %v703, %v5855
        %v5857 = vpop.f32.mrf.mxu0
        %v5858 = vadd.f32 %v703, %v5857
        %5859 = vmatmul.bf16.gmra.mxu0 %v4594
        %v5860 = vpop.f32.mrf.mxu0
        %v5861 = vadd.f32 %v703, %v5860
        %v5862 = vpop.f32.mrf.mxu0
        %v5863 = vadd.f32 %v703, %v5862
        %5864 = vmatmul.bf16.gmra.mxu0 %v4600
        %v5865 = vpop.f32.mrf.mxu0
        %v5866 = vadd.f32 %v703, %v5865
        %v5867 = vpop.f32.mrf.mxu0
        %v5868 = vadd.f32 %v703, %v5867
        %5869 = vmatmul.bf16.gmra.mxu0 %v4606
        %v5870 = vpop.f32.mrf.mxu0
        %v5871 = vadd.f32 %v703, %v5870
        %v5872 = vpop.f32.mrf.mxu0
        %v5873 = vadd.f32 %v703, %v5872
        %5874 = vmatmul.bf16.gmra.mxu0 %v4612
        %v5875 = vpop.f32.mrf.mxu0
        %v5876 = vadd.f32 %v703, %v5875
        %v5877 = vpop.f32.mrf.mxu0
        %v5878 = vadd.f32 %v703, %v5877
        %5879 = vmatmul.bf16.gmra.mxu0 %v4618
        %v5880 = vpop.f32.mrf.mxu0
        %v5881 = vadd.f32 %v703, %v5880
        %v5882 = vpop.f32.mrf.mxu0
        %v5883 = vadd.f32 %v703, %v5882
        %5884 = vmatmul.bf16.gmra.mxu0 %v4624
        %v5885 = vpop.f32.mrf.mxu0
        %v5886 = vadd.f32 %v703, %v5885
        %v5887 = vpop.f32.mrf.mxu0
        %v5888 = vadd.f32 %v703, %v5887
        %5889 = vmatmul.bf16.gmra.mxu0 %v4630
        %v5890 = vpop.f32.mrf.mxu0
        %v5891 = vadd.f32 %v703, %v5890
        %v5892 = vpop.f32.mrf.mxu0
        %v5893 = vadd.f32 %v703, %v5892
        %5894 = vmatmul.bf16.gmra.mxu0 %v4636
        %v5895 = vpop.f32.mrf.mxu0
        %v5896 = vadd.f32 %v703, %v5895
        %v5897 = vpop.f32.mrf.mxu0
        %v5898 = vadd.f32 %v703, %v5897
        %5899 = vmatmul.bf16.gmra.mxu0 %v4642
        %v5900 = vpop.f32.mrf.mxu0
        %v5901 = vadd.f32 %v703, %v5900
        %v5902 = vpop.f32.mrf.mxu0
        %v5903 = vadd.f32 %v703, %v5902
        %5904 = vmatmul.bf16.gmra.mxu0 %v4648
        %v5905 = vpop.f32.mrf.mxu0
        %v5906 = vadd.f32 %v703, %v5905
        %v5907 = vpop.f32.mrf.mxu0
        %v5908 = vadd.f32 %v703, %v5907
        %5909 = vmatmul.bf16.gmra.mxu0 %v4654
        %v5910 = vpop.f32.mrf.mxu0
        %v5911 = vadd.f32 %v703, %v5910
        %v5912 = vpop.f32.mrf.mxu0
        %v5913 = vadd.f32 %v703, %v5912
        %5914 = vmatmul.bf16.gmra.mxu0 %v4660
        %v5915 = vpop.f32.mrf.mxu0
        %v5916 = vadd.f32 %v703, %v5915
        %v5917 = vpop.f32.mrf.mxu0
        %v5918 = vadd.f32 %v703, %v5917
        %5919 = vmatmul.bf16.gmra.mxu0 %v4666
        %v5920 = vpop.f32.mrf.mxu0
        %v5921 = vadd.f32 %v703, %v5920
        %v5922 = vpop.f32.mrf.mxu0
        %v5923 = vadd.f32 %v703, %v5922
        %5924 = vdwg.mxu0
        %5925 = vmatpush.bf16.msra.mxu0 %v1714
        %5926 = vmatpush.bf16.msra.mxu0 %v1711
        %5927 = vmatpush.bf16.msra.mxu0 %v1708
        %5928 = vmatpush.bf16.msra.mxu0 %v1705
        %5929 = vmatpush.bf16.msra.mxu0 %v1702
        %5930 = vmatpush.bf16.msra.mxu0 %v1699
        %5931 = vmatpush.bf16.msra.mxu0 %v1696
        %5932 = vmatpush.bf16.msra.mxu0 %v1693
        %5933 = vmatmul.bf16.gmra.mxu0 %v4577
        %v5934 = vpop.f32.mrf.mxu0
        %v5935 = vadd.f32 %v5846, %v5934
        %v5936 = vpop.f32.mrf.mxu0
        %v5937 = vadd.f32 %v5848, %v5936
        %5938 = vmatmul.bf16.gmra.mxu0 %v4583
        %v5939 = vpop.f32.mrf.mxu0
        %v5940 = vadd.f32 %v5851, %v5939
        %v5941 = vpop.f32.mrf.mxu0
        %v5942 = vadd.f32 %v5853, %v5941
        %5943 = vmatmul.bf16.gmra.mxu0 %v4589
        %v5944 = vpop.f32.mrf.mxu0
        %v5945 = vadd.f32 %v5856, %v5944
        %v5946 = vpop.f32.mrf.mxu0
        %v5947 = vadd.f32 %v5858, %v5946
        %5948 = vmatmul.bf16.gmra.mxu0 %v4595
        %v5949 = vpop.f32.mrf.mxu0
        %v5950 = vadd.f32 %v5861, %v5949
        %v5951 = vpop.f32.mrf.mxu0
        %v5952 = vadd.f32 %v5863, %v5951
        %5953 = vmatmul.bf16.gmra.mxu0 %v4601
        %v5954 = vpop.f32.mrf.mxu0
        %v5955 = vadd.f32 %v5866, %v5954
        %v5956 = vpop.f32.mrf.mxu0
        %v5957 = vadd.f32 %v5868, %v5956
        %5958 = vmatmul.bf16.gmra.mxu0 %v4607
        %v5959 = vpop.f32.mrf.mxu0
        %v5960 = vadd.f32 %v5871, %v5959
        %v5961 = vpop.f32.mrf.mxu0
        %v5962 = vadd.f32 %v5873, %v5961
        %5963 = vmatmul.bf16.gmra.mxu0 %v4613
        %v5964 = vpop.f32.mrf.mxu0
        %v5965 = vadd.f32 %v5876, %v5964
        %v5966 = vpop.f32.mrf.mxu0
        %v5967 = vadd.f32 %v5878, %v5966
        %5968 = vmatmul.bf16.gmra.mxu0 %v4619
        %v5969 = vpop.f32.mrf.mxu0
        %v5970 = vadd.f32 %v5881, %v5969
        %v5971 = vpop.f32.mrf.mxu0
        %v5972 = vadd.f32 %v5883, %v5971
        %5973 = vmatmul.bf16.gmra.mxu0 %v4625
        %v5974 = vpop.f32.mrf.mxu0
        %v5975 = vadd.f32 %v5886, %v5974
        %v5976 = vpop.f32.mrf.mxu0
        %v5977 = vadd.f32 %v5888, %v5976
        %5978 = vmatmul.bf16.gmra.mxu0 %v4631
        %v5979 = vpop.f32.mrf.mxu0
        %v5980 = vadd.f32 %v5891, %v5979
        %v5981 = vpop.f32.mrf.mxu0
        %v5982 = vadd.f32 %v5893, %v5981
        %5983 = vmatmul.bf16.gmra.mxu0 %v4637
        %v5984 = vpop.f32.mrf.mxu0
        %v5985 = vadd.f32 %v5896, %v5984
        %v5986 = vpop.f32.mrf.mxu0
        %v5987 = vadd.f32 %v5898, %v5986
        %5988 = vmatmul.bf16.gmra.mxu0 %v4643
        %v5989 = vpop.f32.mrf.mxu0
        %v5990 = vadd.f32 %v5901, %v5989
        %v5991 = vpop.f32.mrf.mxu0
        %v5992 = vadd.f32 %v5903, %v5991
        %5993 = vmatmul.bf16.gmra.mxu0 %v4649
        %v5994 = vpop.f32.mrf.mxu0
        %v5995 = vadd.f32 %v5906, %v5994
        %v5996 = vpop.f32.mrf.mxu0
        %v5997 = vadd.f32 %v5908, %v5996
        %5998 = vmatmul.bf16.gmra.mxu0 %v4655
        %v5999 = vpop.f32.mrf.mxu0
        %v6000 = vadd.f32 %v5911, %v5999
        %v6001 = vpop.f32.mrf.mxu0
        %v6002 = vadd.f32 %v5913, %v6001
        %6003 = vmatmul.bf16.gmra.mxu0 %v4661
        %v6004 = vpop.f32.mrf.mxu0
        %v6005 = vadd.f32 %v5916, %v6004
        %v6006 = vpop.f32.mrf.mxu0
        %v6007 = vadd.f32 %v5918, %v6006
        %6008 = vmatmul.bf16.gmra.mxu0 %v4667
        %v6009 = vpop.f32.mrf.mxu0
        %v6010 = vadd.f32 %v5921, %v6009
        %v6011 = vpop.f32.mrf.mxu0
        %v6012 = vadd.f32 %v5923, %v6011
        %6013 = vdwg.mxu0
        %6014 = vmatpush.bf16.msra.mxu0 %v1738
        %6015 = vmatpush.bf16.msra.mxu0 %v1735
        %6016 = vmatpush.bf16.msra.mxu0 %v1732
        %6017 = vmatpush.bf16.msra.mxu0 %v1729
        %6018 = vmatpush.bf16.msra.mxu0 %v1726
        %6019 = vmatpush.bf16.msra.mxu0 %v1723
        %6020 = vmatpush.bf16.msra.mxu0 %v1720
        %6021 = vmatpush.bf16.msra.mxu0 %v1717
        %6022 = vmatmul.bf16.gmra.mxu0 %v4578
        %v6023 = vpop.f32.mrf.mxu0
        %v6024 = vadd.f32 %v5935, %v6023
        %v6025 = vpop.f32.mrf.mxu0
        %v6026 = vadd.f32 %v5937, %v6025
        %6027 = vmatmul.bf16.gmra.mxu0 %v4584
        %v6028 = vpop.f32.mrf.mxu0
        %v6029 = vadd.f32 %v5940, %v6028
        %v6030 = vpop.f32.mrf.mxu0
        %v6031 = vadd.f32 %v5942, %v6030
        %6032 = vmatmul.bf16.gmra.mxu0 %v4590
        %v6033 = vpop.f32.mrf.mxu0
        %v6034 = vadd.f32 %v5945, %v6033
        %v6035 = vpop.f32.mrf.mxu0
        %v6036 = vadd.f32 %v5947, %v6035
        %6037 = vmatmul.bf16.gmra.mxu0 %v4596
        %v6038 = vpop.f32.mrf.mxu0
        %v6039 = vadd.f32 %v5950, %v6038
        %v6040 = vpop.f32.mrf.mxu0
        %v6041 = vadd.f32 %v5952, %v6040
        %6042 = vmatmul.bf16.gmra.mxu0 %v4602
        %v6043 = vpop.f32.mrf.mxu0
        %v6044 = vadd.f32 %v5955, %v6043
        %v6045 = vpop.f32.mrf.mxu0
        %v6046 = vadd.f32 %v5957, %v6045
        %6047 = vmatmul.bf16.gmra.mxu0 %v4608
        %v6048 = vpop.f32.mrf.mxu0
        %v6049 = vadd.f32 %v5960, %v6048
        %v6050 = vpop.f32.mrf.mxu0
        %v6051 = vadd.f32 %v5962, %v6050
        %6052 = vmatmul.bf16.gmra.mxu0 %v4614
        %v6053 = vpop.f32.mrf.mxu0
        %v6054 = vadd.f32 %v5965, %v6053
        %v6055 = vpop.f32.mrf.mxu0
        %v6056 = vadd.f32 %v5967, %v6055
        %6057 = vmatmul.bf16.gmra.mxu0 %v4620
        %v6058 = vpop.f32.mrf.mxu0
        %v6059 = vadd.f32 %v5970, %v6058
        %v6060 = vpop.f32.mrf.mxu0
        %v6061 = vadd.f32 %v5972, %v6060
        %6062 = vmatmul.bf16.gmra.mxu0 %v4626
        %v6063 = vpop.f32.mrf.mxu0
        %v6064 = vadd.f32 %v5975, %v6063
        %v6065 = vpop.f32.mrf.mxu0
        %v6066 = vadd.f32 %v5977, %v6065
        %6067 = vmatmul.bf16.gmra.mxu0 %v4632
        %v6068 = vpop.f32.mrf.mxu0
        %v6069 = vadd.f32 %v5980, %v6068
        %v6070 = vpop.f32.mrf.mxu0
        %v6071 = vadd.f32 %v5982, %v6070
        %6072 = vmatmul.bf16.gmra.mxu0 %v4638
        %v6073 = vpop.f32.mrf.mxu0
        %v6074 = vadd.f32 %v5985, %v6073
        %v6075 = vpop.f32.mrf.mxu0
        %v6076 = vadd.f32 %v5987, %v6075
        %6077 = vmatmul.bf16.gmra.mxu0 %v4644
        %v6078 = vpop.f32.mrf.mxu0
        %v6079 = vadd.f32 %v5990, %v6078
        %v6080 = vpop.f32.mrf.mxu0
        %v6081 = vadd.f32 %v5992, %v6080
        %6082 = vmatmul.bf16.gmra.mxu0 %v4650
        %v6083 = vpop.f32.mrf.mxu0
        %v6084 = vadd.f32 %v5995, %v6083
        %v6085 = vpop.f32.mrf.mxu0
        %v6086 = vadd.f32 %v5997, %v6085
        %6087 = vmatmul.bf16.gmra.mxu0 %v4656
        %v6088 = vpop.f32.mrf.mxu0
        %v6089 = vadd.f32 %v6000, %v6088
        %v6090 = vpop.f32.mrf.mxu0
        %v6091 = vadd.f32 %v6002, %v6090
        %6092 = vmatmul.bf16.gmra.mxu0 %v4662
        %v6093 = vpop.f32.mrf.mxu0
        %v6094 = vadd.f32 %v6005, %v6093
        %v6095 = vpop.f32.mrf.mxu0
        %v6096 = vadd.f32 %v6007, %v6095
        %6097 = vmatmul.bf16.gmra.mxu0 %v4668
        %v6098 = vpop.f32.mrf.mxu0
        %v6099 = vadd.f32 %v6010, %v6098
        %v6100 = vpop.f32.mrf.mxu0
        %v6101 = vadd.f32 %v6012, %v6100
        %6102 = vdwg.mxu0
        %6103 = vmatpush.bf16.msra.mxu0 %v1762
        %6104 = vmatpush.bf16.msra.mxu0 %v1759
        %6105 = vmatpush.bf16.msra.mxu0 %v1756
        %6106 = vmatpush.bf16.msra.mxu0 %v1753
        %6107 = vmatpush.bf16.msra.mxu0 %v1750
        %6108 = vmatpush.bf16.msra.mxu0 %v1747
        %6109 = vmatpush.bf16.msra.mxu0 %v1744
        %6110 = vmatpush.bf16.msra.mxu0 %v1741
        %6111 = vmatmul.bf16.gmra.mxu0 %v4579
        %v6112 = vpop.f32.mrf.mxu0
        %v6113 = vadd.f32 %v6024, %v6112
        %v6114 = vpop.f32.mrf.mxu0
        %v6115 = vadd.f32 %v6026, %v6114
        %6116 = vmatmul.bf16.gmra.mxu0 %v4585
        %v6117 = vpop.f32.mrf.mxu0
        %v6118 = vadd.f32 %v6029, %v6117
        %v6119 = vpop.f32.mrf.mxu0
        %v6120 = vadd.f32 %v6031, %v6119
        %6121 = vmatmul.bf16.gmra.mxu0 %v4591
        %v6122 = vpop.f32.mrf.mxu0
        %v6123 = vadd.f32 %v6034, %v6122
        %v6124 = vpop.f32.mrf.mxu0
        %v6125 = vadd.f32 %v6036, %v6124
        %6126 = vmatmul.bf16.gmra.mxu0 %v4597
        %v6127 = vpop.f32.mrf.mxu0
        %v6128 = vadd.f32 %v6039, %v6127
        %v6129 = vpop.f32.mrf.mxu0
        %v6130 = vadd.f32 %v6041, %v6129
        %6131 = vmatmul.bf16.gmra.mxu0 %v4603
        %v6132 = vpop.f32.mrf.mxu0
        %v6133 = vadd.f32 %v6044, %v6132
        %v6134 = vpop.f32.mrf.mxu0
        %v6135 = vadd.f32 %v6046, %v6134
        %6136 = vmatmul.bf16.gmra.mxu0 %v4609
        %v6137 = vpop.f32.mrf.mxu0
        %v6138 = vadd.f32 %v6049, %v6137
        %v6139 = vpop.f32.mrf.mxu0
        %v6140 = vadd.f32 %v6051, %v6139
        %6141 = vmatmul.bf16.gmra.mxu0 %v4615
        %v6142 = vpop.f32.mrf.mxu0
        %v6143 = vadd.f32 %v6054, %v6142
        %v6144 = vpop.f32.mrf.mxu0
        %v6145 = vadd.f32 %v6056, %v6144
        %6146 = vmatmul.bf16.gmra.mxu0 %v4621
        %v6147 = vpop.f32.mrf.mxu0
        %v6148 = vadd.f32 %v6059, %v6147
        %v6149 = vpop.f32.mrf.mxu0
        %v6150 = vadd.f32 %v6061, %v6149
        %6151 = vmatmul.bf16.gmra.mxu0 %v4627
        %v6152 = vpop.f32.mrf.mxu0
        %v6153 = vadd.f32 %v6064, %v6152
        %v6154 = vpop.f32.mrf.mxu0
        %v6155 = vadd.f32 %v6066, %v6154
        %6156 = vmatmul.bf16.gmra.mxu0 %v4633
        %v6157 = vpop.f32.mrf.mxu0
        %v6158 = vadd.f32 %v6069, %v6157
        %v6159 = vpop.f32.mrf.mxu0
        %v6160 = vadd.f32 %v6071, %v6159
        %6161 = vmatmul.bf16.gmra.mxu0 %v4639
        %v6162 = vpop.f32.mrf.mxu0
        %v6163 = vadd.f32 %v6074, %v6162
        %v6164 = vpop.f32.mrf.mxu0
        %v6165 = vadd.f32 %v6076, %v6164
        %6166 = vmatmul.bf16.gmra.mxu0 %v4645
        %v6167 = vpop.f32.mrf.mxu0
        %v6168 = vadd.f32 %v6079, %v6167
        %v6169 = vpop.f32.mrf.mxu0
        %v6170 = vadd.f32 %v6081, %v6169
        %6171 = vmatmul.bf16.gmra.mxu0 %v4651
        %v6172 = vpop.f32.mrf.mxu0
        %v6173 = vadd.f32 %v6084, %v6172
        %v6174 = vpop.f32.mrf.mxu0
        %v6175 = vadd.f32 %v6086, %v6174
        %6176 = vmatmul.bf16.gmra.mxu0 %v4657
        %v6177 = vpop.f32.mrf.mxu0
        %v6178 = vadd.f32 %v6089, %v6177
        %v6179 = vpop.f32.mrf.mxu0
        %v6180 = vadd.f32 %v6091, %v6179
        %6181 = vmatmul.bf16.gmra.mxu0 %v4663
        %v6182 = vpop.f32.mrf.mxu0
        %v6183 = vadd.f32 %v6094, %v6182
        %v6184 = vpop.f32.mrf.mxu0
        %v6185 = vadd.f32 %v6096, %v6184
        %6186 = vmatmul.bf16.gmra.mxu0 %v4669
        %v6187 = vpop.f32.mrf.mxu0
        %v6188 = vadd.f32 %v6099, %v6187
        %v6189 = vpop.f32.mrf.mxu0
        %v6190 = vadd.f32 %v6101, %v6189
        %6191 = vdwg.mxu0
        %6192 = vmatpush.bf16.msra.mxu0 %v1786
        %6193 = vmatpush.bf16.msra.mxu0 %v1783
        %6194 = vmatpush.bf16.msra.mxu0 %v1780
        %6195 = vmatpush.bf16.msra.mxu0 %v1777
        %6196 = vmatpush.bf16.msra.mxu0 %v1774
        %6197 = vmatpush.bf16.msra.mxu0 %v1771
        %6198 = vmatpush.bf16.msra.mxu0 %v1768
        %6199 = vmatpush.bf16.msra.mxu0 %v1765
        %6200 = vmatmul.bf16.gmra.mxu0 %v4580
        %v6201 = vpop.f32.mrf.mxu0
        %v6202 = vadd.f32 %v6113, %v6201
        %v6203 = vpop.f32.mrf.mxu0
        %v6204 = vadd.f32 %v6115, %v6203
        %6205 = vmatmul.bf16.gmra.mxu0 %v4586
        %v6206 = vpop.f32.mrf.mxu0
        %v6207 = vadd.f32 %v6118, %v6206
        %v6208 = vpop.f32.mrf.mxu0
        %v6209 = vadd.f32 %v6120, %v6208
        %6210 = vmatmul.bf16.gmra.mxu0 %v4592
        %v6211 = vpop.f32.mrf.mxu0
        %v6212 = vadd.f32 %v6123, %v6211
        %v6213 = vpop.f32.mrf.mxu0
        %v6214 = vadd.f32 %v6125, %v6213
        %6215 = vmatmul.bf16.gmra.mxu0 %v4598
        %v6216 = vpop.f32.mrf.mxu0
        %v6217 = vadd.f32 %v6128, %v6216
        %v6218 = vpop.f32.mrf.mxu0
        %v6219 = vadd.f32 %v6130, %v6218
        %6220 = vmatmul.bf16.gmra.mxu0 %v4604
        %v6221 = vpop.f32.mrf.mxu0
        %v6222 = vadd.f32 %v6133, %v6221
        %v6223 = vpop.f32.mrf.mxu0
        %v6224 = vadd.f32 %v6135, %v6223
        %6225 = vmatmul.bf16.gmra.mxu0 %v4610
        %v6226 = vpop.f32.mrf.mxu0
        %v6227 = vadd.f32 %v6138, %v6226
        %v6228 = vpop.f32.mrf.mxu0
        %v6229 = vadd.f32 %v6140, %v6228
        %6230 = vmatmul.bf16.gmra.mxu0 %v4616
        %v6231 = vpop.f32.mrf.mxu0
        %v6232 = vadd.f32 %v6143, %v6231
        %v6233 = vpop.f32.mrf.mxu0
        %v6234 = vadd.f32 %v6145, %v6233
        %6235 = vmatmul.bf16.gmra.mxu0 %v4622
        %v6236 = vpop.f32.mrf.mxu0
        %v6237 = vadd.f32 %v6148, %v6236
        %v6238 = vpop.f32.mrf.mxu0
        %v6239 = vadd.f32 %v6150, %v6238
        %6240 = vmatmul.bf16.gmra.mxu0 %v4628
        %v6241 = vpop.f32.mrf.mxu0
        %v6242 = vadd.f32 %v6153, %v6241
        %v6243 = vpop.f32.mrf.mxu0
        %v6244 = vadd.f32 %v6155, %v6243
        %6245 = vmatmul.bf16.gmra.mxu0 %v4634
        %v6246 = vpop.f32.mrf.mxu0
        %v6247 = vadd.f32 %v6158, %v6246
        %v6248 = vpop.f32.mrf.mxu0
        %v6249 = vadd.f32 %v6160, %v6248
        %6250 = vmatmul.bf16.gmra.mxu0 %v4640
        %v6251 = vpop.f32.mrf.mxu0
        %v6252 = vadd.f32 %v6163, %v6251
        %v6253 = vpop.f32.mrf.mxu0
        %v6254 = vadd.f32 %v6165, %v6253
        %6255 = vmatmul.bf16.gmra.mxu0 %v4646
        %v6256 = vpop.f32.mrf.mxu0
        %v6257 = vadd.f32 %v6168, %v6256
        %v6258 = vpop.f32.mrf.mxu0
        %v6259 = vadd.f32 %v6170, %v6258
        %6260 = vmatmul.bf16.gmra.mxu0 %v4652
        %v6261 = vpop.f32.mrf.mxu0
        %v6262 = vadd.f32 %v6173, %v6261
        %v6263 = vpop.f32.mrf.mxu0
        %v6264 = vadd.f32 %v6175, %v6263
        %6265 = vmatmul.bf16.gmra.mxu0 %v4658
        %v6266 = vpop.f32.mrf.mxu0
        %v6267 = vadd.f32 %v6178, %v6266
        %v6268 = vpop.f32.mrf.mxu0
        %v6269 = vadd.f32 %v6180, %v6268
        %6270 = vmatmul.bf16.gmra.mxu0 %v4664
        %v6271 = vpop.f32.mrf.mxu0
        %v6272 = vadd.f32 %v6183, %v6271
        %v6273 = vpop.f32.mrf.mxu0
        %v6274 = vadd.f32 %v6185, %v6273
        %6275 = vmatmul.bf16.gmra.mxu0 %v4670
        %v6276 = vpop.f32.mrf.mxu0
        %v6277 = vadd.f32 %v6188, %v6276
        %v6278 = vpop.f32.mrf.mxu0
        %v6279 = vadd.f32 %v6190, %v6278
        %6280 = vdwg.mxu0
        %6281 = vmatpush.bf16.msra.mxu0 %v1810
        %6282 = vmatpush.bf16.msra.mxu0 %v1807
        %6283 = vmatpush.bf16.msra.mxu0 %v1804
        %6284 = vmatpush.bf16.msra.mxu0 %v1801
        %6285 = vmatpush.bf16.msra.mxu0 %v1798
        %6286 = vmatpush.bf16.msra.mxu0 %v1795
        %6287 = vmatpush.bf16.msra.mxu0 %v1792
        %6288 = vmatpush.bf16.msra.mxu0 %v1789
        %6289 = vmatmul.bf16.gmra.mxu0 %v4581
        %v6290 = vpop.f32.mrf.mxu0
        %v6291 = vadd.f32 %v6202, %v6290
        %v6292 = vpop.f32.mrf.mxu0
        %v6293 = vadd.f32 %v6204, %v6292
        %6294 = vmatmul.bf16.gmra.mxu0 %v4587
        %v6295 = vpop.f32.mrf.mxu0
        %v6296 = vadd.f32 %v6207, %v6295
        %v6297 = vpop.f32.mrf.mxu0
        %v6298 = vadd.f32 %v6209, %v6297
        %6299 = vmatmul.bf16.gmra.mxu0 %v4593
        %v6300 = vpop.f32.mrf.mxu0
        %v6301 = vadd.f32 %v6212, %v6300
        %v6302 = vpop.f32.mrf.mxu0
        %v6303 = vadd.f32 %v6214, %v6302
        %6304 = vmatmul.bf16.gmra.mxu0 %v4599
        %v6305 = vpop.f32.mrf.mxu0
        %v6306 = vadd.f32 %v6217, %v6305
        %v6307 = vpop.f32.mrf.mxu0
        %v6308 = vadd.f32 %v6219, %v6307
        %6309 = vmatmul.bf16.gmra.mxu0 %v4605
        %v6310 = vpop.f32.mrf.mxu0
        %v6311 = vadd.f32 %v6222, %v6310
        %v6312 = vpop.f32.mrf.mxu0
        %v6313 = vadd.f32 %v6224, %v6312
        %6314 = vmatmul.bf16.gmra.mxu0 %v4611
        %v6315 = vpop.f32.mrf.mxu0
        %v6316 = vadd.f32 %v6227, %v6315
        %v6317 = vpop.f32.mrf.mxu0
        %v6318 = vadd.f32 %v6229, %v6317
        %6319 = vmatmul.bf16.gmra.mxu0 %v4617
        %v6320 = vpop.f32.mrf.mxu0
        %v6321 = vadd.f32 %v6232, %v6320
        %v6322 = vpop.f32.mrf.mxu0
        %v6323 = vadd.f32 %v6234, %v6322
        %6324 = vmatmul.bf16.gmra.mxu0 %v4623
        %v6325 = vpop.f32.mrf.mxu0
        %v6326 = vadd.f32 %v6237, %v6325
        %v6327 = vpop.f32.mrf.mxu0
        %v6328 = vadd.f32 %v6239, %v6327
        %6329 = vmatmul.bf16.gmra.mxu0 %v4629
        %v6330 = vpop.f32.mrf.mxu0
        %v6331 = vadd.f32 %v6242, %v6330
        %v6332 = vpop.f32.mrf.mxu0
        %v6333 = vadd.f32 %v6244, %v6332
        %6334 = vmatmul.bf16.gmra.mxu0 %v4635
        %v6335 = vpop.f32.mrf.mxu0
        %v6336 = vadd.f32 %v6247, %v6335
        %v6337 = vpop.f32.mrf.mxu0
        %v6338 = vadd.f32 %v6249, %v6337
        %6339 = vmatmul.bf16.gmra.mxu0 %v4641
        %v6340 = vpop.f32.mrf.mxu0
        %v6341 = vadd.f32 %v6252, %v6340
        %v6342 = vpop.f32.mrf.mxu0
        %v6343 = vadd.f32 %v6254, %v6342
        %6344 = vmatmul.bf16.gmra.mxu0 %v4647
        %v6345 = vpop.f32.mrf.mxu0
        %v6346 = vadd.f32 %v6257, %v6345
        %v6347 = vpop.f32.mrf.mxu0
        %v6348 = vadd.f32 %v6259, %v6347
        %6349 = vmatmul.bf16.gmra.mxu0 %v4653
        %v6350 = vpop.f32.mrf.mxu0
        %v6351 = vadd.f32 %v6262, %v6350
        %v6352 = vpop.f32.mrf.mxu0
        %v6353 = vadd.f32 %v6264, %v6352
        %6354 = vmatmul.bf16.gmra.mxu0 %v4659
        %v6355 = vpop.f32.mrf.mxu0
        %v6356 = vadd.f32 %v6267, %v6355
        %v6357 = vpop.f32.mrf.mxu0
        %v6358 = vadd.f32 %v6269, %v6357
        %6359 = vmatmul.bf16.gmra.mxu0 %v4665
        %v6360 = vpop.f32.mrf.mxu0
        %v6361 = vadd.f32 %v6272, %v6360
        %v6362 = vpop.f32.mrf.mxu0
        %v6363 = vadd.f32 %v6274, %v6362
        %6364 = vmatmul.bf16.gmra.mxu0 %v4671
        %v6365 = vpop.f32.mrf.mxu0
        %v6366 = vadd.f32 %v6277, %v6365
        %v6367 = vpop.f32.mrf.mxu0
        %v6368 = vadd.f32 %v6279, %v6367
        %6369 = vdwg.mxu0
        %v6370 = vadd.f32 %v5223, %v507
        %v6371 = vadd.f32 %v5757, %v508
        %v6372 = vadd.f32 %v6291, %v509
        %v6373 = vadd.f32 %v5225, %v510
        %v6374 = vadd.f32 %v5759, %v511
        %v6375 = vadd.f32 %v6293, %v512
        %v6376 = vadd.f32 %v5228, %v513
        %v6377 = vadd.f32 %v5762, %v514
        %v6378 = vadd.f32 %v6296, %v515
        %v6379 = vadd.f32 %v5230, %v516
        %v6380 = vadd.f32 %v5764, %v517
        %v6381 = vadd.f32 %v6298, %v518
        %v6382 = vadd.f32 %v5233, %v519
        %v6383 = vadd.f32 %v5767, %v520
        %v6384 = vadd.f32 %v6301, %v521
        %v6385 = vadd.f32 %v5235, %v522
        %v6386 = vadd.f32 %v5769, %v523
        %v6387 = vadd.f32 %v6303, %v524
        %v6388 = vadd.f32 %v5238, %v525
        %v6389 = vadd.f32 %v5772, %v526
        %v6390 = vadd.f32 %v6306, %v527
        %v6391 = vadd.f32 %v5240, %v528
        %v6392 = vadd.f32 %v5774, %v529
        %v6393 = vadd.f32 %v6308, %v530
        %v6394 = vadd.f32 %v5243, %v531
        %v6395 = vadd.f32 %v5777, %v532
        %v6396 = vadd.f32 %v6311, %v533
        %v6397 = vadd.f32 %v5245, %v534
        %v6398 = vadd.f32 %v5779, %v535
        %v6399 = vadd.f32 %v6313, %v536
        %v6400 = vadd.f32 %v5248, %v537
        %v6401 = vadd.f32 %v5782, %v538
        %v6402 = vadd.f32 %v6316, %v539
        %v6403 = vadd.f32 %v5250, %v540
        %v6404 = vadd.f32 %v5784, %v541
        %v6405 = vadd.f32 %v6318, %v542
        %v6406 = vadd.f32 %v5253, %v543
        %v6407 = vadd.f32 %v5787, %v544
        %v6408 = vadd.f32 %v6321, %v545
        %v6409 = vadd.f32 %v5255, %v546
        %v6410 = vadd.f32 %v5789, %v547
        %v6411 = vadd.f32 %v6323, %v548
        %v6412 = vadd.f32 %v5258, %v549
        %v6413 = vadd.f32 %v5792, %v550
        %v6414 = vadd.f32 %v6326, %v551
        %v6415 = vadd.f32 %v5260, %v552
        %v6416 = vadd.f32 %v5794, %v553
        %v6417 = vadd.f32 %v6328, %v554
        %v6418 = vadd.f32 %v5263, %v555
        %v6419 = vadd.f32 %v5797, %v556
        %v6420 = vadd.f32 %v6331, %v557
        %v6421 = vadd.f32 %v5265, %v558
        %v6422 = vadd.f32 %v5799, %v559
        %v6423 = vadd.f32 %v6333, %v560
        %v6424 = vadd.f32 %v5268, %v561
        %v6425 = vadd.f32 %v5802, %v562
        %v6426 = vadd.f32 %v6336, %v563
        %v6427 = vadd.f32 %v5270, %v564
        %v6428 = vadd.f32 %v5804, %v565
        %v6429 = vadd.f32 %v6338, %v566
        %v6430 = vadd.f32 %v5273, %v567
        %v6431 = vadd.f32 %v5807, %v568
        %v6432 = vadd.f32 %v6341, %v569
        %v6433 = vadd.f32 %v5275, %v570
        %v6434 = vadd.f32 %v5809, %v571
        %v6435 = vadd.f32 %v6343, %v572
        %v6436 = vadd.f32 %v5278, %v573
        %v6437 = vadd.f32 %v5812, %v574
        %v6438 = vadd.f32 %v6346, %v575
        %v6439 = vadd.f32 %v5280, %v576
        %v6440 = vadd.f32 %v5814, %v577
        %v6441 = vadd.f32 %v6348, %v578
        %v6442 = vadd.f32 %v5283, %v579
        %v6443 = vadd.f32 %v5817, %v580
        %v6444 = vadd.f32 %v6351, %v581
        %v6445 = vadd.f32 %v5285, %v582
        %v6446 = vadd.f32 %v5819, %v583
        %v6447 = vadd.f32 %v6353, %v584
        %v6448 = vadd.f32 %v5288, %v585
        %v6449 = vadd.f32 %v5822, %v586
        %v6450 = vadd.f32 %v6356, %v587
        %v6451 = vadd.f32 %v5290, %v588
        %v6452 = vadd.f32 %v5824, %v589
        %v6453 = vadd.f32 %v6358, %v590
        %v6454 = vadd.f32 %v5293, %v591
        %v6455 = vadd.f32 %v5827, %v592
        %v6456 = vadd.f32 %v6361, %v593
        %v6457 = vadd.f32 %v5295, %v594
        %v6458 = vadd.f32 %v5829, %v595
        %v6459 = vadd.f32 %v6363, %v596
        %v6460 = vadd.f32 %v5298, %v597
        %v6461 = vadd.f32 %v5832, %v598
        %v6462 = vadd.f32 %v6366, %v599
        %v6463 = vadd.f32 %v5300, %v600
        %v6464 = vadd.f32 %v5834, %v601
        %v6465 = vadd.f32 %v6368, %v602
        %v6562 = vrot.slane %v6370, 7
        %v6563 = vrot.slane %v6371, 7
        %v6564 = vrot.slane %v6372, 7
        %v6565 = vrot.slane %v6373, 7
        %v6566 = vsel %vm3756, %v6562, %v6565
        %v6567 = vrot.slane %v6374, 7
        %v6568 = vsel %vm3756, %v6563, %v6567
        %v6569 = vrot.slane %v6375, 7
        %v6570 = vsel %vm3756, %v6564, %v6569
        %v6571 = vrot.slane %v6376, 7
        %v6572 = vsel %vm3756, %v6565, %v6571
        %v6573 = vrot.slane %v6377, 7
        %v6574 = vsel %vm3756, %v6567, %v6573
        %v6575 = vrot.slane %v6378, 7
        %v6576 = vsel %vm3756, %v6569, %v6575
        %v6577 = vrot.slane %v6379, 7
        %v6578 = vsel %vm3756, %v6571, %v6577
        %v6579 = vrot.slane %v6380, 7
        %v6580 = vsel %vm3756, %v6573, %v6579
        %v6581 = vrot.slane %v6381, 7
        %v6582 = vsel %vm3756, %v6575, %v6581
        %v6583 = vrot.slane %v6382, 7
        %v6584 = vsel %vm3756, %v6577, %v6583
        %v6585 = vrot.slane %v6383, 7
        %v6586 = vsel %vm3756, %v6579, %v6585
        %v6587 = vrot.slane %v6384, 7
        %v6588 = vsel %vm3756, %v6581, %v6587
        %v6589 = vrot.slane %v6385, 7
        %v6590 = vsel %vm3756, %v6583, %v6589
        %v6591 = vrot.slane %v6386, 7
        %v6592 = vsel %vm3756, %v6585, %v6591
        %v6593 = vrot.slane %v6387, 7
        %v6594 = vsel %vm3756, %v6587, %v6593
        %v6595 = vrot.slane %v6388, 7
        %v6596 = vsel %vm3756, %v6589, %v6595
        %v6597 = vrot.slane %v6389, 7
        %v6598 = vsel %vm3756, %v6591, %v6597
        %v6599 = vrot.slane %v6390, 7
        %v6600 = vsel %vm3756, %v6593, %v6599
        %v6601 = vrot.slane %v6391, 7
        %v6602 = vsel %vm3756, %v6595, %v6601
        %v6603 = vrot.slane %v6392, 7
        %v6604 = vsel %vm3756, %v6597, %v6603
        %v6605 = vrot.slane %v6393, 7
        %v6606 = vsel %vm3756, %v6599, %v6605
        %v6607 = vrot.slane %v6394, 7
        %v6608 = vsel %vm3756, %v6601, %v6607
        %v6609 = vrot.slane %v6395, 7
        %v6610 = vsel %vm3756, %v6603, %v6609
        %v6611 = vrot.slane %v6396, 7
        %v6612 = vsel %vm3756, %v6605, %v6611
        %v6613 = vrot.slane %v6397, 7
        %v6614 = vsel %vm3756, %v6607, %v6613
        %v6615 = vrot.slane %v6398, 7
        %v6616 = vsel %vm3756, %v6609, %v6615
        %v6617 = vrot.slane %v6399, 7
        %v6618 = vsel %vm3756, %v6611, %v6617
        %v6619 = vrot.slane %v6400, 7
        %v6620 = vsel %vm3756, %v6613, %v6619
        %v6621 = vrot.slane %v6401, 7
        %v6622 = vsel %vm3756, %v6615, %v6621
        %v6623 = vrot.slane %v6402, 7
        %v6624 = vsel %vm3756, %v6617, %v6623
        %v6625 = vrot.slane %v6403, 7
        %v6626 = vsel %vm3756, %v6619, %v6625
        %v6627 = vrot.slane %v6404, 7
        %v6628 = vsel %vm3756, %v6621, %v6627
        %v6629 = vrot.slane %v6405, 7
        %v6630 = vsel %vm3756, %v6623, %v6629
        %v6631 = vrot.slane %v6406, 7
        %v6632 = vsel %vm3756, %v6625, %v6631
        %v6633 = vrot.slane %v6407, 7
        %v6634 = vsel %vm3756, %v6627, %v6633
        %v6635 = vrot.slane %v6408, 7
        %v6636 = vsel %vm3756, %v6629, %v6635
        %v6637 = vrot.slane %v6409, 7
        %v6638 = vsel %vm3756, %v6631, %v6637
        %v6639 = vrot.slane %v6410, 7
        %v6640 = vsel %vm3756, %v6633, %v6639
        %v6641 = vrot.slane %v6411, 7
        %v6642 = vsel %vm3756, %v6635, %v6641
        %v6643 = vrot.slane %v6412, 7
        %v6644 = vsel %vm3756, %v6637, %v6643
        %v6645 = vrot.slane %v6413, 7
        %v6646 = vsel %vm3756, %v6639, %v6645
        %v6647 = vrot.slane %v6414, 7
        %v6648 = vsel %vm3756, %v6641, %v6647
        %v6649 = vrot.slane %v6415, 7
        %v6650 = vsel %vm3756, %v6643, %v6649
        %v6651 = vrot.slane %v6416, 7
        %v6652 = vsel %vm3756, %v6645, %v6651
        %v6653 = vrot.slane %v6417, 7
        %v6654 = vsel %vm3756, %v6647, %v6653
        %v6655 = vrot.slane %v6418, 7
        %v6656 = vsel %vm3756, %v6649, %v6655
        %v6657 = vrot.slane %v6419, 7
        %v6658 = vsel %vm3756, %v6651, %v6657
        %v6659 = vrot.slane %v6420, 7
        %v6660 = vsel %vm3756, %v6653, %v6659
        %v6661 = vrot.slane %v6421, 7
        %v6662 = vsel %vm3756, %v6655, %v6661
        %v6663 = vrot.slane %v6422, 7
        %v6664 = vsel %vm3756, %v6657, %v6663
        %v6665 = vrot.slane %v6423, 7
        %v6666 = vsel %vm3756, %v6659, %v6665
        %v6667 = vrot.slane %v6424, 7
        %v6668 = vsel %vm3756, %v6661, %v6667
        %v6669 = vrot.slane %v6425, 7
        %v6670 = vsel %vm3756, %v6663, %v6669
        %v6671 = vrot.slane %v6426, 7
        %v6672 = vsel %vm3756, %v6665, %v6671
        %v6673 = vrot.slane %v6427, 7
        %v6674 = vsel %vm3756, %v6667, %v6673
        %v6675 = vrot.slane %v6428, 7
        %v6676 = vsel %vm3756, %v6669, %v6675
        %v6677 = vrot.slane %v6429, 7
        %v6678 = vsel %vm3756, %v6671, %v6677
        %v6679 = vrot.slane %v6430, 7
        %v6680 = vsel %vm3756, %v6673, %v6679
        %v6681 = vrot.slane %v6431, 7
        %v6682 = vsel %vm3756, %v6675, %v6681
        %v6683 = vrot.slane %v6432, 7
        %v6684 = vsel %vm3756, %v6677, %v6683
        %v6685 = vrot.slane %v6433, 7
        %v6686 = vsel %vm3756, %v6679, %v6685
        %v6687 = vrot.slane %v6434, 7
        %v6688 = vsel %vm3756, %v6681, %v6687
        %v6689 = vrot.slane %v6435, 7
        %v6690 = vsel %vm3756, %v6683, %v6689
        %v6691 = vrot.slane %v6436, 7
        %v6692 = vsel %vm3756, %v6685, %v6691
        %v6693 = vrot.slane %v6437, 7
        %v6694 = vsel %vm3756, %v6687, %v6693
        %v6695 = vrot.slane %v6438, 7
        %v6696 = vsel %vm3756, %v6689, %v6695
        %v6697 = vrot.slane %v6439, 7
        %v6698 = vsel %vm3756, %v6691, %v6697
        %v6699 = vrot.slane %v6440, 7
        %v6700 = vsel %vm3756, %v6693, %v6699
        %v6701 = vrot.slane %v6441, 7
        %v6702 = vsel %vm3756, %v6695, %v6701
        %v6703 = vrot.slane %v6442, 7
        %v6704 = vsel %vm3756, %v6697, %v6703
        %v6705 = vrot.slane %v6443, 7
        %v6706 = vsel %vm3756, %v6699, %v6705
        %v6707 = vrot.slane %v6444, 7
        %v6708 = vsel %vm3756, %v6701, %v6707
        %v6709 = vrot.slane %v6445, 7
        %v6710 = vsel %vm3756, %v6703, %v6709
        %v6711 = vrot.slane %v6446, 7
        %v6712 = vsel %vm3756, %v6705, %v6711
        %v6713 = vrot.slane %v6447, 7
        %v6714 = vsel %vm3756, %v6707, %v6713
        %v6715 = vrot.slane %v6448, 7
        %v6716 = vsel %vm3756, %v6709, %v6715
        %v6717 = vrot.slane %v6449, 7
        %v6718 = vsel %vm3756, %v6711, %v6717
        %v6719 = vrot.slane %v6450, 7
        %v6720 = vsel %vm3756, %v6713, %v6719
        %v6721 = vrot.slane %v6451, 7
        %v6722 = vsel %vm3756, %v6715, %v6721
        %v6723 = vrot.slane %v6452, 7
        %v6724 = vsel %vm3756, %v6717, %v6723
        %v6725 = vrot.slane %v6453, 7
        %v6726 = vsel %vm3756, %v6719, %v6725
        %v6727 = vrot.slane %v6454, 7
        %v6728 = vsel %vm3756, %v6721, %v6727
        %v6729 = vrot.slane %v6455, 7
        %v6730 = vsel %vm3756, %v6723, %v6729
        %v6731 = vrot.slane %v6456, 7
        %v6732 = vsel %vm3756, %v6725, %v6731
        %v6733 = vrot.slane %v6457, 7
        %v6734 = vsel %vm3756, %v6727, %v6733
        %v6735 = vrot.slane %v6458, 7
        %v6736 = vsel %vm3756, %v6729, %v6735
        %v6737 = vrot.slane %v6459, 7
        %v6738 = vsel %vm3756, %v6731, %v6737
        %v6739 = vrot.slane %v6460, 7
        %v6740 = vsel %vm3756, %v6733, %v6739
        %v6741 = vrot.slane %v6461, 7
        %v6742 = vsel %vm3756, %v6735, %v6741
        %v6743 = vrot.slane %v6462, 7
        %v6744 = vsel %vm3756, %v6737, %v6743
        %v6745 = vrot.slane %v6463, 7
        %v6746 = vsel %vm3756, %v6739, %v6745
        %v6747 = vrot.slane %v6464, 7
        %v6748 = vsel %vm3756, %v6741, %v6747
        %v6749 = vrot.slane %v6465, 7
        %v6750 = vsel %vm3756, %v6743, %v6749
        %v6850 = vsel %vm3756, %v3654, %v6562
        %v6851 = vsel %vm3756, %v3655, %v6563
        %v6852 = vsel %vm3756, %v3656, %v6564
        %v6853 = vpack.c.bf16 %v6851, %v6850
        %v6854 = vpack.c.bf16 %v6852, %v6852
        %v6855 = vpack.c.bf16 %v6568, %v6566
        %v6856 = vpack.c.bf16 %v6570, %v6570
        %v6857 = vpack.c.bf16 %v6574, %v6572
        %v6858 = vpack.c.bf16 %v6576, %v6576
        %v6859 = vpack.c.bf16 %v6580, %v6578
        %v6860 = vpack.c.bf16 %v6582, %v6582
        %v6861 = vpack.c.bf16 %v6586, %v6584
        %v6862 = vpack.c.bf16 %v6588, %v6588
        %v6863 = vpack.c.bf16 %v6592, %v6590
        %v6864 = vpack.c.bf16 %v6594, %v6594
        %v6865 = vpack.c.bf16 %v6598, %v6596
        %v6866 = vpack.c.bf16 %v6600, %v6600
        %v6867 = vpack.c.bf16 %v6604, %v6602
        %v6868 = vpack.c.bf16 %v6606, %v6606
        %v6869 = vpack.c.bf16 %v6610, %v6608
        %v6870 = vpack.c.bf16 %v6612, %v6612
        %v6871 = vpack.c.bf16 %v6616, %v6614
        %v6872 = vpack.c.bf16 %v6618, %v6618
        %v6873 = vpack.c.bf16 %v6622, %v6620
        %v6874 = vpack.c.bf16 %v6624, %v6624
        %v6875 = vpack.c.bf16 %v6628, %v6626
        %v6876 = vpack.c.bf16 %v6630, %v6630
        %v6877 = vpack.c.bf16 %v6634, %v6632
        %v6878 = vpack.c.bf16 %v6636, %v6636
        %v6879 = vpack.c.bf16 %v6640, %v6638
        %v6880 = vpack.c.bf16 %v6642, %v6642
        %v6881 = vpack.c.bf16 %v6646, %v6644
        %v6882 = vpack.c.bf16 %v6648, %v6648
        %v6883 = vpack.c.bf16 %v6652, %v6650
        %v6884 = vpack.c.bf16 %v6654, %v6654
        %v6885 = vpack.c.bf16 %v6658, %v6656
        %v6886 = vpack.c.bf16 %v6660, %v6660
        %v6887 = vpack.c.bf16 %v6664, %v6662
        %v6888 = vpack.c.bf16 %v6666, %v6666
        %v6889 = vpack.c.bf16 %v6670, %v6668
        %v6890 = vpack.c.bf16 %v6672, %v6672
        %v6891 = vpack.c.bf16 %v6676, %v6674
        %v6892 = vpack.c.bf16 %v6678, %v6678
        %v6893 = vpack.c.bf16 %v6682, %v6680
        %v6894 = vpack.c.bf16 %v6684, %v6684
        %v6895 = vpack.c.bf16 %v6688, %v6686
        %v6896 = vpack.c.bf16 %v6690, %v6690
        %v6897 = vpack.c.bf16 %v6694, %v6692
        %v6898 = vpack.c.bf16 %v6696, %v6696
        %v6899 = vpack.c.bf16 %v6700, %v6698
        %v6900 = vpack.c.bf16 %v6702, %v6702
        %v6901 = vpack.c.bf16 %v6706, %v6704
        %v6902 = vpack.c.bf16 %v6708, %v6708
        %v6903 = vpack.c.bf16 %v6712, %v6710
        %v6904 = vpack.c.bf16 %v6714, %v6714
        %v6905 = vpack.c.bf16 %v6718, %v6716
        %v6906 = vpack.c.bf16 %v6720, %v6720
        %v6907 = vpack.c.bf16 %v6724, %v6722
        %v6908 = vpack.c.bf16 %v6726, %v6726
        %v6909 = vpack.c.bf16 %v6730, %v6728
        %v6910 = vpack.c.bf16 %v6732, %v6732
        %v6911 = vpack.c.bf16 %v6736, %v6734
        %v6912 = vpack.c.bf16 %v6738, %v6738
        %v6913 = vpack.c.bf16 %v6742, %v6740
        %v6914 = vpack.c.bf16 %v6744, %v6744
        %v6915 = vpack.c.bf16 %v6748, %v6746
        %v6916 = vpack.c.bf16 %v6750, %v6750
        %v6917 = vpack.c.bf16 %v6747, %v6745
        %v6918 = vpack.c.bf16 %v6749, %v6749
        %s6919 = scalar_lea.vmem %s312, 396
        %6920 = vst [vmem:[%s6919] sm:$0xff] %v6853
        %6921 = vst [vmem:[%s6919 + $0x8] sm:$0xf] %v6854
        %6922 = vst [vmem:[%s6919 + $0xc] sm:$0xff] %v6855
        %6923 = vst [vmem:[%s6919 + $0x14] sm:$0xf] %v6856
        %6924 = vst [vmem:[%s6919 + $0x18] sm:$0xff] %v6857
        %6925 = vst [vmem:[%s6919 + $0x20] sm:$0xf] %v6858
        %6926 = vst [vmem:[%s6919 + $0x24] sm:$0xff] %v6859
        %6927 = vst [vmem:[%s6919 + $0x2c] sm:$0xf] %v6860
        %6928 = vst [vmem:[%s6919 + $0x30] sm:$0xff] %v6861
        %6929 = vst [vmem:[%s6919 + $0x38] sm:$0xf] %v6862
        %6930 = vst [vmem:[%s6919 + $0x3c] sm:$0xff] %v6863
        %6931 = vst [vmem:[%s6919 + $0x44] sm:$0xf] %v6864
        %6932 = vst [vmem:[%s6919 + $0x48] sm:$0xff] %v6865
        %6933 = vst [vmem:[%s6919 + $0x50] sm:$0xf] %v6866
        %6934 = vst [vmem:[%s6919 + $0x54] sm:$0xff] %v6867
        %6935 = vst [vmem:[%s6919 + $0x5c] sm:$0xf] %v6868
        %6936 = vst [vmem:[%s6919 + $0x60] sm:$0xff] %v6869
        %6937 = vst [vmem:[%s6919 + $0x68] sm:$0xf] %v6870
        %6938 = vst [vmem:[%s6919 + $0x6c] sm:$0xff] %v6871
        %6939 = vst [vmem:[%s6919 + $0x74] sm:$0xf] %v6872
        %6940 = vst [vmem:[%s6919 + $0x78] sm:$0xff] %v6873
        %6941 = vst [vmem:[%s6919 + $0x80] sm:$0xf] %v6874
        %6942 = vst [vmem:[%s6919 + $0x84] sm:$0xff] %v6875
        %6943 = vst [vmem:[%s6919 + $0x8c] sm:$0xf] %v6876
        %6944 = vst [vmem:[%s6919 + $0x90] sm:$0xff] %v6877
        %6945 = vst [vmem:[%s6919 + $0x98] sm:$0xf] %v6878
        %6946 = vst [vmem:[%s6919 + $0x9c] sm:$0xff] %v6879
        %6947 = vst [vmem:[%s6919 + $0xa4] sm:$0xf] %v6880
        %6948 = vst [vmem:[%s6919 + $0xa8] sm:$0xff] %v6881
        %6949 = vst [vmem:[%s6919 + $0xb0] sm:$0xf] %v6882
        %6950 = vst [vmem:[%s6919 + $0xb4] sm:$0xff] %v6883
        %6951 = vst [vmem:[%s6919 + $0xbc] sm:$0xf] %v6884
        %6952 = vst [vmem:[%s6919 + $0xc0] sm:$0xff] %v6885
        %6953 = vst [vmem:[%s6919 + $0xc8] sm:$0xf] %v6886
        %6954 = vst [vmem:[%s6919 + $0xcc] sm:$0xff] %v6887
        %6955 = vst [vmem:[%s6919 + $0xd4] sm:$0xf] %v6888
        %6956 = vst [vmem:[%s6919 + $0xd8] sm:$0xff] %v6889
        %6957 = vst [vmem:[%s6919 + $0xe0] sm:$0xf] %v6890
        %6958 = vst [vmem:[%s6919 + $0xe4] sm:$0xff] %v6891
        %6959 = vst [vmem:[%s6919 + $0xec] sm:$0xf] %v6892
        %6960 = vst [vmem:[%s6919 + $0xf0] sm:$0xff] %v6893
        %6961 = vst [vmem:[%s6919 + $0xf8] sm:$0xf] %v6894
        %6962 = vst [vmem:[%s6919 + $0xfc] sm:$0xff] %v6895
        %6963 = vst [vmem:[%s6919 + $0x104] sm:$0xf] %v6896
        %6964 = vst [vmem:[%s6919 + $0x108] sm:$0xff] %v6897
        %6965 = vst [vmem:[%s6919 + $0x110] sm:$0xf] %v6898
        %6966 = vst [vmem:[%s6919 + $0x114] sm:$0xff] %v6899
        %6967 = vst [vmem:[%s6919 + $0x11c] sm:$0xf] %v6900
        %6968 = vst [vmem:[%s6919 + $0x120] sm:$0xff] %v6901
        %6969 = vst [vmem:[%s6919 + $0x128] sm:$0xf] %v6902
        %6970 = vst [vmem:[%s6919 + $0x12c] sm:$0xff] %v6903
        %6971 = vst [vmem:[%s6919 + $0x134] sm:$0xf] %v6904
        %6972 = vst [vmem:[%s6919 + $0x138] sm:$0xff] %v6905
        %6973 = vst [vmem:[%s6919 + $0x140] sm:$0xf] %v6906
        %6974 = vst [vmem:[%s6919 + $0x144] sm:$0xff] %v6907
        %6975 = vst [vmem:[%s6919 + $0x14c] sm:$0xf] %v6908
        %6976 = vst [vmem:[%s6919 + $0x150] sm:$0xff] %v6909
        %6977 = vst [vmem:[%s6919 + $0x158] sm:$0xf] %v6910
        %6978 = vst [vmem:[%s6919 + $0x15c] sm:$0xff] %v6911
        %6979 = vst [vmem:[%s6919 + $0x164] sm:$0xf] %v6912
        %6980 = vst [vmem:[%s6919 + $0x168] sm:$0xff] %v6913
        %6981 = vst [vmem:[%s6919 + $0x170] sm:$0xf] %v6914
        %6982 = vst [vmem:[%s6919 + $0x174] sm:$0xff] %v6915
        %6983 = vst [vmem:[%s6919 + $0x17c] sm:$0xf] %v6916
        %v6984 = vld [vmem:[%s6919 + $0x180] sm:$0x11]
        %v6985 = vsel %vm4184, %v6917, %v6984
        %6986 = vst [vmem:[%s6919 + $0x180] sm:$0x11] %v6985
        %v6987 = vld [vmem:[%s6919 + $0x188] sm:$0x1]
        %v6988 = vsel %vm4180, %v6918, %v6987
        %6989 = vst [vmem:[%s6919 + $0x188] sm:$0x1] %v6988
        %s6990 = scalar_lea.vmem %s257, 1536 [#allocation2]
        %v6991 = vld [vmem:[%s6990] sm:$0xff]
        %v6992 = vld [vmem:[%s6990 + $0x8] sm:$0xff]
        %v6993 = vld [vmem:[%s6990 + $0x10] sm:$0xff]
        %v6994 = vld [vmem:[%s6990 + $0x18] sm:$0xff]
        %v6995 = vld [vmem:[%s6990 + $0x20] sm:$0xff]
        %v6996 = vld [vmem:[%s6990 + $0x28] sm:$0xff]
        %v6997 = vld [vmem:[%s6990 + $0x30] sm:$0xff]
        %v6998 = vld [vmem:[%s6990 + $0x38] sm:$0xff]
        %v6999 = vld [vmem:[%s6990 + $0x40] sm:$0xff]
        %v7000 = vld [vmem:[%s6990 + $0x48] sm:$0xff]
        %v7001 = vld [vmem:[%s6990 + $0x50] sm:$0xff]
        %v7002 = vld [vmem:[%s6990 + $0x58] sm:$0xff]
        %v7003 = vld [vmem:[%s6990 + $0x60] sm:$0xff]
        %v7004 = vld [vmem:[%s6990 + $0x68] sm:$0xff]
        %v7005 = vld [vmem:[%s6990 + $0x70] sm:$0xff]
        %v7006 = vld [vmem:[%s6990 + $0x78] sm:$0xff]
        %v7007 = vld [vmem:[%s6990 + $0x80] sm:$0xff]
        %v7008 = vld [vmem:[%s6990 + $0x88] sm:$0xff]
        %v7009 = vld [vmem:[%s6990 + $0x90] sm:$0xff]
        %v7010 = vld [vmem:[%s6990 + $0x98] sm:$0xff]
        %v7011 = vld [vmem:[%s6990 + $0xa0] sm:$0xff]
        %v7012 = vld [vmem:[%s6990 + $0xa8] sm:$0xff]
        %v7013 = vld [vmem:[%s6990 + $0xb0] sm:$0xff]
        %v7014 = vld [vmem:[%s6990 + $0xb8] sm:$0xff]
        %v7015 = vld [vmem:[%s6990 + $0xc0] sm:$0xff]
        %v7016 = vld [vmem:[%s6990 + $0xc8] sm:$0xff]
        %v7017 = vld [vmem:[%s6990 + $0xd0] sm:$0xff]
        %v7018 = vld [vmem:[%s6990 + $0xd8] sm:$0xff]
        %v7019 = vld [vmem:[%s6990 + $0xe0] sm:$0xff]
        %v7020 = vld [vmem:[%s6990 + $0xe8] sm:$0xff]
        %v7021 = vld [vmem:[%s6990 + $0xf0] sm:$0xff]
        %v7022 = vld [vmem:[%s6990 + $0xf8] sm:$0xff]
        %v7023 = vld [vmem:[%s6990 + $0x100] sm:$0xff]
        %v7024 = vld [vmem:[%s6990 + $0x108] sm:$0xff]
        %v7025 = vld [vmem:[%s6990 + $0x110] sm:$0xff]
        %v7026 = vld [vmem:[%s6990 + $0x118] sm:$0xff]
        %v7027 = vld [vmem:[%s6990 + $0x120] sm:$0xff]
        %v7028 = vld [vmem:[%s6990 + $0x128] sm:$0xff]
        %v7029 = vld [vmem:[%s6990 + $0x130] sm:$0xff]
        %v7030 = vld [vmem:[%s6990 + $0x138] sm:$0xff]
        %v7031 = vld [vmem:[%s6990 + $0x140] sm:$0xff]
        %v7032 = vld [vmem:[%s6990 + $0x148] sm:$0xff]
        %v7033 = vld [vmem:[%s6990 + $0x150] sm:$0xff]
        %v7034 = vld [vmem:[%s6990 + $0x158] sm:$0xff]
        %v7035 = vld [vmem:[%s6990 + $0x160] sm:$0xff]
        %v7036 = vld [vmem:[%s6990 + $0x168] sm:$0xff]
        %v7037 = vld [vmem:[%s6990 + $0x170] sm:$0xff]
        %v7038 = vld [vmem:[%s6990 + $0x178] sm:$0xff]
        %v7039 = vld [vmem:[%s6990 + $0x180] sm:$0xff]
        %v7040 = vld [vmem:[%s6990 + $0x188] sm:$0xff]
        %v7041 = vld [vmem:[%s6990 + $0x190] sm:$0xff]
        %v7042 = vld [vmem:[%s6990 + $0x198] sm:$0xff]
        %v7043 = vld [vmem:[%s6990 + $0x1a0] sm:$0xff]
        %v7044 = vld [vmem:[%s6990 + $0x1a8] sm:$0xff]
        %v7045 = vld [vmem:[%s6990 + $0x1b0] sm:$0xff]
        %v7046 = vld [vmem:[%s6990 + $0x1b8] sm:$0xff]
        %v7047 = vld [vmem:[%s6990 + $0x1c0] sm:$0xff]
        %v7048 = vld [vmem:[%s6990 + $0x1c8] sm:$0xff]
        %v7049 = vld [vmem:[%s6990 + $0x1d0] sm:$0xff]
        %v7050 = vld [vmem:[%s6990 + $0x1d8] sm:$0xff]
        %v7051 = vld [vmem:[%s6990 + $0x1e0] sm:$0xff]
        %v7052 = vld [vmem:[%s6990 + $0x1e8] sm:$0xff]
        %v7053 = vld [vmem:[%s6990 + $0x1f0] sm:$0xff]
        %v7054 = vld [vmem:[%s6990 + $0x1f8] sm:$0xff]
        %v7055 = vld [vmem:[%s6990 + $0x200] sm:$0xff]
        %v7056 = vld [vmem:[%s6990 + $0x208] sm:$0xff]
        %v7057 = vld [vmem:[%s6990 + $0x210] sm:$0xff]
        %v7058 = vld [vmem:[%s6990 + $0x218] sm:$0xff]
        %v7059 = vld [vmem:[%s6990 + $0x220] sm:$0xff]
        %v7060 = vld [vmem:[%s6990 + $0x228] sm:$0xff]
        %v7061 = vld [vmem:[%s6990 + $0x230] sm:$0xff]
        %v7062 = vld [vmem:[%s6990 + $0x238] sm:$0xff]
        %v7063 = vld [vmem:[%s6990 + $0x240] sm:$0xff]
        %v7064 = vld [vmem:[%s6990 + $0x248] sm:$0xff]
        %v7065 = vld [vmem:[%s6990 + $0x250] sm:$0xff]
        %v7066 = vld [vmem:[%s6990 + $0x258] sm:$0xff]
        %v7067 = vld [vmem:[%s6990 + $0x260] sm:$0xff]
        %v7068 = vld [vmem:[%s6990 + $0x268] sm:$0xff]
        %v7069 = vld [vmem:[%s6990 + $0x270] sm:$0xff]
        %v7070 = vld [vmem:[%s6990 + $0x278] sm:$0xff]
        %v7071 = vld [vmem:[%s6990 + $0x280] sm:$0xff]
        %v7072 = vld [vmem:[%s6990 + $0x288] sm:$0xff]
        %v7073 = vld [vmem:[%s6990 + $0x290] sm:$0xff]
        %v7074 = vld [vmem:[%s6990 + $0x298] sm:$0xff]
        %v7075 = vld [vmem:[%s6990 + $0x2a0] sm:$0xff]
        %v7076 = vld [vmem:[%s6990 + $0x2a8] sm:$0xff]
        %v7077 = vld [vmem:[%s6990 + $0x2b0] sm:$0xff]
        %v7078 = vld [vmem:[%s6990 + $0x2b8] sm:$0xff]
        %v7079 = vld [vmem:[%s6990 + $0x2c0] sm:$0xff]
        %v7080 = vld [vmem:[%s6990 + $0x2c8] sm:$0xff]
        %v7081 = vld [vmem:[%s6990 + $0x2d0] sm:$0xff]
        %v7082 = vld [vmem:[%s6990 + $0x2d8] sm:$0xff]
        %v7083 = vld [vmem:[%s6990 + $0x2e0] sm:$0xff]
        %v7084 = vld [vmem:[%s6990 + $0x2e8] sm:$0xff]
        %v7085 = vld [vmem:[%s6990 + $0x2f0] sm:$0xff]
        %v7086 = vld [vmem:[%s6990 + $0x2f8] sm:$0xff]
        %v7183 = vunpack.c.l.b16 %v6991
        %v7184 = vunpack.c.h.b16 %v6991
        %v7185 = vunpack.c.l.b16 %v6992
        %v7186 = vunpack.c.h.b16 %v6992
        %v7187 = vunpack.c.l.b16 %v6993
        %v7188 = vunpack.c.h.b16 %v6993
        %v7189 = vunpack.c.l.b16 %v6994
        %v7190 = vunpack.c.h.b16 %v6994
        %v7191 = vunpack.c.l.b16 %v6995
        %v7192 = vunpack.c.h.b16 %v6995
        %v7193 = vunpack.c.l.b16 %v6996
        %v7194 = vunpack.c.h.b16 %v6996
        %v7195 = vunpack.c.l.b16 %v6997
        %v7196 = vunpack.c.h.b16 %v6997
        %v7197 = vunpack.c.l.b16 %v6998
        %v7198 = vunpack.c.h.b16 %v6998
        %v7199 = vunpack.c.l.b16 %v6999
        %v7200 = vunpack.c.h.b16 %v6999
        %v7201 = vunpack.c.l.b16 %v7000
        %v7202 = vunpack.c.h.b16 %v7000
        %v7203 = vunpack.c.l.b16 %v7001
        %v7204 = vunpack.c.h.b16 %v7001
        %v7205 = vunpack.c.l.b16 %v7002
        %v7206 = vunpack.c.h.b16 %v7002
        %v7207 = vunpack.c.l.b16 %v7003
        %v7208 = vunpack.c.h.b16 %v7003
        %v7209 = vunpack.c.l.b16 %v7004
        %v7210 = vunpack.c.h.b16 %v7004
        %v7211 = vunpack.c.l.b16 %v7005
        %v7212 = vunpack.c.h.b16 %v7005
        %v7213 = vunpack.c.l.b16 %v7006
        %v7214 = vunpack.c.h.b16 %v7006
        %v7215 = vunpack.c.l.b16 %v7007
        %v7216 = vunpack.c.h.b16 %v7007
        %v7217 = vunpack.c.l.b16 %v7008
        %v7218 = vunpack.c.h.b16 %v7008
        %v7219 = vunpack.c.l.b16 %v7009
        %v7220 = vunpack.c.h.b16 %v7009
        %v7221 = vunpack.c.l.b16 %v7010
        %v7222 = vunpack.c.h.b16 %v7010
        %v7223 = vunpack.c.l.b16 %v7011
        %v7224 = vunpack.c.h.b16 %v7011
        %v7225 = vunpack.c.l.b16 %v7012
        %v7226 = vunpack.c.h.b16 %v7012
        %v7227 = vunpack.c.l.b16 %v7013
        %v7228 = vunpack.c.h.b16 %v7013
        %v7229 = vunpack.c.l.b16 %v7014
        %v7230 = vunpack.c.h.b16 %v7014
        %v7231 = vunpack.c.l.b16 %v7015
        %v7232 = vunpack.c.h.b16 %v7015
        %v7233 = vunpack.c.l.b16 %v7016
        %v7234 = vunpack.c.h.b16 %v7016
        %v7235 = vunpack.c.l.b16 %v7017
        %v7236 = vunpack.c.h.b16 %v7017
        %v7237 = vunpack.c.l.b16 %v7018
        %v7238 = vunpack.c.h.b16 %v7018
        %v7239 = vunpack.c.l.b16 %v7019
        %v7240 = vunpack.c.h.b16 %v7019
        %v7241 = vunpack.c.l.b16 %v7020
        %v7242 = vunpack.c.h.b16 %v7020
        %v7243 = vunpack.c.l.b16 %v7021
        %v7244 = vunpack.c.h.b16 %v7021
        %v7245 = vunpack.c.l.b16 %v7022
        %v7246 = vunpack.c.h.b16 %v7022
        %v7247 = vunpack.c.l.b16 %v7023
        %v7248 = vunpack.c.h.b16 %v7023
        %v7249 = vunpack.c.l.b16 %v7024
        %v7250 = vunpack.c.h.b16 %v7024
        %v7251 = vunpack.c.l.b16 %v7025
        %v7252 = vunpack.c.h.b16 %v7025
        %v7253 = vunpack.c.l.b16 %v7026
        %v7254 = vunpack.c.h.b16 %v7026
        %v7255 = vunpack.c.l.b16 %v7027
        %v7256 = vunpack.c.h.b16 %v7027
        %v7257 = vunpack.c.l.b16 %v7028
        %v7258 = vunpack.c.h.b16 %v7028
        %v7259 = vunpack.c.l.b16 %v7029
        %v7260 = vunpack.c.h.b16 %v7029
        %v7261 = vunpack.c.l.b16 %v7030
        %v7262 = vunpack.c.h.b16 %v7030
        %v7263 = vunpack.c.l.b16 %v7031
        %v7264 = vunpack.c.h.b16 %v7031
        %v7265 = vunpack.c.l.b16 %v7032
        %v7266 = vunpack.c.h.b16 %v7032
        %v7267 = vunpack.c.l.b16 %v7033
        %v7268 = vunpack.c.h.b16 %v7033
        %v7269 = vunpack.c.l.b16 %v7034
        %v7270 = vunpack.c.h.b16 %v7034
        %v7271 = vunpack.c.l.b16 %v7035
        %v7272 = vunpack.c.h.b16 %v7035
        %v7273 = vunpack.c.l.b16 %v7036
        %v7274 = vunpack.c.h.b16 %v7036
        %v7275 = vunpack.c.l.b16 %v7037
        %v7276 = vunpack.c.h.b16 %v7037
        %v7277 = vunpack.c.l.b16 %v7038
        %v7278 = vunpack.c.h.b16 %v7038
        %v7279 = vunpack.c.l.b16 %v7039
        %v7280 = vunpack.c.h.b16 %v7039
        %v7281 = vunpack.c.l.b16 %v7040
        %v7282 = vunpack.c.h.b16 %v7040
        %v7283 = vunpack.c.l.b16 %v7041
        %v7284 = vunpack.c.h.b16 %v7041
        %v7285 = vunpack.c.l.b16 %v7042
        %v7286 = vunpack.c.h.b16 %v7042
        %v7287 = vunpack.c.l.b16 %v7043
        %v7288 = vunpack.c.h.b16 %v7043
        %v7289 = vunpack.c.l.b16 %v7044
        %v7290 = vunpack.c.h.b16 %v7044
        %v7291 = vunpack.c.l.b16 %v7045
        %v7292 = vunpack.c.h.b16 %v7045
        %v7293 = vunpack.c.l.b16 %v7046
        %v7294 = vunpack.c.h.b16 %v7046
        %v7295 = vunpack.c.l.b16 %v7047
        %v7296 = vunpack.c.h.b16 %v7047
        %v7297 = vunpack.c.l.b16 %v7048
        %v7298 = vunpack.c.h.b16 %v7048
        %v7299 = vunpack.c.l.b16 %v7049
        %v7300 = vunpack.c.h.b16 %v7049
        %v7301 = vunpack.c.l.b16 %v7050
        %v7302 = vunpack.c.h.b16 %v7050
        %v7303 = vunpack.c.l.b16 %v7051
        %v7304 = vunpack.c.h.b16 %v7051
        %v7305 = vunpack.c.l.b16 %v7052
        %v7306 = vunpack.c.h.b16 %v7052
        %v7307 = vunpack.c.l.b16 %v7053
        %v7308 = vunpack.c.h.b16 %v7053
        %v7309 = vunpack.c.l.b16 %v7054
        %v7310 = vunpack.c.h.b16 %v7054
        %v7311 = vunpack.c.l.b16 %v7055
        %v7312 = vunpack.c.h.b16 %v7055
        %v7313 = vunpack.c.l.b16 %v7056
        %v7314 = vunpack.c.h.b16 %v7056
        %v7315 = vunpack.c.l.b16 %v7057
        %v7316 = vunpack.c.h.b16 %v7057
        %v7317 = vunpack.c.l.b16 %v7058
        %v7318 = vunpack.c.h.b16 %v7058
        %v7319 = vunpack.c.l.b16 %v7059
        %v7320 = vunpack.c.h.b16 %v7059
        %v7321 = vunpack.c.l.b16 %v7060
        %v7322 = vunpack.c.h.b16 %v7060
        %v7323 = vunpack.c.l.b16 %v7061
        %v7324 = vunpack.c.h.b16 %v7061
        %v7325 = vunpack.c.l.b16 %v7062
        %v7326 = vunpack.c.h.b16 %v7062
        %v7327 = vunpack.c.l.b16 %v7063
        %v7328 = vunpack.c.h.b16 %v7063
        %v7329 = vunpack.c.l.b16 %v7064
        %v7330 = vunpack.c.h.b16 %v7064
        %v7331 = vunpack.c.l.b16 %v7065
        %v7332 = vunpack.c.h.b16 %v7065
        %v7333 = vunpack.c.l.b16 %v7066
        %v7334 = vunpack.c.h.b16 %v7066
        %v7335 = vunpack.c.l.b16 %v7067
        %v7336 = vunpack.c.h.b16 %v7067
        %v7337 = vunpack.c.l.b16 %v7068
        %v7338 = vunpack.c.h.b16 %v7068
        %v7339 = vunpack.c.l.b16 %v7069
        %v7340 = vunpack.c.h.b16 %v7069
        %v7341 = vunpack.c.l.b16 %v7070
        %v7342 = vunpack.c.h.b16 %v7070
        %v7343 = vunpack.c.l.b16 %v7071
        %v7344 = vunpack.c.h.b16 %v7071
        %v7345 = vunpack.c.l.b16 %v7072
        %v7346 = vunpack.c.h.b16 %v7072
        %v7347 = vunpack.c.l.b16 %v7073
        %v7348 = vunpack.c.h.b16 %v7073
        %v7349 = vunpack.c.l.b16 %v7074
        %v7350 = vunpack.c.h.b16 %v7074
        %v7351 = vunpack.c.l.b16 %v7075
        %v7352 = vunpack.c.h.b16 %v7075
        %v7353 = vunpack.c.l.b16 %v7076
        %v7354 = vunpack.c.h.b16 %v7076
        %v7355 = vunpack.c.l.b16 %v7077
        %v7356 = vunpack.c.h.b16 %v7077
        %v7357 = vunpack.c.l.b16 %v7078
        %v7358 = vunpack.c.h.b16 %v7078
        %v7359 = vunpack.c.l.b16 %v7079
        %v7360 = vunpack.c.h.b16 %v7079
        %v7361 = vunpack.c.l.b16 %v7080
        %v7362 = vunpack.c.h.b16 %v7080
        %v7363 = vunpack.c.l.b16 %v7081
        %v7364 = vunpack.c.h.b16 %v7081
        %v7365 = vunpack.c.l.b16 %v7082
        %v7366 = vunpack.c.h.b16 %v7082
        %v7367 = vunpack.c.l.b16 %v7083
        %v7368 = vunpack.c.h.b16 %v7083
        %v7369 = vunpack.c.l.b16 %v7084
        %v7370 = vunpack.c.h.b16 %v7084
        %v7371 = vunpack.c.l.b16 %v7085
        %v7372 = vunpack.c.h.b16 %v7085
        %v7373 = vunpack.c.l.b16 %v7086
        %v7374 = vunpack.c.h.b16 %v7086
        %v7375 = vpack.c.b16 %v7189, %v7183
        %v7376 = vpack.c.b16 %v7190, %v7184
        %v7377 = vpack.c.b16 %v7191, %v7185
        %v7378 = vpack.c.b16 %v7192, %v7186
        %v7379 = vpack.c.b16 %v7193, %v7187
        %v7380 = vpack.c.b16 %v7194, %v7188
        %v7381 = vpack.c.b16 %v7201, %v7195
        %v7382 = vpack.c.b16 %v7202, %v7196
        %v7383 = vpack.c.b16 %v7203, %v7197
        %v7384 = vpack.c.b16 %v7204, %v7198
        %v7385 = vpack.c.b16 %v7205, %v7199
        %v7386 = vpack.c.b16 %v7206, %v7200
        %v7387 = vpack.c.b16 %v7213, %v7207
        %v7388 = vpack.c.b16 %v7214, %v7208
        %v7389 = vpack.c.b16 %v7215, %v7209
        %v7390 = vpack.c.b16 %v7216, %v7210
        %v7391 = vpack.c.b16 %v7217, %v7211
        %v7392 = vpack.c.b16 %v7218, %v7212
        %v7393 = vpack.c.b16 %v7225, %v7219
        %v7394 = vpack.c.b16 %v7226, %v7220
        %v7395 = vpack.c.b16 %v7227, %v7221
        %v7396 = vpack.c.b16 %v7228, %v7222
        %v7397 = vpack.c.b16 %v7229, %v7223
        %v7398 = vpack.c.b16 %v7230, %v7224
        %v7399 = vpack.c.b16 %v7237, %v7231
        %v7400 = vpack.c.b16 %v7238, %v7232
        %v7401 = vpack.c.b16 %v7239, %v7233
        %v7402 = vpack.c.b16 %v7240, %v7234
        %v7403 = vpack.c.b16 %v7241, %v7235
        %v7404 = vpack.c.b16 %v7242, %v7236
        %v7405 = vpack.c.b16 %v7249, %v7243
        %v7406 = vpack.c.b16 %v7250, %v7244
        %v7407 = vpack.c.b16 %v7251, %v7245
        %v7408 = vpack.c.b16 %v7252, %v7246
        %v7409 = vpack.c.b16 %v7253, %v7247
        %v7410 = vpack.c.b16 %v7254, %v7248
        %v7411 = vpack.c.b16 %v7261, %v7255
        %v7412 = vpack.c.b16 %v7262, %v7256
        %v7413 = vpack.c.b16 %v7263, %v7257
        %v7414 = vpack.c.b16 %v7264, %v7258
        %v7415 = vpack.c.b16 %v7265, %v7259
        %v7416 = vpack.c.b16 %v7266, %v7260
        %v7417 = vpack.c.b16 %v7273, %v7267
        %v7418 = vpack.c.b16 %v7274, %v7268
        %v7419 = vpack.c.b16 %v7275, %v7269
        %v7420 = vpack.c.b16 %v7276, %v7270
        %v7421 = vpack.c.b16 %v7277, %v7271
        %v7422 = vpack.c.b16 %v7278, %v7272
        %v7423 = vpack.c.b16 %v7285, %v7279
        %v7424 = vpack.c.b16 %v7286, %v7280
        %v7425 = vpack.c.b16 %v7287, %v7281
        %v7426 = vpack.c.b16 %v7288, %v7282
        %v7427 = vpack.c.b16 %v7289, %v7283
        %v7428 = vpack.c.b16 %v7290, %v7284
        %v7429 = vpack.c.b16 %v7297, %v7291
        %v7430 = vpack.c.b16 %v7298, %v7292
        %v7431 = vpack.c.b16 %v7299, %v7293
        %v7432 = vpack.c.b16 %v7300, %v7294
        %v7433 = vpack.c.b16 %v7301, %v7295
        %v7434 = vpack.c.b16 %v7302, %v7296
        %v7435 = vpack.c.b16 %v7309, %v7303
        %v7436 = vpack.c.b16 %v7310, %v7304
        %v7437 = vpack.c.b16 %v7311, %v7305
        %v7438 = vpack.c.b16 %v7312, %v7306
        %v7439 = vpack.c.b16 %v7313, %v7307
        %v7440 = vpack.c.b16 %v7314, %v7308
        %v7441 = vpack.c.b16 %v7321, %v7315
        %v7442 = vpack.c.b16 %v7322, %v7316
        %v7443 = vpack.c.b16 %v7323, %v7317
        %v7444 = vpack.c.b16 %v7324, %v7318
        %v7445 = vpack.c.b16 %v7325, %v7319
        %v7446 = vpack.c.b16 %v7326, %v7320
        %v7447 = vpack.c.b16 %v7333, %v7327
        %v7448 = vpack.c.b16 %v7334, %v7328
        %v7449 = vpack.c.b16 %v7335, %v7329
        %v7450 = vpack.c.b16 %v7336, %v7330
        %v7451 = vpack.c.b16 %v7337, %v7331
        %v7452 = vpack.c.b16 %v7338, %v7332
        %v7453 = vpack.c.b16 %v7345, %v7339
        %v7454 = vpack.c.b16 %v7346, %v7340
        %v7455 = vpack.c.b16 %v7347, %v7341
        %v7456 = vpack.c.b16 %v7348, %v7342
        %v7457 = vpack.c.b16 %v7349, %v7343
        %v7458 = vpack.c.b16 %v7350, %v7344
        %v7459 = vpack.c.b16 %v7357, %v7351
        %v7460 = vpack.c.b16 %v7358, %v7352
        %v7461 = vpack.c.b16 %v7359, %v7353
        %v7462 = vpack.c.b16 %v7360, %v7354
        %v7463 = vpack.c.b16 %v7361, %v7355
        %v7464 = vpack.c.b16 %v7362, %v7356
        %v7465 = vpack.c.b16 %v7369, %v7363
        %v7466 = vpack.c.b16 %v7370, %v7364
        %v7467 = vpack.c.b16 %v7371, %v7365
        %v7468 = vpack.c.b16 %v7372, %v7366
        %v7469 = vpack.c.b16 %v7373, %v7367
        %v7470 = vpack.c.b16 %v7374, %v7368
        %7567 = vmatpush.bf16.msra.mxu0 %v1688
        %7568 = vmatpush.bf16.msra.mxu0 %v1685
        %7569 = vmatpush.bf16.msra.mxu0 %v1682
        %7570 = vmatpush.bf16.msra.mxu0 %v1679
        %7571 = vmatpush.bf16.msra.mxu0 %v1676
        %7572 = vmatpush.bf16.msra.mxu0 %v1673
        %7573 = vmatpush.bf16.msra.mxu0 %v1670
        %7574 = vmatpush.bf16.msra.mxu0 %v1667
        %7575 = vmatmul.bf16.gmra.mxu0 %v7375
        %v7576 = vpop.f32.mrf.mxu0
        %v7577 = vadd.f32 %v701, %v7576
        %v7578 = vpop.f32.mrf.mxu0
        %v7579 = vadd.f32 %v701, %v7578
        %7580 = vmatmul.bf16.gmra.mxu0 %v7381
        %v7581 = vpop.f32.mrf.mxu0
        %v7582 = vadd.f32 %v701, %v7581
        %v7583 = vpop.f32.mrf.mxu0
        %v7584 = vadd.f32 %v701, %v7583
        %7585 = vmatmul.bf16.gmra.mxu0 %v7387
        %v7586 = vpop.f32.mrf.mxu0
        %v7587 = vadd.f32 %v701, %v7586
        %v7588 = vpop.f32.mrf.mxu0
        %v7589 = vadd.f32 %v701, %v7588
        %7590 = vmatmul.bf16.gmra.mxu0 %v7393
        %v7591 = vpop.f32.mrf.mxu0
        %v7592 = vadd.f32 %v701, %v7591
        %v7593 = vpop.f32.mrf.mxu0
        %v7594 = vadd.f32 %v701, %v7593
        %7595 = vmatmul.bf16.gmra.mxu0 %v7399
        %v7596 = vpop.f32.mrf.mxu0
        %v7597 = vadd.f32 %v701, %v7596
        %v7598 = vpop.f32.mrf.mxu0
        %v7599 = vadd.f32 %v701, %v7598
        %7600 = vmatmul.bf16.gmra.mxu0 %v7405
        %v7601 = vpop.f32.mrf.mxu0
        %v7602 = vadd.f32 %v701, %v7601
        %v7603 = vpop.f32.mrf.mxu0
        %v7604 = vadd.f32 %v701, %v7603
        %7605 = vmatmul.bf16.gmra.mxu0 %v7411
        %v7606 = vpop.f32.mrf.mxu0
        %v7607 = vadd.f32 %v701, %v7606
        %v7608 = vpop.f32.mrf.mxu0
        %v7609 = vadd.f32 %v701, %v7608
        %7610 = vmatmul.bf16.gmra.mxu0 %v7417
        %v7611 = vpop.f32.mrf.mxu0
        %v7612 = vadd.f32 %v701, %v7611
        %v7613 = vpop.f32.mrf.mxu0
        %v7614 = vadd.f32 %v701, %v7613
        %7615 = vmatmul.bf16.gmra.mxu0 %v7423
        %v7616 = vpop.f32.mrf.mxu0
        %v7617 = vadd.f32 %v701, %v7616
        %v7618 = vpop.f32.mrf.mxu0
        %v7619 = vadd.f32 %v701, %v7618
        %7620 = vmatmul.bf16.gmra.mxu0 %v7429
        %v7621 = vpop.f32.mrf.mxu0
        %v7622 = vadd.f32 %v701, %v7621
        %v7623 = vpop.f32.mrf.mxu0
        %v7624 = vadd.f32 %v701, %v7623
        %7625 = vmatmul.bf16.gmra.mxu0 %v7435
        %v7626 = vpop.f32.mrf.mxu0
        %v7627 = vadd.f32 %v701, %v7626
        %v7628 = vpop.f32.mrf.mxu0
        %v7629 = vadd.f32 %v701, %v7628
        %7630 = vmatmul.bf16.gmra.mxu0 %v7441
        %v7631 = vpop.f32.mrf.mxu0
        %v7632 = vadd.f32 %v701, %v7631
        %v7633 = vpop.f32.mrf.mxu0
        %v7634 = vadd.f32 %v701, %v7633
        %7635 = vmatmul.bf16.gmra.mxu0 %v7447
        %v7636 = vpop.f32.mrf.mxu0
        %v7637 = vadd.f32 %v701, %v7636
        %v7638 = vpop.f32.mrf.mxu0
        %v7639 = vadd.f32 %v701, %v7638
        %7640 = vmatmul.bf16.gmra.mxu0 %v7453
        %v7641 = vpop.f32.mrf.mxu0
        %v7642 = vadd.f32 %v701, %v7641
        %v7643 = vpop.f32.mrf.mxu0
        %v7644 = vadd.f32 %v701, %v7643
        %7645 = vmatmul.bf16.gmra.mxu0 %v7459
        %v7646 = vpop.f32.mrf.mxu0
        %v7647 = vadd.f32 %v701, %v7646
        %v7648 = vpop.f32.mrf.mxu0
        %v7649 = vadd.f32 %v701, %v7648
        %7650 = vmatmul.bf16.gmra.mxu0 %v7465
        %v7651 = vpop.f32.mrf.mxu0
        %v7652 = vadd.f32 %v701, %v7651
        %v7653 = vpop.f32.mrf.mxu0
        %v7654 = vadd.f32 %v701, %v7653
        %7655 = vdwg.mxu0
        %7656 = vmatpush.bf16.msra.mxu0 %v1712
        %7657 = vmatpush.bf16.msra.mxu0 %v1709
        %7658 = vmatpush.bf16.msra.mxu0 %v1706
        %7659 = vmatpush.bf16.msra.mxu0 %v1703
        %7660 = vmatpush.bf16.msra.mxu0 %v1700
        %7661 = vmatpush.bf16.msra.mxu0 %v1697
        %7662 = vmatpush.bf16.msra.mxu0 %v1694
        %7663 = vmatpush.bf16.msra.mxu0 %v1691
        %7664 = vmatmul.bf16.gmra.mxu0 %v7376
        %v7665 = vpop.f32.mrf.mxu0
        %v7666 = vadd.f32 %v7577, %v7665
        %v7667 = vpop.f32.mrf.mxu0
        %v7668 = vadd.f32 %v7579, %v7667
        %7669 = vmatmul.bf16.gmra.mxu0 %v7382
        %v7670 = vpop.f32.mrf.mxu0
        %v7671 = vadd.f32 %v7582, %v7670
        %v7672 = vpop.f32.mrf.mxu0
        %v7673 = vadd.f32 %v7584, %v7672
        %7674 = vmatmul.bf16.gmra.mxu0 %v7388
        %v7675 = vpop.f32.mrf.mxu0
        %v7676 = vadd.f32 %v7587, %v7675
        %v7677 = vpop.f32.mrf.mxu0
        %v7678 = vadd.f32 %v7589, %v7677
        %7679 = vmatmul.bf16.gmra.mxu0 %v7394
        %v7680 = vpop.f32.mrf.mxu0
        %v7681 = vadd.f32 %v7592, %v7680
        %v7682 = vpop.f32.mrf.mxu0
        %v7683 = vadd.f32 %v7594, %v7682
        %7684 = vmatmul.bf16.gmra.mxu0 %v7400
        %v7685 = vpop.f32.mrf.mxu0
        %v7686 = vadd.f32 %v7597, %v7685
        %v7687 = vpop.f32.mrf.mxu0
        %v7688 = vadd.f32 %v7599, %v7687
        %7689 = vmatmul.bf16.gmra.mxu0 %v7406
        %v7690 = vpop.f32.mrf.mxu0
        %v7691 = vadd.f32 %v7602, %v7690
        %v7692 = vpop.f32.mrf.mxu0
        %v7693 = vadd.f32 %v7604, %v7692
        %7694 = vmatmul.bf16.gmra.mxu0 %v7412
        %v7695 = vpop.f32.mrf.mxu0
        %v7696 = vadd.f32 %v7607, %v7695
        %v7697 = vpop.f32.mrf.mxu0
        %v7698 = vadd.f32 %v7609, %v7697
        %7699 = vmatmul.bf16.gmra.mxu0 %v7418
        %v7700 = vpop.f32.mrf.mxu0
        %v7701 = vadd.f32 %v7612, %v7700
        %v7702 = vpop.f32.mrf.mxu0
        %v7703 = vadd.f32 %v7614, %v7702
        %7704 = vmatmul.bf16.gmra.mxu0 %v7424
        %v7705 = vpop.f32.mrf.mxu0
        %v7706 = vadd.f32 %v7617, %v7705
        %v7707 = vpop.f32.mrf.mxu0
        %v7708 = vadd.f32 %v7619, %v7707
        %7709 = vmatmul.bf16.gmra.mxu0 %v7430
        %v7710 = vpop.f32.mrf.mxu0
        %v7711 = vadd.f32 %v7622, %v7710
        %v7712 = vpop.f32.mrf.mxu0
        %v7713 = vadd.f32 %v7624, %v7712
        %7714 = vmatmul.bf16.gmra.mxu0 %v7436
        %v7715 = vpop.f32.mrf.mxu0
        %v7716 = vadd.f32 %v7627, %v7715
        %v7717 = vpop.f32.mrf.mxu0
        %v7718 = vadd.f32 %v7629, %v7717
        %7719 = vmatmul.bf16.gmra.mxu0 %v7442
        %v7720 = vpop.f32.mrf.mxu0
        %v7721 = vadd.f32 %v7632, %v7720
        %v7722 = vpop.f32.mrf.mxu0
        %v7723 = vadd.f32 %v7634, %v7722
        %7724 = vmatmul.bf16.gmra.mxu0 %v7448
        %v7725 = vpop.f32.mrf.mxu0
        %v7726 = vadd.f32 %v7637, %v7725
        %v7727 = vpop.f32.mrf.mxu0
        %v7728 = vadd.f32 %v7639, %v7727
        %7729 = vmatmul.bf16.gmra.mxu0 %v7454
        %v7730 = vpop.f32.mrf.mxu0
        %v7731 = vadd.f32 %v7642, %v7730
        %v7732 = vpop.f32.mrf.mxu0
        %v7733 = vadd.f32 %v7644, %v7732
        %7734 = vmatmul.bf16.gmra.mxu0 %v7460
        %v7735 = vpop.f32.mrf.mxu0
        %v7736 = vadd.f32 %v7647, %v7735
        %v7737 = vpop.f32.mrf.mxu0
        %v7738 = vadd.f32 %v7649, %v7737
        %7739 = vmatmul.bf16.gmra.mxu0 %v7466
        %v7740 = vpop.f32.mrf.mxu0
        %v7741 = vadd.f32 %v7652, %v7740
        %v7742 = vpop.f32.mrf.mxu0
        %v7743 = vadd.f32 %v7654, %v7742
        %7744 = vdwg.mxu0
        %7745 = vmatpush.bf16.msra.mxu0 %v1736
        %7746 = vmatpush.bf16.msra.mxu0 %v1733
        %7747 = vmatpush.bf16.msra.mxu0 %v1730
        %7748 = vmatpush.bf16.msra.mxu0 %v1727
        %7749 = vmatpush.bf16.msra.mxu0 %v1724
        %7750 = vmatpush.bf16.msra.mxu0 %v1721
        %7751 = vmatpush.bf16.msra.mxu0 %v1718
        %7752 = vmatpush.bf16.msra.mxu0 %v1715
        %7753 = vmatmul.bf16.gmra.mxu0 %v7377
        %v7754 = vpop.f32.mrf.mxu0
        %v7755 = vadd.f32 %v7666, %v7754
        %v7756 = vpop.f32.mrf.mxu0
        %v7757 = vadd.f32 %v7668, %v7756
        %7758 = vmatmul.bf16.gmra.mxu0 %v7383
        %v7759 = vpop.f32.mrf.mxu0
        %v7760 = vadd.f32 %v7671, %v7759
        %v7761 = vpop.f32.mrf.mxu0
        %v7762 = vadd.f32 %v7673, %v7761
        %7763 = vmatmul.bf16.gmra.mxu0 %v7389
        %v7764 = vpop.f32.mrf.mxu0
        %v7765 = vadd.f32 %v7676, %v7764
        %v7766 = vpop.f32.mrf.mxu0
        %v7767 = vadd.f32 %v7678, %v7766
        %7768 = vmatmul.bf16.gmra.mxu0 %v7395
        %v7769 = vpop.f32.mrf.mxu0
        %v7770 = vadd.f32 %v7681, %v7769
        %v7771 = vpop.f32.mrf.mxu0
        %v7772 = vadd.f32 %v7683, %v7771
        %7773 = vmatmul.bf16.gmra.mxu0 %v7401
        %v7774 = vpop.f32.mrf.mxu0
        %v7775 = vadd.f32 %v7686, %v7774
        %v7776 = vpop.f32.mrf.mxu0
        %v7777 = vadd.f32 %v7688, %v7776
        %7778 = vmatmul.bf16.gmra.mxu0 %v7407
        %v7779 = vpop.f32.mrf.mxu0
        %v7780 = vadd.f32 %v7691, %v7779
        %v7781 = vpop.f32.mrf.mxu0
        %v7782 = vadd.f32 %v7693, %v7781
        %7783 = vmatmul.bf16.gmra.mxu0 %v7413
        %v7784 = vpop.f32.mrf.mxu0
        %v7785 = vadd.f32 %v7696, %v7784
        %v7786 = vpop.f32.mrf.mxu0
        %v7787 = vadd.f32 %v7698, %v7786
        %7788 = vmatmul.bf16.gmra.mxu0 %v7419
        %v7789 = vpop.f32.mrf.mxu0
        %v7790 = vadd.f32 %v7701, %v7789
        %v7791 = vpop.f32.mrf.mxu0
        %v7792 = vadd.f32 %v7703, %v7791
        %7793 = vmatmul.bf16.gmra.mxu0 %v7425
        %v7794 = vpop.f32.mrf.mxu0
        %v7795 = vadd.f32 %v7706, %v7794
        %v7796 = vpop.f32.mrf.mxu0
        %v7797 = vadd.f32 %v7708, %v7796
        %7798 = vmatmul.bf16.gmra.mxu0 %v7431
        %v7799 = vpop.f32.mrf.mxu0
        %v7800 = vadd.f32 %v7711, %v7799
        %v7801 = vpop.f32.mrf.mxu0
        %v7802 = vadd.f32 %v7713, %v7801
        %7803 = vmatmul.bf16.gmra.mxu0 %v7437
        %v7804 = vpop.f32.mrf.mxu0
        %v7805 = vadd.f32 %v7716, %v7804
        %v7806 = vpop.f32.mrf.mxu0
        %v7807 = vadd.f32 %v7718, %v7806
        %7808 = vmatmul.bf16.gmra.mxu0 %v7443
        %v7809 = vpop.f32.mrf.mxu0
        %v7810 = vadd.f32 %v7721, %v7809
        %v7811 = vpop.f32.mrf.mxu0
        %v7812 = vadd.f32 %v7723, %v7811
        %7813 = vmatmul.bf16.gmra.mxu0 %v7449
        %v7814 = vpop.f32.mrf.mxu0
        %v7815 = vadd.f32 %v7726, %v7814
        %v7816 = vpop.f32.mrf.mxu0
        %v7817 = vadd.f32 %v7728, %v7816
        %7818 = vmatmul.bf16.gmra.mxu0 %v7455
        %v7819 = vpop.f32.mrf.mxu0
        %v7820 = vadd.f32 %v7731, %v7819
        %v7821 = vpop.f32.mrf.mxu0
        %v7822 = vadd.f32 %v7733, %v7821
        %7823 = vmatmul.bf16.gmra.mxu0 %v7461
        %v7824 = vpop.f32.mrf.mxu0
        %v7825 = vadd.f32 %v7736, %v7824
        %v7826 = vpop.f32.mrf.mxu0
        %v7827 = vadd.f32 %v7738, %v7826
        %7828 = vmatmul.bf16.gmra.mxu0 %v7467
        %v7829 = vpop.f32.mrf.mxu0
        %v7830 = vadd.f32 %v7741, %v7829
        %v7831 = vpop.f32.mrf.mxu0
        %v7832 = vadd.f32 %v7743, %v7831
        %7833 = vdwg.mxu0
        %7834 = vmatpush.bf16.msra.mxu0 %v1760
        %7835 = vmatpush.bf16.msra.mxu0 %v1757
        %7836 = vmatpush.bf16.msra.mxu0 %v1754
        %7837 = vmatpush.bf16.msra.mxu0 %v1751
        %7838 = vmatpush.bf16.msra.mxu0 %v1748
        %7839 = vmatpush.bf16.msra.mxu0 %v1745
        %7840 = vmatpush.bf16.msra.mxu0 %v1742
        %7841 = vmatpush.bf16.msra.mxu0 %v1739
        %7842 = vmatmul.bf16.gmra.mxu0 %v7378
        %v7843 = vpop.f32.mrf.mxu0
        %v7844 = vadd.f32 %v7755, %v7843
        %v7845 = vpop.f32.mrf.mxu0
        %v7846 = vadd.f32 %v7757, %v7845
        %7847 = vmatmul.bf16.gmra.mxu0 %v7384
        %v7848 = vpop.f32.mrf.mxu0
        %v7849 = vadd.f32 %v7760, %v7848
        %v7850 = vpop.f32.mrf.mxu0
        %v7851 = vadd.f32 %v7762, %v7850
        %7852 = vmatmul.bf16.gmra.mxu0 %v7390
        %v7853 = vpop.f32.mrf.mxu0
        %v7854 = vadd.f32 %v7765, %v7853
        %v7855 = vpop.f32.mrf.mxu0
        %v7856 = vadd.f32 %v7767, %v7855
        %7857 = vmatmul.bf16.gmra.mxu0 %v7396
        %v7858 = vpop.f32.mrf.mxu0
        %v7859 = vadd.f32 %v7770, %v7858
        %v7860 = vpop.f32.mrf.mxu0
        %v7861 = vadd.f32 %v7772, %v7860
        %7862 = vmatmul.bf16.gmra.mxu0 %v7402
        %v7863 = vpop.f32.mrf.mxu0
        %v7864 = vadd.f32 %v7775, %v7863
        %v7865 = vpop.f32.mrf.mxu0
        %v7866 = vadd.f32 %v7777, %v7865
        %7867 = vmatmul.bf16.gmra.mxu0 %v7408
        %v7868 = vpop.f32.mrf.mxu0
        %v7869 = vadd.f32 %v7780, %v7868
        %v7870 = vpop.f32.mrf.mxu0
        %v7871 = vadd.f32 %v7782, %v7870
        %7872 = vmatmul.bf16.gmra.mxu0 %v7414
        %v7873 = vpop.f32.mrf.mxu0
        %v7874 = vadd.f32 %v7785, %v7873
        %v7875 = vpop.f32.mrf.mxu0
        %v7876 = vadd.f32 %v7787, %v7875
        %7877 = vmatmul.bf16.gmra.mxu0 %v7420
        %v7878 = vpop.f32.mrf.mxu0
        %v7879 = vadd.f32 %v7790, %v7878
        %v7880 = vpop.f32.mrf.mxu0
        %v7881 = vadd.f32 %v7792, %v7880
        %7882 = vmatmul.bf16.gmra.mxu0 %v7426
        %v7883 = vpop.f32.mrf.mxu0
        %v7884 = vadd.f32 %v7795, %v7883
        %v7885 = vpop.f32.mrf.mxu0
        %v7886 = vadd.f32 %v7797, %v7885
        %7887 = vmatmul.bf16.gmra.mxu0 %v7432
        %v7888 = vpop.f32.mrf.mxu0
        %v7889 = vadd.f32 %v7800, %v7888
        %v7890 = vpop.f32.mrf.mxu0
        %v7891 = vadd.f32 %v7802, %v7890
        %7892 = vmatmul.bf16.gmra.mxu0 %v7438
        %v7893 = vpop.f32.mrf.mxu0
        %v7894 = vadd.f32 %v7805, %v7893
        %v7895 = vpop.f32.mrf.mxu0
        %v7896 = vadd.f32 %v7807, %v7895
        %7897 = vmatmul.bf16.gmra.mxu0 %v7444
        %v7898 = vpop.f32.mrf.mxu0
        %v7899 = vadd.f32 %v7810, %v7898
        %v7900 = vpop.f32.mrf.mxu0
        %v7901 = vadd.f32 %v7812, %v7900
        %7902 = vmatmul.bf16.gmra.mxu0 %v7450
        %v7903 = vpop.f32.mrf.mxu0
        %v7904 = vadd.f32 %v7815, %v7903
        %v7905 = vpop.f32.mrf.mxu0
        %v7906 = vadd.f32 %v7817, %v7905
        %7907 = vmatmul.bf16.gmra.mxu0 %v7456
        %v7908 = vpop.f32.mrf.mxu0
        %v7909 = vadd.f32 %v7820, %v7908
        %v7910 = vpop.f32.mrf.mxu0
        %v7911 = vadd.f32 %v7822, %v7910
        %7912 = vmatmul.bf16.gmra.mxu0 %v7462
        %v7913 = vpop.f32.mrf.mxu0
        %v7914 = vadd.f32 %v7825, %v7913
        %v7915 = vpop.f32.mrf.mxu0
        %v7916 = vadd.f32 %v7827, %v7915
        %7917 = vmatmul.bf16.gmra.mxu0 %v7468
        %v7918 = vpop.f32.mrf.mxu0
        %v7919 = vadd.f32 %v7830, %v7918
        %v7920 = vpop.f32.mrf.mxu0
        %v7921 = vadd.f32 %v7832, %v7920
        %7922 = vdwg.mxu0
        %7923 = vmatpush.bf16.msra.mxu0 %v1784
        %7924 = vmatpush.bf16.msra.mxu0 %v1781
        %7925 = vmatpush.bf16.msra.mxu0 %v1778
        %7926 = vmatpush.bf16.msra.mxu0 %v1775
        %7927 = vmatpush.bf16.msra.mxu0 %v1772
        %7928 = vmatpush.bf16.msra.mxu0 %v1769
        %7929 = vmatpush.bf16.msra.mxu0 %v1766
        %7930 = vmatpush.bf16.msra.mxu0 %v1763
        %7931 = vmatmul.bf16.gmra.mxu0 %v7379
        %v7932 = vpop.f32.mrf.mxu0
        %v7933 = vadd.f32 %v7844, %v7932
        %v7934 = vpop.f32.mrf.mxu0
        %v7935 = vadd.f32 %v7846, %v7934
        %7936 = vmatmul.bf16.gmra.mxu0 %v7385
        %v7937 = vpop.f32.mrf.mxu0
        %v7938 = vadd.f32 %v7849, %v7937
        %v7939 = vpop.f32.mrf.mxu0
        %v7940 = vadd.f32 %v7851, %v7939
        %7941 = vmatmul.bf16.gmra.mxu0 %v7391
        %v7942 = vpop.f32.mrf.mxu0
        %v7943 = vadd.f32 %v7854, %v7942
        %v7944 = vpop.f32.mrf.mxu0
        %v7945 = vadd.f32 %v7856, %v7944
        %7946 = vmatmul.bf16.gmra.mxu0 %v7397
        %v7947 = vpop.f32.mrf.mxu0
        %v7948 = vadd.f32 %v7859, %v7947
        %v7949 = vpop.f32.mrf.mxu0
        %v7950 = vadd.f32 %v7861, %v7949
        %7951 = vmatmul.bf16.gmra.mxu0 %v7403
        %v7952 = vpop.f32.mrf.mxu0
        %v7953 = vadd.f32 %v7864, %v7952
        %v7954 = vpop.f32.mrf.mxu0
        %v7955 = vadd.f32 %v7866, %v7954
        %7956 = vmatmul.bf16.gmra.mxu0 %v7409
        %v7957 = vpop.f32.mrf.mxu0
        %v7958 = vadd.f32 %v7869, %v7957
        %v7959 = vpop.f32.mrf.mxu0
        %v7960 = vadd.f32 %v7871, %v7959
        %7961 = vmatmul.bf16.gmra.mxu0 %v7415
        %v7962 = vpop.f32.mrf.mxu0
        %v7963 = vadd.f32 %v7874, %v7962
        %v7964 = vpop.f32.mrf.mxu0
        %v7965 = vadd.f32 %v7876, %v7964
        %7966 = vmatmul.bf16.gmra.mxu0 %v7421
        %v7967 = vpop.f32.mrf.mxu0
        %v7968 = vadd.f32 %v7879, %v7967
        %v7969 = vpop.f32.mrf.mxu0
        %v7970 = vadd.f32 %v7881, %v7969
        %7971 = vmatmul.bf16.gmra.mxu0 %v7427
        %v7972 = vpop.f32.mrf.mxu0
        %v7973 = vadd.f32 %v7884, %v7972
        %v7974 = vpop.f32.mrf.mxu0
        %v7975 = vadd.f32 %v7886, %v7974
        %7976 = vmatmul.bf16.gmra.mxu0 %v7433
        %v7977 = vpop.f32.mrf.mxu0
        %v7978 = vadd.f32 %v7889, %v7977
        %v7979 = vpop.f32.mrf.mxu0
        %v7980 = vadd.f32 %v7891, %v7979
        %7981 = vmatmul.bf16.gmra.mxu0 %v7439
        %v7982 = vpop.f32.mrf.mxu0
        %v7983 = vadd.f32 %v7894, %v7982
        %v7984 = vpop.f32.mrf.mxu0
        %v7985 = vadd.f32 %v7896, %v7984
        %7986 = vmatmul.bf16.gmra.mxu0 %v7445
        %v7987 = vpop.f32.mrf.mxu0
        %v7988 = vadd.f32 %v7899, %v7987
        %v7989 = vpop.f32.mrf.mxu0
        %v7990 = vadd.f32 %v7901, %v7989
        %7991 = vmatmul.bf16.gmra.mxu0 %v7451
        %v7992 = vpop.f32.mrf.mxu0
        %v7993 = vadd.f32 %v7904, %v7992
        %v7994 = vpop.f32.mrf.mxu0
        %v7995 = vadd.f32 %v7906, %v7994
        %7996 = vmatmul.bf16.gmra.mxu0 %v7457
        %v7997 = vpop.f32.mrf.mxu0
        %v7998 = vadd.f32 %v7909, %v7997
        %v7999 = vpop.f32.mrf.mxu0
        %v8000 = vadd.f32 %v7911, %v7999
        %8001 = vmatmul.bf16.gmra.mxu0 %v7463
        %v8002 = vpop.f32.mrf.mxu0
        %v8003 = vadd.f32 %v7914, %v8002
        %v8004 = vpop.f32.mrf.mxu0
        %v8005 = vadd.f32 %v7916, %v8004
        %8006 = vmatmul.bf16.gmra.mxu0 %v7469
        %v8007 = vpop.f32.mrf.mxu0
        %v8008 = vadd.f32 %v7919, %v8007
        %v8009 = vpop.f32.mrf.mxu0
        %v8010 = vadd.f32 %v7921, %v8009
        %8011 = vdwg.mxu0
        %8012 = vmatpush.bf16.msra.mxu0 %v1808
        %8013 = vmatpush.bf16.msra.mxu0 %v1805
        %8014 = vmatpush.bf16.msra.mxu0 %v1802
        %8015 = vmatpush.bf16.msra.mxu0 %v1799
        %8016 = vmatpush.bf16.msra.mxu0 %v1796
        %8017 = vmatpush.bf16.msra.mxu0 %v1793
        %8018 = vmatpush.bf16.msra.mxu0 %v1790
        %8019 = vmatpush.bf16.msra.mxu0 %v1787
        %8020 = vmatmul.bf16.gmra.mxu0 %v7380
        %v8021 = vpop.f32.mrf.mxu0
        %v8022 = vadd.f32 %v7933, %v8021
        %v8023 = vpop.f32.mrf.mxu0
        %v8024 = vadd.f32 %v7935, %v8023
        %8025 = vmatmul.bf16.gmra.mxu0 %v7386
        %v8026 = vpop.f32.mrf.mxu0
        %v8027 = vadd.f32 %v7938, %v8026
        %v8028 = vpop.f32.mrf.mxu0
        %v8029 = vadd.f32 %v7940, %v8028
        %8030 = vmatmul.bf16.gmra.mxu0 %v7392
        %v8031 = vpop.f32.mrf.mxu0
        %v8032 = vadd.f32 %v7943, %v8031
        %v8033 = vpop.f32.mrf.mxu0
        %v8034 = vadd.f32 %v7945, %v8033
        %8035 = vmatmul.bf16.gmra.mxu0 %v7398
        %v8036 = vpop.f32.mrf.mxu0
        %v8037 = vadd.f32 %v7948, %v8036
        %v8038 = vpop.f32.mrf.mxu0
        %v8039 = vadd.f32 %v7950, %v8038
        %8040 = vmatmul.bf16.gmra.mxu0 %v7404
        %v8041 = vpop.f32.mrf.mxu0
        %v8042 = vadd.f32 %v7953, %v8041
        %v8043 = vpop.f32.mrf.mxu0
        %v8044 = vadd.f32 %v7955, %v8043
        %8045 = vmatmul.bf16.gmra.mxu0 %v7410
        %v8046 = vpop.f32.mrf.mxu0
        %v8047 = vadd.f32 %v7958, %v8046
        %v8048 = vpop.f32.mrf.mxu0
        %v8049 = vadd.f32 %v7960, %v8048
        %8050 = vmatmul.bf16.gmra.mxu0 %v7416
        %v8051 = vpop.f32.mrf.mxu0
        %v8052 = vadd.f32 %v7963, %v8051
        %v8053 = vpop.f32.mrf.mxu0
        %v8054 = vadd.f32 %v7965, %v8053
        %8055 = vmatmul.bf16.gmra.mxu0 %v7422
        %v8056 = vpop.f32.mrf.mxu0
        %v8057 = vadd.f32 %v7968, %v8056
        %v8058 = vpop.f32.mrf.mxu0
        %v8059 = vadd.f32 %v7970, %v8058
        %8060 = vmatmul.bf16.gmra.mxu0 %v7428
        %v8061 = vpop.f32.mrf.mxu0
        %v8062 = vadd.f32 %v7973, %v8061
        %v8063 = vpop.f32.mrf.mxu0
        %v8064 = vadd.f32 %v7975, %v8063
        %8065 = vmatmul.bf16.gmra.mxu0 %v7434
        %v8066 = vpop.f32.mrf.mxu0
        %v8067 = vadd.f32 %v7978, %v8066
        %v8068 = vpop.f32.mrf.mxu0
        %v8069 = vadd.f32 %v7980, %v8068
        %8070 = vmatmul.bf16.gmra.mxu0 %v7440
        %v8071 = vpop.f32.mrf.mxu0
        %v8072 = vadd.f32 %v7983, %v8071
        %v8073 = vpop.f32.mrf.mxu0
        %v8074 = vadd.f32 %v7985, %v8073
        %8075 = vmatmul.bf16.gmra.mxu0 %v7446
        %v8076 = vpop.f32.mrf.mxu0
        %v8077 = vadd.f32 %v7988, %v8076
        %v8078 = vpop.f32.mrf.mxu0
        %v8079 = vadd.f32 %v7990, %v8078
        %8080 = vmatmul.bf16.gmra.mxu0 %v7452
        %v8081 = vpop.f32.mrf.mxu0
        %v8082 = vadd.f32 %v7993, %v8081
        %v8083 = vpop.f32.mrf.mxu0
        %v8084 = vadd.f32 %v7995, %v8083
        %8085 = vmatmul.bf16.gmra.mxu0 %v7458
        %v8086 = vpop.f32.mrf.mxu0
        %v8087 = vadd.f32 %v7998, %v8086
        %v8088 = vpop.f32.mrf.mxu0
        %v8089 = vadd.f32 %v8000, %v8088
        %8090 = vmatmul.bf16.gmra.mxu0 %v7464
        %v8091 = vpop.f32.mrf.mxu0
        %v8092 = vadd.f32 %v8003, %v8091
        %v8093 = vpop.f32.mrf.mxu0
        %v8094 = vadd.f32 %v8005, %v8093
        %8095 = vmatmul.bf16.gmra.mxu0 %v7470
        %v8096 = vpop.f32.mrf.mxu0
        %v8097 = vadd.f32 %v8008, %v8096
        %v8098 = vpop.f32.mrf.mxu0
        %v8099 = vadd.f32 %v8010, %v8098
        %8100 = vdwg.mxu0
        %8101 = vmatpush.bf16.msra.mxu0 %v1689
        %8102 = vmatpush.bf16.msra.mxu0 %v1686
        %8103 = vmatpush.bf16.msra.mxu0 %v1683
        %8104 = vmatpush.bf16.msra.mxu0 %v1680
        %8105 = vmatpush.bf16.msra.mxu0 %v1677
        %8106 = vmatpush.bf16.msra.mxu0 %v1674
        %8107 = vmatpush.bf16.msra.mxu0 %v1671
        %8108 = vmatpush.bf16.msra.mxu0 %v1668
        %8109 = vmatmul.bf16.gmra.mxu0 %v7375
        %v8110 = vpop.f32.mrf.mxu0
        %v8111 = vadd.f32 %v702, %v8110
        %v8112 = vpop.f32.mrf.mxu0
        %v8113 = vadd.f32 %v702, %v8112
        %8114 = vmatmul.bf16.gmra.mxu0 %v7381
        %v8115 = vpop.f32.mrf.mxu0
        %v8116 = vadd.f32 %v702, %v8115
        %v8117 = vpop.f32.mrf.mxu0
        %v8118 = vadd.f32 %v702, %v8117
        %8119 = vmatmul.bf16.gmra.mxu0 %v7387
        %v8120 = vpop.f32.mrf.mxu0
        %v8121 = vadd.f32 %v702, %v8120
        %v8122 = vpop.f32.mrf.mxu0
        %v8123 = vadd.f32 %v702, %v8122
        %8124 = vmatmul.bf16.gmra.mxu0 %v7393
        %v8125 = vpop.f32.mrf.mxu0
        %v8126 = vadd.f32 %v702, %v8125
        %v8127 = vpop.f32.mrf.mxu0
        %v8128 = vadd.f32 %v702, %v8127
        %8129 = vmatmul.bf16.gmra.mxu0 %v7399
        %v8130 = vpop.f32.mrf.mxu0
        %v8131 = vadd.f32 %v702, %v8130
        %v8132 = vpop.f32.mrf.mxu0
        %v8133 = vadd.f32 %v702, %v8132
        %8134 = vmatmul.bf16.gmra.mxu0 %v7405
        %v8135 = vpop.f32.mrf.mxu0
        %v8136 = vadd.f32 %v702, %v8135
        %v8137 = vpop.f32.mrf.mxu0
        %v8138 = vadd.f32 %v702, %v8137
        %8139 = vmatmul.bf16.gmra.mxu0 %v7411
        %v8140 = vpop.f32.mrf.mxu0
        %v8141 = vadd.f32 %v702, %v8140
        %v8142 = vpop.f32.mrf.mxu0
        %v8143 = vadd.f32 %v702, %v8142
        %8144 = vmatmul.bf16.gmra.mxu0 %v7417
        %v8145 = vpop.f32.mrf.mxu0
        %v8146 = vadd.f32 %v702, %v8145
        %v8147 = vpop.f32.mrf.mxu0
        %v8148 = vadd.f32 %v702, %v8147
        %8149 = vmatmul.bf16.gmra.mxu0 %v7423
        %v8150 = vpop.f32.mrf.mxu0
        %v8151 = vadd.f32 %v702, %v8150
        %v8152 = vpop.f32.mrf.mxu0
        %v8153 = vadd.f32 %v702, %v8152
        %8154 = vmatmul.bf16.gmra.mxu0 %v7429
        %v8155 = vpop.f32.mrf.mxu0
        %v8156 = vadd.f32 %v702, %v8155
        %v8157 = vpop.f32.mrf.mxu0
        %v8158 = vadd.f32 %v702, %v8157
        %8159 = vmatmul.bf16.gmra.mxu0 %v7435
        %v8160 = vpop.f32.mrf.mxu0
        %v8161 = vadd.f32 %v702, %v8160
        %v8162 = vpop.f32.mrf.mxu0
        %v8163 = vadd.f32 %v702, %v8162
        %8164 = vmatmul.bf16.gmra.mxu0 %v7441
        %v8165 = vpop.f32.mrf.mxu0
        %v8166 = vadd.f32 %v702, %v8165
        %v8167 = vpop.f32.mrf.mxu0
        %v8168 = vadd.f32 %v702, %v8167
        %8169 = vmatmul.bf16.gmra.mxu0 %v7447
        %v8170 = vpop.f32.mrf.mxu0
        %v8171 = vadd.f32 %v702, %v8170
        %v8172 = vpop.f32.mrf.mxu0
        %v8173 = vadd.f32 %v702, %v8172
        %8174 = vmatmul.bf16.gmra.mxu0 %v7453
        %v8175 = vpop.f32.mrf.mxu0
        %v8176 = vadd.f32 %v702, %v8175
        %v8177 = vpop.f32.mrf.mxu0
        %v8178 = vadd.f32 %v702, %v8177
        %8179 = vmatmul.bf16.gmra.mxu0 %v7459
        %v8180 = vpop.f32.mrf.mxu0
        %v8181 = vadd.f32 %v702, %v8180
        %v8182 = vpop.f32.mrf.mxu0
        %v8183 = vadd.f32 %v702, %v8182
        %8184 = vmatmul.bf16.gmra.mxu0 %v7465
        %v8185 = vpop.f32.mrf.mxu0
        %v8186 = vadd.f32 %v702, %v8185
        %v8187 = vpop.f32.mrf.mxu0
        %v8188 = vadd.f32 %v702, %v8187
        %8189 = vdwg.mxu0
        %8190 = vmatpush.bf16.msra.mxu0 %v1713
        %8191 = vmatpush.bf16.msra.mxu0 %v1710
        %8192 = vmatpush.bf16.msra.mxu0 %v1707
        %8193 = vmatpush.bf16.msra.mxu0 %v1704
        %8194 = vmatpush.bf16.msra.mxu0 %v1701
        %8195 = vmatpush.bf16.msra.mxu0 %v1698
        %8196 = vmatpush.bf16.msra.mxu0 %v1695
        %8197 = vmatpush.bf16.msra.mxu0 %v1692
        %8198 = vmatmul.bf16.gmra.mxu0 %v7376
        %v8199 = vpop.f32.mrf.mxu0
        %v8200 = vadd.f32 %v8111, %v8199
        %v8201 = vpop.f32.mrf.mxu0
        %v8202 = vadd.f32 %v8113, %v8201
        %8203 = vmatmul.bf16.gmra.mxu0 %v7382
        %v8204 = vpop.f32.mrf.mxu0
        %v8205 = vadd.f32 %v8116, %v8204
        %v8206 = vpop.f32.mrf.mxu0
        %v8207 = vadd.f32 %v8118, %v8206
        %8208 = vmatmul.bf16.gmra.mxu0 %v7388
        %v8209 = vpop.f32.mrf.mxu0
        %v8210 = vadd.f32 %v8121, %v8209
        %v8211 = vpop.f32.mrf.mxu0
        %v8212 = vadd.f32 %v8123, %v8211
        %8213 = vmatmul.bf16.gmra.mxu0 %v7394
        %v8214 = vpop.f32.mrf.mxu0
        %v8215 = vadd.f32 %v8126, %v8214
        %v8216 = vpop.f32.mrf.mxu0
        %v8217 = vadd.f32 %v8128, %v8216
        %8218 = vmatmul.bf16.gmra.mxu0 %v7400
        %v8219 = vpop.f32.mrf.mxu0
        %v8220 = vadd.f32 %v8131, %v8219
        %v8221 = vpop.f32.mrf.mxu0
        %v8222 = vadd.f32 %v8133, %v8221
        %8223 = vmatmul.bf16.gmra.mxu0 %v7406
        %v8224 = vpop.f32.mrf.mxu0
        %v8225 = vadd.f32 %v8136, %v8224
        %v8226 = vpop.f32.mrf.mxu0
        %v8227 = vadd.f32 %v8138, %v8226
        %8228 = vmatmul.bf16.gmra.mxu0 %v7412
        %v8229 = vpop.f32.mrf.mxu0
        %v8230 = vadd.f32 %v8141, %v8229
        %v8231 = vpop.f32.mrf.mxu0
        %v8232 = vadd.f32 %v8143, %v8231
        %8233 = vmatmul.bf16.gmra.mxu0 %v7418
        %v8234 = vpop.f32.mrf.mxu0
        %v8235 = vadd.f32 %v8146, %v8234
        %v8236 = vpop.f32.mrf.mxu0
        %v8237 = vadd.f32 %v8148, %v8236
        %8238 = vmatmul.bf16.gmra.mxu0 %v7424
        %v8239 = vpop.f32.mrf.mxu0
        %v8240 = vadd.f32 %v8151, %v8239
        %v8241 = vpop.f32.mrf.mxu0
        %v8242 = vadd.f32 %v8153, %v8241
        %8243 = vmatmul.bf16.gmra.mxu0 %v7430
        %v8244 = vpop.f32.mrf.mxu0
        %v8245 = vadd.f32 %v8156, %v8244
        %v8246 = vpop.f32.mrf.mxu0
        %v8247 = vadd.f32 %v8158, %v8246
        %8248 = vmatmul.bf16.gmra.mxu0 %v7436
        %v8249 = vpop.f32.mrf.mxu0
        %v8250 = vadd.f32 %v8161, %v8249
        %v8251 = vpop.f32.mrf.mxu0
        %v8252 = vadd.f32 %v8163, %v8251
        %8253 = vmatmul.bf16.gmra.mxu0 %v7442
        %v8254 = vpop.f32.mrf.mxu0
        %v8255 = vadd.f32 %v8166, %v8254
        %v8256 = vpop.f32.mrf.mxu0
        %v8257 = vadd.f32 %v8168, %v8256
        %8258 = vmatmul.bf16.gmra.mxu0 %v7448
        %v8259 = vpop.f32.mrf.mxu0
        %v8260 = vadd.f32 %v8171, %v8259
        %v8261 = vpop.f32.mrf.mxu0
        %v8262 = vadd.f32 %v8173, %v8261
        %8263 = vmatmul.bf16.gmra.mxu0 %v7454
        %v8264 = vpop.f32.mrf.mxu0
        %v8265 = vadd.f32 %v8176, %v8264
        %v8266 = vpop.f32.mrf.mxu0
        %v8267 = vadd.f32 %v8178, %v8266
        %8268 = vmatmul.bf16.gmra.mxu0 %v7460
        %v8269 = vpop.f32.mrf.mxu0
        %v8270 = vadd.f32 %v8181, %v8269
        %v8271 = vpop.f32.mrf.mxu0
        %v8272 = vadd.f32 %v8183, %v8271
        %8273 = vmatmul.bf16.gmra.mxu0 %v7466
        %v8274 = vpop.f32.mrf.mxu0
        %v8275 = vadd.f32 %v8186, %v8274
        %v8276 = vpop.f32.mrf.mxu0
        %v8277 = vadd.f32 %v8188, %v8276
        %8278 = vdwg.mxu0
        %8279 = vmatpush.bf16.msra.mxu0 %v1737
        %8280 = vmatpush.bf16.msra.mxu0 %v1734
        %8281 = vmatpush.bf16.msra.mxu0 %v1731
        %8282 = vmatpush.bf16.msra.mxu0 %v1728
        %8283 = vmatpush.bf16.msra.mxu0 %v1725
        %8284 = vmatpush.bf16.msra.mxu0 %v1722
        %8285 = vmatpush.bf16.msra.mxu0 %v1719
        %8286 = vmatpush.bf16.msra.mxu0 %v1716
        %8287 = vmatmul.bf16.gmra.mxu0 %v7377
        %v8288 = vpop.f32.mrf.mxu0
        %v8289 = vadd.f32 %v8200, %v8288
        %v8290 = vpop.f32.mrf.mxu0
        %v8291 = vadd.f32 %v8202, %v8290
        %8292 = vmatmul.bf16.gmra.mxu0 %v7383
        %v8293 = vpop.f32.mrf.mxu0
        %v8294 = vadd.f32 %v8205, %v8293
        %v8295 = vpop.f32.mrf.mxu0
        %v8296 = vadd.f32 %v8207, %v8295
        %8297 = vmatmul.bf16.gmra.mxu0 %v7389
        %v8298 = vpop.f32.mrf.mxu0
        %v8299 = vadd.f32 %v8210, %v8298
        %v8300 = vpop.f32.mrf.mxu0
        %v8301 = vadd.f32 %v8212, %v8300
        %8302 = vmatmul.bf16.gmra.mxu0 %v7395
        %v8303 = vpop.f32.mrf.mxu0
        %v8304 = vadd.f32 %v8215, %v8303
        %v8305 = vpop.f32.mrf.mxu0
        %v8306 = vadd.f32 %v8217, %v8305
        %8307 = vmatmul.bf16.gmra.mxu0 %v7401
        %v8308 = vpop.f32.mrf.mxu0
        %v8309 = vadd.f32 %v8220, %v8308
        %v8310 = vpop.f32.mrf.mxu0
        %v8311 = vadd.f32 %v8222, %v8310
        %8312 = vmatmul.bf16.gmra.mxu0 %v7407
        %v8313 = vpop.f32.mrf.mxu0
        %v8314 = vadd.f32 %v8225, %v8313
        %v8315 = vpop.f32.mrf.mxu0
        %v8316 = vadd.f32 %v8227, %v8315
        %8317 = vmatmul.bf16.gmra.mxu0 %v7413
        %v8318 = vpop.f32.mrf.mxu0
        %v8319 = vadd.f32 %v8230, %v8318
        %v8320 = vpop.f32.mrf.mxu0
        %v8321 = vadd.f32 %v8232, %v8320
        %8322 = vmatmul.bf16.gmra.mxu0 %v7419
        %v8323 = vpop.f32.mrf.mxu0
        %v8324 = vadd.f32 %v8235, %v8323
        %v8325 = vpop.f32.mrf.mxu0
        %v8326 = vadd.f32 %v8237, %v8325
        %8327 = vmatmul.bf16.gmra.mxu0 %v7425
        %v8328 = vpop.f32.mrf.mxu0
        %v8329 = vadd.f32 %v8240, %v8328
        %v8330 = vpop.f32.mrf.mxu0
        %v8331 = vadd.f32 %v8242, %v8330
        %8332 = vmatmul.bf16.gmra.mxu0 %v7431
        %v8333 = vpop.f32.mrf.mxu0
        %v8334 = vadd.f32 %v8245, %v8333
        %v8335 = vpop.f32.mrf.mxu0
        %v8336 = vadd.f32 %v8247, %v8335
        %8337 = vmatmul.bf16.gmra.mxu0 %v7437
        %v8338 = vpop.f32.mrf.mxu0
        %v8339 = vadd.f32 %v8250, %v8338
        %v8340 = vpop.f32.mrf.mxu0
        %v8341 = vadd.f32 %v8252, %v8340
        %8342 = vmatmul.bf16.gmra.mxu0 %v7443
        %v8343 = vpop.f32.mrf.mxu0
        %v8344 = vadd.f32 %v8255, %v8343
        %v8345 = vpop.f32.mrf.mxu0
        %v8346 = vadd.f32 %v8257, %v8345
        %8347 = vmatmul.bf16.gmra.mxu0 %v7449
        %v8348 = vpop.f32.mrf.mxu0
        %v8349 = vadd.f32 %v8260, %v8348
        %v8350 = vpop.f32.mrf.mxu0
        %v8351 = vadd.f32 %v8262, %v8350
        %8352 = vmatmul.bf16.gmra.mxu0 %v7455
        %v8353 = vpop.f32.mrf.mxu0
        %v8354 = vadd.f32 %v8265, %v8353
        %v8355 = vpop.f32.mrf.mxu0
        %v8356 = vadd.f32 %v8267, %v8355
        %8357 = vmatmul.bf16.gmra.mxu0 %v7461
        %v8358 = vpop.f32.mrf.mxu0
        %v8359 = vadd.f32 %v8270, %v8358
        %v8360 = vpop.f32.mrf.mxu0
        %v8361 = vadd.f32 %v8272, %v8360
        %8362 = vmatmul.bf16.gmra.mxu0 %v7467
        %v8363 = vpop.f32.mrf.mxu0
        %v8364 = vadd.f32 %v8275, %v8363
        %v8365 = vpop.f32.mrf.mxu0
        %v8366 = vadd.f32 %v8277, %v8365
        %8367 = vdwg.mxu0
        %8368 = vmatpush.bf16.msra.mxu0 %v1761
        %8369 = vmatpush.bf16.msra.mxu0 %v1758
        %8370 = vmatpush.bf16.msra.mxu0 %v1755
        %8371 = vmatpush.bf16.msra.mxu0 %v1752
        %8372 = vmatpush.bf16.msra.mxu0 %v1749
        %8373 = vmatpush.bf16.msra.mxu0 %v1746
        %8374 = vmatpush.bf16.msra.mxu0 %v1743
        %8375 = vmatpush.bf16.msra.mxu0 %v1740
        %8376 = vmatmul.bf16.gmra.mxu0 %v7378
        %v8377 = vpop.f32.mrf.mxu0
        %v8378 = vadd.f32 %v8289, %v8377
        %v8379 = vpop.f32.mrf.mxu0
        %v8380 = vadd.f32 %v8291, %v8379
        %8381 = vmatmul.bf16.gmra.mxu0 %v7384
        %v8382 = vpop.f32.mrf.mxu0
        %v8383 = vadd.f32 %v8294, %v8382
        %v8384 = vpop.f32.mrf.mxu0
        %v8385 = vadd.f32 %v8296, %v8384
        %8386 = vmatmul.bf16.gmra.mxu0 %v7390
        %v8387 = vpop.f32.mrf.mxu0
        %v8388 = vadd.f32 %v8299, %v8387
        %v8389 = vpop.f32.mrf.mxu0
        %v8390 = vadd.f32 %v8301, %v8389
        %8391 = vmatmul.bf16.gmra.mxu0 %v7396
        %v8392 = vpop.f32.mrf.mxu0
        %v8393 = vadd.f32 %v8304, %v8392
        %v8394 = vpop.f32.mrf.mxu0
        %v8395 = vadd.f32 %v8306, %v8394
        %8396 = vmatmul.bf16.gmra.mxu0 %v7402
        %v8397 = vpop.f32.mrf.mxu0
        %v8398 = vadd.f32 %v8309, %v8397
        %v8399 = vpop.f32.mrf.mxu0
        %v8400 = vadd.f32 %v8311, %v8399
        %8401 = vmatmul.bf16.gmra.mxu0 %v7408
        %v8402 = vpop.f32.mrf.mxu0
        %v8403 = vadd.f32 %v8314, %v8402
        %v8404 = vpop.f32.mrf.mxu0
        %v8405 = vadd.f32 %v8316, %v8404
        %8406 = vmatmul.bf16.gmra.mxu0 %v7414
        %v8407 = vpop.f32.mrf.mxu0
        %v8408 = vadd.f32 %v8319, %v8407
        %v8409 = vpop.f32.mrf.mxu0
        %v8410 = vadd.f32 %v8321, %v8409
        %8411 = vmatmul.bf16.gmra.mxu0 %v7420
        %v8412 = vpop.f32.mrf.mxu0
        %v8413 = vadd.f32 %v8324, %v8412
        %v8414 = vpop.f32.mrf.mxu0
        %v8415 = vadd.f32 %v8326, %v8414
        %8416 = vmatmul.bf16.gmra.mxu0 %v7426
        %v8417 = vpop.f32.mrf.mxu0
        %v8418 = vadd.f32 %v8329, %v8417
        %v8419 = vpop.f32.mrf.mxu0
        %v8420 = vadd.f32 %v8331, %v8419
        %8421 = vmatmul.bf16.gmra.mxu0 %v7432
        %v8422 = vpop.f32.mrf.mxu0
        %v8423 = vadd.f32 %v8334, %v8422
        %v8424 = vpop.f32.mrf.mxu0
        %v8425 = vadd.f32 %v8336, %v8424
        %8426 = vmatmul.bf16.gmra.mxu0 %v7438
        %v8427 = vpop.f32.mrf.mxu0
        %v8428 = vadd.f32 %v8339, %v8427
        %v8429 = vpop.f32.mrf.mxu0
        %v8430 = vadd.f32 %v8341, %v8429
        %8431 = vmatmul.bf16.gmra.mxu0 %v7444
        %v8432 = vpop.f32.mrf.mxu0
        %v8433 = vadd.f32 %v8344, %v8432
        %v8434 = vpop.f32.mrf.mxu0
        %v8435 = vadd.f32 %v8346, %v8434
        %8436 = vmatmul.bf16.gmra.mxu0 %v7450
        %v8437 = vpop.f32.mrf.mxu0
        %v8438 = vadd.f32 %v8349, %v8437
        %v8439 = vpop.f32.mrf.mxu0
        %v8440 = vadd.f32 %v8351, %v8439
        %8441 = vmatmul.bf16.gmra.mxu0 %v7456
        %v8442 = vpop.f32.mrf.mxu0
        %v8443 = vadd.f32 %v8354, %v8442
        %v8444 = vpop.f32.mrf.mxu0
        %v8445 = vadd.f32 %v8356, %v8444
        %8446 = vmatmul.bf16.gmra.mxu0 %v7462
        %v8447 = vpop.f32.mrf.mxu0
        %v8448 = vadd.f32 %v8359, %v8447
        %v8449 = vpop.f32.mrf.mxu0
        %v8450 = vadd.f32 %v8361, %v8449
        %8451 = vmatmul.bf16.gmra.mxu0 %v7468
        %v8452 = vpop.f32.mrf.mxu0
        %v8453 = vadd.f32 %v8364, %v8452
        %v8454 = vpop.f32.mrf.mxu0
        %v8455 = vadd.f32 %v8366, %v8454
        %8456 = vdwg.mxu0
        %8457 = vmatpush.bf16.msra.mxu0 %v1785
        %8458 = vmatpush.bf16.msra.mxu0 %v1782
        %8459 = vmatpush.bf16.msra.mxu0 %v1779
        %8460 = vmatpush.bf16.msra.mxu0 %v1776
        %8461 = vmatpush.bf16.msra.mxu0 %v1773
        %8462 = vmatpush.bf16.msra.mxu0 %v1770
        %8463 = vmatpush.bf16.msra.mxu0 %v1767
        %8464 = vmatpush.bf16.msra.mxu0 %v1764
        %8465 = vmatmul.bf16.gmra.mxu0 %v7379
        %v8466 = vpop.f32.mrf.mxu0
        %v8467 = vadd.f32 %v8378, %v8466
        %v8468 = vpop.f32.mrf.mxu0
        %v8469 = vadd.f32 %v8380, %v8468
        %8470 = vmatmul.bf16.gmra.mxu0 %v7385
        %v8471 = vpop.f32.mrf.mxu0
        %v8472 = vadd.f32 %v8383, %v8471
        %v8473 = vpop.f32.mrf.mxu0
        %v8474 = vadd.f32 %v8385, %v8473
        %8475 = vmatmul.bf16.gmra.mxu0 %v7391
        %v8476 = vpop.f32.mrf.mxu0
        %v8477 = vadd.f32 %v8388, %v8476
        %v8478 = vpop.f32.mrf.mxu0
        %v8479 = vadd.f32 %v8390, %v8478
        %8480 = vmatmul.bf16.gmra.mxu0 %v7397
        %v8481 = vpop.f32.mrf.mxu0
        %v8482 = vadd.f32 %v8393, %v8481
        %v8483 = vpop.f32.mrf.mxu0
        %v8484 = vadd.f32 %v8395, %v8483
        %8485 = vmatmul.bf16.gmra.mxu0 %v7403
        %v8486 = vpop.f32.mrf.mxu0
        %v8487 = vadd.f32 %v8398, %v8486
        %v8488 = vpop.f32.mrf.mxu0
        %v8489 = vadd.f32 %v8400, %v8488
        %8490 = vmatmul.bf16.gmra.mxu0 %v7409
        %v8491 = vpop.f32.mrf.mxu0
        %v8492 = vadd.f32 %v8403, %v8491
        %v8493 = vpop.f32.mrf.mxu0
        %v8494 = vadd.f32 %v8405, %v8493
        %8495 = vmatmul.bf16.gmra.mxu0 %v7415
        %v8496 = vpop.f32.mrf.mxu0
        %v8497 = vadd.f32 %v8408, %v8496
        %v8498 = vpop.f32.mrf.mxu0
        %v8499 = vadd.f32 %v8410, %v8498
        %8500 = vmatmul.bf16.gmra.mxu0 %v7421
        %v8501 = vpop.f32.mrf.mxu0
        %v8502 = vadd.f32 %v8413, %v8501
        %v8503 = vpop.f32.mrf.mxu0
        %v8504 = vadd.f32 %v8415, %v8503
        %8505 = vmatmul.bf16.gmra.mxu0 %v7427
        %v8506 = vpop.f32.mrf.mxu0
        %v8507 = vadd.f32 %v8418, %v8506
        %v8508 = vpop.f32.mrf.mxu0
        %v8509 = vadd.f32 %v8420, %v8508
        %8510 = vmatmul.bf16.gmra.mxu0 %v7433
        %v8511 = vpop.f32.mrf.mxu0
        %v8512 = vadd.f32 %v8423, %v8511
        %v8513 = vpop.f32.mrf.mxu0
        %v8514 = vadd.f32 %v8425, %v8513
        %8515 = vmatmul.bf16.gmra.mxu0 %v7439
        %v8516 = vpop.f32.mrf.mxu0
        %v8517 = vadd.f32 %v8428, %v8516
        %v8518 = vpop.f32.mrf.mxu0
        %v8519 = vadd.f32 %v8430, %v8518
        %8520 = vmatmul.bf16.gmra.mxu0 %v7445
        %v8521 = vpop.f32.mrf.mxu0
        %v8522 = vadd.f32 %v8433, %v8521
        %v8523 = vpop.f32.mrf.mxu0
        %v8524 = vadd.f32 %v8435, %v8523
        %8525 = vmatmul.bf16.gmra.mxu0 %v7451
        %v8526 = vpop.f32.mrf.mxu0
        %v8527 = vadd.f32 %v8438, %v8526
        %v8528 = vpop.f32.mrf.mxu0
        %v8529 = vadd.f32 %v8440, %v8528
        %8530 = vmatmul.bf16.gmra.mxu0 %v7457
        %v8531 = vpop.f32.mrf.mxu0
        %v8532 = vadd.f32 %v8443, %v8531
        %v8533 = vpop.f32.mrf.mxu0
        %v8534 = vadd.f32 %v8445, %v8533
        %8535 = vmatmul.bf16.gmra.mxu0 %v7463
        %v8536 = vpop.f32.mrf.mxu0
        %v8537 = vadd.f32 %v8448, %v8536
        %v8538 = vpop.f32.mrf.mxu0
        %v8539 = vadd.f32 %v8450, %v8538
        %8540 = vmatmul.bf16.gmra.mxu0 %v7469
        %v8541 = vpop.f32.mrf.mxu0
        %v8542 = vadd.f32 %v8453, %v8541
        %v8543 = vpop.f32.mrf.mxu0
        %v8544 = vadd.f32 %v8455, %v8543
        %8545 = vdwg.mxu0
        %8546 = vmatpush.bf16.msra.mxu0 %v1809
        %8547 = vmatpush.bf16.msra.mxu0 %v1806
        %8548 = vmatpush.bf16.msra.mxu0 %v1803
        %8549 = vmatpush.bf16.msra.mxu0 %v1800
        %8550 = vmatpush.bf16.msra.mxu0 %v1797
        %8551 = vmatpush.bf16.msra.mxu0 %v1794
        %8552 = vmatpush.bf16.msra.mxu0 %v1791
        %8553 = vmatpush.bf16.msra.mxu0 %v1788
        %8554 = vmatmul.bf16.gmra.mxu0 %v7380
        %v8555 = vpop.f32.mrf.mxu0
        %v8556 = vadd.f32 %v8467, %v8555
        %v8557 = vpop.f32.mrf.mxu0
        %v8558 = vadd.f32 %v8469, %v8557
        %8559 = vmatmul.bf16.gmra.mxu0 %v7386
        %v8560 = vpop.f32.mrf.mxu0
        %v8561 = vadd.f32 %v8472, %v8560
        %v8562 = vpop.f32.mrf.mxu0
        %v8563 = vadd.f32 %v8474, %v8562
        %8564 = vmatmul.bf16.gmra.mxu0 %v7392
        %v8565 = vpop.f32.mrf.mxu0
        %v8566 = vadd.f32 %v8477, %v8565
        %v8567 = vpop.f32.mrf.mxu0
        %v8568 = vadd.f32 %v8479, %v8567
        %8569 = vmatmul.bf16.gmra.mxu0 %v7398
        %v8570 = vpop.f32.mrf.mxu0
        %v8571 = vadd.f32 %v8482, %v8570
        %v8572 = vpop.f32.mrf.mxu0
        %v8573 = vadd.f32 %v8484, %v8572
        %8574 = vmatmul.bf16.gmra.mxu0 %v7404
        %v8575 = vpop.f32.mrf.mxu0
        %v8576 = vadd.f32 %v8487, %v8575
        %v8577 = vpop.f32.mrf.mxu0
        %v8578 = vadd.f32 %v8489, %v8577
        %8579 = vmatmul.bf16.gmra.mxu0 %v7410
        %v8580 = vpop.f32.mrf.mxu0
        %v8581 = vadd.f32 %v8492, %v8580
        %v8582 = vpop.f32.mrf.mxu0
        %v8583 = vadd.f32 %v8494, %v8582
        %8584 = vmatmul.bf16.gmra.mxu0 %v7416
        %v8585 = vpop.f32.mrf.mxu0
        %v8586 = vadd.f32 %v8497, %v8585
        %v8587 = vpop.f32.mrf.mxu0
        %v8588 = vadd.f32 %v8499, %v8587
        %8589 = vmatmul.bf16.gmra.mxu0 %v7422
        %v8590 = vpop.f32.mrf.mxu0
        %v8591 = vadd.f32 %v8502, %v8590
        %v8592 = vpop.f32.mrf.mxu0
        %v8593 = vadd.f32 %v8504, %v8592
        %8594 = vmatmul.bf16.gmra.mxu0 %v7428
        %v8595 = vpop.f32.mrf.mxu0
        %v8596 = vadd.f32 %v8507, %v8595
        %v8597 = vpop.f32.mrf.mxu0
        %v8598 = vadd.f32 %v8509, %v8597
        %8599 = vmatmul.bf16.gmra.mxu0 %v7434
        %v8600 = vpop.f32.mrf.mxu0
        %v8601 = vadd.f32 %v8512, %v8600
        %v8602 = vpop.f32.mrf.mxu0
        %v8603 = vadd.f32 %v8514, %v8602
        %8604 = vmatmul.bf16.gmra.mxu0 %v7440
        %v8605 = vpop.f32.mrf.mxu0
        %v8606 = vadd.f32 %v8517, %v8605
        %v8607 = vpop.f32.mrf.mxu0
        %v8608 = vadd.f32 %v8519, %v8607
        %8609 = vmatmul.bf16.gmra.mxu0 %v7446
        %v8610 = vpop.f32.mrf.mxu0
        %v8611 = vadd.f32 %v8522, %v8610
        %v8612 = vpop.f32.mrf.mxu0
        %v8613 = vadd.f32 %v8524, %v8612
        %8614 = vmatmul.bf16.gmra.mxu0 %v7452
        %v8615 = vpop.f32.mrf.mxu0
        %v8616 = vadd.f32 %v8527, %v8615
        %v8617 = vpop.f32.mrf.mxu0
        %v8618 = vadd.f32 %v8529, %v8617
        %8619 = vmatmul.bf16.gmra.mxu0 %v7458
        %v8620 = vpop.f32.mrf.mxu0
        %v8621 = vadd.f32 %v8532, %v8620
        %v8622 = vpop.f32.mrf.mxu0
        %v8623 = vadd.f32 %v8534, %v8622
        %8624 = vmatmul.bf16.gmra.mxu0 %v7464
        %v8625 = vpop.f32.mrf.mxu0
        %v8626 = vadd.f32 %v8537, %v8625
        %v8627 = vpop.f32.mrf.mxu0
        %v8628 = vadd.f32 %v8539, %v8627
        %8629 = vmatmul.bf16.gmra.mxu0 %v7470
        %v8630 = vpop.f32.mrf.mxu0
        %v8631 = vadd.f32 %v8542, %v8630
        %v8632 = vpop.f32.mrf.mxu0
        %v8633 = vadd.f32 %v8544, %v8632
        %8634 = vdwg.mxu0
        %8635 = vmatpush.bf16.msra.mxu0 %v1690
        %8636 = vmatpush.bf16.msra.mxu0 %v1687
        %8637 = vmatpush.bf16.msra.mxu0 %v1684
        %8638 = vmatpush.bf16.msra.mxu0 %v1681
        %8639 = vmatpush.bf16.msra.mxu0 %v1678
        %8640 = vmatpush.bf16.msra.mxu0 %v1675
        %8641 = vmatpush.bf16.msra.mxu0 %v1672
        %8642 = vmatpush.bf16.msra.mxu0 %v1669
        %8643 = vmatmul.bf16.gmra.mxu0 %v7375
        %v8644 = vpop.f32.mrf.mxu0
        %v8645 = vadd.f32 %v703, %v8644
        %v8646 = vpop.f32.mrf.mxu0
        %v8647 = vadd.f32 %v703, %v8646
        %8648 = vmatmul.bf16.gmra.mxu0 %v7381
        %v8649 = vpop.f32.mrf.mxu0
        %v8650 = vadd.f32 %v703, %v8649
        %v8651 = vpop.f32.mrf.mxu0
        %v8652 = vadd.f32 %v703, %v8651
        %8653 = vmatmul.bf16.gmra.mxu0 %v7387
        %v8654 = vpop.f32.mrf.mxu0
        %v8655 = vadd.f32 %v703, %v8654
        %v8656 = vpop.f32.mrf.mxu0
        %v8657 = vadd.f32 %v703, %v8656
        %8658 = vmatmul.bf16.gmra.mxu0 %v7393
        %v8659 = vpop.f32.mrf.mxu0
        %v8660 = vadd.f32 %v703, %v8659
        %v8661 = vpop.f32.mrf.mxu0
        %v8662 = vadd.f32 %v703, %v8661
        %8663 = vmatmul.bf16.gmra.mxu0 %v7399
        %v8664 = vpop.f32.mrf.mxu0
        %v8665 = vadd.f32 %v703, %v8664
        %v8666 = vpop.f32.mrf.mxu0
        %v8667 = vadd.f32 %v703, %v8666
        %8668 = vmatmul.bf16.gmra.mxu0 %v7405
        %v8669 = vpop.f32.mrf.mxu0
        %v8670 = vadd.f32 %v703, %v8669
        %v8671 = vpop.f32.mrf.mxu0
        %v8672 = vadd.f32 %v703, %v8671
        %8673 = vmatmul.bf16.gmra.mxu0 %v7411
        %v8674 = vpop.f32.mrf.mxu0
        %v8675 = vadd.f32 %v703, %v8674
        %v8676 = vpop.f32.mrf.mxu0
        %v8677 = vadd.f32 %v703, %v8676
        %8678 = vmatmul.bf16.gmra.mxu0 %v7417
        %v8679 = vpop.f32.mrf.mxu0
        %v8680 = vadd.f32 %v703, %v8679
        %v8681 = vpop.f32.mrf.mxu0
        %v8682 = vadd.f32 %v703, %v8681
        %8683 = vmatmul.bf16.gmra.mxu0 %v7423
        %v8684 = vpop.f32.mrf.mxu0
        %v8685 = vadd.f32 %v703, %v8684
        %v8686 = vpop.f32.mrf.mxu0
        %v8687 = vadd.f32 %v703, %v8686
        %8688 = vmatmul.bf16.gmra.mxu0 %v7429
        %v8689 = vpop.f32.mrf.mxu0
        %v8690 = vadd.f32 %v703, %v8689
        %v8691 = vpop.f32.mrf.mxu0
        %v8692 = vadd.f32 %v703, %v8691
        %8693 = vmatmul.bf16.gmra.mxu0 %v7435
        %v8694 = vpop.f32.mrf.mxu0
        %v8695 = vadd.f32 %v703, %v8694
        %v8696 = vpop.f32.mrf.mxu0
        %v8697 = vadd.f32 %v703, %v8696
        %8698 = vmatmul.bf16.gmra.mxu0 %v7441
        %v8699 = vpop.f32.mrf.mxu0
        %v8700 = vadd.f32 %v703, %v8699
        %v8701 = vpop.f32.mrf.mxu0
        %v8702 = vadd.f32 %v703, %v8701
        %8703 = vmatmul.bf16.gmra.mxu0 %v7447
        %v8704 = vpop.f32.mrf.mxu0
        %v8705 = vadd.f32 %v703, %v8704
        %v8706 = vpop.f32.mrf.mxu0
        %v8707 = vadd.f32 %v703, %v8706
        %8708 = vmatmul.bf16.gmra.mxu0 %v7453
        %v8709 = vpop.f32.mrf.mxu0
        %v8710 = vadd.f32 %v703, %v8709
        %v8711 = vpop.f32.mrf.mxu0
        %v8712 = vadd.f32 %v703, %v8711
        %8713 = vmatmul.bf16.gmra.mxu0 %v7459
        %v8714 = vpop.f32.mrf.mxu0
        %v8715 = vadd.f32 %v703, %v8714
        %v8716 = vpop.f32.mrf.mxu0
        %v8717 = vadd.f32 %v703, %v8716
        %8718 = vmatmul.bf16.gmra.mxu0 %v7465
        %v8719 = vpop.f32.mrf.mxu0
        %v8720 = vadd.f32 %v703, %v8719
        %v8721 = vpop.f32.mrf.mxu0
        %v8722 = vadd.f32 %v703, %v8721
        %8723 = vdwg.mxu0
        %8724 = vmatpush.bf16.msra.mxu0 %v1714
        %8725 = vmatpush.bf16.msra.mxu0 %v1711
        %8726 = vmatpush.bf16.msra.mxu0 %v1708
        %8727 = vmatpush.bf16.msra.mxu0 %v1705
        %8728 = vmatpush.bf16.msra.mxu0 %v1702
        %8729 = vmatpush.bf16.msra.mxu0 %v1699
        %8730 = vmatpush.bf16.msra.mxu0 %v1696
        %8731 = vmatpush.bf16.msra.mxu0 %v1693
        %8732 = vmatmul.bf16.gmra.mxu0 %v7376
        %v8733 = vpop.f32.mrf.mxu0
        %v8734 = vadd.f32 %v8645, %v8733
        %v8735 = vpop.f32.mrf.mxu0
        %v8736 = vadd.f32 %v8647, %v8735
        %8737 = vmatmul.bf16.gmra.mxu0 %v7382
        %v8738 = vpop.f32.mrf.mxu0
        %v8739 = vadd.f32 %v8650, %v8738
        %v8740 = vpop.f32.mrf.mxu0
        %v8741 = vadd.f32 %v8652, %v8740
        %8742 = vmatmul.bf16.gmra.mxu0 %v7388
        %v8743 = vpop.f32.mrf.mxu0
        %v8744 = vadd.f32 %v8655, %v8743
        %v8745 = vpop.f32.mrf.mxu0
        %v8746 = vadd.f32 %v8657, %v8745
        %8747 = vmatmul.bf16.gmra.mxu0 %v7394
        %v8748 = vpop.f32.mrf.mxu0
        %v8749 = vadd.f32 %v8660, %v8748
        %v8750 = vpop.f32.mrf.mxu0
        %v8751 = vadd.f32 %v8662, %v8750
        %8752 = vmatmul.bf16.gmra.mxu0 %v7400
        %v8753 = vpop.f32.mrf.mxu0
        %v8754 = vadd.f32 %v8665, %v8753
        %v8755 = vpop.f32.mrf.mxu0
        %v8756 = vadd.f32 %v8667, %v8755
        %8757 = vmatmul.bf16.gmra.mxu0 %v7406
        %v8758 = vpop.f32.mrf.mxu0
        %v8759 = vadd.f32 %v8670, %v8758
        %v8760 = vpop.f32.mrf.mxu0
        %v8761 = vadd.f32 %v8672, %v8760
        %8762 = vmatmul.bf16.gmra.mxu0 %v7412
        %v8763 = vpop.f32.mrf.mxu0
        %v8764 = vadd.f32 %v8675, %v8763
        %v8765 = vpop.f32.mrf.mxu0
        %v8766 = vadd.f32 %v8677, %v8765
        %8767 = vmatmul.bf16.gmra.mxu0 %v7418
        %v8768 = vpop.f32.mrf.mxu0
        %v8769 = vadd.f32 %v8680, %v8768
        %v8770 = vpop.f32.mrf.mxu0
        %v8771 = vadd.f32 %v8682, %v8770
        %8772 = vmatmul.bf16.gmra.mxu0 %v7424
        %v8773 = vpop.f32.mrf.mxu0
        %v8774 = vadd.f32 %v8685, %v8773
        %v8775 = vpop.f32.mrf.mxu0
        %v8776 = vadd.f32 %v8687, %v8775
        %8777 = vmatmul.bf16.gmra.mxu0 %v7430
        %v8778 = vpop.f32.mrf.mxu0
        %v8779 = vadd.f32 %v8690, %v8778
        %v8780 = vpop.f32.mrf.mxu0
        %v8781 = vadd.f32 %v8692, %v8780
        %8782 = vmatmul.bf16.gmra.mxu0 %v7436
        %v8783 = vpop.f32.mrf.mxu0
        %v8784 = vadd.f32 %v8695, %v8783
        %v8785 = vpop.f32.mrf.mxu0
        %v8786 = vadd.f32 %v8697, %v8785
        %8787 = vmatmul.bf16.gmra.mxu0 %v7442
        %v8788 = vpop.f32.mrf.mxu0
        %v8789 = vadd.f32 %v8700, %v8788
        %v8790 = vpop.f32.mrf.mxu0
        %v8791 = vadd.f32 %v8702, %v8790
        %8792 = vmatmul.bf16.gmra.mxu0 %v7448
        %v8793 = vpop.f32.mrf.mxu0
        %v8794 = vadd.f32 %v8705, %v8793
        %v8795 = vpop.f32.mrf.mxu0
        %v8796 = vadd.f32 %v8707, %v8795
        %8797 = vmatmul.bf16.gmra.mxu0 %v7454
        %v8798 = vpop.f32.mrf.mxu0
        %v8799 = vadd.f32 %v8710, %v8798
        %v8800 = vpop.f32.mrf.mxu0
        %v8801 = vadd.f32 %v8712, %v8800
        %8802 = vmatmul.bf16.gmra.mxu0 %v7460
        %v8803 = vpop.f32.mrf.mxu0
        %v8804 = vadd.f32 %v8715, %v8803
        %v8805 = vpop.f32.mrf.mxu0
        %v8806 = vadd.f32 %v8717, %v8805
        %8807 = vmatmul.bf16.gmra.mxu0 %v7466
        %v8808 = vpop.f32.mrf.mxu0
        %v8809 = vadd.f32 %v8720, %v8808
        %v8810 = vpop.f32.mrf.mxu0
        %v8811 = vadd.f32 %v8722, %v8810
        %8812 = vdwg.mxu0
        %8813 = vmatpush.bf16.msra.mxu0 %v1738
        %8814 = vmatpush.bf16.msra.mxu0 %v1735
        %8815 = vmatpush.bf16.msra.mxu0 %v1732
        %8816 = vmatpush.bf16.msra.mxu0 %v1729
        %8817 = vmatpush.bf16.msra.mxu0 %v1726
        %8818 = vmatpush.bf16.msra.mxu0 %v1723
        %8819 = vmatpush.bf16.msra.mxu0 %v1720
        %8820 = vmatpush.bf16.msra.mxu0 %v1717
        %8821 = vmatmul.bf16.gmra.mxu0 %v7377
        %v8822 = vpop.f32.mrf.mxu0
        %v8823 = vadd.f32 %v8734, %v8822
        %v8824 = vpop.f32.mrf.mxu0
        %v8825 = vadd.f32 %v8736, %v8824
        %8826 = vmatmul.bf16.gmra.mxu0 %v7383
        %v8827 = vpop.f32.mrf.mxu0
        %v8828 = vadd.f32 %v8739, %v8827
        %v8829 = vpop.f32.mrf.mxu0
        %v8830 = vadd.f32 %v8741, %v8829
        %8831 = vmatmul.bf16.gmra.mxu0 %v7389
        %v8832 = vpop.f32.mrf.mxu0
        %v8833 = vadd.f32 %v8744, %v8832
        %v8834 = vpop.f32.mrf.mxu0
        %v8835 = vadd.f32 %v8746, %v8834
        %8836 = vmatmul.bf16.gmra.mxu0 %v7395
        %v8837 = vpop.f32.mrf.mxu0
        %v8838 = vadd.f32 %v8749, %v8837
        %v8839 = vpop.f32.mrf.mxu0
        %v8840 = vadd.f32 %v8751, %v8839
        %8841 = vmatmul.bf16.gmra.mxu0 %v7401
        %v8842 = vpop.f32.mrf.mxu0
        %v8843 = vadd.f32 %v8754, %v8842
        %v8844 = vpop.f32.mrf.mxu0
        %v8845 = vadd.f32 %v8756, %v8844
        %8846 = vmatmul.bf16.gmra.mxu0 %v7407
        %v8847 = vpop.f32.mrf.mxu0
        %v8848 = vadd.f32 %v8759, %v8847
        %v8849 = vpop.f32.mrf.mxu0
        %v8850 = vadd.f32 %v8761, %v8849
        %8851 = vmatmul.bf16.gmra.mxu0 %v7413
        %v8852 = vpop.f32.mrf.mxu0
        %v8853 = vadd.f32 %v8764, %v8852
        %v8854 = vpop.f32.mrf.mxu0
        %v8855 = vadd.f32 %v8766, %v8854
        %8856 = vmatmul.bf16.gmra.mxu0 %v7419
        %v8857 = vpop.f32.mrf.mxu0
        %v8858 = vadd.f32 %v8769, %v8857
        %v8859 = vpop.f32.mrf.mxu0
        %v8860 = vadd.f32 %v8771, %v8859
        %8861 = vmatmul.bf16.gmra.mxu0 %v7425
        %v8862 = vpop.f32.mrf.mxu0
        %v8863 = vadd.f32 %v8774, %v8862
        %v8864 = vpop.f32.mrf.mxu0
        %v8865 = vadd.f32 %v8776, %v8864
        %8866 = vmatmul.bf16.gmra.mxu0 %v7431
        %v8867 = vpop.f32.mrf.mxu0
        %v8868 = vadd.f32 %v8779, %v8867
        %v8869 = vpop.f32.mrf.mxu0
        %v8870 = vadd.f32 %v8781, %v8869
        %8871 = vmatmul.bf16.gmra.mxu0 %v7437
        %v8872 = vpop.f32.mrf.mxu0
        %v8873 = vadd.f32 %v8784, %v8872
        %v8874 = vpop.f32.mrf.mxu0
        %v8875 = vadd.f32 %v8786, %v8874
        %8876 = vmatmul.bf16.gmra.mxu0 %v7443
        %v8877 = vpop.f32.mrf.mxu0
        %v8878 = vadd.f32 %v8789, %v8877
        %v8879 = vpop.f32.mrf.mxu0
        %v8880 = vadd.f32 %v8791, %v8879
        %8881 = vmatmul.bf16.gmra.mxu0 %v7449
        %v8882 = vpop.f32.mrf.mxu0
        %v8883 = vadd.f32 %v8794, %v8882
        %v8884 = vpop.f32.mrf.mxu0
        %v8885 = vadd.f32 %v8796, %v8884
        %8886 = vmatmul.bf16.gmra.mxu0 %v7455
        %v8887 = vpop.f32.mrf.mxu0
        %v8888 = vadd.f32 %v8799, %v8887
        %v8889 = vpop.f32.mrf.mxu0
        %v8890 = vadd.f32 %v8801, %v8889
        %8891 = vmatmul.bf16.gmra.mxu0 %v7461
        %v8892 = vpop.f32.mrf.mxu0
        %v8893 = vadd.f32 %v8804, %v8892
        %v8894 = vpop.f32.mrf.mxu0
        %v8895 = vadd.f32 %v8806, %v8894
        %8896 = vmatmul.bf16.gmra.mxu0 %v7467
        %v8897 = vpop.f32.mrf.mxu0
        %v8898 = vadd.f32 %v8809, %v8897
        %v8899 = vpop.f32.mrf.mxu0
        %v8900 = vadd.f32 %v8811, %v8899
        %8901 = vdwg.mxu0
        %8902 = vmatpush.bf16.msra.mxu0 %v1762
        %8903 = vmatpush.bf16.msra.mxu0 %v1759
        %8904 = vmatpush.bf16.msra.mxu0 %v1756
        %8905 = vmatpush.bf16.msra.mxu0 %v1753
        %8906 = vmatpush.bf16.msra.mxu0 %v1750
        %8907 = vmatpush.bf16.msra.mxu0 %v1747
        %8908 = vmatpush.bf16.msra.mxu0 %v1744
        %8909 = vmatpush.bf16.msra.mxu0 %v1741
        %8910 = vmatmul.bf16.gmra.mxu0 %v7378
        %v8911 = vpop.f32.mrf.mxu0
        %v8912 = vadd.f32 %v8823, %v8911
        %v8913 = vpop.f32.mrf.mxu0
        %v8914 = vadd.f32 %v8825, %v8913
        %8915 = vmatmul.bf16.gmra.mxu0 %v7384
        %v8916 = vpop.f32.mrf.mxu0
        %v8917 = vadd.f32 %v8828, %v8916
        %v8918 = vpop.f32.mrf.mxu0
        %v8919 = vadd.f32 %v8830, %v8918
        %8920 = vmatmul.bf16.gmra.mxu0 %v7390
        %v8921 = vpop.f32.mrf.mxu0
        %v8922 = vadd.f32 %v8833, %v8921
        %v8923 = vpop.f32.mrf.mxu0
        %v8924 = vadd.f32 %v8835, %v8923
        %8925 = vmatmul.bf16.gmra.mxu0 %v7396
        %v8926 = vpop.f32.mrf.mxu0
        %v8927 = vadd.f32 %v8838, %v8926
        %v8928 = vpop.f32.mrf.mxu0
        %v8929 = vadd.f32 %v8840, %v8928
        %8930 = vmatmul.bf16.gmra.mxu0 %v7402
        %v8931 = vpop.f32.mrf.mxu0
        %v8932 = vadd.f32 %v8843, %v8931
        %v8933 = vpop.f32.mrf.mxu0
        %v8934 = vadd.f32 %v8845, %v8933
        %8935 = vmatmul.bf16.gmra.mxu0 %v7408
        %v8936 = vpop.f32.mrf.mxu0
        %v8937 = vadd.f32 %v8848, %v8936
        %v8938 = vpop.f32.mrf.mxu0
        %v8939 = vadd.f32 %v8850, %v8938
        %8940 = vmatmul.bf16.gmra.mxu0 %v7414
        %v8941 = vpop.f32.mrf.mxu0
        %v8942 = vadd.f32 %v8853, %v8941
        %v8943 = vpop.f32.mrf.mxu0
        %v8944 = vadd.f32 %v8855, %v8943
        %8945 = vmatmul.bf16.gmra.mxu0 %v7420
        %v8946 = vpop.f32.mrf.mxu0
        %v8947 = vadd.f32 %v8858, %v8946
        %v8948 = vpop.f32.mrf.mxu0
        %v8949 = vadd.f32 %v8860, %v8948
        %8950 = vmatmul.bf16.gmra.mxu0 %v7426
        %v8951 = vpop.f32.mrf.mxu0
        %v8952 = vadd.f32 %v8863, %v8951
        %v8953 = vpop.f32.mrf.mxu0
        %v8954 = vadd.f32 %v8865, %v8953
        %8955 = vmatmul.bf16.gmra.mxu0 %v7432
        %v8956 = vpop.f32.mrf.mxu0
        %v8957 = vadd.f32 %v8868, %v8956
        %v8958 = vpop.f32.mrf.mxu0
        %v8959 = vadd.f32 %v8870, %v8958
        %8960 = vmatmul.bf16.gmra.mxu0 %v7438
        %v8961 = vpop.f32.mrf.mxu0
        %v8962 = vadd.f32 %v8873, %v8961
        %v8963 = vpop.f32.mrf.mxu0
        %v8964 = vadd.f32 %v8875, %v8963
        %8965 = vmatmul.bf16.gmra.mxu0 %v7444
        %v8966 = vpop.f32.mrf.mxu0
        %v8967 = vadd.f32 %v8878, %v8966
        %v8968 = vpop.f32.mrf.mxu0
        %v8969 = vadd.f32 %v8880, %v8968
        %8970 = vmatmul.bf16.gmra.mxu0 %v7450
        %v8971 = vpop.f32.mrf.mxu0
        %v8972 = vadd.f32 %v8883, %v8971
        %v8973 = vpop.f32.mrf.mxu0
        %v8974 = vadd.f32 %v8885, %v8973
        %8975 = vmatmul.bf16.gmra.mxu0 %v7456
        %v8976 = vpop.f32.mrf.mxu0
        %v8977 = vadd.f32 %v8888, %v8976
        %v8978 = vpop.f32.mrf.mxu0
        %v8979 = vadd.f32 %v8890, %v8978
        %8980 = vmatmul.bf16.gmra.mxu0 %v7462
        %v8981 = vpop.f32.mrf.mxu0
        %v8982 = vadd.f32 %v8893, %v8981
        %v8983 = vpop.f32.mrf.mxu0
        %v8984 = vadd.f32 %v8895, %v8983
        %8985 = vmatmul.bf16.gmra.mxu0 %v7468
        %v8986 = vpop.f32.mrf.mxu0
        %v8987 = vadd.f32 %v8898, %v8986
        %v8988 = vpop.f32.mrf.mxu0
        %v8989 = vadd.f32 %v8900, %v8988
        %8990 = vdwg.mxu0
        %8991 = vmatpush.bf16.msra.mxu0 %v1786
        %8992 = vmatpush.bf16.msra.mxu0 %v1783
        %8993 = vmatpush.bf16.msra.mxu0 %v1780
        %8994 = vmatpush.bf16.msra.mxu0 %v1777
        %8995 = vmatpush.bf16.msra.mxu0 %v1774
        %8996 = vmatpush.bf16.msra.mxu0 %v1771
        %8997 = vmatpush.bf16.msra.mxu0 %v1768
        %8998 = vmatpush.bf16.msra.mxu0 %v1765
        %8999 = vmatmul.bf16.gmra.mxu0 %v7379
        %v9000 = vpop.f32.mrf.mxu0
        %v9001 = vadd.f32 %v8912, %v9000
        %v9002 = vpop.f32.mrf.mxu0
        %v9003 = vadd.f32 %v8914, %v9002
        %9004 = vmatmul.bf16.gmra.mxu0 %v7385
        %v9005 = vpop.f32.mrf.mxu0
        %v9006 = vadd.f32 %v8917, %v9005
        %v9007 = vpop.f32.mrf.mxu0
        %v9008 = vadd.f32 %v8919, %v9007
        %9009 = vmatmul.bf16.gmra.mxu0 %v7391
        %v9010 = vpop.f32.mrf.mxu0
        %v9011 = vadd.f32 %v8922, %v9010
        %v9012 = vpop.f32.mrf.mxu0
        %v9013 = vadd.f32 %v8924, %v9012
        %9014 = vmatmul.bf16.gmra.mxu0 %v7397
        %v9015 = vpop.f32.mrf.mxu0
        %v9016 = vadd.f32 %v8927, %v9015
        %v9017 = vpop.f32.mrf.mxu0
        %v9018 = vadd.f32 %v8929, %v9017
        %9019 = vmatmul.bf16.gmra.mxu0 %v7403
        %v9020 = vpop.f32.mrf.mxu0
        %v9021 = vadd.f32 %v8932, %v9020
        %v9022 = vpop.f32.mrf.mxu0
        %v9023 = vadd.f32 %v8934, %v9022
        %9024 = vmatmul.bf16.gmra.mxu0 %v7409
        %v9025 = vpop.f32.mrf.mxu0
        %v9026 = vadd.f32 %v8937, %v9025
        %v9027 = vpop.f32.mrf.mxu0
        %v9028 = vadd.f32 %v8939, %v9027
        %9029 = vmatmul.bf16.gmra.mxu0 %v7415
        %v9030 = vpop.f32.mrf.mxu0
        %v9031 = vadd.f32 %v8942, %v9030
        %v9032 = vpop.f32.mrf.mxu0
        %v9033 = vadd.f32 %v8944, %v9032
        %9034 = vmatmul.bf16.gmra.mxu0 %v7421
        %v9035 = vpop.f32.mrf.mxu0
        %v9036 = vadd.f32 %v8947, %v9035
        %v9037 = vpop.f32.mrf.mxu0
        %v9038 = vadd.f32 %v8949, %v9037
        %9039 = vmatmul.bf16.gmra.mxu0 %v7427
        %v9040 = vpop.f32.mrf.mxu0
        %v9041 = vadd.f32 %v8952, %v9040
        %v9042 = vpop.f32.mrf.mxu0
        %v9043 = vadd.f32 %v8954, %v9042
        %9044 = vmatmul.bf16.gmra.mxu0 %v7433
        %v9045 = vpop.f32.mrf.mxu0
        %v9046 = vadd.f32 %v8957, %v9045
        %v9047 = vpop.f32.mrf.mxu0
        %v9048 = vadd.f32 %v8959, %v9047
        %9049 = vmatmul.bf16.gmra.mxu0 %v7439
        %v9050 = vpop.f32.mrf.mxu0
        %v9051 = vadd.f32 %v8962, %v9050
        %v9052 = vpop.f32.mrf.mxu0
        %v9053 = vadd.f32 %v8964, %v9052
        %9054 = vmatmul.bf16.gmra.mxu0 %v7445
        %v9055 = vpop.f32.mrf.mxu0
        %v9056 = vadd.f32 %v8967, %v9055
        %v9057 = vpop.f32.mrf.mxu0
        %v9058 = vadd.f32 %v8969, %v9057
        %9059 = vmatmul.bf16.gmra.mxu0 %v7451
        %v9060 = vpop.f32.mrf.mxu0
        %v9061 = vadd.f32 %v8972, %v9060
        %v9062 = vpop.f32.mrf.mxu0
        %v9063 = vadd.f32 %v8974, %v9062
        %9064 = vmatmul.bf16.gmra.mxu0 %v7457
        %v9065 = vpop.f32.mrf.mxu0
        %v9066 = vadd.f32 %v8977, %v9065
        %v9067 = vpop.f32.mrf.mxu0
        %v9068 = vadd.f32 %v8979, %v9067
        %9069 = vmatmul.bf16.gmra.mxu0 %v7463
        %v9070 = vpop.f32.mrf.mxu0
        %v9071 = vadd.f32 %v8982, %v9070
        %v9072 = vpop.f32.mrf.mxu0
        %v9073 = vadd.f32 %v8984, %v9072
        %9074 = vmatmul.bf16.gmra.mxu0 %v7469
        %v9075 = vpop.f32.mrf.mxu0
        %v9076 = vadd.f32 %v8987, %v9075
        %v9077 = vpop.f32.mrf.mxu0
        %v9078 = vadd.f32 %v8989, %v9077
        %9079 = vdwg.mxu0
        %9080 = vmatpush.bf16.msra.mxu0 %v1810
        %9081 = vmatpush.bf16.msra.mxu0 %v1807
        %9082 = vmatpush.bf16.msra.mxu0 %v1804
        %9083 = vmatpush.bf16.msra.mxu0 %v1801
        %9084 = vmatpush.bf16.msra.mxu0 %v1798
        %9085 = vmatpush.bf16.msra.mxu0 %v1795
        %9086 = vmatpush.bf16.msra.mxu0 %v1792
        %9087 = vmatpush.bf16.msra.mxu0 %v1789
        %9088 = vmatmul.bf16.gmra.mxu0 %v7380
        %v9089 = vpop.f32.mrf.mxu0
        %v9090 = vadd.f32 %v9001, %v9089
        %v9091 = vpop.f32.mrf.mxu0
        %v9092 = vadd.f32 %v9003, %v9091
        %9093 = vmatmul.bf16.gmra.mxu0 %v7386
        %v9094 = vpop.f32.mrf.mxu0
        %v9095 = vadd.f32 %v9006, %v9094
        %v9096 = vpop.f32.mrf.mxu0
        %v9097 = vadd.f32 %v9008, %v9096
        %9098 = vmatmul.bf16.gmra.mxu0 %v7392
        %v9099 = vpop.f32.mrf.mxu0
        %v9100 = vadd.f32 %v9011, %v9099
        %v9101 = vpop.f32.mrf.mxu0
        %v9102 = vadd.f32 %v9013, %v9101
        %9103 = vmatmul.bf16.gmra.mxu0 %v7398
        %v9104 = vpop.f32.mrf.mxu0
        %v9105 = vadd.f32 %v9016, %v9104
        %v9106 = vpop.f32.mrf.mxu0
        %v9107 = vadd.f32 %v9018, %v9106
        %9108 = vmatmul.bf16.gmra.mxu0 %v7404
        %v9109 = vpop.f32.mrf.mxu0
        %v9110 = vadd.f32 %v9021, %v9109
        %v9111 = vpop.f32.mrf.mxu0
        %v9112 = vadd.f32 %v9023, %v9111
        %9113 = vmatmul.bf16.gmra.mxu0 %v7410
        %v9114 = vpop.f32.mrf.mxu0
        %v9115 = vadd.f32 %v9026, %v9114
        %v9116 = vpop.f32.mrf.mxu0
        %v9117 = vadd.f32 %v9028, %v9116
        %9118 = vmatmul.bf16.gmra.mxu0 %v7416
        %v9119 = vpop.f32.mrf.mxu0
        %v9120 = vadd.f32 %v9031, %v9119
        %v9121 = vpop.f32.mrf.mxu0
        %v9122 = vadd.f32 %v9033, %v9121
        %9123 = vmatmul.bf16.gmra.mxu0 %v7422
        %v9124 = vpop.f32.mrf.mxu0
        %v9125 = vadd.f32 %v9036, %v9124
        %v9126 = vpop.f32.mrf.mxu0
        %v9127 = vadd.f32 %v9038, %v9126
        %9128 = vmatmul.bf16.gmra.mxu0 %v7428
        %v9129 = vpop.f32.mrf.mxu0
        %v9130 = vadd.f32 %v9041, %v9129
        %v9131 = vpop.f32.mrf.mxu0
        %v9132 = vadd.f32 %v9043, %v9131
        %9133 = vmatmul.bf16.gmra.mxu0 %v7434
        %v9134 = vpop.f32.mrf.mxu0
        %v9135 = vadd.f32 %v9046, %v9134
        %v9136 = vpop.f32.mrf.mxu0
        %v9137 = vadd.f32 %v9048, %v9136
        %9138 = vmatmul.bf16.gmra.mxu0 %v7440
        %v9139 = vpop.f32.mrf.mxu0
        %v9140 = vadd.f32 %v9051, %v9139
        %v9141 = vpop.f32.mrf.mxu0
        %v9142 = vadd.f32 %v9053, %v9141
        %9143 = vmatmul.bf16.gmra.mxu0 %v7446
        %v9144 = vpop.f32.mrf.mxu0
        %v9145 = vadd.f32 %v9056, %v9144
        %v9146 = vpop.f32.mrf.mxu0
        %v9147 = vadd.f32 %v9058, %v9146
        %9148 = vmatmul.bf16.gmra.mxu0 %v7452
        %v9149 = vpop.f32.mrf.mxu0
        %v9150 = vadd.f32 %v9061, %v9149
        %v9151 = vpop.f32.mrf.mxu0
        %v9152 = vadd.f32 %v9063, %v9151
        %9153 = vmatmul.bf16.gmra.mxu0 %v7458
        %v9154 = vpop.f32.mrf.mxu0
        %v9155 = vadd.f32 %v9066, %v9154
        %v9156 = vpop.f32.mrf.mxu0
        %v9157 = vadd.f32 %v9068, %v9156
        %9158 = vmatmul.bf16.gmra.mxu0 %v7464
        %v9159 = vpop.f32.mrf.mxu0
        %v9160 = vadd.f32 %v9071, %v9159
        %v9161 = vpop.f32.mrf.mxu0
        %v9162 = vadd.f32 %v9073, %v9161
        %9163 = vmatmul.bf16.gmra.mxu0 %v7470
        %v9164 = vpop.f32.mrf.mxu0
        %v9165 = vadd.f32 %v9076, %v9164
        %v9166 = vpop.f32.mrf.mxu0
        %v9167 = vadd.f32 %v9078, %v9166
        %9168 = vdwg.mxu0
        %v9169 = vadd.f32 %v8022, %v507
        %v9170 = vadd.f32 %v8556, %v508
        %v9171 = vadd.f32 %v9090, %v509
        %v9172 = vadd.f32 %v8024, %v510
        %v9173 = vadd.f32 %v8558, %v511
        %v9174 = vadd.f32 %v9092, %v512
        %v9175 = vadd.f32 %v8027, %v513
        %v9176 = vadd.f32 %v8561, %v514
        %v9177 = vadd.f32 %v9095, %v515
        %v9178 = vadd.f32 %v8029, %v516
        %v9179 = vadd.f32 %v8563, %v517
        %v9180 = vadd.f32 %v9097, %v518
        %v9181 = vadd.f32 %v8032, %v519
        %v9182 = vadd.f32 %v8566, %v520
        %v9183 = vadd.f32 %v9100, %v521
        %v9184 = vadd.f32 %v8034, %v522
        %v9185 = vadd.f32 %v8568, %v523
        %v9186 = vadd.f32 %v9102, %v524
        %v9187 = vadd.f32 %v8037, %v525
        %v9188 = vadd.f32 %v8571, %v526
        %v9189 = vadd.f32 %v9105, %v527
        %v9190 = vadd.f32 %v8039, %v528
        %v9191 = vadd.f32 %v8573, %v529
        %v9192 = vadd.f32 %v9107, %v530
        %v9193 = vadd.f32 %v8042, %v531
        %v9194 = vadd.f32 %v8576, %v532
        %v9195 = vadd.f32 %v9110, %v533
        %v9196 = vadd.f32 %v8044, %v534
        %v9197 = vadd.f32 %v8578, %v535
        %v9198 = vadd.f32 %v9112, %v536
        %v9199 = vadd.f32 %v8047, %v537
        %v9200 = vadd.f32 %v8581, %v538
        %v9201 = vadd.f32 %v9115, %v539
        %v9202 = vadd.f32 %v8049, %v540
        %v9203 = vadd.f32 %v8583, %v541
        %v9204 = vadd.f32 %v9117, %v542
        %v9205 = vadd.f32 %v8052, %v543
        %v9206 = vadd.f32 %v8586, %v544
        %v9207 = vadd.f32 %v9120, %v545
        %v9208 = vadd.f32 %v8054, %v546
        %v9209 = vadd.f32 %v8588, %v547
        %v9210 = vadd.f32 %v9122, %v548
        %v9211 = vadd.f32 %v8057, %v549
        %v9212 = vadd.f32 %v8591, %v550
        %v9213 = vadd.f32 %v9125, %v551
        %v9214 = vadd.f32 %v8059, %v552
        %v9215 = vadd.f32 %v8593, %v553
        %v9216 = vadd.f32 %v9127, %v554
        %v9217 = vadd.f32 %v8062, %v555
        %v9218 = vadd.f32 %v8596, %v556
        %v9219 = vadd.f32 %v9130, %v557
        %v9220 = vadd.f32 %v8064, %v558
        %v9221 = vadd.f32 %v8598, %v559
        %v9222 = vadd.f32 %v9132, %v560
        %v9223 = vadd.f32 %v8067, %v561
        %v9224 = vadd.f32 %v8601, %v562
        %v9225 = vadd.f32 %v9135, %v563
        %v9226 = vadd.f32 %v8069, %v564
        %v9227 = vadd.f32 %v8603, %v565
        %v9228 = vadd.f32 %v9137, %v566
        %v9229 = vadd.f32 %v8072, %v567
        %v9230 = vadd.f32 %v8606, %v568
        %v9231 = vadd.f32 %v9140, %v569
        %v9232 = vadd.f32 %v8074, %v570
        %v9233 = vadd.f32 %v8608, %v571
        %v9234 = vadd.f32 %v9142, %v572
        %v9235 = vadd.f32 %v8077, %v573
        %v9236 = vadd.f32 %v8611, %v574
        %v9237 = vadd.f32 %v9145, %v575
        %v9238 = vadd.f32 %v8079, %v576
        %v9239 = vadd.f32 %v8613, %v577
        %v9240 = vadd.f32 %v9147, %v578
        %v9241 = vadd.f32 %v8082, %v579
        %v9242 = vadd.f32 %v8616, %v580
        %v9243 = vadd.f32 %v9150, %v581
        %v9244 = vadd.f32 %v8084, %v582
        %v9245 = vadd.f32 %v8618, %v583
        %v9246 = vadd.f32 %v9152, %v584
        %v9247 = vadd.f32 %v8087, %v585
        %v9248 = vadd.f32 %v8621, %v586
        %v9249 = vadd.f32 %v9155, %v587
        %v9250 = vadd.f32 %v8089, %v588
        %v9251 = vadd.f32 %v8623, %v589
        %v9252 = vadd.f32 %v9157, %v590
        %v9253 = vadd.f32 %v8092, %v591
        %v9254 = vadd.f32 %v8626, %v592
        %v9255 = vadd.f32 %v9160, %v593
        %v9256 = vadd.f32 %v8094, %v594
        %v9257 = vadd.f32 %v8628, %v595
        %v9258 = vadd.f32 %v9162, %v596
        %v9259 = vadd.f32 %v8097, %v597
        %v9260 = vadd.f32 %v8631, %v598
        %v9261 = vadd.f32 %v9165, %v599
        %v9262 = vadd.f32 %v8099, %v600
        %v9263 = vadd.f32 %v8633, %v601
        %v9264 = vadd.f32 %v9167, %v602
        %v9361 = vrot.slane %v9169, 7
        %v9362 = vrot.slane %v9170, 7
        %v9363 = vrot.slane %v9171, 7
        %v9364 = vrot.slane %v9172, 7
        %v9365 = vsel %vm3756, %v9361, %v9364
        %v9366 = vrot.slane %v9173, 7
        %v9367 = vsel %vm3756, %v9362, %v9366
        %v9368 = vrot.slane %v9174, 7
        %v9369 = vsel %vm3756, %v9363, %v9368
        %v9370 = vrot.slane %v9175, 7
        %v9371 = vsel %vm3756, %v9364, %v9370
        %v9372 = vrot.slane %v9176, 7
        %v9373 = vsel %vm3756, %v9366, %v9372
        %v9374 = vrot.slane %v9177, 7
        %v9375 = vsel %vm3756, %v9368, %v9374
        %v9376 = vrot.slane %v9178, 7
        %v9377 = vsel %vm3756, %v9370, %v9376
        %v9378 = vrot.slane %v9179, 7
        %v9379 = vsel %vm3756, %v9372, %v9378
        %v9380 = vrot.slane %v9180, 7
        %v9381 = vsel %vm3756, %v9374, %v9380
        %v9382 = vrot.slane %v9181, 7
        %v9383 = vsel %vm3756, %v9376, %v9382
        %v9384 = vrot.slane %v9182, 7
        %v9385 = vsel %vm3756, %v9378, %v9384
        %v9386 = vrot.slane %v9183, 7
        %v9387 = vsel %vm3756, %v9380, %v9386
        %v9388 = vrot.slane %v9184, 7
        %v9389 = vsel %vm3756, %v9382, %v9388
        %v9390 = vrot.slane %v9185, 7
        %v9391 = vsel %vm3756, %v9384, %v9390
        %v9392 = vrot.slane %v9186, 7
        %v9393 = vsel %vm3756, %v9386, %v9392
        %v9394 = vrot.slane %v9187, 7
        %v9395 = vsel %vm3756, %v9388, %v9394
        %v9396 = vrot.slane %v9188, 7
        %v9397 = vsel %vm3756, %v9390, %v9396
        %v9398 = vrot.slane %v9189, 7
        %v9399 = vsel %vm3756, %v9392, %v9398
        %v9400 = vrot.slane %v9190, 7
        %v9401 = vsel %vm3756, %v9394, %v9400
        %v9402 = vrot.slane %v9191, 7
        %v9403 = vsel %vm3756, %v9396, %v9402
        %v9404 = vrot.slane %v9192, 7
        %v9405 = vsel %vm3756, %v9398, %v9404
        %v9406 = vrot.slane %v9193, 7
        %v9407 = vsel %vm3756, %v9400, %v9406
        %v9408 = vrot.slane %v9194, 7
        %v9409 = vsel %vm3756, %v9402, %v9408
        %v9410 = vrot.slane %v9195, 7
        %v9411 = vsel %vm3756, %v9404, %v9410
        %v9412 = vrot.slane %v9196, 7
        %v9413 = vsel %vm3756, %v9406, %v9412
        %v9414 = vrot.slane %v9197, 7
        %v9415 = vsel %vm3756, %v9408, %v9414
        %v9416 = vrot.slane %v9198, 7
        %v9417 = vsel %vm3756, %v9410, %v9416
        %v9418 = vrot.slane %v9199, 7
        %v9419 = vsel %vm3756, %v9412, %v9418
        %v9420 = vrot.slane %v9200, 7
        %v9421 = vsel %vm3756, %v9414, %v9420
        %v9422 = vrot.slane %v9201, 7
        %v9423 = vsel %vm3756, %v9416, %v9422
        %v9424 = vrot.slane %v9202, 7
        %v9425 = vsel %vm3756, %v9418, %v9424
        %v9426 = vrot.slane %v9203, 7
        %v9427 = vsel %vm3756, %v9420, %v9426
        %v9428 = vrot.slane %v9204, 7
        %v9429 = vsel %vm3756, %v9422, %v9428
        %v9430 = vrot.slane %v9205, 7
        %v9431 = vsel %vm3756, %v9424, %v9430
        %v9432 = vrot.slane %v9206, 7
        %v9433 = vsel %vm3756, %v9426, %v9432
        %v9434 = vrot.slane %v9207, 7
        %v9435 = vsel %vm3756, %v9428, %v9434
        %v9436 = vrot.slane %v9208, 7
        %v9437 = vsel %vm3756, %v9430, %v9436
        %v9438 = vrot.slane %v9209, 7
        %v9439 = vsel %vm3756, %v9432, %v9438
        %v9440 = vrot.slane %v9210, 7
        %v9441 = vsel %vm3756, %v9434, %v9440
        %v9442 = vrot.slane %v9211, 7
        %v9443 = vsel %vm3756, %v9436, %v9442
        %v9444 = vrot.slane %v9212, 7
        %v9445 = vsel %vm3756, %v9438, %v9444
        %v9446 = vrot.slane %v9213, 7
        %v9447 = vsel %vm3756, %v9440, %v9446
        %v9448 = vrot.slane %v9214, 7
        %v9449 = vsel %vm3756, %v9442, %v9448
        %v9450 = vrot.slane %v9215, 7
        %v9451 = vsel %vm3756, %v9444, %v9450
        %v9452 = vrot.slane %v9216, 7
        %v9453 = vsel %vm3756, %v9446, %v9452
        %v9454 = vrot.slane %v9217, 7
        %v9455 = vsel %vm3756, %v9448, %v9454
        %v9456 = vrot.slane %v9218, 7
        %v9457 = vsel %vm3756, %v9450, %v9456
        %v9458 = vrot.slane %v9219, 7
        %v9459 = vsel %vm3756, %v9452, %v9458
        %v9460 = vrot.slane %v9220, 7
        %v9461 = vsel %vm3756, %v9454, %v9460
        %v9462 = vrot.slane %v9221, 7
        %v9463 = vsel %vm3756, %v9456, %v9462
        %v9464 = vrot.slane %v9222, 7
        %v9465 = vsel %vm3756, %v9458, %v9464
        %v9466 = vrot.slane %v9223, 7
        %v9467 = vsel %vm3756, %v9460, %v9466
        %v9468 = vrot.slane %v9224, 7
        %v9469 = vsel %vm3756, %v9462, %v9468
        %v9470 = vrot.slane %v9225, 7
        %v9471 = vsel %vm3756, %v9464, %v9470
        %v9472 = vrot.slane %v9226, 7
        %v9473 = vsel %vm3756, %v9466, %v9472
        %v9474 = vrot.slane %v9227, 7
        %v9475 = vsel %vm3756, %v9468, %v9474
        %v9476 = vrot.slane %v9228, 7
        %v9477 = vsel %vm3756, %v9470, %v9476
        %v9478 = vrot.slane %v9229, 7
        %v9479 = vsel %vm3756, %v9472, %v9478
        %v9480 = vrot.slane %v9230, 7
        %v9481 = vsel %vm3756, %v9474, %v9480
        %v9482 = vrot.slane %v9231, 7
        %v9483 = vsel %vm3756, %v9476, %v9482
        %v9484 = vrot.slane %v9232, 7
        %v9485 = vsel %vm3756, %v9478, %v9484
        %v9486 = vrot.slane %v9233, 7
        %v9487 = vsel %vm3756, %v9480, %v9486
        %v9488 = vrot.slane %v9234, 7
        %v9489 = vsel %vm3756, %v9482, %v9488
        %v9490 = vrot.slane %v9235, 7
        %v9491 = vsel %vm3756, %v9484, %v9490
        %v9492 = vrot.slane %v9236, 7
        %v9493 = vsel %vm3756, %v9486, %v9492
        %v9494 = vrot.slane %v9237, 7
        %v9495 = vsel %vm3756, %v9488, %v9494
        %v9496 = vrot.slane %v9238, 7
        %v9497 = vsel %vm3756, %v9490, %v9496
        %v9498 = vrot.slane %v9239, 7
        %v9499 = vsel %vm3756, %v9492, %v9498
        %v9500 = vrot.slane %v9240, 7
        %v9501 = vsel %vm3756, %v9494, %v9500
        %v9502 = vrot.slane %v9241, 7
        %v9503 = vsel %vm3756, %v9496, %v9502
        %v9504 = vrot.slane %v9242, 7
        %v9505 = vsel %vm3756, %v9498, %v9504
        %v9506 = vrot.slane %v9243, 7
        %v9507 = vsel %vm3756, %v9500, %v9506
        %v9508 = vrot.slane %v9244, 7
        %v9509 = vsel %vm3756, %v9502, %v9508
        %v9510 = vrot.slane %v9245, 7
        %v9511 = vsel %vm3756, %v9504, %v9510
        %v9512 = vrot.slane %v9246, 7
        %v9513 = vsel %vm3756, %v9506, %v9512
        %v9514 = vrot.slane %v9247, 7
        %v9515 = vsel %vm3756, %v9508, %v9514
        %v9516 = vrot.slane %v9248, 7
        %v9517 = vsel %vm3756, %v9510, %v9516
        %v9518 = vrot.slane %v9249, 7
        %v9519 = vsel %vm3756, %v9512, %v9518
        %v9520 = vrot.slane %v9250, 7
        %v9521 = vsel %vm3756, %v9514, %v9520
        %v9522 = vrot.slane %v9251, 7
        %v9523 = vsel %vm3756, %v9516, %v9522
        %v9524 = vrot.slane %v9252, 7
        %v9525 = vsel %vm3756, %v9518, %v9524
        %v9526 = vrot.slane %v9253, 7
        %v9527 = vsel %vm3756, %v9520, %v9526
        %v9528 = vrot.slane %v9254, 7
        %v9529 = vsel %vm3756, %v9522, %v9528
        %v9530 = vrot.slane %v9255, 7
        %v9531 = vsel %vm3756, %v9524, %v9530
        %v9532 = vrot.slane %v9256, 7
        %v9533 = vsel %vm3756, %v9526, %v9532
        %v9534 = vrot.slane %v9257, 7
        %v9535 = vsel %vm3756, %v9528, %v9534
        %v9536 = vrot.slane %v9258, 7
        %v9537 = vsel %vm3756, %v9530, %v9536
        %v9538 = vrot.slane %v9259, 7
        %v9539 = vsel %vm3756, %v9532, %v9538
        %v9540 = vrot.slane %v9260, 7
        %v9541 = vsel %vm3756, %v9534, %v9540
        %v9542 = vrot.slane %v9261, 7
        %v9543 = vsel %vm3756, %v9536, %v9542
        %v9544 = vrot.slane %v9262, 7
        %v9545 = vsel %vm3756, %v9538, %v9544
        %v9546 = vrot.slane %v9263, 7
        %v9547 = vsel %vm3756, %v9540, %v9546
        %v9548 = vrot.slane %v9264, 7
        %v9549 = vsel %vm3756, %v9542, %v9548
        %v9649 = vsel %vm3756, %v3654, %v9361
        %v9650 = vsel %vm3756, %v3655, %v9362
        %v9651 = vsel %vm3756, %v3656, %v9363
        %v9652 = vpack.c.bf16 %v9650, %v9649
        %v9653 = vpack.c.bf16 %v9651, %v9651
        %v9654 = vpack.c.bf16 %v9367, %v9365
        %v9655 = vpack.c.bf16 %v9369, %v9369
        %v9656 = vpack.c.bf16 %v9373, %v9371
        %v9657 = vpack.c.bf16 %v9375, %v9375
        %v9658 = vpack.c.bf16 %v9379, %v9377
        %v9659 = vpack.c.bf16 %v9381, %v9381
        %v9660 = vpack.c.bf16 %v9385, %v9383
        %v9661 = vpack.c.bf16 %v9387, %v9387
        %v9662 = vpack.c.bf16 %v9391, %v9389
        %v9663 = vpack.c.bf16 %v9393, %v9393
        %v9664 = vpack.c.bf16 %v9397, %v9395
        %v9665 = vpack.c.bf16 %v9399, %v9399
        %v9666 = vpack.c.bf16 %v9403, %v9401
        %v9667 = vpack.c.bf16 %v9405, %v9405
        %v9668 = vpack.c.bf16 %v9409, %v9407
        %v9669 = vpack.c.bf16 %v9411, %v9411
        %v9670 = vpack.c.bf16 %v9415, %v9413
        %v9671 = vpack.c.bf16 %v9417, %v9417
        %v9672 = vpack.c.bf16 %v9421, %v9419
        %v9673 = vpack.c.bf16 %v9423, %v9423
        %v9674 = vpack.c.bf16 %v9427, %v9425
        %v9675 = vpack.c.bf16 %v9429, %v9429
        %v9676 = vpack.c.bf16 %v9433, %v9431
        %v9677 = vpack.c.bf16 %v9435, %v9435
        %v9678 = vpack.c.bf16 %v9439, %v9437
        %v9679 = vpack.c.bf16 %v9441, %v9441
        %v9680 = vpack.c.bf16 %v9445, %v9443
        %v9681 = vpack.c.bf16 %v9447, %v9447
        %v9682 = vpack.c.bf16 %v9451, %v9449
        %v9683 = vpack.c.bf16 %v9453, %v9453
        %v9684 = vpack.c.bf16 %v9457, %v9455
        %v9685 = vpack.c.bf16 %v9459, %v9459
        %v9686 = vpack.c.bf16 %v9463, %v9461
        %v9687 = vpack.c.bf16 %v9465, %v9465
        %v9688 = vpack.c.bf16 %v9469, %v9467
        %v9689 = vpack.c.bf16 %v9471, %v9471
        %v9690 = vpack.c.bf16 %v9475, %v9473
        %v9691 = vpack.c.bf16 %v9477, %v9477
        %v9692 = vpack.c.bf16 %v9481, %v9479
        %v9693 = vpack.c.bf16 %v9483, %v9483
        %v9694 = vpack.c.bf16 %v9487, %v9485
        %v9695 = vpack.c.bf16 %v9489, %v9489
        %v9696 = vpack.c.bf16 %v9493, %v9491
        %v9697 = vpack.c.bf16 %v9495, %v9495
        %v9698 = vpack.c.bf16 %v9499, %v9497
        %v9699 = vpack.c.bf16 %v9501, %v9501
        %v9700 = vpack.c.bf16 %v9505, %v9503
        %v9701 = vpack.c.bf16 %v9507, %v9507
        %v9702 = vpack.c.bf16 %v9511, %v9509
        %v9703 = vpack.c.bf16 %v9513, %v9513
        %v9704 = vpack.c.bf16 %v9517, %v9515
        %v9705 = vpack.c.bf16 %v9519, %v9519
        %v9706 = vpack.c.bf16 %v9523, %v9521
        %v9707 = vpack.c.bf16 %v9525, %v9525
        %v9708 = vpack.c.bf16 %v9529, %v9527
        %v9709 = vpack.c.bf16 %v9531, %v9531
        %v9710 = vpack.c.bf16 %v9535, %v9533
        %v9711 = vpack.c.bf16 %v9537, %v9537
        %v9712 = vpack.c.bf16 %v9541, %v9539
        %v9713 = vpack.c.bf16 %v9543, %v9543
        %v9714 = vpack.c.bf16 %v9547, %v9545
        %v9715 = vpack.c.bf16 %v9549, %v9549
        %v9716 = vpack.c.bf16 %v9546, %v9544
        %v9717 = vpack.c.bf16 %v9548, %v9548
        %s9718 = scalar_lea.vmem %s312, 792
        %9719 = vst [vmem:[%s9718] sm:$0xff] %v9652
        %9720 = vst [vmem:[%s9718 + $0x8] sm:$0xf] %v9653
        %9721 = vst [vmem:[%s9718 + $0xc] sm:$0xff] %v9654
        %9722 = vst [vmem:[%s9718 + $0x14] sm:$0xf] %v9655
        %9723 = vst [vmem:[%s9718 + $0x18] sm:$0xff] %v9656
        %9724 = vst [vmem:[%s9718 + $0x20] sm:$0xf] %v9657
        %9725 = vst [vmem:[%s9718 + $0x24] sm:$0xff] %v9658
        %9726 = vst [vmem:[%s9718 + $0x2c] sm:$0xf] %v9659
        %9727 = vst [vmem:[%s9718 + $0x30] sm:$0xff] %v9660
        %9728 = vst [vmem:[%s9718 + $0x38] sm:$0xf] %v9661
        %9729 = vst [vmem:[%s9718 + $0x3c] sm:$0xff] %v9662
        %9730 = vst [vmem:[%s9718 + $0x44] sm:$0xf] %v9663
        %9731 = vst [vmem:[%s9718 + $0x48] sm:$0xff] %v9664
        %9732 = vst [vmem:[%s9718 + $0x50] sm:$0xf] %v9665
        %9733 = vst [vmem:[%s9718 + $0x54] sm:$0xff] %v9666
        %9734 = vst [vmem:[%s9718 + $0x5c] sm:$0xf] %v9667
        %9735 = vst [vmem:[%s9718 + $0x60] sm:$0xff] %v9668
        %9736 = vst [vmem:[%s9718 + $0x68] sm:$0xf] %v9669
        %9737 = vst [vmem:[%s9718 + $0x6c] sm:$0xff] %v9670
        %9738 = vst [vmem:[%s9718 + $0x74] sm:$0xf] %v9671
        %9739 = vst [vmem:[%s9718 + $0x78] sm:$0xff] %v9672
        %9740 = vst [vmem:[%s9718 + $0x80] sm:$0xf] %v9673
        %9741 = vst [vmem:[%s9718 + $0x84] sm:$0xff] %v9674
        %9742 = vst [vmem:[%s9718 + $0x8c] sm:$0xf] %v9675
        %9743 = vst [vmem:[%s9718 + $0x90] sm:$0xff] %v9676
        %9744 = vst [vmem:[%s9718 + $0x98] sm:$0xf] %v9677
        %9745 = vst [vmem:[%s9718 + $0x9c] sm:$0xff] %v9678
        %9746 = vst [vmem:[%s9718 + $0xa4] sm:$0xf] %v9679
        %9747 = vst [vmem:[%s9718 + $0xa8] sm:$0xff] %v9680
        %9748 = vst [vmem:[%s9718 + $0xb0] sm:$0xf] %v9681
        %9749 = vst [vmem:[%s9718 + $0xb4] sm:$0xff] %v9682
        %9750 = vst [vmem:[%s9718 + $0xbc] sm:$0xf] %v9683
        %9751 = vst [vmem:[%s9718 + $0xc0] sm:$0xff] %v9684
        %9752 = vst [vmem:[%s9718 + $0xc8] sm:$0xf] %v9685
        %9753 = vst [vmem:[%s9718 + $0xcc] sm:$0xff] %v9686
        %9754 = vst [vmem:[%s9718 + $0xd4] sm:$0xf] %v9687
        %9755 = vst [vmem:[%s9718 + $0xd8] sm:$0xff] %v9688
        %9756 = vst [vmem:[%s9718 + $0xe0] sm:$0xf] %v9689
        %9757 = vst [vmem:[%s9718 + $0xe4] sm:$0xff] %v9690
        %9758 = vst [vmem:[%s9718 + $0xec] sm:$0xf] %v9691
        %9759 = vst [vmem:[%s9718 + $0xf0] sm:$0xff] %v9692
        %9760 = vst [vmem:[%s9718 + $0xf8] sm:$0xf] %v9693
        %9761 = vst [vmem:[%s9718 + $0xfc] sm:$0xff] %v9694
        %9762 = vst [vmem:[%s9718 + $0x104] sm:$0xf] %v9695
        %9763 = vst [vmem:[%s9718 + $0x108] sm:$0xff] %v9696
        %9764 = vst [vmem:[%s9718 + $0x110] sm:$0xf] %v9697
        %9765 = vst [vmem:[%s9718 + $0x114] sm:$0xff] %v9698
        %9766 = vst [vmem:[%s9718 + $0x11c] sm:$0xf] %v9699
        %9767 = vst [vmem:[%s9718 + $0x120] sm:$0xff] %v9700
        %9768 = vst [vmem:[%s9718 + $0x128] sm:$0xf] %v9701
        %9769 = vst [vmem:[%s9718 + $0x12c] sm:$0xff] %v9702
        %9770 = vst [vmem:[%s9718 + $0x134] sm:$0xf] %v9703
        %9771 = vst [vmem:[%s9718 + $0x138] sm:$0xff] %v9704
        %9772 = vst [vmem:[%s9718 + $0x140] sm:$0xf] %v9705
        %9773 = vst [vmem:[%s9718 + $0x144] sm:$0xff] %v9706
        %9774 = vst [vmem:[%s9718 + $0x14c] sm:$0xf] %v9707
        %9775 = vst [vmem:[%s9718 + $0x150] sm:$0xff] %v9708
        %9776 = vst [vmem:[%s9718 + $0x158] sm:$0xf] %v9709
        %9777 = vst [vmem:[%s9718 + $0x15c] sm:$0xff] %v9710
        %9778 = vst [vmem:[%s9718 + $0x164] sm:$0xf] %v9711
        %9779 = vst [vmem:[%s9718 + $0x168] sm:$0xff] %v9712
        %9780 = vst [vmem:[%s9718 + $0x170] sm:$0xf] %v9713
        %9781 = vst [vmem:[%s9718 + $0x174] sm:$0xff] %v9714
        %9782 = vst [vmem:[%s9718 + $0x17c] sm:$0xf] %v9715
        %v9783 = vld [vmem:[%s9718 + $0x180] sm:$0x11]
        %v9784 = vsel %vm4184, %v9716, %v9783
        %9785 = vst [vmem:[%s9718 + $0x180] sm:$0x11] %v9784
        %v9786 = vld [vmem:[%s9718 + $0x188] sm:$0x1]
        %v9787 = vsel %vm4180, %v9717, %v9786
        %9788 = vst [vmem:[%s9718 + $0x188] sm:$0x1] %v9787
        %s9789 = scalar_lea.vmem %s257, 2304 [#allocation2]
        %v9790 = vld [vmem:[%s9789] sm:$0xff]
        %v9791 = vld [vmem:[%s9789 + $0x8] sm:$0xff]
        %v9792 = vld [vmem:[%s9789 + $0x10] sm:$0xff]
        %v9793 = vld [vmem:[%s9789 + $0x18] sm:$0xff]
        %v9794 = vld [vmem:[%s9789 + $0x20] sm:$0xff]
        %v9795 = vld [vmem:[%s9789 + $0x28] sm:$0xff]
        %v9796 = vld [vmem:[%s9789 + $0x30] sm:$0xff]
        %v9797 = vld [vmem:[%s9789 + $0x38] sm:$0xff]
        %v9798 = vld [vmem:[%s9789 + $0x40] sm:$0xff]
        %v9799 = vld [vmem:[%s9789 + $0x48] sm:$0xff]
        %v9800 = vld [vmem:[%s9789 + $0x50] sm:$0xff]
        %v9801 = vld [vmem:[%s9789 + $0x58] sm:$0xff]
        %v9802 = vld [vmem:[%s9789 + $0x60] sm:$0xff]
        %v9803 = vld [vmem:[%s9789 + $0x68] sm:$0xff]
        %v9804 = vld [vmem:[%s9789 + $0x70] sm:$0xff]
        %v9805 = vld [vmem:[%s9789 + $0x78] sm:$0xff]
        %v9806 = vld [vmem:[%s9789 + $0x80] sm:$0xff]
        %v9807 = vld [vmem:[%s9789 + $0x88] sm:$0xff]
        %v9808 = vld [vmem:[%s9789 + $0x90] sm:$0xff]
        %v9809 = vld [vmem:[%s9789 + $0x98] sm:$0xff]
        %v9810 = vld [vmem:[%s9789 + $0xa0] sm:$0xff]
        %v9811 = vld [vmem:[%s9789 + $0xa8] sm:$0xff]
        %v9812 = vld [vmem:[%s9789 + $0xb0] sm:$0xff]
        %v9813 = vld [vmem:[%s9789 + $0xb8] sm:$0xff]
        %v9814 = vld [vmem:[%s9789 + $0xc0] sm:$0xff]
        %v9815 = vld [vmem:[%s9789 + $0xc8] sm:$0xff]
        %v9816 = vld [vmem:[%s9789 + $0xd0] sm:$0xff]
        %v9817 = vld [vmem:[%s9789 + $0xd8] sm:$0xff]
        %v9818 = vld [vmem:[%s9789 + $0xe0] sm:$0xff]
        %v9819 = vld [vmem:[%s9789 + $0xe8] sm:$0xff]
        %v9820 = vld [vmem:[%s9789 + $0xf0] sm:$0xff]
        %v9821 = vld [vmem:[%s9789 + $0xf8] sm:$0xff]
        %v9822 = vld [vmem:[%s9789 + $0x100] sm:$0xff]
        %v9823 = vld [vmem:[%s9789 + $0x108] sm:$0xff]
        %v9824 = vld [vmem:[%s9789 + $0x110] sm:$0xff]
        %v9825 = vld [vmem:[%s9789 + $0x118] sm:$0xff]
        %v9826 = vld [vmem:[%s9789 + $0x120] sm:$0xff]
        %v9827 = vld [vmem:[%s9789 + $0x128] sm:$0xff]
        %v9828 = vld [vmem:[%s9789 + $0x130] sm:$0xff]
        %v9829 = vld [vmem:[%s9789 + $0x138] sm:$0xff]
        %v9830 = vld [vmem:[%s9789 + $0x140] sm:$0xff]
        %v9831 = vld [vmem:[%s9789 + $0x148] sm:$0xff]
        %v9832 = vld [vmem:[%s9789 + $0x150] sm:$0xff]
        %v9833 = vld [vmem:[%s9789 + $0x158] sm:$0xff]
        %v9834 = vld [vmem:[%s9789 + $0x160] sm:$0xff]
        %v9835 = vld [vmem:[%s9789 + $0x168] sm:$0xff]
        %v9836 = vld [vmem:[%s9789 + $0x170] sm:$0xff]
        %v9837 = vld [vmem:[%s9789 + $0x178] sm:$0xff]
        %v9838 = vld [vmem:[%s9789 + $0x180] sm:$0xff]
        %v9839 = vld [vmem:[%s9789 + $0x188] sm:$0xff]
        %v9840 = vld [vmem:[%s9789 + $0x190] sm:$0xff]
        %v9841 = vld [vmem:[%s9789 + $0x198] sm:$0xff]
        %v9842 = vld [vmem:[%s9789 + $0x1a0] sm:$0xff]
        %v9843 = vld [vmem:[%s9789 + $0x1a8] sm:$0xff]
        %v9844 = vld [vmem:[%s9789 + $0x1b0] sm:$0xff]
        %v9845 = vld [vmem:[%s9789 + $0x1b8] sm:$0xff]
        %v9846 = vld [vmem:[%s9789 + $0x1c0] sm:$0xff]
        %v9847 = vld [vmem:[%s9789 + $0x1c8] sm:$0xff]
        %v9848 = vld [vmem:[%s9789 + $0x1d0] sm:$0xff]
        %v9849 = vld [vmem:[%s9789 + $0x1d8] sm:$0xff]
        %v9850 = vld [vmem:[%s9789 + $0x1e0] sm:$0xff]
        %v9851 = vld [vmem:[%s9789 + $0x1e8] sm:$0xff]
        %v9852 = vld [vmem:[%s9789 + $0x1f0] sm:$0xff]
        %v9853 = vld [vmem:[%s9789 + $0x1f8] sm:$0xff]
        %v9854 = vld [vmem:[%s9789 + $0x200] sm:$0xff]
        %v9855 = vld [vmem:[%s9789 + $0x208] sm:$0xff]
        %v9856 = vld [vmem:[%s9789 + $0x210] sm:$0xff]
        %v9857 = vld [vmem:[%s9789 + $0x218] sm:$0xff]
        %v9858 = vld [vmem:[%s9789 + $0x220] sm:$0xff]
        %v9859 = vld [vmem:[%s9789 + $0x228] sm:$0xff]
        %v9860 = vld [vmem:[%s9789 + $0x230] sm:$0xff]
        %v9861 = vld [vmem:[%s9789 + $0x238] sm:$0xff]
        %v9862 = vld [vmem:[%s9789 + $0x240] sm:$0xff]
        %v9863 = vld [vmem:[%s9789 + $0x248] sm:$0xff]
        %v9864 = vld [vmem:[%s9789 + $0x250] sm:$0xff]
        %v9865 = vld [vmem:[%s9789 + $0x258] sm:$0xff]
        %v9866 = vld [vmem:[%s9789 + $0x260] sm:$0xff]
        %v9867 = vld [vmem:[%s9789 + $0x268] sm:$0xff]
        %v9868 = vld [vmem:[%s9789 + $0x270] sm:$0xff]
        %v9869 = vld [vmem:[%s9789 + $0x278] sm:$0xff]
        %v9870 = vld [vmem:[%s9789 + $0x280] sm:$0xff]
        %v9871 = vld [vmem:[%s9789 + $0x288] sm:$0xff]
        %v9872 = vld [vmem:[%s9789 + $0x290] sm:$0xff]
        %v9873 = vld [vmem:[%s9789 + $0x298] sm:$0xff]
        %v9874 = vld [vmem:[%s9789 + $0x2a0] sm:$0xff]
        %v9875 = vld [vmem:[%s9789 + $0x2a8] sm:$0xff]
        %v9876 = vld [vmem:[%s9789 + $0x2b0] sm:$0xff]
        %v9877 = vld [vmem:[%s9789 + $0x2b8] sm:$0xff]
        %v9878 = vld [vmem:[%s9789 + $0x2c0] sm:$0xff]
        %v9879 = vld [vmem:[%s9789 + $0x2c8] sm:$0xff]
        %v9880 = vld [vmem:[%s9789 + $0x2d0] sm:$0xff]
        %v9881 = vld [vmem:[%s9789 + $0x2d8] sm:$0xff]
        %v9882 = vld [vmem:[%s9789 + $0x2e0] sm:$0xff]
        %v9883 = vld [vmem:[%s9789 + $0x2e8] sm:$0xff]
        %v9884 = vld [vmem:[%s9789 + $0x2f0] sm:$0xff]
        %v9885 = vld [vmem:[%s9789 + $0x2f8] sm:$0xff]
        %v9982 = vunpack.c.l.b16 %v9790
        %v9983 = vunpack.c.h.b16 %v9790
        %v9984 = vunpack.c.l.b16 %v9791
        %v9985 = vunpack.c.h.b16 %v9791
        %v9986 = vunpack.c.l.b16 %v9792
        %v9987 = vunpack.c.h.b16 %v9792
        %v9988 = vunpack.c.l.b16 %v9793
        %v9989 = vunpack.c.h.b16 %v9793
        %v9990 = vunpack.c.l.b16 %v9794
        %v9991 = vunpack.c.h.b16 %v9794
        %v9992 = vunpack.c.l.b16 %v9795
        %v9993 = vunpack.c.h.b16 %v9795
        %v9994 = vunpack.c.l.b16 %v9796
        %v9995 = vunpack.c.h.b16 %v9796
        %v9996 = vunpack.c.l.b16 %v9797
        %v9997 = vunpack.c.h.b16 %v9797
        %v9998 = vunpack.c.l.b16 %v9798
        %v9999 = vunpack.c.h.b16 %v9798
        %v10000 = vunpack.c.l.b16 %v9799
        %v10001 = vunpack.c.h.b16 %v9799
        %v10002 = vunpack.c.l.b16 %v9800
        %v10003 = vunpack.c.h.b16 %v9800
        %v10004 = vunpack.c.l.b16 %v9801
        %v10005 = vunpack.c.h.b16 %v9801
        %v10006 = vunpack.c.l.b16 %v9802
        %v10007 = vunpack.c.h.b16 %v9802
        %v10008 = vunpack.c.l.b16 %v9803
        %v10009 = vunpack.c.h.b16 %v9803
        %v10010 = vunpack.c.l.b16 %v9804
        %v10011 = vunpack.c.h.b16 %v9804
        %v10012 = vunpack.c.l.b16 %v9805
        %v10013 = vunpack.c.h.b16 %v9805
        %v10014 = vunpack.c.l.b16 %v9806
        %v10015 = vunpack.c.h.b16 %v9806
        %v10016 = vunpack.c.l.b16 %v9807
        %v10017 = vunpack.c.h.b16 %v9807
        %v10018 = vunpack.c.l.b16 %v9808
        %v10019 = vunpack.c.h.b16 %v9808
        %v10020 = vunpack.c.l.b16 %v9809
        %v10021 = vunpack.c.h.b16 %v9809
        %v10022 = vunpack.c.l.b16 %v9810
        %v10023 = vunpack.c.h.b16 %v9810
        %v10024 = vunpack.c.l.b16 %v9811
        %v10025 = vunpack.c.h.b16 %v9811
        %v10026 = vunpack.c.l.b16 %v9812
        %v10027 = vunpack.c.h.b16 %v9812
        %v10028 = vunpack.c.l.b16 %v9813
        %v10029 = vunpack.c.h.b16 %v9813
        %v10030 = vunpack.c.l.b16 %v9814
        %v10031 = vunpack.c.h.b16 %v9814
        %v10032 = vunpack.c.l.b16 %v9815
        %v10033 = vunpack.c.h.b16 %v9815
        %v10034 = vunpack.c.l.b16 %v9816
        %v10035 = vunpack.c.h.b16 %v9816
        %v10036 = vunpack.c.l.b16 %v9817
        %v10037 = vunpack.c.h.b16 %v9817
        %v10038 = vunpack.c.l.b16 %v9818
        %v10039 = vunpack.c.h.b16 %v9818
        %v10040 = vunpack.c.l.b16 %v9819
        %v10041 = vunpack.c.h.b16 %v9819
        %v10042 = vunpack.c.l.b16 %v9820
        %v10043 = vunpack.c.h.b16 %v9820
        %v10044 = vunpack.c.l.b16 %v9821
        %v10045 = vunpack.c.h.b16 %v9821
        %v10046 = vunpack.c.l.b16 %v9822
        %v10047 = vunpack.c.h.b16 %v9822
        %v10048 = vunpack.c.l.b16 %v9823
        %v10049 = vunpack.c.h.b16 %v9823
        %v10050 = vunpack.c.l.b16 %v9824
        %v10051 = vunpack.c.h.b16 %v9824
        %v10052 = vunpack.c.l.b16 %v9825
        %v10053 = vunpack.c.h.b16 %v9825
        %v10054 = vunpack.c.l.b16 %v9826
        %v10055 = vunpack.c.h.b16 %v9826
        %v10056 = vunpack.c.l.b16 %v9827
        %v10057 = vunpack.c.h.b16 %v9827
        %v10058 = vunpack.c.l.b16 %v9828
        %v10059 = vunpack.c.h.b16 %v9828
        %v10060 = vunpack.c.l.b16 %v9829
        %v10061 = vunpack.c.h.b16 %v9829
        %v10062 = vunpack.c.l.b16 %v9830
        %v10063 = vunpack.c.h.b16 %v9830
        %v10064 = vunpack.c.l.b16 %v9831
        %v10065 = vunpack.c.h.b16 %v9831
        %v10066 = vunpack.c.l.b16 %v9832
        %v10067 = vunpack.c.h.b16 %v9832
        %v10068 = vunpack.c.l.b16 %v9833
        %v10069 = vunpack.c.h.b16 %v9833
        %v10070 = vunpack.c.l.b16 %v9834
        %v10071 = vunpack.c.h.b16 %v9834
        %v10072 = vunpack.c.l.b16 %v9835
        %v10073 = vunpack.c.h.b16 %v9835
        %v10074 = vunpack.c.l.b16 %v9836
        %v10075 = vunpack.c.h.b16 %v9836
        %v10076 = vunpack.c.l.b16 %v9837
        %v10077 = vunpack.c.h.b16 %v9837
        %v10078 = vunpack.c.l.b16 %v9838
        %v10079 = vunpack.c.h.b16 %v9838
        %v10080 = vunpack.c.l.b16 %v9839
        %v10081 = vunpack.c.h.b16 %v9839
        %v10082 = vunpack.c.l.b16 %v9840
        %v10083 = vunpack.c.h.b16 %v9840
        %v10084 = vunpack.c.l.b16 %v9841
        %v10085 = vunpack.c.h.b16 %v9841
        %v10086 = vunpack.c.l.b16 %v9842
        %v10087 = vunpack.c.h.b16 %v9842
        %v10088 = vunpack.c.l.b16 %v9843
        %v10089 = vunpack.c.h.b16 %v9843
        %v10090 = vunpack.c.l.b16 %v9844
        %v10091 = vunpack.c.h.b16 %v9844
        %v10092 = vunpack.c.l.b16 %v9845
        %v10093 = vunpack.c.h.b16 %v9845
        %v10094 = vunpack.c.l.b16 %v9846
        %v10095 = vunpack.c.h.b16 %v9846
        %v10096 = vunpack.c.l.b16 %v9847
        %v10097 = vunpack.c.h.b16 %v9847
        %v10098 = vunpack.c.l.b16 %v9848
        %v10099 = vunpack.c.h.b16 %v9848
        %v10100 = vunpack.c.l.b16 %v9849
        %v10101 = vunpack.c.h.b16 %v9849
        %v10102 = vunpack.c.l.b16 %v9850
        %v10103 = vunpack.c.h.b16 %v9850
        %v10104 = vunpack.c.l.b16 %v9851
        %v10105 = vunpack.c.h.b16 %v9851
        %v10106 = vunpack.c.l.b16 %v9852
        %v10107 = vunpack.c.h.b16 %v9852
        %v10108 = vunpack.c.l.b16 %v9853
        %v10109 = vunpack.c.h.b16 %v9853
        %v10110 = vunpack.c.l.b16 %v9854
        %v10111 = vunpack.c.h.b16 %v9854
        %v10112 = vunpack.c.l.b16 %v9855
        %v10113 = vunpack.c.h.b16 %v9855
        %v10114 = vunpack.c.l.b16 %v9856
        %v10115 = vunpack.c.h.b16 %v9856
        %v10116 = vunpack.c.l.b16 %v9857
        %v10117 = vunpack.c.h.b16 %v9857
        %v10118 = vunpack.c.l.b16 %v9858
        %v10119 = vunpack.c.h.b16 %v9858
        %v10120 = vunpack.c.l.b16 %v9859
        %v10121 = vunpack.c.h.b16 %v9859
        %v10122 = vunpack.c.l.b16 %v9860
        %v10123 = vunpack.c.h.b16 %v9860
        %v10124 = vunpack.c.l.b16 %v9861
        %v10125 = vunpack.c.h.b16 %v9861
        %v10126 = vunpack.c.l.b16 %v9862
        %v10127 = vunpack.c.h.b16 %v9862
        %v10128 = vunpack.c.l.b16 %v9863
        %v10129 = vunpack.c.h.b16 %v9863
        %v10130 = vunpack.c.l.b16 %v9864
        %v10131 = vunpack.c.h.b16 %v9864
        %v10132 = vunpack.c.l.b16 %v9865
        %v10133 = vunpack.c.h.b16 %v9865
        %v10134 = vunpack.c.l.b16 %v9866
        %v10135 = vunpack.c.h.b16 %v9866
        %v10136 = vunpack.c.l.b16 %v9867
        %v10137 = vunpack.c.h.b16 %v9867
        %v10138 = vunpack.c.l.b16 %v9868
        %v10139 = vunpack.c.h.b16 %v9868
        %v10140 = vunpack.c.l.b16 %v9869
        %v10141 = vunpack.c.h.b16 %v9869
        %v10142 = vunpack.c.l.b16 %v9870
        %v10143 = vunpack.c.h.b16 %v9870
        %v10144 = vunpack.c.l.b16 %v9871
        %v10145 = vunpack.c.h.b16 %v9871
        %v10146 = vunpack.c.l.b16 %v9872
        %v10147 = vunpack.c.h.b16 %v9872
        %v10148 = vunpack.c.l.b16 %v9873
        %v10149 = vunpack.c.h.b16 %v9873
        %v10150 = vunpack.c.l.b16 %v9874
        %v10151 = vunpack.c.h.b16 %v9874
        %v10152 = vunpack.c.l.b16 %v9875
        %v10153 = vunpack.c.h.b16 %v9875
        %v10154 = vunpack.c.l.b16 %v9876
        %v10155 = vunpack.c.h.b16 %v9876
        %v10156 = vunpack.c.l.b16 %v9877
        %v10157 = vunpack.c.h.b16 %v9877
        %v10158 = vunpack.c.l.b16 %v9878
        %v10159 = vunpack.c.h.b16 %v9878
        %v10160 = vunpack.c.l.b16 %v9879
        %v10161 = vunpack.c.h.b16 %v9879
        %v10162 = vunpack.c.l.b16 %v9880
        %v10163 = vunpack.c.h.b16 %v9880
        %v10164 = vunpack.c.l.b16 %v9881
        %v10165 = vunpack.c.h.b16 %v9881
        %v10166 = vunpack.c.l.b16 %v9882
        %v10167 = vunpack.c.h.b16 %v9882
        %v10168 = vunpack.c.l.b16 %v9883
        %v10169 = vunpack.c.h.b16 %v9883
        %v10170 = vunpack.c.l.b16 %v9884
        %v10171 = vunpack.c.h.b16 %v9884
        %v10172 = vunpack.c.l.b16 %v9885
        %v10173 = vunpack.c.h.b16 %v9885
        %v10174 = vpack.c.b16 %v9988, %v9982
        %v10175 = vpack.c.b16 %v9989, %v9983
        %v10176 = vpack.c.b16 %v9990, %v9984
        %v10177 = vpack.c.b16 %v9991, %v9985
        %v10178 = vpack.c.b16 %v9992, %v9986
        %v10179 = vpack.c.b16 %v9993, %v9987
        %v10180 = vpack.c.b16 %v10000, %v9994
        %v10181 = vpack.c.b16 %v10001, %v9995
        %v10182 = vpack.c.b16 %v10002, %v9996
        %v10183 = vpack.c.b16 %v10003, %v9997
        %v10184 = vpack.c.b16 %v10004, %v9998
        %v10185 = vpack.c.b16 %v10005, %v9999
        %v10186 = vpack.c.b16 %v10012, %v10006
        %v10187 = vpack.c.b16 %v10013, %v10007
        %v10188 = vpack.c.b16 %v10014, %v10008
        %v10189 = vpack.c.b16 %v10015, %v10009
        %v10190 = vpack.c.b16 %v10016, %v10010
        %v10191 = vpack.c.b16 %v10017, %v10011
        %v10192 = vpack.c.b16 %v10024, %v10018
        %v10193 = vpack.c.b16 %v10025, %v10019
        %v10194 = vpack.c.b16 %v10026, %v10020
        %v10195 = vpack.c.b16 %v10027, %v10021
        %v10196 = vpack.c.b16 %v10028, %v10022
        %v10197 = vpack.c.b16 %v10029, %v10023
        %v10198 = vpack.c.b16 %v10036, %v10030
        %v10199 = vpack.c.b16 %v10037, %v10031
        %v10200 = vpack.c.b16 %v10038, %v10032
        %v10201 = vpack.c.b16 %v10039, %v10033
        %v10202 = vpack.c.b16 %v10040, %v10034
        %v10203 = vpack.c.b16 %v10041, %v10035
        %v10204 = vpack.c.b16 %v10048, %v10042
        %v10205 = vpack.c.b16 %v10049, %v10043
        %v10206 = vpack.c.b16 %v10050, %v10044
        %v10207 = vpack.c.b16 %v10051, %v10045
        %v10208 = vpack.c.b16 %v10052, %v10046
        %v10209 = vpack.c.b16 %v10053, %v10047
        %v10210 = vpack.c.b16 %v10060, %v10054
        %v10211 = vpack.c.b16 %v10061, %v10055
        %v10212 = vpack.c.b16 %v10062, %v10056
        %v10213 = vpack.c.b16 %v10063, %v10057
        %v10214 = vpack.c.b16 %v10064, %v10058
        %v10215 = vpack.c.b16 %v10065, %v10059
        %v10216 = vpack.c.b16 %v10072, %v10066
        %v10217 = vpack.c.b16 %v10073, %v10067
        %v10218 = vpack.c.b16 %v10074, %v10068
        %v10219 = vpack.c.b16 %v10075, %v10069
        %v10220 = vpack.c.b16 %v10076, %v10070
        %v10221 = vpack.c.b16 %v10077, %v10071
        %v10222 = vpack.c.b16 %v10084, %v10078
        %v10223 = vpack.c.b16 %v10085, %v10079
        %v10224 = vpack.c.b16 %v10086, %v10080
        %v10225 = vpack.c.b16 %v10087, %v10081
        %v10226 = vpack.c.b16 %v10088, %v10082
        %v10227 = vpack.c.b16 %v10089, %v10083
        %v10228 = vpack.c.b16 %v10096, %v10090
        %v10229 = vpack.c.b16 %v10097, %v10091
        %v10230 = vpack.c.b16 %v10098, %v10092
        %v10231 = vpack.c.b16 %v10099, %v10093
        %v10232 = vpack.c.b16 %v10100, %v10094
        %v10233 = vpack.c.b16 %v10101, %v10095
        %v10234 = vpack.c.b16 %v10108, %v10102
        %v10235 = vpack.c.b16 %v10109, %v10103
        %v10236 = vpack.c.b16 %v10110, %v10104
        %v10237 = vpack.c.b16 %v10111, %v10105
        %v10238 = vpack.c.b16 %v10112, %v10106
        %v10239 = vpack.c.b16 %v10113, %v10107
        %v10240 = vpack.c.b16 %v10120, %v10114
        %v10241 = vpack.c.b16 %v10121, %v10115
        %v10242 = vpack.c.b16 %v10122, %v10116
        %v10243 = vpack.c.b16 %v10123, %v10117
        %v10244 = vpack.c.b16 %v10124, %v10118
        %v10245 = vpack.c.b16 %v10125, %v10119
        %v10246 = vpack.c.b16 %v10132, %v10126
        %v10247 = vpack.c.b16 %v10133, %v10127
        %v10248 = vpack.c.b16 %v10134, %v10128
        %v10249 = vpack.c.b16 %v10135, %v10129
        %v10250 = vpack.c.b16 %v10136, %v10130
        %v10251 = vpack.c.b16 %v10137, %v10131
        %v10252 = vpack.c.b16 %v10144, %v10138
        %v10253 = vpack.c.b16 %v10145, %v10139
        %v10254 = vpack.c.b16 %v10146, %v10140
        %v10255 = vpack.c.b16 %v10147, %v10141
        %v10256 = vpack.c.b16 %v10148, %v10142
        %v10257 = vpack.c.b16 %v10149, %v10143
        %v10258 = vpack.c.b16 %v10156, %v10150
        %v10259 = vpack.c.b16 %v10157, %v10151
        %v10260 = vpack.c.b16 %v10158, %v10152
        %v10261 = vpack.c.b16 %v10159, %v10153
        %v10262 = vpack.c.b16 %v10160, %v10154
        %v10263 = vpack.c.b16 %v10161, %v10155
        %v10264 = vpack.c.b16 %v10168, %v10162
        %v10265 = vpack.c.b16 %v10169, %v10163
        %v10266 = vpack.c.b16 %v10170, %v10164
        %v10267 = vpack.c.b16 %v10171, %v10165
        %v10268 = vpack.c.b16 %v10172, %v10166
        %v10269 = vpack.c.b16 %v10173, %v10167
        %10366 = vmatpush.bf16.msra.mxu0 %v1688
        %10367 = vmatpush.bf16.msra.mxu0 %v1685
        %10368 = vmatpush.bf16.msra.mxu0 %v1682
        %10369 = vmatpush.bf16.msra.mxu0 %v1679
        %10370 = vmatpush.bf16.msra.mxu0 %v1676
        %10371 = vmatpush.bf16.msra.mxu0 %v1673
        %10372 = vmatpush.bf16.msra.mxu0 %v1670
        %10373 = vmatpush.bf16.msra.mxu0 %v1667
        %10374 = vmatmul.bf16.gmra.mxu0 %v10174
        %v10375 = vpop.f32.mrf.mxu0
        %v10376 = vadd.f32 %v701, %v10375
        %v10377 = vpop.f32.mrf.mxu0
        %v10378 = vadd.f32 %v701, %v10377
        %10379 = vmatmul.bf16.gmra.mxu0 %v10180
        %v10380 = vpop.f32.mrf.mxu0
        %v10381 = vadd.f32 %v701, %v10380
        %v10382 = vpop.f32.mrf.mxu0
        %v10383 = vadd.f32 %v701, %v10382
        %10384 = vmatmul.bf16.gmra.mxu0 %v10186
        %v10385 = vpop.f32.mrf.mxu0
        %v10386 = vadd.f32 %v701, %v10385
        %v10387 = vpop.f32.mrf.mxu0
        %v10388 = vadd.f32 %v701, %v10387
        %10389 = vmatmul.bf16.gmra.mxu0 %v10192
        %v10390 = vpop.f32.mrf.mxu0
        %v10391 = vadd.f32 %v701, %v10390
        %v10392 = vpop.f32.mrf.mxu0
        %v10393 = vadd.f32 %v701, %v10392
        %10394 = vmatmul.bf16.gmra.mxu0 %v10198
        %v10395 = vpop.f32.mrf.mxu0
        %v10396 = vadd.f32 %v701, %v10395
        %v10397 = vpop.f32.mrf.mxu0
        %v10398 = vadd.f32 %v701, %v10397
        %10399 = vmatmul.bf16.gmra.mxu0 %v10204
        %v10400 = vpop.f32.mrf.mxu0
        %v10401 = vadd.f32 %v701, %v10400
        %v10402 = vpop.f32.mrf.mxu0
        %v10403 = vadd.f32 %v701, %v10402
        %10404 = vmatmul.bf16.gmra.mxu0 %v10210
        %v10405 = vpop.f32.mrf.mxu0
        %v10406 = vadd.f32 %v701, %v10405
        %v10407 = vpop.f32.mrf.mxu0
        %v10408 = vadd.f32 %v701, %v10407
        %10409 = vmatmul.bf16.gmra.mxu0 %v10216
        %v10410 = vpop.f32.mrf.mxu0
        %v10411 = vadd.f32 %v701, %v10410
        %v10412 = vpop.f32.mrf.mxu0
        %v10413 = vadd.f32 %v701, %v10412
        %10414 = vmatmul.bf16.gmra.mxu0 %v10222
        %v10415 = vpop.f32.mrf.mxu0
        %v10416 = vadd.f32 %v701, %v10415
        %v10417 = vpop.f32.mrf.mxu0
        %v10418 = vadd.f32 %v701, %v10417
        %10419 = vmatmul.bf16.gmra.mxu0 %v10228
        %v10420 = vpop.f32.mrf.mxu0
        %v10421 = vadd.f32 %v701, %v10420
        %v10422 = vpop.f32.mrf.mxu0
        %v10423 = vadd.f32 %v701, %v10422
        %10424 = vmatmul.bf16.gmra.mxu0 %v10234
        %v10425 = vpop.f32.mrf.mxu0
        %v10426 = vadd.f32 %v701, %v10425
        %v10427 = vpop.f32.mrf.mxu0
        %v10428 = vadd.f32 %v701, %v10427
        %10429 = vmatmul.bf16.gmra.mxu0 %v10240
        %v10430 = vpop.f32.mrf.mxu0
        %v10431 = vadd.f32 %v701, %v10430
        %v10432 = vpop.f32.mrf.mxu0
        %v10433 = vadd.f32 %v701, %v10432
        %10434 = vmatmul.bf16.gmra.mxu0 %v10246
        %v10435 = vpop.f32.mrf.mxu0
        %v10436 = vadd.f32 %v701, %v10435
        %v10437 = vpop.f32.mrf.mxu0
        %v10438 = vadd.f32 %v701, %v10437
        %10439 = vmatmul.bf16.gmra.mxu0 %v10252
        %v10440 = vpop.f32.mrf.mxu0
        %v10441 = vadd.f32 %v701, %v10440
        %v10442 = vpop.f32.mrf.mxu0
        %v10443 = vadd.f32 %v701, %v10442
        %10444 = vmatmul.bf16.gmra.mxu0 %v10258
        %v10445 = vpop.f32.mrf.mxu0
        %v10446 = vadd.f32 %v701, %v10445
        %v10447 = vpop.f32.mrf.mxu0
        %v10448 = vadd.f32 %v701, %v10447
        %10449 = vmatmul.bf16.gmra.mxu0 %v10264
        %v10450 = vpop.f32.mrf.mxu0
        %v10451 = vadd.f32 %v701, %v10450
        %v10452 = vpop.f32.mrf.mxu0
        %v10453 = vadd.f32 %v701, %v10452
        %10454 = vdwg.mxu0
        %10455 = vmatpush.bf16.msra.mxu0 %v1712
        %10456 = vmatpush.bf16.msra.mxu0 %v1709
        %10457 = vmatpush.bf16.msra.mxu0 %v1706
        %10458 = vmatpush.bf16.msra.mxu0 %v1703
        %10459 = vmatpush.bf16.msra.mxu0 %v1700
        %10460 = vmatpush.bf16.msra.mxu0 %v1697
        %10461 = vmatpush.bf16.msra.mxu0 %v1694
        %10462 = vmatpush.bf16.msra.mxu0 %v1691
        %10463 = vmatmul.bf16.gmra.mxu0 %v10175
        %v10464 = vpop.f32.mrf.mxu0
        %v10465 = vadd.f32 %v10376, %v10464
        %v10466 = vpop.f32.mrf.mxu0
        %v10467 = vadd.f32 %v10378, %v10466
        %10468 = vmatmul.bf16.gmra.mxu0 %v10181
        %v10469 = vpop.f32.mrf.mxu0
        %v10470 = vadd.f32 %v10381, %v10469
        %v10471 = vpop.f32.mrf.mxu0
        %v10472 = vadd.f32 %v10383, %v10471
        %10473 = vmatmul.bf16.gmra.mxu0 %v10187
        %v10474 = vpop.f32.mrf.mxu0
        %v10475 = vadd.f32 %v10386, %v10474
        %v10476 = vpop.f32.mrf.mxu0
        %v10477 = vadd.f32 %v10388, %v10476
        %10478 = vmatmul.bf16.gmra.mxu0 %v10193
        %v10479 = vpop.f32.mrf.mxu0
        %v10480 = vadd.f32 %v10391, %v10479
        %v10481 = vpop.f32.mrf.mxu0
        %v10482 = vadd.f32 %v10393, %v10481
        %10483 = vmatmul.bf16.gmra.mxu0 %v10199
        %v10484 = vpop.f32.mrf.mxu0
        %v10485 = vadd.f32 %v10396, %v10484
        %v10486 = vpop.f32.mrf.mxu0
        %v10487 = vadd.f32 %v10398, %v10486
        %10488 = vmatmul.bf16.gmra.mxu0 %v10205
        %v10489 = vpop.f32.mrf.mxu0
        %v10490 = vadd.f32 %v10401, %v10489
        %v10491 = vpop.f32.mrf.mxu0
        %v10492 = vadd.f32 %v10403, %v10491
        %10493 = vmatmul.bf16.gmra.mxu0 %v10211
        %v10494 = vpop.f32.mrf.mxu0
        %v10495 = vadd.f32 %v10406, %v10494
        %v10496 = vpop.f32.mrf.mxu0
        %v10497 = vadd.f32 %v10408, %v10496
        %10498 = vmatmul.bf16.gmra.mxu0 %v10217
        %v10499 = vpop.f32.mrf.mxu0
        %v10500 = vadd.f32 %v10411, %v10499
        %v10501 = vpop.f32.mrf.mxu0
        %v10502 = vadd.f32 %v10413, %v10501
        %10503 = vmatmul.bf16.gmra.mxu0 %v10223
        %v10504 = vpop.f32.mrf.mxu0
        %v10505 = vadd.f32 %v10416, %v10504
        %v10506 = vpop.f32.mrf.mxu0
        %v10507 = vadd.f32 %v10418, %v10506
        %10508 = vmatmul.bf16.gmra.mxu0 %v10229
        %v10509 = vpop.f32.mrf.mxu0
        %v10510 = vadd.f32 %v10421, %v10509
        %v10511 = vpop.f32.mrf.mxu0
        %v10512 = vadd.f32 %v10423, %v10511
        %10513 = vmatmul.bf16.gmra.mxu0 %v10235
        %v10514 = vpop.f32.mrf.mxu0
        %v10515 = vadd.f32 %v10426, %v10514
        %v10516 = vpop.f32.mrf.mxu0
        %v10517 = vadd.f32 %v10428, %v10516
        %10518 = vmatmul.bf16.gmra.mxu0 %v10241
        %v10519 = vpop.f32.mrf.mxu0
        %v10520 = vadd.f32 %v10431, %v10519
        %v10521 = vpop.f32.mrf.mxu0
        %v10522 = vadd.f32 %v10433, %v10521
        %10523 = vmatmul.bf16.gmra.mxu0 %v10247
        %v10524 = vpop.f32.mrf.mxu0
        %v10525 = vadd.f32 %v10436, %v10524
        %v10526 = vpop.f32.mrf.mxu0
        %v10527 = vadd.f32 %v10438, %v10526
        %10528 = vmatmul.bf16.gmra.mxu0 %v10253
        %v10529 = vpop.f32.mrf.mxu0
        %v10530 = vadd.f32 %v10441, %v10529
        %v10531 = vpop.f32.mrf.mxu0
        %v10532 = vadd.f32 %v10443, %v10531
        %10533 = vmatmul.bf16.gmra.mxu0 %v10259
        %v10534 = vpop.f32.mrf.mxu0
        %v10535 = vadd.f32 %v10446, %v10534
        %v10536 = vpop.f32.mrf.mxu0
        %v10537 = vadd.f32 %v10448, %v10536
        %10538 = vmatmul.bf16.gmra.mxu0 %v10265
        %v10539 = vpop.f32.mrf.mxu0
        %v10540 = vadd.f32 %v10451, %v10539
        %v10541 = vpop.f32.mrf.mxu0
        %v10542 = vadd.f32 %v10453, %v10541
        %10543 = vdwg.mxu0
        %10544 = vmatpush.bf16.msra.mxu0 %v1736
        %10545 = vmatpush.bf16.msra.mxu0 %v1733
        %10546 = vmatpush.bf16.msra.mxu0 %v1730
        %10547 = vmatpush.bf16.msra.mxu0 %v1727
        %10548 = vmatpush.bf16.msra.mxu0 %v1724
        %10549 = vmatpush.bf16.msra.mxu0 %v1721
        %10550 = vmatpush.bf16.msra.mxu0 %v1718
        %10551 = vmatpush.bf16.msra.mxu0 %v1715
        %10552 = vmatmul.bf16.gmra.mxu0 %v10176
        %v10553 = vpop.f32.mrf.mxu0
        %v10554 = vadd.f32 %v10465, %v10553
        %v10555 = vpop.f32.mrf.mxu0
        %v10556 = vadd.f32 %v10467, %v10555
        %10557 = vmatmul.bf16.gmra.mxu0 %v10182
        %v10558 = vpop.f32.mrf.mxu0
        %v10559 = vadd.f32 %v10470, %v10558
        %v10560 = vpop.f32.mrf.mxu0
        %v10561 = vadd.f32 %v10472, %v10560
        %10562 = vmatmul.bf16.gmra.mxu0 %v10188
        %v10563 = vpop.f32.mrf.mxu0
        %v10564 = vadd.f32 %v10475, %v10563
        %v10565 = vpop.f32.mrf.mxu0
        %v10566 = vadd.f32 %v10477, %v10565
        %10567 = vmatmul.bf16.gmra.mxu0 %v10194
        %v10568 = vpop.f32.mrf.mxu0
        %v10569 = vadd.f32 %v10480, %v10568
        %v10570 = vpop.f32.mrf.mxu0
        %v10571 = vadd.f32 %v10482, %v10570
        %10572 = vmatmul.bf16.gmra.mxu0 %v10200
        %v10573 = vpop.f32.mrf.mxu0
        %v10574 = vadd.f32 %v10485, %v10573
        %v10575 = vpop.f32.mrf.mxu0
        %v10576 = vadd.f32 %v10487, %v10575
        %10577 = vmatmul.bf16.gmra.mxu0 %v10206
        %v10578 = vpop.f32.mrf.mxu0
        %v10579 = vadd.f32 %v10490, %v10578
        %v10580 = vpop.f32.mrf.mxu0
        %v10581 = vadd.f32 %v10492, %v10580
        %10582 = vmatmul.bf16.gmra.mxu0 %v10212
        %v10583 = vpop.f32.mrf.mxu0
        %v10584 = vadd.f32 %v10495, %v10583
        %v10585 = vpop.f32.mrf.mxu0
        %v10586 = vadd.f32 %v10497, %v10585
        %10587 = vmatmul.bf16.gmra.mxu0 %v10218
        %v10588 = vpop.f32.mrf.mxu0
        %v10589 = vadd.f32 %v10500, %v10588
        %v10590 = vpop.f32.mrf.mxu0
        %v10591 = vadd.f32 %v10502, %v10590
        %10592 = vmatmul.bf16.gmra.mxu0 %v10224
        %v10593 = vpop.f32.mrf.mxu0
        %v10594 = vadd.f32 %v10505, %v10593
        %v10595 = vpop.f32.mrf.mxu0
        %v10596 = vadd.f32 %v10507, %v10595
        %10597 = vmatmul.bf16.gmra.mxu0 %v10230
        %v10598 = vpop.f32.mrf.mxu0
        %v10599 = vadd.f32 %v10510, %v10598
        %v10600 = vpop.f32.mrf.mxu0
        %v10601 = vadd.f32 %v10512, %v10600
        %10602 = vmatmul.bf16.gmra.mxu0 %v10236
        %v10603 = vpop.f32.mrf.mxu0
        %v10604 = vadd.f32 %v10515, %v10603
        %v10605 = vpop.f32.mrf.mxu0
        %v10606 = vadd.f32 %v10517, %v10605
        %10607 = vmatmul.bf16.gmra.mxu0 %v10242
        %v10608 = vpop.f32.mrf.mxu0
        %v10609 = vadd.f32 %v10520, %v10608
        %v10610 = vpop.f32.mrf.mxu0
        %v10611 = vadd.f32 %v10522, %v10610
        %10612 = vmatmul.bf16.gmra.mxu0 %v10248
        %v10613 = vpop.f32.mrf.mxu0
        %v10614 = vadd.f32 %v10525, %v10613
        %v10615 = vpop.f32.mrf.mxu0
        %v10616 = vadd.f32 %v10527, %v10615
        %10617 = vmatmul.bf16.gmra.mxu0 %v10254
        %v10618 = vpop.f32.mrf.mxu0
        %v10619 = vadd.f32 %v10530, %v10618
        %v10620 = vpop.f32.mrf.mxu0
        %v10621 = vadd.f32 %v10532, %v10620
        %10622 = vmatmul.bf16.gmra.mxu0 %v10260
        %v10623 = vpop.f32.mrf.mxu0
        %v10624 = vadd.f32 %v10535, %v10623
        %v10625 = vpop.f32.mrf.mxu0
        %v10626 = vadd.f32 %v10537, %v10625
        %10627 = vmatmul.bf16.gmra.mxu0 %v10266
        %v10628 = vpop.f32.mrf.mxu0
        %v10629 = vadd.f32 %v10540, %v10628
        %v10630 = vpop.f32.mrf.mxu0
        %v10631 = vadd.f32 %v10542, %v10630
        %10632 = vdwg.mxu0
        %10633 = vmatpush.bf16.msra.mxu0 %v1760
        %10634 = vmatpush.bf16.msra.mxu0 %v1757
        %10635 = vmatpush.bf16.msra.mxu0 %v1754
        %10636 = vmatpush.bf16.msra.mxu0 %v1751
        %10637 = vmatpush.bf16.msra.mxu0 %v1748
        %10638 = vmatpush.bf16.msra.mxu0 %v1745
        %10639 = vmatpush.bf16.msra.mxu0 %v1742
        %10640 = vmatpush.bf16.msra.mxu0 %v1739
        %10641 = vmatmul.bf16.gmra.mxu0 %v10177
        %v10642 = vpop.f32.mrf.mxu0
        %v10643 = vadd.f32 %v10554, %v10642
        %v10644 = vpop.f32.mrf.mxu0
        %v10645 = vadd.f32 %v10556, %v10644
        %10646 = vmatmul.bf16.gmra.mxu0 %v10183
        %v10647 = vpop.f32.mrf.mxu0
        %v10648 = vadd.f32 %v10559, %v10647
        %v10649 = vpop.f32.mrf.mxu0
        %v10650 = vadd.f32 %v10561, %v10649
        %10651 = vmatmul.bf16.gmra.mxu0 %v10189
        %v10652 = vpop.f32.mrf.mxu0
        %v10653 = vadd.f32 %v10564, %v10652
        %v10654 = vpop.f32.mrf.mxu0
        %v10655 = vadd.f32 %v10566, %v10654
        %10656 = vmatmul.bf16.gmra.mxu0 %v10195
        %v10657 = vpop.f32.mrf.mxu0
        %v10658 = vadd.f32 %v10569, %v10657
        %v10659 = vpop.f32.mrf.mxu0
        %v10660 = vadd.f32 %v10571, %v10659
        %10661 = vmatmul.bf16.gmra.mxu0 %v10201
        %v10662 = vpop.f32.mrf.mxu0
        %v10663 = vadd.f32 %v10574, %v10662
        %v10664 = vpop.f32.mrf.mxu0
        %v10665 = vadd.f32 %v10576, %v10664
        %10666 = vmatmul.bf16.gmra.mxu0 %v10207
        %v10667 = vpop.f32.mrf.mxu0
        %v10668 = vadd.f32 %v10579, %v10667
        %v10669 = vpop.f32.mrf.mxu0
        %v10670 = vadd.f32 %v10581, %v10669
        %10671 = vmatmul.bf16.gmra.mxu0 %v10213
        %v10672 = vpop.f32.mrf.mxu0
        %v10673 = vadd.f32 %v10584, %v10672
        %v10674 = vpop.f32.mrf.mxu0
        %v10675 = vadd.f32 %v10586, %v10674
        %10676 = vmatmul.bf16.gmra.mxu0 %v10219
        %v10677 = vpop.f32.mrf.mxu0
        %v10678 = vadd.f32 %v10589, %v10677
        %v10679 = vpop.f32.mrf.mxu0
        %v10680 = vadd.f32 %v10591, %v10679
        %10681 = vmatmul.bf16.gmra.mxu0 %v10225
        %v10682 = vpop.f32.mrf.mxu0
        %v10683 = vadd.f32 %v10594, %v10682
        %v10684 = vpop.f32.mrf.mxu0
        %v10685 = vadd.f32 %v10596, %v10684
        %10686 = vmatmul.bf16.gmra.mxu0 %v10231
        %v10687 = vpop.f32.mrf.mxu0
        %v10688 = vadd.f32 %v10599, %v10687
        %v10689 = vpop.f32.mrf.mxu0
        %v10690 = vadd.f32 %v10601, %v10689
        %10691 = vmatmul.bf16.gmra.mxu0 %v10237
        %v10692 = vpop.f32.mrf.mxu0
        %v10693 = vadd.f32 %v10604, %v10692
        %v10694 = vpop.f32.mrf.mxu0
        %v10695 = vadd.f32 %v10606, %v10694
        %10696 = vmatmul.bf16.gmra.mxu0 %v10243
        %v10697 = vpop.f32.mrf.mxu0
        %v10698 = vadd.f32 %v10609, %v10697
        %v10699 = vpop.f32.mrf.mxu0
        %v10700 = vadd.f32 %v10611, %v10699
        %10701 = vmatmul.bf16.gmra.mxu0 %v10249
        %v10702 = vpop.f32.mrf.mxu0
        %v10703 = vadd.f32 %v10614, %v10702
        %v10704 = vpop.f32.mrf.mxu0
        %v10705 = vadd.f32 %v10616, %v10704
        %10706 = vmatmul.bf16.gmra.mxu0 %v10255
        %v10707 = vpop.f32.mrf.mxu0
        %v10708 = vadd.f32 %v10619, %v10707
        %v10709 = vpop.f32.mrf.mxu0
        %v10710 = vadd.f32 %v10621, %v10709
        %10711 = vmatmul.bf16.gmra.mxu0 %v10261
        %v10712 = vpop.f32.mrf.mxu0
        %v10713 = vadd.f32 %v10624, %v10712
        %v10714 = vpop.f32.mrf.mxu0
        %v10715 = vadd.f32 %v10626, %v10714
        %10716 = vmatmul.bf16.gmra.mxu0 %v10267
        %v10717 = vpop.f32.mrf.mxu0
        %v10718 = vadd.f32 %v10629, %v10717
        %v10719 = vpop.f32.mrf.mxu0
        %v10720 = vadd.f32 %v10631, %v10719
        %10721 = vdwg.mxu0
        %10722 = vmatpush.bf16.msra.mxu0 %v1784
        %10723 = vmatpush.bf16.msra.mxu0 %v1781
        %10724 = vmatpush.bf16.msra.mxu0 %v1778
        %10725 = vmatpush.bf16.msra.mxu0 %v1775
        %10726 = vmatpush.bf16.msra.mxu0 %v1772
        %10727 = vmatpush.bf16.msra.mxu0 %v1769
        %10728 = vmatpush.bf16.msra.mxu0 %v1766
        %10729 = vmatpush.bf16.msra.mxu0 %v1763
        %10730 = vmatmul.bf16.gmra.mxu0 %v10178
        %v10731 = vpop.f32.mrf.mxu0
        %v10732 = vadd.f32 %v10643, %v10731
        %v10733 = vpop.f32.mrf.mxu0
        %v10734 = vadd.f32 %v10645, %v10733
        %10735 = vmatmul.bf16.gmra.mxu0 %v10184
        %v10736 = vpop.f32.mrf.mxu0
        %v10737 = vadd.f32 %v10648, %v10736
        %v10738 = vpop.f32.mrf.mxu0
        %v10739 = vadd.f32 %v10650, %v10738
        %10740 = vmatmul.bf16.gmra.mxu0 %v10190
        %v10741 = vpop.f32.mrf.mxu0
        %v10742 = vadd.f32 %v10653, %v10741
        %v10743 = vpop.f32.mrf.mxu0
        %v10744 = vadd.f32 %v10655, %v10743
        %10745 = vmatmul.bf16.gmra.mxu0 %v10196
        %v10746 = vpop.f32.mrf.mxu0
        %v10747 = vadd.f32 %v10658, %v10746
        %v10748 = vpop.f32.mrf.mxu0
        %v10749 = vadd.f32 %v10660, %v10748
        %10750 = vmatmul.bf16.gmra.mxu0 %v10202
        %v10751 = vpop.f32.mrf.mxu0
        %v10752 = vadd.f32 %v10663, %v10751
        %v10753 = vpop.f32.mrf.mxu0
        %v10754 = vadd.f32 %v10665, %v10753
        %10755 = vmatmul.bf16.gmra.mxu0 %v10208
        %v10756 = vpop.f32.mrf.mxu0
        %v10757 = vadd.f32 %v10668, %v10756
        %v10758 = vpop.f32.mrf.mxu0
        %v10759 = vadd.f32 %v10670, %v10758
        %10760 = vmatmul.bf16.gmra.mxu0 %v10214
        %v10761 = vpop.f32.mrf.mxu0
        %v10762 = vadd.f32 %v10673, %v10761
        %v10763 = vpop.f32.mrf.mxu0
        %v10764 = vadd.f32 %v10675, %v10763
        %10765 = vmatmul.bf16.gmra.mxu0 %v10220
        %v10766 = vpop.f32.mrf.mxu0
        %v10767 = vadd.f32 %v10678, %v10766
        %v10768 = vpop.f32.mrf.mxu0
        %v10769 = vadd.f32 %v10680, %v10768
        %10770 = vmatmul.bf16.gmra.mxu0 %v10226
        %v10771 = vpop.f32.mrf.mxu0
        %v10772 = vadd.f32 %v10683, %v10771
        %v10773 = vpop.f32.mrf.mxu0
        %v10774 = vadd.f32 %v10685, %v10773
        %10775 = vmatmul.bf16.gmra.mxu0 %v10232
        %v10776 = vpop.f32.mrf.mxu0
        %v10777 = vadd.f32 %v10688, %v10776
        %v10778 = vpop.f32.mrf.mxu0
        %v10779 = vadd.f32 %v10690, %v10778
        %10780 = vmatmul.bf16.gmra.mxu0 %v10238
        %v10781 = vpop.f32.mrf.mxu0
        %v10782 = vadd.f32 %v10693, %v10781
        %v10783 = vpop.f32.mrf.mxu0
        %v10784 = vadd.f32 %v10695, %v10783
        %10785 = vmatmul.bf16.gmra.mxu0 %v10244
        %v10786 = vpop.f32.mrf.mxu0
        %v10787 = vadd.f32 %v10698, %v10786
        %v10788 = vpop.f32.mrf.mxu0
        %v10789 = vadd.f32 %v10700, %v10788
        %10790 = vmatmul.bf16.gmra.mxu0 %v10250
        %v10791 = vpop.f32.mrf.mxu0
        %v10792 = vadd.f32 %v10703, %v10791
        %v10793 = vpop.f32.mrf.mxu0
        %v10794 = vadd.f32 %v10705, %v10793
        %10795 = vmatmul.bf16.gmra.mxu0 %v10256
        %v10796 = vpop.f32.mrf.mxu0
        %v10797 = vadd.f32 %v10708, %v10796
        %v10798 = vpop.f32.mrf.mxu0
        %v10799 = vadd.f32 %v10710, %v10798
        %10800 = vmatmul.bf16.gmra.mxu0 %v10262
        %v10801 = vpop.f32.mrf.mxu0
        %v10802 = vadd.f32 %v10713, %v10801
        %v10803 = vpop.f32.mrf.mxu0
        %v10804 = vadd.f32 %v10715, %v10803
        %10805 = vmatmul.bf16.gmra.mxu0 %v10268
        %v10806 = vpop.f32.mrf.mxu0
        %v10807 = vadd.f32 %v10718, %v10806
        %v10808 = vpop.f32.mrf.mxu0
        %v10809 = vadd.f32 %v10720, %v10808
        %10810 = vdwg.mxu0
        %10811 = vmatpush.bf16.msra.mxu0 %v1808
        %10812 = vmatpush.bf16.msra.mxu0 %v1805
        %10813 = vmatpush.bf16.msra.mxu0 %v1802
        %10814 = vmatpush.bf16.msra.mxu0 %v1799
        %10815 = vmatpush.bf16.msra.mxu0 %v1796
        %10816 = vmatpush.bf16.msra.mxu0 %v1793
        %10817 = vmatpush.bf16.msra.mxu0 %v1790
        %10818 = vmatpush.bf16.msra.mxu0 %v1787
        %10819 = vmatmul.bf16.gmra.mxu0 %v10179
        %v10820 = vpop.f32.mrf.mxu0
        %v10821 = vadd.f32 %v10732, %v10820
        %v10822 = vpop.f32.mrf.mxu0
        %v10823 = vadd.f32 %v10734, %v10822
        %10824 = vmatmul.bf16.gmra.mxu0 %v10185
        %v10825 = vpop.f32.mrf.mxu0
        %v10826 = vadd.f32 %v10737, %v10825
        %v10827 = vpop.f32.mrf.mxu0
        %v10828 = vadd.f32 %v10739, %v10827
        %10829 = vmatmul.bf16.gmra.mxu0 %v10191
        %v10830 = vpop.f32.mrf.mxu0
        %v10831 = vadd.f32 %v10742, %v10830
        %v10832 = vpop.f32.mrf.mxu0
        %v10833 = vadd.f32 %v10744, %v10832
        %10834 = vmatmul.bf16.gmra.mxu0 %v10197
        %v10835 = vpop.f32.mrf.mxu0
        %v10836 = vadd.f32 %v10747, %v10835
        %v10837 = vpop.f32.mrf.mxu0
        %v10838 = vadd.f32 %v10749, %v10837
        %10839 = vmatmul.bf16.gmra.mxu0 %v10203
        %v10840 = vpop.f32.mrf.mxu0
        %v10841 = vadd.f32 %v10752, %v10840
        %v10842 = vpop.f32.mrf.mxu0
        %v10843 = vadd.f32 %v10754, %v10842
        %10844 = vmatmul.bf16.gmra.mxu0 %v10209
        %v10845 = vpop.f32.mrf.mxu0
        %v10846 = vadd.f32 %v10757, %v10845
        %v10847 = vpop.f32.mrf.mxu0
        %v10848 = vadd.f32 %v10759, %v10847
        %10849 = vmatmul.bf16.gmra.mxu0 %v10215
        %v10850 = vpop.f32.mrf.mxu0
        %v10851 = vadd.f32 %v10762, %v10850
        %v10852 = vpop.f32.mrf.mxu0
        %v10853 = vadd.f32 %v10764, %v10852
        %10854 = vmatmul.bf16.gmra.mxu0 %v10221
        %v10855 = vpop.f32.mrf.mxu0
        %v10856 = vadd.f32 %v10767, %v10855
        %v10857 = vpop.f32.mrf.mxu0
        %v10858 = vadd.f32 %v10769, %v10857
        %10859 = vmatmul.bf16.gmra.mxu0 %v10227
        %v10860 = vpop.f32.mrf.mxu0
        %v10861 = vadd.f32 %v10772, %v10860
        %v10862 = vpop.f32.mrf.mxu0
        %v10863 = vadd.f32 %v10774, %v10862
        %10864 = vmatmul.bf16.gmra.mxu0 %v10233
        %v10865 = vpop.f32.mrf.mxu0
        %v10866 = vadd.f32 %v10777, %v10865
        %v10867 = vpop.f32.mrf.mxu0
        %v10868 = vadd.f32 %v10779, %v10867
        %10869 = vmatmul.bf16.gmra.mxu0 %v10239
        %v10870 = vpop.f32.mrf.mxu0
        %v10871 = vadd.f32 %v10782, %v10870
        %v10872 = vpop.f32.mrf.mxu0
        %v10873 = vadd.f32 %v10784, %v10872
        %10874 = vmatmul.bf16.gmra.mxu0 %v10245
        %v10875 = vpop.f32.mrf.mxu0
        %v10876 = vadd.f32 %v10787, %v10875
        %v10877 = vpop.f32.mrf.mxu0
        %v10878 = vadd.f32 %v10789, %v10877
        %10879 = vmatmul.bf16.gmra.mxu0 %v10251
        %v10880 = vpop.f32.mrf.mxu0
        %v10881 = vadd.f32 %v10792, %v10880
        %v10882 = vpop.f32.mrf.mxu0
        %v10883 = vadd.f32 %v10794, %v10882
        %10884 = vmatmul.bf16.gmra.mxu0 %v10257
        %v10885 = vpop.f32.mrf.mxu0
        %v10886 = vadd.f32 %v10797, %v10885
        %v10887 = vpop.f32.mrf.mxu0
        %v10888 = vadd.f32 %v10799, %v10887
        %10889 = vmatmul.bf16.gmra.mxu0 %v10263
        %v10890 = vpop.f32.mrf.mxu0
        %v10891 = vadd.f32 %v10802, %v10890
        %v10892 = vpop.f32.mrf.mxu0
        %v10893 = vadd.f32 %v10804, %v10892
        %10894 = vmatmul.bf16.gmra.mxu0 %v10269
        %v10895 = vpop.f32.mrf.mxu0
        %v10896 = vadd.f32 %v10807, %v10895
        %v10897 = vpop.f32.mrf.mxu0
        %v10898 = vadd.f32 %v10809, %v10897
        %10899 = vdwg.mxu0
        %10900 = vmatpush.bf16.msra.mxu0 %v1689
        %10901 = vmatpush.bf16.msra.mxu0 %v1686
        %10902 = vmatpush.bf16.msra.mxu0 %v1683
        %10903 = vmatpush.bf16.msra.mxu0 %v1680
        %10904 = vmatpush.bf16.msra.mxu0 %v1677
        %10905 = vmatpush.bf16.msra.mxu0 %v1674
        %10906 = vmatpush.bf16.msra.mxu0 %v1671
        %10907 = vmatpush.bf16.msra.mxu0 %v1668
        %10908 = vmatmul.bf16.gmra.mxu0 %v10174
        %v10909 = vpop.f32.mrf.mxu0
        %v10910 = vadd.f32 %v702, %v10909
        %v10911 = vpop.f32.mrf.mxu0
        %v10912 = vadd.f32 %v702, %v10911
        %10913 = vmatmul.bf16.gmra.mxu0 %v10180
        %v10914 = vpop.f32.mrf.mxu0
        %v10915 = vadd.f32 %v702, %v10914
        %v10916 = vpop.f32.mrf.mxu0
        %v10917 = vadd.f32 %v702, %v10916
        %10918 = vmatmul.bf16.gmra.mxu0 %v10186
        %v10919 = vpop.f32.mrf.mxu0
        %v10920 = vadd.f32 %v702, %v10919
        %v10921 = vpop.f32.mrf.mxu0
        %v10922 = vadd.f32 %v702, %v10921
        %10923 = vmatmul.bf16.gmra.mxu0 %v10192
        %v10924 = vpop.f32.mrf.mxu0
        %v10925 = vadd.f32 %v702, %v10924
        %v10926 = vpop.f32.mrf.mxu0
        %v10927 = vadd.f32 %v702, %v10926
        %10928 = vmatmul.bf16.gmra.mxu0 %v10198
        %v10929 = vpop.f32.mrf.mxu0
        %v10930 = vadd.f32 %v702, %v10929
        %v10931 = vpop.f32.mrf.mxu0
        %v10932 = vadd.f32 %v702, %v10931
        %10933 = vmatmul.bf16.gmra.mxu0 %v10204
        %v10934 = vpop.f32.mrf.mxu0
        %v10935 = vadd.f32 %v702, %v10934
        %v10936 = vpop.f32.mrf.mxu0
        %v10937 = vadd.f32 %v702, %v10936
        %10938 = vmatmul.bf16.gmra.mxu0 %v10210
        %v10939 = vpop.f32.mrf.mxu0
        %v10940 = vadd.f32 %v702, %v10939
        %v10941 = vpop.f32.mrf.mxu0
        %v10942 = vadd.f32 %v702, %v10941
        %10943 = vmatmul.bf16.gmra.mxu0 %v10216
        %v10944 = vpop.f32.mrf.mxu0
        %v10945 = vadd.f32 %v702, %v10944
        %v10946 = vpop.f32.mrf.mxu0
        %v10947 = vadd.f32 %v702, %v10946
        %10948 = vmatmul.bf16.gmra.mxu0 %v10222
        %v10949 = vpop.f32.mrf.mxu0
        %v10950 = vadd.f32 %v702, %v10949
        %v10951 = vpop.f32.mrf.mxu0
        %v10952 = vadd.f32 %v702, %v10951
        %10953 = vmatmul.bf16.gmra.mxu0 %v10228
        %v10954 = vpop.f32.mrf.mxu0
        %v10955 = vadd.f32 %v702, %v10954
        %v10956 = vpop.f32.mrf.mxu0
        %v10957 = vadd.f32 %v702, %v10956
        %10958 = vmatmul.bf16.gmra.mxu0 %v10234
        %v10959 = vpop.f32.mrf.mxu0
        %v10960 = vadd.f32 %v702, %v10959
        %v10961 = vpop.f32.mrf.mxu0
        %v10962 = vadd.f32 %v702, %v10961
        %10963 = vmatmul.bf16.gmra.mxu0 %v10240
        %v10964 = vpop.f32.mrf.mxu0
        %v10965 = vadd.f32 %v702, %v10964
        %v10966 = vpop.f32.mrf.mxu0
        %v10967 = vadd.f32 %v702, %v10966
        %10968 = vmatmul.bf16.gmra.mxu0 %v10246
        %v10969 = vpop.f32.mrf.mxu0
        %v10970 = vadd.f32 %v702, %v10969
        %v10971 = vpop.f32.mrf.mxu0
        %v10972 = vadd.f32 %v702, %v10971
        %10973 = vmatmul.bf16.gmra.mxu0 %v10252
        %v10974 = vpop.f32.mrf.mxu0
        %v10975 = vadd.f32 %v702, %v10974
        %v10976 = vpop.f32.mrf.mxu0
        %v10977 = vadd.f32 %v702, %v10976
        %10978 = vmatmul.bf16.gmra.mxu0 %v10258
        %v10979 = vpop.f32.mrf.mxu0
        %v10980 = vadd.f32 %v702, %v10979
        %v10981 = vpop.f32.mrf.mxu0
        %v10982 = vadd.f32 %v702, %v10981
        %10983 = vmatmul.bf16.gmra.mxu0 %v10264
        %v10984 = vpop.f32.mrf.mxu0
        %v10985 = vadd.f32 %v702, %v10984
        %v10986 = vpop.f32.mrf.mxu0
        %v10987 = vadd.f32 %v702, %v10986
        %10988 = vdwg.mxu0
        %10989 = vmatpush.bf16.msra.mxu0 %v1713
        %10990 = vmatpush.bf16.msra.mxu0 %v1710
        %10991 = vmatpush.bf16.msra.mxu0 %v1707
        %10992 = vmatpush.bf16.msra.mxu0 %v1704
        %10993 = vmatpush.bf16.msra.mxu0 %v1701
        %10994 = vmatpush.bf16.msra.mxu0 %v1698
        %10995 = vmatpush.bf16.msra.mxu0 %v1695
        %10996 = vmatpush.bf16.msra.mxu0 %v1692
        %10997 = vmatmul.bf16.gmra.mxu0 %v10175
        %v10998 = vpop.f32.mrf.mxu0
        %v10999 = vadd.f32 %v10910, %v10998
        %v11000 = vpop.f32.mrf.mxu0
        %v11001 = vadd.f32 %v10912, %v11000
        %11002 = vmatmul.bf16.gmra.mxu0 %v10181
        %v11003 = vpop.f32.mrf.mxu0
        %v11004 = vadd.f32 %v10915, %v11003
        %v11005 = vpop.f32.mrf.mxu0
        %v11006 = vadd.f32 %v10917, %v11005
        %11007 = vmatmul.bf16.gmra.mxu0 %v10187
        %v11008 = vpop.f32.mrf.mxu0
        %v11009 = vadd.f32 %v10920, %v11008
        %v11010 = vpop.f32.mrf.mxu0
        %v11011 = vadd.f32 %v10922, %v11010
        %11012 = vmatmul.bf16.gmra.mxu0 %v10193
        %v11013 = vpop.f32.mrf.mxu0
        %v11014 = vadd.f32 %v10925, %v11013
        %v11015 = vpop.f32.mrf.mxu0
        %v11016 = vadd.f32 %v10927, %v11015
        %11017 = vmatmul.bf16.gmra.mxu0 %v10199
        %v11018 = vpop.f32.mrf.mxu0
        %v11019 = vadd.f32 %v10930, %v11018
        %v11020 = vpop.f32.mrf.mxu0
        %v11021 = vadd.f32 %v10932, %v11020
        %11022 = vmatmul.bf16.gmra.mxu0 %v10205
        %v11023 = vpop.f32.mrf.mxu0
        %v11024 = vadd.f32 %v10935, %v11023
        %v11025 = vpop.f32.mrf.mxu0
        %v11026 = vadd.f32 %v10937, %v11025
        %11027 = vmatmul.bf16.gmra.mxu0 %v10211
        %v11028 = vpop.f32.mrf.mxu0
        %v11029 = vadd.f32 %v10940, %v11028
        %v11030 = vpop.f32.mrf.mxu0
        %v11031 = vadd.f32 %v10942, %v11030
        %11032 = vmatmul.bf16.gmra.mxu0 %v10217
        %v11033 = vpop.f32.mrf.mxu0
        %v11034 = vadd.f32 %v10945, %v11033
        %v11035 = vpop.f32.mrf.mxu0
        %v11036 = vadd.f32 %v10947, %v11035
        %11037 = vmatmul.bf16.gmra.mxu0 %v10223
        %v11038 = vpop.f32.mrf.mxu0
        %v11039 = vadd.f32 %v10950, %v11038
        %v11040 = vpop.f32.mrf.mxu0
        %v11041 = vadd.f32 %v10952, %v11040
        %11042 = vmatmul.bf16.gmra.mxu0 %v10229
        %v11043 = vpop.f32.mrf.mxu0
        %v11044 = vadd.f32 %v10955, %v11043
        %v11045 = vpop.f32.mrf.mxu0
        %v11046 = vadd.f32 %v10957, %v11045
        %11047 = vmatmul.bf16.gmra.mxu0 %v10235
        %v11048 = vpop.f32.mrf.mxu0
        %v11049 = vadd.f32 %v10960, %v11048
        %v11050 = vpop.f32.mrf.mxu0
        %v11051 = vadd.f32 %v10962, %v11050
        %11052 = vmatmul.bf16.gmra.mxu0 %v10241
        %v11053 = vpop.f32.mrf.mxu0
        %v11054 = vadd.f32 %v10965, %v11053
        %v11055 = vpop.f32.mrf.mxu0
        %v11056 = vadd.f32 %v10967, %v11055
        %11057 = vmatmul.bf16.gmra.mxu0 %v10247
        %v11058 = vpop.f32.mrf.mxu0
        %v11059 = vadd.f32 %v10970, %v11058
        %v11060 = vpop.f32.mrf.mxu0
        %v11061 = vadd.f32 %v10972, %v11060
        %11062 = vmatmul.bf16.gmra.mxu0 %v10253
        %v11063 = vpop.f32.mrf.mxu0
        %v11064 = vadd.f32 %v10975, %v11063
        %v11065 = vpop.f32.mrf.mxu0
        %v11066 = vadd.f32 %v10977, %v11065
        %11067 = vmatmul.bf16.gmra.mxu0 %v10259
        %v11068 = vpop.f32.mrf.mxu0
        %v11069 = vadd.f32 %v10980, %v11068
        %v11070 = vpop.f32.mrf.mxu0
        %v11071 = vadd.f32 %v10982, %v11070
        %11072 = vmatmul.bf16.gmra.mxu0 %v10265
        %v11073 = vpop.f32.mrf.mxu0
        %v11074 = vadd.f32 %v10985, %v11073
        %v11075 = vpop.f32.mrf.mxu0
        %v11076 = vadd.f32 %v10987, %v11075
        %11077 = vdwg.mxu0
        %11078 = vmatpush.bf16.msra.mxu0 %v1737
        %11079 = vmatpush.bf16.msra.mxu0 %v1734
        %11080 = vmatpush.bf16.msra.mxu0 %v1731
        %11081 = vmatpush.bf16.msra.mxu0 %v1728
        %11082 = vmatpush.bf16.msra.mxu0 %v1725
        %11083 = vmatpush.bf16.msra.mxu0 %v1722
        %11084 = vmatpush.bf16.msra.mxu0 %v1719
        %11085 = vmatpush.bf16.msra.mxu0 %v1716
        %11086 = vmatmul.bf16.gmra.mxu0 %v10176
        %v11087 = vpop.f32.mrf.mxu0
        %v11088 = vadd.f32 %v10999, %v11087
        %v11089 = vpop.f32.mrf.mxu0
        %v11090 = vadd.f32 %v11001, %v11089
        %11091 = vmatmul.bf16.gmra.mxu0 %v10182
        %v11092 = vpop.f32.mrf.mxu0
        %v11093 = vadd.f32 %v11004, %v11092
        %v11094 = vpop.f32.mrf.mxu0
        %v11095 = vadd.f32 %v11006, %v11094
        %11096 = vmatmul.bf16.gmra.mxu0 %v10188
        %v11097 = vpop.f32.mrf.mxu0
        %v11098 = vadd.f32 %v11009, %v11097
        %v11099 = vpop.f32.mrf.mxu0
        %v11100 = vadd.f32 %v11011, %v11099
        %11101 = vmatmul.bf16.gmra.mxu0 %v10194
        %v11102 = vpop.f32.mrf.mxu0
        %v11103 = vadd.f32 %v11014, %v11102
        %v11104 = vpop.f32.mrf.mxu0
        %v11105 = vadd.f32 %v11016, %v11104
        %11106 = vmatmul.bf16.gmra.mxu0 %v10200
        %v11107 = vpop.f32.mrf.mxu0
        %v11108 = vadd.f32 %v11019, %v11107
        %v11109 = vpop.f32.mrf.mxu0
        %v11110 = vadd.f32 %v11021, %v11109
        %11111 = vmatmul.bf16.gmra.mxu0 %v10206
        %v11112 = vpop.f32.mrf.mxu0
        %v11113 = vadd.f32 %v11024, %v11112
        %v11114 = vpop.f32.mrf.mxu0
        %v11115 = vadd.f32 %v11026, %v11114
        %11116 = vmatmul.bf16.gmra.mxu0 %v10212
        %v11117 = vpop.f32.mrf.mxu0
        %v11118 = vadd.f32 %v11029, %v11117
        %v11119 = vpop.f32.mrf.mxu0
        %v11120 = vadd.f32 %v11031, %v11119
        %11121 = vmatmul.bf16.gmra.mxu0 %v10218
        %v11122 = vpop.f32.mrf.mxu0
        %v11123 = vadd.f32 %v11034, %v11122
        %v11124 = vpop.f32.mrf.mxu0
        %v11125 = vadd.f32 %v11036, %v11124
        %11126 = vmatmul.bf16.gmra.mxu0 %v10224
        %v11127 = vpop.f32.mrf.mxu0
        %v11128 = vadd.f32 %v11039, %v11127
        %v11129 = vpop.f32.mrf.mxu0
        %v11130 = vadd.f32 %v11041, %v11129
        %11131 = vmatmul.bf16.gmra.mxu0 %v10230
        %v11132 = vpop.f32.mrf.mxu0
        %v11133 = vadd.f32 %v11044, %v11132
        %v11134 = vpop.f32.mrf.mxu0
        %v11135 = vadd.f32 %v11046, %v11134
        %11136 = vmatmul.bf16.gmra.mxu0 %v10236
        %v11137 = vpop.f32.mrf.mxu0
        %v11138 = vadd.f32 %v11049, %v11137
        %v11139 = vpop.f32.mrf.mxu0
        %v11140 = vadd.f32 %v11051, %v11139
        %11141 = vmatmul.bf16.gmra.mxu0 %v10242
        %v11142 = vpop.f32.mrf.mxu0
        %v11143 = vadd.f32 %v11054, %v11142
        %v11144 = vpop.f32.mrf.mxu0
        %v11145 = vadd.f32 %v11056, %v11144
        %11146 = vmatmul.bf16.gmra.mxu0 %v10248
        %v11147 = vpop.f32.mrf.mxu0
        %v11148 = vadd.f32 %v11059, %v11147
        %v11149 = vpop.f32.mrf.mxu0
        %v11150 = vadd.f32 %v11061, %v11149
        %11151 = vmatmul.bf16.gmra.mxu0 %v10254
        %v11152 = vpop.f32.mrf.mxu0
        %v11153 = vadd.f32 %v11064, %v11152
        %v11154 = vpop.f32.mrf.mxu0
        %v11155 = vadd.f32 %v11066, %v11154
        %11156 = vmatmul.bf16.gmra.mxu0 %v10260
        %v11157 = vpop.f32.mrf.mxu0
        %v11158 = vadd.f32 %v11069, %v11157
        %v11159 = vpop.f32.mrf.mxu0
        %v11160 = vadd.f32 %v11071, %v11159
        %11161 = vmatmul.bf16.gmra.mxu0 %v10266
        %v11162 = vpop.f32.mrf.mxu0
        %v11163 = vadd.f32 %v11074, %v11162
        %v11164 = vpop.f32.mrf.mxu0
        %v11165 = vadd.f32 %v11076, %v11164
        %11166 = vdwg.mxu0
        %11167 = vmatpush.bf16.msra.mxu0 %v1761
        %11168 = vmatpush.bf16.msra.mxu0 %v1758
        %11169 = vmatpush.bf16.msra.mxu0 %v1755
        %11170 = vmatpush.bf16.msra.mxu0 %v1752
        %11171 = vmatpush.bf16.msra.mxu0 %v1749
        %11172 = vmatpush.bf16.msra.mxu0 %v1746
        %11173 = vmatpush.bf16.msra.mxu0 %v1743
        %11174 = vmatpush.bf16.msra.mxu0 %v1740
        %11175 = vmatmul.bf16.gmra.mxu0 %v10177
        %v11176 = vpop.f32.mrf.mxu0
        %v11177 = vadd.f32 %v11088, %v11176
        %v11178 = vpop.f32.mrf.mxu0
        %v11179 = vadd.f32 %v11090, %v11178
        %11180 = vmatmul.bf16.gmra.mxu0 %v10183
        %v11181 = vpop.f32.mrf.mxu0
        %v11182 = vadd.f32 %v11093, %v11181
        %v11183 = vpop.f32.mrf.mxu0
        %v11184 = vadd.f32 %v11095, %v11183
        %11185 = vmatmul.bf16.gmra.mxu0 %v10189
        %v11186 = vpop.f32.mrf.mxu0
        %v11187 = vadd.f32 %v11098, %v11186
        %v11188 = vpop.f32.mrf.mxu0
        %v11189 = vadd.f32 %v11100, %v11188
        %11190 = vmatmul.bf16.gmra.mxu0 %v10195
        %v11191 = vpop.f32.mrf.mxu0
        %v11192 = vadd.f32 %v11103, %v11191
        %v11193 = vpop.f32.mrf.mxu0
        %v11194 = vadd.f32 %v11105, %v11193
        %11195 = vmatmul.bf16.gmra.mxu0 %v10201
        %v11196 = vpop.f32.mrf.mxu0
        %v11197 = vadd.f32 %v11108, %v11196
        %v11198 = vpop.f32.mrf.mxu0
        %v11199 = vadd.f32 %v11110, %v11198
        %11200 = vmatmul.bf16.gmra.mxu0 %v10207
        %v11201 = vpop.f32.mrf.mxu0
        %v11202 = vadd.f32 %v11113, %v11201
        %v11203 = vpop.f32.mrf.mxu0
        %v11204 = vadd.f32 %v11115, %v11203
        %11205 = vmatmul.bf16.gmra.mxu0 %v10213
        %v11206 = vpop.f32.mrf.mxu0
        %v11207 = vadd.f32 %v11118, %v11206
        %v11208 = vpop.f32.mrf.mxu0
        %v11209 = vadd.f32 %v11120, %v11208
        %11210 = vmatmul.bf16.gmra.mxu0 %v10219
        %v11211 = vpop.f32.mrf.mxu0
        %v11212 = vadd.f32 %v11123, %v11211
        %v11213 = vpop.f32.mrf.mxu0
        %v11214 = vadd.f32 %v11125, %v11213
        %11215 = vmatmul.bf16.gmra.mxu0 %v10225
        %v11216 = vpop.f32.mrf.mxu0
        %v11217 = vadd.f32 %v11128, %v11216
        %v11218 = vpop.f32.mrf.mxu0
        %v11219 = vadd.f32 %v11130, %v11218
        %11220 = vmatmul.bf16.gmra.mxu0 %v10231
        %v11221 = vpop.f32.mrf.mxu0
        %v11222 = vadd.f32 %v11133, %v11221
        %v11223 = vpop.f32.mrf.mxu0
        %v11224 = vadd.f32 %v11135, %v11223
        %11225 = vmatmul.bf16.gmra.mxu0 %v10237
        %v11226 = vpop.f32.mrf.mxu0
        %v11227 = vadd.f32 %v11138, %v11226
        %v11228 = vpop.f32.mrf.mxu0
        %v11229 = vadd.f32 %v11140, %v11228
        %11230 = vmatmul.bf16.gmra.mxu0 %v10243
        %v11231 = vpop.f32.mrf.mxu0
        %v11232 = vadd.f32 %v11143, %v11231
        %v11233 = vpop.f32.mrf.mxu0
        %v11234 = vadd.f32 %v11145, %v11233
        %11235 = vmatmul.bf16.gmra.mxu0 %v10249
        %v11236 = vpop.f32.mrf.mxu0
        %v11237 = vadd.f32 %v11148, %v11236
        %v11238 = vpop.f32.mrf.mxu0
        %v11239 = vadd.f32 %v11150, %v11238
        %11240 = vmatmul.bf16.gmra.mxu0 %v10255
        %v11241 = vpop.f32.mrf.mxu0
        %v11242 = vadd.f32 %v11153, %v11241
        %v11243 = vpop.f32.mrf.mxu0
        %v11244 = vadd.f32 %v11155, %v11243
        %11245 = vmatmul.bf16.gmra.mxu0 %v10261
        %v11246 = vpop.f32.mrf.mxu0
        %v11247 = vadd.f32 %v11158, %v11246
        %v11248 = vpop.f32.mrf.mxu0
        %v11249 = vadd.f32 %v11160, %v11248
        %11250 = vmatmul.bf16.gmra.mxu0 %v10267
        %v11251 = vpop.f32.mrf.mxu0
        %v11252 = vadd.f32 %v11163, %v11251
        %v11253 = vpop.f32.mrf.mxu0
        %v11254 = vadd.f32 %v11165, %v11253
        %11255 = vdwg.mxu0
        %11256 = vmatpush.bf16.msra.mxu0 %v1785
        %11257 = vmatpush.bf16.msra.mxu0 %v1782
        %11258 = vmatpush.bf16.msra.mxu0 %v1779
        %11259 = vmatpush.bf16.msra.mxu0 %v1776
        %11260 = vmatpush.bf16.msra.mxu0 %v1773
        %11261 = vmatpush.bf16.msra.mxu0 %v1770
        %11262 = vmatpush.bf16.msra.mxu0 %v1767
        %11263 = vmatpush.bf16.msra.mxu0 %v1764
        %11264 = vmatmul.bf16.gmra.mxu0 %v10178
        %v11265 = vpop.f32.mrf.mxu0
        %v11266 = vadd.f32 %v11177, %v11265
        %v11267 = vpop.f32.mrf.mxu0
        %v11268 = vadd.f32 %v11179, %v11267
        %11269 = vmatmul.bf16.gmra.mxu0 %v10184
        %v11270 = vpop.f32.mrf.mxu0
        %v11271 = vadd.f32 %v11182, %v11270
        %v11272 = vpop.f32.mrf.mxu0
        %v11273 = vadd.f32 %v11184, %v11272
        %11274 = vmatmul.bf16.gmra.mxu0 %v10190
        %v11275 = vpop.f32.mrf.mxu0
        %v11276 = vadd.f32 %v11187, %v11275
        %v11277 = vpop.f32.mrf.mxu0
        %v11278 = vadd.f32 %v11189, %v11277
        %11279 = vmatmul.bf16.gmra.mxu0 %v10196
        %v11280 = vpop.f32.mrf.mxu0
        %v11281 = vadd.f32 %v11192, %v11280
        %v11282 = vpop.f32.mrf.mxu0
        %v11283 = vadd.f32 %v11194, %v11282
        %11284 = vmatmul.bf16.gmra.mxu0 %v10202
        %v11285 = vpop.f32.mrf.mxu0
        %v11286 = vadd.f32 %v11197, %v11285
        %v11287 = vpop.f32.mrf.mxu0
        %v11288 = vadd.f32 %v11199, %v11287
        %11289 = vmatmul.bf16.gmra.mxu0 %v10208
        %v11290 = vpop.f32.mrf.mxu0
        %v11291 = vadd.f32 %v11202, %v11290
        %v11292 = vpop.f32.mrf.mxu0
        %v11293 = vadd.f32 %v11204, %v11292
        %11294 = vmatmul.bf16.gmra.mxu0 %v10214
        %v11295 = vpop.f32.mrf.mxu0
        %v11296 = vadd.f32 %v11207, %v11295
        %v11297 = vpop.f32.mrf.mxu0
        %v11298 = vadd.f32 %v11209, %v11297
        %11299 = vmatmul.bf16.gmra.mxu0 %v10220
        %v11300 = vpop.f32.mrf.mxu0
        %v11301 = vadd.f32 %v11212, %v11300
        %v11302 = vpop.f32.mrf.mxu0
        %v11303 = vadd.f32 %v11214, %v11302
        %11304 = vmatmul.bf16.gmra.mxu0 %v10226
        %v11305 = vpop.f32.mrf.mxu0
        %v11306 = vadd.f32 %v11217, %v11305
        %v11307 = vpop.f32.mrf.mxu0
        %v11308 = vadd.f32 %v11219, %v11307
        %11309 = vmatmul.bf16.gmra.mxu0 %v10232
        %v11310 = vpop.f32.mrf.mxu0
        %v11311 = vadd.f32 %v11222, %v11310
        %v11312 = vpop.f32.mrf.mxu0
        %v11313 = vadd.f32 %v11224, %v11312
        %11314 = vmatmul.bf16.gmra.mxu0 %v10238
        %v11315 = vpop.f32.mrf.mxu0
        %v11316 = vadd.f32 %v11227, %v11315
        %v11317 = vpop.f32.mrf.mxu0
        %v11318 = vadd.f32 %v11229, %v11317
        %11319 = vmatmul.bf16.gmra.mxu0 %v10244
        %v11320 = vpop.f32.mrf.mxu0
        %v11321 = vadd.f32 %v11232, %v11320
        %v11322 = vpop.f32.mrf.mxu0
        %v11323 = vadd.f32 %v11234, %v11322
        %11324 = vmatmul.bf16.gmra.mxu0 %v10250
        %v11325 = vpop.f32.mrf.mxu0
        %v11326 = vadd.f32 %v11237, %v11325
        %v11327 = vpop.f32.mrf.mxu0
        %v11328 = vadd.f32 %v11239, %v11327
        %11329 = vmatmul.bf16.gmra.mxu0 %v10256
        %v11330 = vpop.f32.mrf.mxu0
        %v11331 = vadd.f32 %v11242, %v11330
        %v11332 = vpop.f32.mrf.mxu0
        %v11333 = vadd.f32 %v11244, %v11332
        %11334 = vmatmul.bf16.gmra.mxu0 %v10262
        %v11335 = vpop.f32.mrf.mxu0
        %v11336 = vadd.f32 %v11247, %v11335
        %v11337 = vpop.f32.mrf.mxu0
        %v11338 = vadd.f32 %v11249, %v11337
        %11339 = vmatmul.bf16.gmra.mxu0 %v10268
        %v11340 = vpop.f32.mrf.mxu0
        %v11341 = vadd.f32 %v11252, %v11340
        %v11342 = vpop.f32.mrf.mxu0
        %v11343 = vadd.f32 %v11254, %v11342
        %11344 = vdwg.mxu0
        %11345 = vmatpush.bf16.msra.mxu0 %v1809
        %11346 = vmatpush.bf16.msra.mxu0 %v1806
        %11347 = vmatpush.bf16.msra.mxu0 %v1803
        %11348 = vmatpush.bf16.msra.mxu0 %v1800
        %11349 = vmatpush.bf16.msra.mxu0 %v1797
        %11350 = vmatpush.bf16.msra.mxu0 %v1794
        %11351 = vmatpush.bf16.msra.mxu0 %v1791
        %11352 = vmatpush.bf16.msra.mxu0 %v1788
        %11353 = vmatmul.bf16.gmra.mxu0 %v10179
        %v11354 = vpop.f32.mrf.mxu0
        %v11355 = vadd.f32 %v11266, %v11354
        %v11356 = vpop.f32.mrf.mxu0
        %v11357 = vadd.f32 %v11268, %v11356
        %11358 = vmatmul.bf16.gmra.mxu0 %v10185
        %v11359 = vpop.f32.mrf.mxu0
        %v11360 = vadd.f32 %v11271, %v11359
        %v11361 = vpop.f32.mrf.mxu0
        %v11362 = vadd.f32 %v11273, %v11361
        %11363 = vmatmul.bf16.gmra.mxu0 %v10191
        %v11364 = vpop.f32.mrf.mxu0
        %v11365 = vadd.f32 %v11276, %v11364
        %v11366 = vpop.f32.mrf.mxu0
        %v11367 = vadd.f32 %v11278, %v11366
        %11368 = vmatmul.bf16.gmra.mxu0 %v10197
        %v11369 = vpop.f32.mrf.mxu0
        %v11370 = vadd.f32 %v11281, %v11369
        %v11371 = vpop.f32.mrf.mxu0
        %v11372 = vadd.f32 %v11283, %v11371
        %11373 = vmatmul.bf16.gmra.mxu0 %v10203
        %v11374 = vpop.f32.mrf.mxu0
        %v11375 = vadd.f32 %v11286, %v11374
        %v11376 = vpop.f32.mrf.mxu0
        %v11377 = vadd.f32 %v11288, %v11376
        %11378 = vmatmul.bf16.gmra.mxu0 %v10209
        %v11379 = vpop.f32.mrf.mxu0
        %v11380 = vadd.f32 %v11291, %v11379
        %v11381 = vpop.f32.mrf.mxu0
        %v11382 = vadd.f32 %v11293, %v11381
        %11383 = vmatmul.bf16.gmra.mxu0 %v10215
        %v11384 = vpop.f32.mrf.mxu0
        %v11385 = vadd.f32 %v11296, %v11384
        %v11386 = vpop.f32.mrf.mxu0
        %v11387 = vadd.f32 %v11298, %v11386
        %11388 = vmatmul.bf16.gmra.mxu0 %v10221
        %v11389 = vpop.f32.mrf.mxu0
        %v11390 = vadd.f32 %v11301, %v11389
        %v11391 = vpop.f32.mrf.mxu0
        %v11392 = vadd.f32 %v11303, %v11391
        %11393 = vmatmul.bf16.gmra.mxu0 %v10227
        %v11394 = vpop.f32.mrf.mxu0
        %v11395 = vadd.f32 %v11306, %v11394
        %v11396 = vpop.f32.mrf.mxu0
        %v11397 = vadd.f32 %v11308, %v11396
        %11398 = vmatmul.bf16.gmra.mxu0 %v10233
        %v11399 = vpop.f32.mrf.mxu0
        %v11400 = vadd.f32 %v11311, %v11399
        %v11401 = vpop.f32.mrf.mxu0
        %v11402 = vadd.f32 %v11313, %v11401
        %11403 = vmatmul.bf16.gmra.mxu0 %v10239
        %v11404 = vpop.f32.mrf.mxu0
        %v11405 = vadd.f32 %v11316, %v11404
        %v11406 = vpop.f32.mrf.mxu0
        %v11407 = vadd.f32 %v11318, %v11406
        %11408 = vmatmul.bf16.gmra.mxu0 %v10245
        %v11409 = vpop.f32.mrf.mxu0
        %v11410 = vadd.f32 %v11321, %v11409
        %v11411 = vpop.f32.mrf.mxu0
        %v11412 = vadd.f32 %v11323, %v11411
        %11413 = vmatmul.bf16.gmra.mxu0 %v10251
        %v11414 = vpop.f32.mrf.mxu0
        %v11415 = vadd.f32 %v11326, %v11414
        %v11416 = vpop.f32.mrf.mxu0
        %v11417 = vadd.f32 %v11328, %v11416
        %11418 = vmatmul.bf16.gmra.mxu0 %v10257
        %v11419 = vpop.f32.mrf.mxu0
        %v11420 = vadd.f32 %v11331, %v11419
        %v11421 = vpop.f32.mrf.mxu0
        %v11422 = vadd.f32 %v11333, %v11421
        %11423 = vmatmul.bf16.gmra.mxu0 %v10263
        %v11424 = vpop.f32.mrf.mxu0
        %v11425 = vadd.f32 %v11336, %v11424
        %v11426 = vpop.f32.mrf.mxu0
        %v11427 = vadd.f32 %v11338, %v11426
        %11428 = vmatmul.bf16.gmra.mxu0 %v10269
        %v11429 = vpop.f32.mrf.mxu0
        %v11430 = vadd.f32 %v11341, %v11429
        %v11431 = vpop.f32.mrf.mxu0
        %v11432 = vadd.f32 %v11343, %v11431
        %11433 = vdwg.mxu0
        %11434 = vmatpush.bf16.msra.mxu0 %v1690
        %11435 = vmatpush.bf16.msra.mxu0 %v1687
        %11436 = vmatpush.bf16.msra.mxu0 %v1684
        %11437 = vmatpush.bf16.msra.mxu0 %v1681
        %11438 = vmatpush.bf16.msra.mxu0 %v1678
        %11439 = vmatpush.bf16.msra.mxu0 %v1675
        %11440 = vmatpush.bf16.msra.mxu0 %v1672
        %11441 = vmatpush.bf16.msra.mxu0 %v1669
        %11442 = vmatmul.bf16.gmra.mxu0 %v10174
        %v11443 = vpop.f32.mrf.mxu0
        %v11444 = vadd.f32 %v703, %v11443
        %v11445 = vpop.f32.mrf.mxu0
        %v11446 = vadd.f32 %v703, %v11445
        %11447 = vmatmul.bf16.gmra.mxu0 %v10180
        %v11448 = vpop.f32.mrf.mxu0
        %v11449 = vadd.f32 %v703, %v11448
        %v11450 = vpop.f32.mrf.mxu0
        %v11451 = vadd.f32 %v703, %v11450
        %11452 = vmatmul.bf16.gmra.mxu0 %v10186
        %v11453 = vpop.f32.mrf.mxu0
        %v11454 = vadd.f32 %v703, %v11453
        %v11455 = vpop.f32.mrf.mxu0
        %v11456 = vadd.f32 %v703, %v11455
        %11457 = vmatmul.bf16.gmra.mxu0 %v10192
        %v11458 = vpop.f32.mrf.mxu0
        %v11459 = vadd.f32 %v703, %v11458
        %v11460 = vpop.f32.mrf.mxu0
        %v11461 = vadd.f32 %v703, %v11460
        %11462 = vmatmul.bf16.gmra.mxu0 %v10198
        %v11463 = vpop.f32.mrf.mxu0
        %v11464 = vadd.f32 %v703, %v11463
        %v11465 = vpop.f32.mrf.mxu0
        %v11466 = vadd.f32 %v703, %v11465
        %11467 = vmatmul.bf16.gmra.mxu0 %v10204
        %v11468 = vpop.f32.mrf.mxu0
        %v11469 = vadd.f32 %v703, %v11468
        %v11470 = vpop.f32.mrf.mxu0
        %v11471 = vadd.f32 %v703, %v11470
        %11472 = vmatmul.bf16.gmra.mxu0 %v10210
        %v11473 = vpop.f32.mrf.mxu0
        %v11474 = vadd.f32 %v703, %v11473
        %v11475 = vpop.f32.mrf.mxu0
        %v11476 = vadd.f32 %v703, %v11475
        %11477 = vmatmul.bf16.gmra.mxu0 %v10216
        %v11478 = vpop.f32.mrf.mxu0
        %v11479 = vadd.f32 %v703, %v11478
        %v11480 = vpop.f32.mrf.mxu0
        %v11481 = vadd.f32 %v703, %v11480
        %11482 = vmatmul.bf16.gmra.mxu0 %v10222
        %v11483 = vpop.f32.mrf.mxu0
        %v11484 = vadd.f32 %v703, %v11483
        %v11485 = vpop.f32.mrf.mxu0
        %v11486 = vadd.f32 %v703, %v11485
        %11487 = vmatmul.bf16.gmra.mxu0 %v10228
        %v11488 = vpop.f32.mrf.mxu0
        %v11489 = vadd.f32 %v703, %v11488
        %v11490 = vpop.f32.mrf.mxu0
        %v11491 = vadd.f32 %v703, %v11490
        %11492 = vmatmul.bf16.gmra.mxu0 %v10234
        %v11493 = vpop.f32.mrf.mxu0
        %v11494 = vadd.f32 %v703, %v11493
        %v11495 = vpop.f32.mrf.mxu0
        %v11496 = vadd.f32 %v703, %v11495
        %11497 = vmatmul.bf16.gmra.mxu0 %v10240
        %v11498 = vpop.f32.mrf.mxu0
        %v11499 = vadd.f32 %v703, %v11498
        %v11500 = vpop.f32.mrf.mxu0
        %v11501 = vadd.f32 %v703, %v11500
        %11502 = vmatmul.bf16.gmra.mxu0 %v10246
        %v11503 = vpop.f32.mrf.mxu0
        %v11504 = vadd.f32 %v703, %v11503
        %v11505 = vpop.f32.mrf.mxu0
        %v11506 = vadd.f32 %v703, %v11505
        %11507 = vmatmul.bf16.gmra.mxu0 %v10252
        %v11508 = vpop.f32.mrf.mxu0
        %v11509 = vadd.f32 %v703, %v11508
        %v11510 = vpop.f32.mrf.mxu0
        %v11511 = vadd.f32 %v703, %v11510
        %11512 = vmatmul.bf16.gmra.mxu0 %v10258
        %v11513 = vpop.f32.mrf.mxu0
        %v11514 = vadd.f32 %v703, %v11513
        %v11515 = vpop.f32.mrf.mxu0
        %v11516 = vadd.f32 %v703, %v11515
        %11517 = vmatmul.bf16.gmra.mxu0 %v10264
        %v11518 = vpop.f32.mrf.mxu0
        %v11519 = vadd.f32 %v703, %v11518
        %v11520 = vpop.f32.mrf.mxu0
        %v11521 = vadd.f32 %v703, %v11520
        %11522 = vdwg.mxu0
        %11523 = vmatpush.bf16.msra.mxu0 %v1714
        %11524 = vmatpush.bf16.msra.mxu0 %v1711
        %11525 = vmatpush.bf16.msra.mxu0 %v1708
        %11526 = vmatpush.bf16.msra.mxu0 %v1705
        %11527 = vmatpush.bf16.msra.mxu0 %v1702
        %11528 = vmatpush.bf16.msra.mxu0 %v1699
        %11529 = vmatpush.bf16.msra.mxu0 %v1696
        %11530 = vmatpush.bf16.msra.mxu0 %v1693
        %11531 = vmatmul.bf16.gmra.mxu0 %v10175
        %v11532 = vpop.f32.mrf.mxu0
        %v11533 = vadd.f32 %v11444, %v11532
        %v11534 = vpop.f32.mrf.mxu0
        %v11535 = vadd.f32 %v11446, %v11534
        %11536 = vmatmul.bf16.gmra.mxu0 %v10181
        %v11537 = vpop.f32.mrf.mxu0
        %v11538 = vadd.f32 %v11449, %v11537
        %v11539 = vpop.f32.mrf.mxu0
        %v11540 = vadd.f32 %v11451, %v11539
        %11541 = vmatmul.bf16.gmra.mxu0 %v10187
        %v11542 = vpop.f32.mrf.mxu0
        %v11543 = vadd.f32 %v11454, %v11542
        %v11544 = vpop.f32.mrf.mxu0
        %v11545 = vadd.f32 %v11456, %v11544
        %11546 = vmatmul.bf16.gmra.mxu0 %v10193
        %v11547 = vpop.f32.mrf.mxu0
        %v11548 = vadd.f32 %v11459, %v11547
        %v11549 = vpop.f32.mrf.mxu0
        %v11550 = vadd.f32 %v11461, %v11549
        %11551 = vmatmul.bf16.gmra.mxu0 %v10199
        %v11552 = vpop.f32.mrf.mxu0
        %v11553 = vadd.f32 %v11464, %v11552
        %v11554 = vpop.f32.mrf.mxu0
        %v11555 = vadd.f32 %v11466, %v11554
        %11556 = vmatmul.bf16.gmra.mxu0 %v10205
        %v11557 = vpop.f32.mrf.mxu0
        %v11558 = vadd.f32 %v11469, %v11557
        %v11559 = vpop.f32.mrf.mxu0
        %v11560 = vadd.f32 %v11471, %v11559
        %11561 = vmatmul.bf16.gmra.mxu0 %v10211
        %v11562 = vpop.f32.mrf.mxu0
        %v11563 = vadd.f32 %v11474, %v11562
        %v11564 = vpop.f32.mrf.mxu0
        %v11565 = vadd.f32 %v11476, %v11564
        %11566 = vmatmul.bf16.gmra.mxu0 %v10217
        %v11567 = vpop.f32.mrf.mxu0
        %v11568 = vadd.f32 %v11479, %v11567
        %v11569 = vpop.f32.mrf.mxu0
        %v11570 = vadd.f32 %v11481, %v11569
        %11571 = vmatmul.bf16.gmra.mxu0 %v10223
        %v11572 = vpop.f32.mrf.mxu0
        %v11573 = vadd.f32 %v11484, %v11572
        %v11574 = vpop.f32.mrf.mxu0
        %v11575 = vadd.f32 %v11486, %v11574
        %11576 = vmatmul.bf16.gmra.mxu0 %v10229
        %v11577 = vpop.f32.mrf.mxu0
        %v11578 = vadd.f32 %v11489, %v11577
        %v11579 = vpop.f32.mrf.mxu0
        %v11580 = vadd.f32 %v11491, %v11579
        %11581 = vmatmul.bf16.gmra.mxu0 %v10235
        %v11582 = vpop.f32.mrf.mxu0
        %v11583 = vadd.f32 %v11494, %v11582
        %v11584 = vpop.f32.mrf.mxu0
        %v11585 = vadd.f32 %v11496, %v11584
        %11586 = vmatmul.bf16.gmra.mxu0 %v10241
        %v11587 = vpop.f32.mrf.mxu0
        %v11588 = vadd.f32 %v11499, %v11587
        %v11589 = vpop.f32.mrf.mxu0
        %v11590 = vadd.f32 %v11501, %v11589
        %11591 = vmatmul.bf16.gmra.mxu0 %v10247
        %v11592 = vpop.f32.mrf.mxu0
        %v11593 = vadd.f32 %v11504, %v11592
        %v11594 = vpop.f32.mrf.mxu0
        %v11595 = vadd.f32 %v11506, %v11594
        %11596 = vmatmul.bf16.gmra.mxu0 %v10253
        %v11597 = vpop.f32.mrf.mxu0
        %v11598 = vadd.f32 %v11509, %v11597
        %v11599 = vpop.f32.mrf.mxu0
        %v11600 = vadd.f32 %v11511, %v11599
        %11601 = vmatmul.bf16.gmra.mxu0 %v10259
        %v11602 = vpop.f32.mrf.mxu0
        %v11603 = vadd.f32 %v11514, %v11602
        %v11604 = vpop.f32.mrf.mxu0
        %v11605 = vadd.f32 %v11516, %v11604
        %11606 = vmatmul.bf16.gmra.mxu0 %v10265
        %v11607 = vpop.f32.mrf.mxu0
        %v11608 = vadd.f32 %v11519, %v11607
        %v11609 = vpop.f32.mrf.mxu0
        %v11610 = vadd.f32 %v11521, %v11609
        %11611 = vdwg.mxu0
        %11612 = vmatpush.bf16.msra.mxu0 %v1738
        %11613 = vmatpush.bf16.msra.mxu0 %v1735
        %11614 = vmatpush.bf16.msra.mxu0 %v1732
        %11615 = vmatpush.bf16.msra.mxu0 %v1729
        %11616 = vmatpush.bf16.msra.mxu0 %v1726
        %11617 = vmatpush.bf16.msra.mxu0 %v1723
        %11618 = vmatpush.bf16.msra.mxu0 %v1720
        %11619 = vmatpush.bf16.msra.mxu0 %v1717
        %11620 = vmatmul.bf16.gmra.mxu0 %v10176
        %v11621 = vpop.f32.mrf.mxu0
        %v11622 = vadd.f32 %v11533, %v11621
        %v11623 = vpop.f32.mrf.mxu0
        %v11624 = vadd.f32 %v11535, %v11623
        %11625 = vmatmul.bf16.gmra.mxu0 %v10182
        %v11626 = vpop.f32.mrf.mxu0
        %v11627 = vadd.f32 %v11538, %v11626
        %v11628 = vpop.f32.mrf.mxu0
        %v11629 = vadd.f32 %v11540, %v11628
        %11630 = vmatmul.bf16.gmra.mxu0 %v10188
        %v11631 = vpop.f32.mrf.mxu0
        %v11632 = vadd.f32 %v11543, %v11631
        %v11633 = vpop.f32.mrf.mxu0
        %v11634 = vadd.f32 %v11545, %v11633
        %11635 = vmatmul.bf16.gmra.mxu0 %v10194
        %v11636 = vpop.f32.mrf.mxu0
        %v11637 = vadd.f32 %v11548, %v11636
        %v11638 = vpop.f32.mrf.mxu0
        %v11639 = vadd.f32 %v11550, %v11638
        %11640 = vmatmul.bf16.gmra.mxu0 %v10200
        %v11641 = vpop.f32.mrf.mxu0
        %v11642 = vadd.f32 %v11553, %v11641
        %v11643 = vpop.f32.mrf.mxu0
        %v11644 = vadd.f32 %v11555, %v11643
        %11645 = vmatmul.bf16.gmra.mxu0 %v10206
        %v11646 = vpop.f32.mrf.mxu0
        %v11647 = vadd.f32 %v11558, %v11646
        %v11648 = vpop.f32.mrf.mxu0
        %v11649 = vadd.f32 %v11560, %v11648
        %11650 = vmatmul.bf16.gmra.mxu0 %v10212
        %v11651 = vpop.f32.mrf.mxu0
        %v11652 = vadd.f32 %v11563, %v11651
        %v11653 = vpop.f32.mrf.mxu0
        %v11654 = vadd.f32 %v11565, %v11653
        %11655 = vmatmul.bf16.gmra.mxu0 %v10218
        %v11656 = vpop.f32.mrf.mxu0
        %v11657 = vadd.f32 %v11568, %v11656
        %v11658 = vpop.f32.mrf.mxu0
        %v11659 = vadd.f32 %v11570, %v11658
        %11660 = vmatmul.bf16.gmra.mxu0 %v10224
        %v11661 = vpop.f32.mrf.mxu0
        %v11662 = vadd.f32 %v11573, %v11661
        %v11663 = vpop.f32.mrf.mxu0
        %v11664 = vadd.f32 %v11575, %v11663
        %11665 = vmatmul.bf16.gmra.mxu0 %v10230
        %v11666 = vpop.f32.mrf.mxu0
        %v11667 = vadd.f32 %v11578, %v11666
        %v11668 = vpop.f32.mrf.mxu0
        %v11669 = vadd.f32 %v11580, %v11668
        %11670 = vmatmul.bf16.gmra.mxu0 %v10236
        %v11671 = vpop.f32.mrf.mxu0
        %v11672 = vadd.f32 %v11583, %v11671
        %v11673 = vpop.f32.mrf.mxu0
        %v11674 = vadd.f32 %v11585, %v11673
        %11675 = vmatmul.bf16.gmra.mxu0 %v10242
        %v11676 = vpop.f32.mrf.mxu0
        %v11677 = vadd.f32 %v11588, %v11676
        %v11678 = vpop.f32.mrf.mxu0
        %v11679 = vadd.f32 %v11590, %v11678
        %11680 = vmatmul.bf16.gmra.mxu0 %v10248
        %v11681 = vpop.f32.mrf.mxu0
        %v11682 = vadd.f32 %v11593, %v11681
        %v11683 = vpop.f32.mrf.mxu0
        %v11684 = vadd.f32 %v11595, %v11683
        %11685 = vmatmul.bf16.gmra.mxu0 %v10254
        %v11686 = vpop.f32.mrf.mxu0
        %v11687 = vadd.f32 %v11598, %v11686
        %v11688 = vpop.f32.mrf.mxu0
        %v11689 = vadd.f32 %v11600, %v11688
        %11690 = vmatmul.bf16.gmra.mxu0 %v10260
        %v11691 = vpop.f32.mrf.mxu0
        %v11692 = vadd.f32 %v11603, %v11691
        %v11693 = vpop.f32.mrf.mxu0
        %v11694 = vadd.f32 %v11605, %v11693
        %11695 = vmatmul.bf16.gmra.mxu0 %v10266
        %v11696 = vpop.f32.mrf.mxu0
        %v11697 = vadd.f32 %v11608, %v11696
        %v11698 = vpop.f32.mrf.mxu0
        %v11699 = vadd.f32 %v11610, %v11698
        %11700 = vdwg.mxu0
        %11701 = vmatpush.bf16.msra.mxu0 %v1762
        %11702 = vmatpush.bf16.msra.mxu0 %v1759
        %11703 = vmatpush.bf16.msra.mxu0 %v1756
        %11704 = vmatpush.bf16.msra.mxu0 %v1753
        %11705 = vmatpush.bf16.msra.mxu0 %v1750
        %11706 = vmatpush.bf16.msra.mxu0 %v1747
        %11707 = vmatpush.bf16.msra.mxu0 %v1744
        %11708 = vmatpush.bf16.msra.mxu0 %v1741
        %11709 = vmatmul.bf16.gmra.mxu0 %v10177
        %v11710 = vpop.f32.mrf.mxu0
        %v11711 = vadd.f32 %v11622, %v11710
        %v11712 = vpop.f32.mrf.mxu0
        %v11713 = vadd.f32 %v11624, %v11712
        %11714 = vmatmul.bf16.gmra.mxu0 %v10183
        %v11715 = vpop.f32.mrf.mxu0
        %v11716 = vadd.f32 %v11627, %v11715
        %v11717 = vpop.f32.mrf.mxu0
        %v11718 = vadd.f32 %v11629, %v11717
        %11719 = vmatmul.bf16.gmra.mxu0 %v10189
        %v11720 = vpop.f32.mrf.mxu0
        %v11721 = vadd.f32 %v11632, %v11720
        %v11722 = vpop.f32.mrf.mxu0
        %v11723 = vadd.f32 %v11634, %v11722
        %11724 = vmatmul.bf16.gmra.mxu0 %v10195
        %v11725 = vpop.f32.mrf.mxu0
        %v11726 = vadd.f32 %v11637, %v11725
        %v11727 = vpop.f32.mrf.mxu0
        %v11728 = vadd.f32 %v11639, %v11727
        %11729 = vmatmul.bf16.gmra.mxu0 %v10201
        %v11730 = vpop.f32.mrf.mxu0
        %v11731 = vadd.f32 %v11642, %v11730
        %v11732 = vpop.f32.mrf.mxu0
        %v11733 = vadd.f32 %v11644, %v11732
        %11734 = vmatmul.bf16.gmra.mxu0 %v10207
        %v11735 = vpop.f32.mrf.mxu0
        %v11736 = vadd.f32 %v11647, %v11735
        %v11737 = vpop.f32.mrf.mxu0
        %v11738 = vadd.f32 %v11649, %v11737
        %11739 = vmatmul.bf16.gmra.mxu0 %v10213
        %v11740 = vpop.f32.mrf.mxu0
        %v11741 = vadd.f32 %v11652, %v11740
        %v11742 = vpop.f32.mrf.mxu0
        %v11743 = vadd.f32 %v11654, %v11742
        %11744 = vmatmul.bf16.gmra.mxu0 %v10219
        %v11745 = vpop.f32.mrf.mxu0
        %v11746 = vadd.f32 %v11657, %v11745
        %v11747 = vpop.f32.mrf.mxu0
        %v11748 = vadd.f32 %v11659, %v11747
        %11749 = vmatmul.bf16.gmra.mxu0 %v10225
        %v11750 = vpop.f32.mrf.mxu0
        %v11751 = vadd.f32 %v11662, %v11750
        %v11752 = vpop.f32.mrf.mxu0
        %v11753 = vadd.f32 %v11664, %v11752
        %11754 = vmatmul.bf16.gmra.mxu0 %v10231
        %v11755 = vpop.f32.mrf.mxu0
        %v11756 = vadd.f32 %v11667, %v11755
        %v11757 = vpop.f32.mrf.mxu0
        %v11758 = vadd.f32 %v11669, %v11757
        %11759 = vmatmul.bf16.gmra.mxu0 %v10237
        %v11760 = vpop.f32.mrf.mxu0
        %v11761 = vadd.f32 %v11672, %v11760
        %v11762 = vpop.f32.mrf.mxu0
        %v11763 = vadd.f32 %v11674, %v11762
        %11764 = vmatmul.bf16.gmra.mxu0 %v10243
        %v11765 = vpop.f32.mrf.mxu0
        %v11766 = vadd.f32 %v11677, %v11765
        %v11767 = vpop.f32.mrf.mxu0
        %v11768 = vadd.f32 %v11679, %v11767
        %11769 = vmatmul.bf16.gmra.mxu0 %v10249
        %v11770 = vpop.f32.mrf.mxu0
        %v11771 = vadd.f32 %v11682, %v11770
        %v11772 = vpop.f32.mrf.mxu0
        %v11773 = vadd.f32 %v11684, %v11772
        %11774 = vmatmul.bf16.gmra.mxu0 %v10255
        %v11775 = vpop.f32.mrf.mxu0
        %v11776 = vadd.f32 %v11687, %v11775
        %v11777 = vpop.f32.mrf.mxu0
        %v11778 = vadd.f32 %v11689, %v11777
        %11779 = vmatmul.bf16.gmra.mxu0 %v10261
        %v11780 = vpop.f32.mrf.mxu0
        %v11781 = vadd.f32 %v11692, %v11780
        %v11782 = vpop.f32.mrf.mxu0
        %v11783 = vadd.f32 %v11694, %v11782
        %11784 = vmatmul.bf16.gmra.mxu0 %v10267
        %v11785 = vpop.f32.mrf.mxu0
        %v11786 = vadd.f32 %v11697, %v11785
        %v11787 = vpop.f32.mrf.mxu0
        %v11788 = vadd.f32 %v11699, %v11787
        %11789 = vdwg.mxu0
        %11790 = vmatpush.bf16.msra.mxu0 %v1786
        %11791 = vmatpush.bf16.msra.mxu0 %v1783
        %11792 = vmatpush.bf16.msra.mxu0 %v1780
        %11793 = vmatpush.bf16.msra.mxu0 %v1777
        %11794 = vmatpush.bf16.msra.mxu0 %v1774
        %11795 = vmatpush.bf16.msra.mxu0 %v1771
        %11796 = vmatpush.bf16.msra.mxu0 %v1768
        %11797 = vmatpush.bf16.msra.mxu0 %v1765
        %11798 = vmatmul.bf16.gmra.mxu0 %v10178
        %v11799 = vpop.f32.mrf.mxu0
        %v11800 = vadd.f32 %v11711, %v11799
        %v11801 = vpop.f32.mrf.mxu0
        %v11802 = vadd.f32 %v11713, %v11801
        %11803 = vmatmul.bf16.gmra.mxu0 %v10184
        %v11804 = vpop.f32.mrf.mxu0
        %v11805 = vadd.f32 %v11716, %v11804
        %v11806 = vpop.f32.mrf.mxu0
        %v11807 = vadd.f32 %v11718, %v11806
        %11808 = vmatmul.bf16.gmra.mxu0 %v10190
        %v11809 = vpop.f32.mrf.mxu0
        %v11810 = vadd.f32 %v11721, %v11809
        %v11811 = vpop.f32.mrf.mxu0
        %v11812 = vadd.f32 %v11723, %v11811
        %11813 = vmatmul.bf16.gmra.mxu0 %v10196
        %v11814 = vpop.f32.mrf.mxu0
        %v11815 = vadd.f32 %v11726, %v11814
        %v11816 = vpop.f32.mrf.mxu0
        %v11817 = vadd.f32 %v11728, %v11816
        %11818 = vmatmul.bf16.gmra.mxu0 %v10202
        %v11819 = vpop.f32.mrf.mxu0
        %v11820 = vadd.f32 %v11731, %v11819
        %v11821 = vpop.f32.mrf.mxu0
        %v11822 = vadd.f32 %v11733, %v11821
        %11823 = vmatmul.bf16.gmra.mxu0 %v10208
        %v11824 = vpop.f32.mrf.mxu0
        %v11825 = vadd.f32 %v11736, %v11824
        %v11826 = vpop.f32.mrf.mxu0
        %v11827 = vadd.f32 %v11738, %v11826
        %11828 = vmatmul.bf16.gmra.mxu0 %v10214
        %v11829 = vpop.f32.mrf.mxu0
        %v11830 = vadd.f32 %v11741, %v11829
        %v11831 = vpop.f32.mrf.mxu0
        %v11832 = vadd.f32 %v11743, %v11831
        %11833 = vmatmul.bf16.gmra.mxu0 %v10220
        %v11834 = vpop.f32.mrf.mxu0
        %v11835 = vadd.f32 %v11746, %v11834
        %v11836 = vpop.f32.mrf.mxu0
        %v11837 = vadd.f32 %v11748, %v11836
        %11838 = vmatmul.bf16.gmra.mxu0 %v10226
        %v11839 = vpop.f32.mrf.mxu0
        %v11840 = vadd.f32 %v11751, %v11839
        %v11841 = vpop.f32.mrf.mxu0
        %v11842 = vadd.f32 %v11753, %v11841
        %11843 = vmatmul.bf16.gmra.mxu0 %v10232
        %v11844 = vpop.f32.mrf.mxu0
        %v11845 = vadd.f32 %v11756, %v11844
        %v11846 = vpop.f32.mrf.mxu0
        %v11847 = vadd.f32 %v11758, %v11846
        %11848 = vmatmul.bf16.gmra.mxu0 %v10238
        %v11849 = vpop.f32.mrf.mxu0
        %v11850 = vadd.f32 %v11761, %v11849
        %v11851 = vpop.f32.mrf.mxu0
        %v11852 = vadd.f32 %v11763, %v11851
        %11853 = vmatmul.bf16.gmra.mxu0 %v10244
        %v11854 = vpop.f32.mrf.mxu0
        %v11855 = vadd.f32 %v11766, %v11854
        %v11856 = vpop.f32.mrf.mxu0
        %v11857 = vadd.f32 %v11768, %v11856
        %11858 = vmatmul.bf16.gmra.mxu0 %v10250
        %v11859 = vpop.f32.mrf.mxu0
        %v11860 = vadd.f32 %v11771, %v11859
        %v11861 = vpop.f32.mrf.mxu0
        %v11862 = vadd.f32 %v11773, %v11861
        %11863 = vmatmul.bf16.gmra.mxu0 %v10256
        %v11864 = vpop.f32.mrf.mxu0
        %v11865 = vadd.f32 %v11776, %v11864
        %v11866 = vpop.f32.mrf.mxu0
        %v11867 = vadd.f32 %v11778, %v11866
        %11868 = vmatmul.bf16.gmra.mxu0 %v10262
        %v11869 = vpop.f32.mrf.mxu0
        %v11870 = vadd.f32 %v11781, %v11869
        %v11871 = vpop.f32.mrf.mxu0
        %v11872 = vadd.f32 %v11783, %v11871
        %11873 = vmatmul.bf16.gmra.mxu0 %v10268
        %v11874 = vpop.f32.mrf.mxu0
        %v11875 = vadd.f32 %v11786, %v11874
        %v11876 = vpop.f32.mrf.mxu0
        %v11877 = vadd.f32 %v11788, %v11876
        %11878 = vdwg.mxu0
        %11879 = vmatpush.bf16.msra.mxu0 %v1810
        %11880 = vmatpush.bf16.msra.mxu0 %v1807
        %11881 = vmatpush.bf16.msra.mxu0 %v1804
        %11882 = vmatpush.bf16.msra.mxu0 %v1801
        %11883 = vmatpush.bf16.msra.mxu0 %v1798
        %11884 = vmatpush.bf16.msra.mxu0 %v1795
        %11885 = vmatpush.bf16.msra.mxu0 %v1792
        %11886 = vmatpush.bf16.msra.mxu0 %v1789
        %11887 = vmatmul.bf16.gmra.mxu0 %v10179
        %v11888 = vpop.f32.mrf.mxu0
        %v11889 = vadd.f32 %v11800, %v11888
        %v11890 = vpop.f32.mrf.mxu0
        %v11891 = vadd.f32 %v11802, %v11890
        %11892 = vmatmul.bf16.gmra.mxu0 %v10185
        %v11893 = vpop.f32.mrf.mxu0
        %v11894 = vadd.f32 %v11805, %v11893
        %v11895 = vpop.f32.mrf.mxu0
        %v11896 = vadd.f32 %v11807, %v11895
        %11897 = vmatmul.bf16.gmra.mxu0 %v10191
        %v11898 = vpop.f32.mrf.mxu0
        %v11899 = vadd.f32 %v11810, %v11898
        %v11900 = vpop.f32.mrf.mxu0
        %v11901 = vadd.f32 %v11812, %v11900
        %11902 = vmatmul.bf16.gmra.mxu0 %v10197
        %v11903 = vpop.f32.mrf.mxu0
        %v11904 = vadd.f32 %v11815, %v11903
        %v11905 = vpop.f32.mrf.mxu0
        %v11906 = vadd.f32 %v11817, %v11905
        %11907 = vmatmul.bf16.gmra.mxu0 %v10203
        %v11908 = vpop.f32.mrf.mxu0
        %v11909 = vadd.f32 %v11820, %v11908
        %v11910 = vpop.f32.mrf.mxu0
        %v11911 = vadd.f32 %v11822, %v11910
        %11912 = vmatmul.bf16.gmra.mxu0 %v10209
        %v11913 = vpop.f32.mrf.mxu0
        %v11914 = vadd.f32 %v11825, %v11913
        %v11915 = vpop.f32.mrf.mxu0
        %v11916 = vadd.f32 %v11827, %v11915
        %11917 = vmatmul.bf16.gmra.mxu0 %v10215
        %v11918 = vpop.f32.mrf.mxu0
        %v11919 = vadd.f32 %v11830, %v11918
        %v11920 = vpop.f32.mrf.mxu0
        %v11921 = vadd.f32 %v11832, %v11920
        %11922 = vmatmul.bf16.gmra.mxu0 %v10221
        %v11923 = vpop.f32.mrf.mxu0
        %v11924 = vadd.f32 %v11835, %v11923
        %v11925 = vpop.f32.mrf.mxu0
        %v11926 = vadd.f32 %v11837, %v11925
        %11927 = vmatmul.bf16.gmra.mxu0 %v10227
        %v11928 = vpop.f32.mrf.mxu0
        %v11929 = vadd.f32 %v11840, %v11928
        %v11930 = vpop.f32.mrf.mxu0
        %v11931 = vadd.f32 %v11842, %v11930
        %11932 = vmatmul.bf16.gmra.mxu0 %v10233
        %v11933 = vpop.f32.mrf.mxu0
        %v11934 = vadd.f32 %v11845, %v11933
        %v11935 = vpop.f32.mrf.mxu0
        %v11936 = vadd.f32 %v11847, %v11935
        %11937 = vmatmul.bf16.gmra.mxu0 %v10239
        %v11938 = vpop.f32.mrf.mxu0
        %v11939 = vadd.f32 %v11850, %v11938
        %v11940 = vpop.f32.mrf.mxu0
        %v11941 = vadd.f32 %v11852, %v11940
        %11942 = vmatmul.bf16.gmra.mxu0 %v10245
        %v11943 = vpop.f32.mrf.mxu0
        %v11944 = vadd.f32 %v11855, %v11943
        %v11945 = vpop.f32.mrf.mxu0
        %v11946 = vadd.f32 %v11857, %v11945
        %11947 = vmatmul.bf16.gmra.mxu0 %v10251
        %v11948 = vpop.f32.mrf.mxu0
        %v11949 = vadd.f32 %v11860, %v11948
        %v11950 = vpop.f32.mrf.mxu0
        %v11951 = vadd.f32 %v11862, %v11950
        %11952 = vmatmul.bf16.gmra.mxu0 %v10257
        %v11953 = vpop.f32.mrf.mxu0
        %v11954 = vadd.f32 %v11865, %v11953
        %v11955 = vpop.f32.mrf.mxu0
        %v11956 = vadd.f32 %v11867, %v11955
        %11957 = vmatmul.bf16.gmra.mxu0 %v10263
        %v11958 = vpop.f32.mrf.mxu0
        %v11959 = vadd.f32 %v11870, %v11958
        %v11960 = vpop.f32.mrf.mxu0
        %v11961 = vadd.f32 %v11872, %v11960
        %11962 = vmatmul.bf16.gmra.mxu0 %v10269
        %v11963 = vpop.f32.mrf.mxu0
        %v11964 = vadd.f32 %v11875, %v11963
        %v11965 = vpop.f32.mrf.mxu0
        %v11966 = vadd.f32 %v11877, %v11965
        %11967 = vdwg.mxu0
        %v11968 = vadd.f32 %v10821, %v507
        %v11969 = vadd.f32 %v11355, %v508
        %v11970 = vadd.f32 %v11889, %v509
        %v11971 = vadd.f32 %v10823, %v510
        %v11972 = vadd.f32 %v11357, %v511
        %v11973 = vadd.f32 %v11891, %v512
        %v11974 = vadd.f32 %v10826, %v513
        %v11975 = vadd.f32 %v11360, %v514
        %v11976 = vadd.f32 %v11894, %v515
        %v11977 = vadd.f32 %v10828, %v516
        %v11978 = vadd.f32 %v11362, %v517
        %v11979 = vadd.f32 %v11896, %v518
        %v11980 = vadd.f32 %v10831, %v519
        %v11981 = vadd.f32 %v11365, %v520
        %v11982 = vadd.f32 %v11899, %v521
        %v11983 = vadd.f32 %v10833, %v522
        %v11984 = vadd.f32 %v11367, %v523
        %v11985 = vadd.f32 %v11901, %v524
        %v11986 = vadd.f32 %v10836, %v525
        %v11987 = vadd.f32 %v11370, %v526
        %v11988 = vadd.f32 %v11904, %v527
        %v11989 = vadd.f32 %v10838, %v528
        %v11990 = vadd.f32 %v11372, %v529
        %v11991 = vadd.f32 %v11906, %v530
        %v11992 = vadd.f32 %v10841, %v531
        %v11993 = vadd.f32 %v11375, %v532
        %v11994 = vadd.f32 %v11909, %v533
        %v11995 = vadd.f32 %v10843, %v534
        %v11996 = vadd.f32 %v11377, %v535
        %v11997 = vadd.f32 %v11911, %v536
        %v11998 = vadd.f32 %v10846, %v537
        %v11999 = vadd.f32 %v11380, %v538
        %v12000 = vadd.f32 %v11914, %v539
        %v12001 = vadd.f32 %v10848, %v540
        %v12002 = vadd.f32 %v11382, %v541
        %v12003 = vadd.f32 %v11916, %v542
        %v12004 = vadd.f32 %v10851, %v543
        %v12005 = vadd.f32 %v11385, %v544
        %v12006 = vadd.f32 %v11919, %v545
        %v12007 = vadd.f32 %v10853, %v546
        %v12008 = vadd.f32 %v11387, %v547
        %v12009 = vadd.f32 %v11921, %v548
        %v12010 = vadd.f32 %v10856, %v549
        %v12011 = vadd.f32 %v11390, %v550
        %v12012 = vadd.f32 %v11924, %v551
        %v12013 = vadd.f32 %v10858, %v552
        %v12014 = vadd.f32 %v11392, %v553
        %v12015 = vadd.f32 %v11926, %v554
        %v12016 = vadd.f32 %v10861, %v555
        %v12017 = vadd.f32 %v11395, %v556
        %v12018 = vadd.f32 %v11929, %v557
        %v12019 = vadd.f32 %v10863, %v558
        %v12020 = vadd.f32 %v11397, %v559
        %v12021 = vadd.f32 %v11931, %v560
        %v12022 = vadd.f32 %v10866, %v561
        %v12023 = vadd.f32 %v11400, %v562
        %v12024 = vadd.f32 %v11934, %v563
        %v12025 = vadd.f32 %v10868, %v564
        %v12026 = vadd.f32 %v11402, %v565
        %v12027 = vadd.f32 %v11936, %v566
        %v12028 = vadd.f32 %v10871, %v567
        %v12029 = vadd.f32 %v11405, %v568
        %v12030 = vadd.f32 %v11939, %v569
        %v12031 = vadd.f32 %v10873, %v570
        %v12032 = vadd.f32 %v11407, %v571
        %v12033 = vadd.f32 %v11941, %v572
        %v12034 = vadd.f32 %v10876, %v573
        %v12035 = vadd.f32 %v11410, %v574
        %v12036 = vadd.f32 %v11944, %v575
        %v12037 = vadd.f32 %v10878, %v576
        %v12038 = vadd.f32 %v11412, %v577
        %v12039 = vadd.f32 %v11946, %v578
        %v12040 = vadd.f32 %v10881, %v579
        %v12041 = vadd.f32 %v11415, %v580
        %v12042 = vadd.f32 %v11949, %v581
        %v12043 = vadd.f32 %v10883, %v582
        %v12044 = vadd.f32 %v11417, %v583
        %v12045 = vadd.f32 %v11951, %v584
        %v12046 = vadd.f32 %v10886, %v585
        %v12047 = vadd.f32 %v11420, %v586
        %v12048 = vadd.f32 %v11954, %v587
        %v12049 = vadd.f32 %v10888, %v588
        %v12050 = vadd.f32 %v11422, %v589
        %v12051 = vadd.f32 %v11956, %v590
        %v12052 = vadd.f32 %v10891, %v591
        %v12053 = vadd.f32 %v11425, %v592
        %v12054 = vadd.f32 %v11959, %v593
        %v12055 = vadd.f32 %v10893, %v594
        %v12056 = vadd.f32 %v11427, %v595
        %v12057 = vadd.f32 %v11961, %v596
        %v12058 = vadd.f32 %v10896, %v597
        %v12059 = vadd.f32 %v11430, %v598
        %v12060 = vadd.f32 %v11964, %v599
        %v12061 = vadd.f32 %v10898, %v600
        %v12062 = vadd.f32 %v11432, %v601
        %v12063 = vadd.f32 %v11966, %v602
        %v12160 = vrot.slane %v11968, 7
        %v12161 = vrot.slane %v11969, 7
        %v12162 = vrot.slane %v11970, 7
        %v12163 = vrot.slane %v11971, 7
        %v12164 = vsel %vm3756, %v12160, %v12163
        %v12165 = vrot.slane %v11972, 7
        %v12166 = vsel %vm3756, %v12161, %v12165
        %v12167 = vrot.slane %v11973, 7
        %v12168 = vsel %vm3756, %v12162, %v12167
        %v12169 = vrot.slane %v11974, 7
        %v12170 = vsel %vm3756, %v12163, %v12169
        %v12171 = vrot.slane %v11975, 7
        %v12172 = vsel %vm3756, %v12165, %v12171
        %v12173 = vrot.slane %v11976, 7
        %v12174 = vsel %vm3756, %v12167, %v12173
        %v12175 = vrot.slane %v11977, 7
        %v12176 = vsel %vm3756, %v12169, %v12175
        %v12177 = vrot.slane %v11978, 7
        %v12178 = vsel %vm3756, %v12171, %v12177
        %v12179 = vrot.slane %v11979, 7
        %v12180 = vsel %vm3756, %v12173, %v12179
        %v12181 = vrot.slane %v11980, 7
        %v12182 = vsel %vm3756, %v12175, %v12181
        %v12183 = vrot.slane %v11981, 7
        %v12184 = vsel %vm3756, %v12177, %v12183
        %v12185 = vrot.slane %v11982, 7
        %v12186 = vsel %vm3756, %v12179, %v12185
        %v12187 = vrot.slane %v11983, 7
        %v12188 = vsel %vm3756, %v12181, %v12187
        %v12189 = vrot.slane %v11984, 7
        %v12190 = vsel %vm3756, %v12183, %v12189
        %v12191 = vrot.slane %v11985, 7
        %v12192 = vsel %vm3756, %v12185, %v12191
        %v12193 = vrot.slane %v11986, 7
        %v12194 = vsel %vm3756, %v12187, %v12193
        %v12195 = vrot.slane %v11987, 7
        %v12196 = vsel %vm3756, %v12189, %v12195
        %v12197 = vrot.slane %v11988, 7
        %v12198 = vsel %vm3756, %v12191, %v12197
        %v12199 = vrot.slane %v11989, 7
        %v12200 = vsel %vm3756, %v12193, %v12199
        %v12201 = vrot.slane %v11990, 7
        %v12202 = vsel %vm3756, %v12195, %v12201
        %v12203 = vrot.slane %v11991, 7
        %v12204 = vsel %vm3756, %v12197, %v12203
        %v12205 = vrot.slane %v11992, 7
        %v12206 = vsel %vm3756, %v12199, %v12205
        %v12207 = vrot.slane %v11993, 7
        %v12208 = vsel %vm3756, %v12201, %v12207
        %v12209 = vrot.slane %v11994, 7
        %v12210 = vsel %vm3756, %v12203, %v12209
        %v12211 = vrot.slane %v11995, 7
        %v12212 = vsel %vm3756, %v12205, %v12211
        %v12213 = vrot.slane %v11996, 7
        %v12214 = vsel %vm3756, %v12207, %v12213
        %v12215 = vrot.slane %v11997, 7
        %v12216 = vsel %vm3756, %v12209, %v12215
        %v12217 = vrot.slane %v11998, 7
        %v12218 = vsel %vm3756, %v12211, %v12217
        %v12219 = vrot.slane %v11999, 7
        %v12220 = vsel %vm3756, %v12213, %v12219
        %v12221 = vrot.slane %v12000, 7
        %v12222 = vsel %vm3756, %v12215, %v12221
        %v12223 = vrot.slane %v12001, 7
        %v12224 = vsel %vm3756, %v12217, %v12223
        %v12225 = vrot.slane %v12002, 7
        %v12226 = vsel %vm3756, %v12219, %v12225
        %v12227 = vrot.slane %v12003, 7
        %v12228 = vsel %vm3756, %v12221, %v12227
        %v12229 = vrot.slane %v12004, 7
        %v12230 = vsel %vm3756, %v12223, %v12229
        %v12231 = vrot.slane %v12005, 7
        %v12232 = vsel %vm3756, %v12225, %v12231
        %v12233 = vrot.slane %v12006, 7
        %v12234 = vsel %vm3756, %v12227, %v12233
        %v12235 = vrot.slane %v12007, 7
        %v12236 = vsel %vm3756, %v12229, %v12235
        %v12237 = vrot.slane %v12008, 7
        %v12238 = vsel %vm3756, %v12231, %v12237
        %v12239 = vrot.slane %v12009, 7
        %v12240 = vsel %vm3756, %v12233, %v12239
        %v12241 = vrot.slane %v12010, 7
        %v12242 = vsel %vm3756, %v12235, %v12241
        %v12243 = vrot.slane %v12011, 7
        %v12244 = vsel %vm3756, %v12237, %v12243
        %v12245 = vrot.slane %v12012, 7
        %v12246 = vsel %vm3756, %v12239, %v12245
        %v12247 = vrot.slane %v12013, 7
        %v12248 = vsel %vm3756, %v12241, %v12247
        %v12249 = vrot.slane %v12014, 7
        %v12250 = vsel %vm3756, %v12243, %v12249
        %v12251 = vrot.slane %v12015, 7
        %v12252 = vsel %vm3756, %v12245, %v12251
        %v12253 = vrot.slane %v12016, 7
        %v12254 = vsel %vm3756, %v12247, %v12253
        %v12255 = vrot.slane %v12017, 7
        %v12256 = vsel %vm3756, %v12249, %v12255
        %v12257 = vrot.slane %v12018, 7
        %v12258 = vsel %vm3756, %v12251, %v12257
        %v12259 = vrot.slane %v12019, 7
        %v12260 = vsel %vm3756, %v12253, %v12259
        %v12261 = vrot.slane %v12020, 7
        %v12262 = vsel %vm3756, %v12255, %v12261
        %v12263 = vrot.slane %v12021, 7
        %v12264 = vsel %vm3756, %v12257, %v12263
        %v12265 = vrot.slane %v12022, 7
        %v12266 = vsel %vm3756, %v12259, %v12265
        %v12267 = vrot.slane %v12023, 7
        %v12268 = vsel %vm3756, %v12261, %v12267
        %v12269 = vrot.slane %v12024, 7
        %v12270 = vsel %vm3756, %v12263, %v12269
        %v12271 = vrot.slane %v12025, 7
        %v12272 = vsel %vm3756, %v12265, %v12271
        %v12273 = vrot.slane %v12026, 7
        %v12274 = vsel %vm3756, %v12267, %v12273
        %v12275 = vrot.slane %v12027, 7
        %v12276 = vsel %vm3756, %v12269, %v12275
        %v12277 = vrot.slane %v12028, 7
        %v12278 = vsel %vm3756, %v12271, %v12277
        %v12279 = vrot.slane %v12029, 7
        %v12280 = vsel %vm3756, %v12273, %v12279
        %v12281 = vrot.slane %v12030, 7
        %v12282 = vsel %vm3756, %v12275, %v12281
        %v12283 = vrot.slane %v12031, 7
        %v12284 = vsel %vm3756, %v12277, %v12283
        %v12285 = vrot.slane %v12032, 7
        %v12286 = vsel %vm3756, %v12279, %v12285
        %v12287 = vrot.slane %v12033, 7
        %v12288 = vsel %vm3756, %v12281, %v12287
        %v12289 = vrot.slane %v12034, 7
        %v12290 = vsel %vm3756, %v12283, %v12289
        %v12291 = vrot.slane %v12035, 7
        %v12292 = vsel %vm3756, %v12285, %v12291
        %v12293 = vrot.slane %v12036, 7
        %v12294 = vsel %vm3756, %v12287, %v12293
        %v12295 = vrot.slane %v12037, 7
        %v12296 = vsel %vm3756, %v12289, %v12295
        %v12297 = vrot.slane %v12038, 7
        %v12298 = vsel %vm3756, %v12291, %v12297
        %v12299 = vrot.slane %v12039, 7
        %v12300 = vsel %vm3756, %v12293, %v12299
        %v12301 = vrot.slane %v12040, 7
        %v12302 = vsel %vm3756, %v12295, %v12301
        %v12303 = vrot.slane %v12041, 7
        %v12304 = vsel %vm3756, %v12297, %v12303
        %v12305 = vrot.slane %v12042, 7
        %v12306 = vsel %vm3756, %v12299, %v12305
        %v12307 = vrot.slane %v12043, 7
        %v12308 = vsel %vm3756, %v12301, %v12307
        %v12309 = vrot.slane %v12044, 7
        %v12310 = vsel %vm3756, %v12303, %v12309
        %v12311 = vrot.slane %v12045, 7
        %v12312 = vsel %vm3756, %v12305, %v12311
        %v12313 = vrot.slane %v12046, 7
        %v12314 = vsel %vm3756, %v12307, %v12313
        %v12315 = vrot.slane %v12047, 7
        %v12316 = vsel %vm3756, %v12309, %v12315
        %v12317 = vrot.slane %v12048, 7
        %v12318 = vsel %vm3756, %v12311, %v12317
        %v12319 = vrot.slane %v12049, 7
        %v12320 = vsel %vm3756, %v12313, %v12319
        %v12321 = vrot.slane %v12050, 7
        %v12322 = vsel %vm3756, %v12315, %v12321
        %v12323 = vrot.slane %v12051, 7
        %v12324 = vsel %vm3756, %v12317, %v12323
        %v12325 = vrot.slane %v12052, 7
        %v12326 = vsel %vm3756, %v12319, %v12325
        %v12327 = vrot.slane %v12053, 7
        %v12328 = vsel %vm3756, %v12321, %v12327
        %v12329 = vrot.slane %v12054, 7
        %v12330 = vsel %vm3756, %v12323, %v12329
        %v12331 = vrot.slane %v12055, 7
        %v12332 = vsel %vm3756, %v12325, %v12331
        %v12333 = vrot.slane %v12056, 7
        %v12334 = vsel %vm3756, %v12327, %v12333
        %v12335 = vrot.slane %v12057, 7
        %v12336 = vsel %vm3756, %v12329, %v12335
        %v12337 = vrot.slane %v12058, 7
        %v12338 = vsel %vm3756, %v12331, %v12337
        %v12339 = vrot.slane %v12059, 7
        %v12340 = vsel %vm3756, %v12333, %v12339
        %v12341 = vrot.slane %v12060, 7
        %v12342 = vsel %vm3756, %v12335, %v12341
        %v12343 = vrot.slane %v12061, 7
        %v12344 = vsel %vm3756, %v12337, %v12343
        %v12345 = vrot.slane %v12062, 7
        %v12346 = vsel %vm3756, %v12339, %v12345
        %v12347 = vrot.slane %v12063, 7
        %v12348 = vsel %vm3756, %v12341, %v12347
        %v12448 = vsel %vm3756, %v3654, %v12160
        %v12449 = vsel %vm3756, %v3655, %v12161
        %v12450 = vsel %vm3756, %v3656, %v12162
        %v12451 = vpack.c.bf16 %v12449, %v12448
        %v12452 = vpack.c.bf16 %v12450, %v12450
        %v12453 = vpack.c.bf16 %v12166, %v12164
        %v12454 = vpack.c.bf16 %v12168, %v12168
        %v12455 = vpack.c.bf16 %v12172, %v12170
        %v12456 = vpack.c.bf16 %v12174, %v12174
        %v12457 = vpack.c.bf16 %v12178, %v12176
        %v12458 = vpack.c.bf16 %v12180, %v12180
        %v12459 = vpack.c.bf16 %v12184, %v12182
        %v12460 = vpack.c.bf16 %v12186, %v12186
        %v12461 = vpack.c.bf16 %v12190, %v12188
        %v12462 = vpack.c.bf16 %v12192, %v12192
        %v12463 = vpack.c.bf16 %v12196, %v12194
        %v12464 = vpack.c.bf16 %v12198, %v12198
        %v12465 = vpack.c.bf16 %v12202, %v12200
        %v12466 = vpack.c.bf16 %v12204, %v12204
        %v12467 = vpack.c.bf16 %v12208, %v12206
        %v12468 = vpack.c.bf16 %v12210, %v12210
        %v12469 = vpack.c.bf16 %v12214, %v12212
        %v12470 = vpack.c.bf16 %v12216, %v12216
        %v12471 = vpack.c.bf16 %v12220, %v12218
        %v12472 = vpack.c.bf16 %v12222, %v12222
        %v12473 = vpack.c.bf16 %v12226, %v12224
        %v12474 = vpack.c.bf16 %v12228, %v12228
        %v12475 = vpack.c.bf16 %v12232, %v12230
        %v12476 = vpack.c.bf16 %v12234, %v12234
        %v12477 = vpack.c.bf16 %v12238, %v12236
        %v12478 = vpack.c.bf16 %v12240, %v12240
        %v12479 = vpack.c.bf16 %v12244, %v12242
        %v12480 = vpack.c.bf16 %v12246, %v12246
        %v12481 = vpack.c.bf16 %v12250, %v12248
        %v12482 = vpack.c.bf16 %v12252, %v12252
        %v12483 = vpack.c.bf16 %v12256, %v12254
        %v12484 = vpack.c.bf16 %v12258, %v12258
        %v12485 = vpack.c.bf16 %v12262, %v12260
        %v12486 = vpack.c.bf16 %v12264, %v12264
        %v12487 = vpack.c.bf16 %v12268, %v12266
        %v12488 = vpack.c.bf16 %v12270, %v12270
        %v12489 = vpack.c.bf16 %v12274, %v12272
        %v12490 = vpack.c.bf16 %v12276, %v12276
        %v12491 = vpack.c.bf16 %v12280, %v12278
        %v12492 = vpack.c.bf16 %v12282, %v12282
        %v12493 = vpack.c.bf16 %v12286, %v12284
        %v12494 = vpack.c.bf16 %v12288, %v12288
        %v12495 = vpack.c.bf16 %v12292, %v12290
        %v12496 = vpack.c.bf16 %v12294, %v12294
        %v12497 = vpack.c.bf16 %v12298, %v12296
        %v12498 = vpack.c.bf16 %v12300, %v12300
        %v12499 = vpack.c.bf16 %v12304, %v12302
        %v12500 = vpack.c.bf16 %v12306, %v12306
        %v12501 = vpack.c.bf16 %v12310, %v12308
        %v12502 = vpack.c.bf16 %v12312, %v12312
        %v12503 = vpack.c.bf16 %v12316, %v12314
        %v12504 = vpack.c.bf16 %v12318, %v12318
        %v12505 = vpack.c.bf16 %v12322, %v12320
        %v12506 = vpack.c.bf16 %v12324, %v12324
        %v12507 = vpack.c.bf16 %v12328, %v12326
        %v12508 = vpack.c.bf16 %v12330, %v12330
        %v12509 = vpack.c.bf16 %v12334, %v12332
        %v12510 = vpack.c.bf16 %v12336, %v12336
        %v12511 = vpack.c.bf16 %v12340, %v12338
        %v12512 = vpack.c.bf16 %v12342, %v12342
        %v12513 = vpack.c.bf16 %v12346, %v12344
        %v12514 = vpack.c.bf16 %v12348, %v12348
        %v12515 = vpack.c.bf16 %v12345, %v12343
        %v12516 = vpack.c.bf16 %v12347, %v12347
        %s12517 = scalar_lea.vmem %s312, 1188
        %12518 = vst [vmem:[%s12517] sm:$0xff] %v12451
        %12519 = vst [vmem:[%s12517 + $0x8] sm:$0xf] %v12452
        %12520 = vst [vmem:[%s12517 + $0xc] sm:$0xff] %v12453
        %12521 = vst [vmem:[%s12517 + $0x14] sm:$0xf] %v12454
        %12522 = vst [vmem:[%s12517 + $0x18] sm:$0xff] %v12455
        %12523 = vst [vmem:[%s12517 + $0x20] sm:$0xf] %v12456
        %12524 = vst [vmem:[%s12517 + $0x24] sm:$0xff] %v12457
        %12525 = vst [vmem:[%s12517 + $0x2c] sm:$0xf] %v12458
        %12526 = vst [vmem:[%s12517 + $0x30] sm:$0xff] %v12459
        %12527 = vst [vmem:[%s12517 + $0x38] sm:$0xf] %v12460
        %12528 = vst [vmem:[%s12517 + $0x3c] sm:$0xff] %v12461
        %12529 = vst [vmem:[%s12517 + $0x44] sm:$0xf] %v12462
        %12530 = vst [vmem:[%s12517 + $0x48] sm:$0xff] %v12463
        %12531 = vst [vmem:[%s12517 + $0x50] sm:$0xf] %v12464
        %12532 = vst [vmem:[%s12517 + $0x54] sm:$0xff] %v12465
        %12533 = vst [vmem:[%s12517 + $0x5c] sm:$0xf] %v12466
        %12534 = vst [vmem:[%s12517 + $0x60] sm:$0xff] %v12467
        %12535 = vst [vmem:[%s12517 + $0x68] sm:$0xf] %v12468
        %12536 = vst [vmem:[%s12517 + $0x6c] sm:$0xff] %v12469
        %12537 = vst [vmem:[%s12517 + $0x74] sm:$0xf] %v12470
        %12538 = vst [vmem:[%s12517 + $0x78] sm:$0xff] %v12471
        %12539 = vst [vmem:[%s12517 + $0x80] sm:$0xf] %v12472
        %12540 = vst [vmem:[%s12517 + $0x84] sm:$0xff] %v12473
        %12541 = vst [vmem:[%s12517 + $0x8c] sm:$0xf] %v12474
        %12542 = vst [vmem:[%s12517 + $0x90] sm:$0xff] %v12475
        %12543 = vst [vmem:[%s12517 + $0x98] sm:$0xf] %v12476
        %12544 = vst [vmem:[%s12517 + $0x9c] sm:$0xff] %v12477
        %12545 = vst [vmem:[%s12517 + $0xa4] sm:$0xf] %v12478
        %12546 = vst [vmem:[%s12517 + $0xa8] sm:$0xff] %v12479
        %12547 = vst [vmem:[%s12517 + $0xb0] sm:$0xf] %v12480
        %12548 = vst [vmem:[%s12517 + $0xb4] sm:$0xff] %v12481
        %12549 = vst [vmem:[%s12517 + $0xbc] sm:$0xf] %v12482
        %12550 = vst [vmem:[%s12517 + $0xc0] sm:$0xff] %v12483
        %12551 = vst [vmem:[%s12517 + $0xc8] sm:$0xf] %v12484
        %12552 = vst [vmem:[%s12517 + $0xcc] sm:$0xff] %v12485
        %12553 = vst [vmem:[%s12517 + $0xd4] sm:$0xf] %v12486
        %12554 = vst [vmem:[%s12517 + $0xd8] sm:$0xff] %v12487
        %12555 = vst [vmem:[%s12517 + $0xe0] sm:$0xf] %v12488
        %12556 = vst [vmem:[%s12517 + $0xe4] sm:$0xff] %v12489
        %12557 = vst [vmem:[%s12517 + $0xec] sm:$0xf] %v12490
        %12558 = vst [vmem:[%s12517 + $0xf0] sm:$0xff] %v12491
        %12559 = vst [vmem:[%s12517 + $0xf8] sm:$0xf] %v12492
        %12560 = vst [vmem:[%s12517 + $0xfc] sm:$0xff] %v12493
        %12561 = vst [vmem:[%s12517 + $0x104] sm:$0xf] %v12494
        %12562 = vst [vmem:[%s12517 + $0x108] sm:$0xff] %v12495
        %12563 = vst [vmem:[%s12517 + $0x110] sm:$0xf] %v12496
        %12564 = vst [vmem:[%s12517 + $0x114] sm:$0xff] %v12497
        %12565 = vst [vmem:[%s12517 + $0x11c] sm:$0xf] %v12498
        %12566 = vst [vmem:[%s12517 + $0x120] sm:$0xff] %v12499
        %12567 = vst [vmem:[%s12517 + $0x128] sm:$0xf] %v12500
        %12568 = vst [vmem:[%s12517 + $0x12c] sm:$0xff] %v12501
        %12569 = vst [vmem:[%s12517 + $0x134] sm:$0xf] %v12502
        %12570 = vst [vmem:[%s12517 + $0x138] sm:$0xff] %v12503
        %12571 = vst [vmem:[%s12517 + $0x140] sm:$0xf] %v12504
        %12572 = vst [vmem:[%s12517 + $0x144] sm:$0xff] %v12505
        %12573 = vst [vmem:[%s12517 + $0x14c] sm:$0xf] %v12506
        %12574 = vst [vmem:[%s12517 + $0x150] sm:$0xff] %v12507
        %12575 = vst [vmem:[%s12517 + $0x158] sm:$0xf] %v12508
        %12576 = vst [vmem:[%s12517 + $0x15c] sm:$0xff] %v12509
        %12577 = vst [vmem:[%s12517 + $0x164] sm:$0xf] %v12510
        %12578 = vst [vmem:[%s12517 + $0x168] sm:$0xff] %v12511
        %12579 = vst [vmem:[%s12517 + $0x170] sm:$0xf] %v12512
        %12580 = vst [vmem:[%s12517 + $0x174] sm:$0xff] %v12513
        %12581 = vst [vmem:[%s12517 + $0x17c] sm:$0xf] %v12514
        %v12582 = vld [vmem:[%s12517 + $0x180] sm:$0x11]
        %v12583 = vsel %vm4184, %v12515, %v12582
        %12584 = vst [vmem:[%s12517 + $0x180] sm:$0x11] %v12583
        %v12585 = vld [vmem:[%s12517 + $0x188] sm:$0x1]
        %v12586 = vsel %vm4180, %v12516, %v12585
        %12587 = vst [vmem:[%s12517 + $0x188] sm:$0x1] %v12586
        %s12588 = smul.u32 4, %s21
        %p12589 = scmp.lt.s32.totalorder %s12588, 7
        %s12590 = scalar_select %p12589, %s12588, 7
        %s12591 = smul.addr %s12590, 99
        %s12592 = smul.addr %s12591, 4
        %s12593 = scalar_lea.vmem %s5, %s12592
        // Predicated region
        $region61: #{tpu_custom_call.1} parent=39 // pred_check
          %p12594 = pneg %p149
        $region62: #{tpu_custom_call.1} parent=39 // pred_check_branch
          %12596 = sbr.rel (%p12594) target = $region64
        $region63: #{tpu_custom_call.1} parent=39 // pred_region
          %s12597 = smul.u32 4, %s21
        $region64: #{tpu_custom_call.1} parent=39 // pred_fallthru
          _
      $region40: #{tpu_custom_call.1} parent=5 // pred_fallthru
        _
      %p12598 = scmp.le.s32.totalorder 2, %s16
      // Predicated region
      $region65: #{tpu_custom_call.1} parent=5 // pred_check
        %p12599 = pneg %p12598
      $region66: #{tpu_custom_call.1} parent=5 // pred_check_branch
        %12601 = sbr.rel (%p12599) target = $region68
      $region67: #{tpu_custom_call.1} parent=5 // pred_region
        %s12602 = ssub.s32 %s16, 2
        // Predicated region
        $region69: #{tpu_custom_call.1} parent=67 // pred_check
          %p12603 = pneg %p155
        $region70: #{tpu_custom_call.1} parent=67 // pred_check_branch
          %12605 = sbr.rel (%p12603) target = $region72
        $region71: #{tpu_custom_call.1} parent=67 // pred_region
          %s12606 = smul.u32 4, %s22
          %p12607 = scmp.lt.s32.totalorder %s12606, 7
          %s12608 = scalar_select %p12607, %s12606, 7
          %s12609 = smul.addr %s12608, 99
          %s12610 = smul.addr %s12609, 4
          %s12611 = scalar_lea.vmem %s5, %s12610
        $region72: #{tpu_custom_call.1} parent=67 // pred_fallthru
          _
      $region68: #{tpu_custom_call.1} parent=5 // pred_fallthru
        _
    $region6: #{tpu_custom_call.1} parent=1 // loop_footer
      %s20 = sadd.s32 1, %s16
    $region7: #{tpu_custom_call.1} parent=1 // loop_footer_branch
      %15 = sbr.rel target = $region3
    $region8: #{tpu_custom_call.1} parent=1 // loop_exit
      _
    %12612 = vsyncpa [#allocation3], 1
    %s12613 = scalar_lea.sflag [#allocation3], 1
    %12614 = vsyncpa %s12613, 1
    %12615 = vsyncpa [#allocation5], 1
    %12616 = vsyncpa [#allocation8], 1

</llo_original>
